<compile_context>
chip_gen: v5e
topology: v5e:2x2
jax: 0.10.0
libtpu: 0.0.40
codegen_flags: <defaults>
</compile_context>

<pallas_src>
import math

import jax
import jax.numpy as jnp
from jax.experimental import pallas as pl
from jax.experimental.pallas import tpu as pltpu

# ----------------------------------------------------------------------------
# config (small, deterministic, synthetic)
# ----------------------------------------------------------------------------
CFG = dict(num_frustum_point=128, num_object_points=128, input_channel=4, init="normal")
NUM_HEADING_BIN = 4
NUM_SIZE_CLUSTER = 2
ONE_HOT_DIM = 3                       # 259 = 256 + 3 ; 515 = 512 + 3
BATCH = 2
BOX_OUT = 3 + NUM_HEADING_BIN * 2 + NUM_SIZE_CLUSTER * 4   # 19

BN_EPS = 1e-5
BN_SCALE = 1.0 / math.sqrt(1.0 + BN_EPS)   # eval-mode BN with default running stats


# ----------------------------------------------------------------------------
# deterministic parameter construction
# ----------------------------------------------------------------------------
def _dense_params(key, fin, fout):
    kw, kb = jax.random.split(key)
    std = 1.0 / math.sqrt(fin)
    w = jax.random.normal(kw, (fin, fout), jnp.float32) * std
    b = jax.random.normal(kb, (1, fout), jnp.float32) * std
    return w, b


def _dense_bn_params(key, fin, fout):
    # Conv1d/Linear followed by eval-mode BatchNorm -> fold BN affine into (w, b).
    w, b = _dense_params(key, fin, fout)
    return w * BN_SCALE, b * BN_SCALE


def build_params(key):
    keys = iter(jax.random.split(key, 32))
    nk = lambda: next(keys)
    cin, K = CFG["input_channel"], ONE_HOT_DIM

    # ---- PointNet_SEG backbone (standard F-PointNet v1 topology, reduced widths) ----
    seg = dict(
        mlp1=[_dense_bn_params(nk(), fi, fo)
              for fi, fo in [(cin, 64), (64, 64), (64, 64), (64, 128), (128, 256)]])
    # concat layer: [point_feat(64) | global(256) | one_hot(K)] -> 256, split matmul
    w6a, b6 = _dense_bn_params(nk(), 64, 256)
    w6b, _ = _dense_params(nk(), 256, 256)
    w6c, _ = _dense_params(nk(), K, 256)
    seg["fuse"] = (w6a, w6b * BN_SCALE, w6c * BN_SCALE, b6)
    seg["mlp2"] = [_dense_bn_params(nk(), fi, fo)
                   for fi, fo in [(256, 128), (128, 128), (128, 128)]]
    # point_seg_head: Dropout(0.5) [identity at inference] + Conv1d(128, 2, 1)
    seg["head"] = _dense_params(nk(), 128, 2)

    center_bb = [_dense_bn_params(nk(), fi, fo)
                 for fi, fo in [(3, 128), (128, 128), (128, 256)]]
    box_bb = [_dense_bn_params(nk(), fi, fo)
              for fi, fo in [(3, 128), (128, 128), (128, 256), (256, 512)]]

    def head(dims):
        ps, n = [], len(dims) - 1
        for i in range(n):
            fn = _dense_bn_params if i < n - 1 else _dense_params
            ps.append(fn(nk(), dims[i], dims[i + 1]))
        return ps

    return dict(
        seg=seg,
        center_backbone=center_bb,
        box_backbone=box_bb,
        center_head=head([256 + K, 256, 128, 3]),
        box_head=head([512 + K, 512, 256, BOX_OUT]),
        mean_size_arr=jnp.array([[3.9, 1.6, 1.56], [0.8, 0.6, 1.73]], jnp.float32),
    )


# ----------------------------------------------------------------------------
# flatten / pad / bf16-cast params in the exact order the fused kernel consumes
# ----------------------------------------------------------------------------
def prepare_fused_params(p):
    bf = lambda a: a.astype(jnp.bfloat16)
    cin = CFG["input_channel"]
    flat = []

    # --- segmentation backbone ---
    for w, b in p["seg"]["mlp1"]:
        flat += [bf(w), b]
    w6a, w6b, w6c, b6 = p["seg"]["fuse"]
    flat += [bf(w6a), bf(w6b), w6c, b6]          # one-hot part stays f32 (K=3, tiny)
    for w, b in p["seg"]["mlp2"]:
        flat += [bf(w), b]

    # --- seg head, zero-padded to 128 lanes so the HBM logits output is lane-dense ---
    wh, bh = p["seg"]["head"]
    wh_pad = jnp.zeros((wh.shape[0], 128), jnp.float32).at[:, :2].set(wh)
    bh_pad = jnp.zeros((1, 128), jnp.float32).at[:, :2].set(bh)
    flat += [bf(wh_pad), bh_pad]

    # --- folded fg-bg logit difference, replicated across Cin lanes (mask source) ---
    whb = bf(wh)
    wdiff = jnp.tile(whb[:, 1:2] - whb[:, 0:1], (1, cin))     # (128, Cin) bf16
    bdiff = jnp.tile(bh[:, 1:2] - bh[:, 0:1], (1, cin))       # (1, Cin)   f32
    flat += [wdiff, bdiff]

    # --- center T-net backbone (first-layer weight padded 3 -> Cin input rows) ---
    w0, b0 = p["center_backbone"][0]
    w0p = jnp.zeros((cin, w0.shape[1]), jnp.float32).at[:3, :].set(w0)
    flat += [bf(w0p), b0]
    for w, b in p["center_backbone"][1:]:
        flat += [bf(w), b]

    # --- center head: split the one-hot concat; final layer padded 3 -> Cin cols ---
    (wc1, bc1), (wc2, bc2), (wc3, bc3) = p["center_head"]
    flat += [bf(wc1[:256]), wc1[256:], bc1, bf(wc2), bc2]
    wc3p = jnp.zeros((wc3.shape[0], cin), jnp.float32).at[:, :3].set(wc3)
    bc3p = jnp.zeros((1, cin), jnp.float32).at[:, :3].set(bc3)
    flat += [bf(wc3p), bc3p]

    # --- box backbone (first-layer weight padded 3 -> Cin input rows) ---
    w0, b0 = p["box_backbone"][0]
    w0p = jnp.zeros((cin, w0.shape[1]), jnp.float32).at[:3, :].set(w0)
    flat += [bf(w0p), b0]
    for w, b in p["box_backbone"][1:]:
        flat += [bf(w), b]

    # --- box head: split one-hot concat; final layer padded BOX_OUT -> 128 cols ---
    (wb1, bb1), (wb2, bb2), (wb3, bb3) = p["box_head"]
    flat += [bf(wb1[:512]), wb1[512:], bb1, bf(wb2), bb2]
    wb3p = jnp.zeros((wb3.shape[0], 128), jnp.float32).at[:, :BOX_OUT].set(wb3)
    bb3p = jnp.zeros((1, 128), jnp.float32).at[:, :BOX_OUT].set(bb3)
    flat += [bf(wb3p), bb3p]

    # --- f32 placement matrix: stage1_center -> lanes [BOX_OUT, BOX_OUT+3) ---
    place = jnp.zeros((cin, 128), jnp.float32)
    for i in range(3):
        place = place.at[i, BOX_OUT + i].set(1.0)
    flat.append(place)
    return flat


# ----------------------------------------------------------------------------
# the single fused Pallas kernel (one batch element per grid step)
# ----------------------------------------------------------------------------
def fpointnet_fused_kernel(*refs):
    pc_ref, oh_ref = refs[0], refs[1]
    logits_ref, packed_ref = refs[-2], refs[-1]
    params = iter(refs[2:-2])
    nxt = lambda: next(params)

    x = pc_ref[0]                     # (N, Cin) f32 — xyz in lanes 0..2
    oh = oh_ref[0]                    # (1, K)   f32

    def dot(a, w_ref):                # bf16 MXU matmul, f32 accumulation
        return jnp.dot(a.astype(jnp.bfloat16), w_ref[...],
                       preferred_element_type=jnp.float32)

    def odot(a, w_ref):               # tiny f32 matmul (one-hot side of concat layers)
        return jnp.dot(a, w_ref[...], preferred_element_type=jnp.float32)

    def lin(h, w_ref, b_ref):
        return dot(h, w_ref) + b_ref[...]

    def lin_relu(h, w_ref, b_ref):
        return jnp.maximum(lin(h, w_ref, b_ref), 0.0)

    # ---- PointNet_SEG backbone ----
    h1 = lin_relu(x, nxt(), nxt())
    h2 = lin_relu(h1, nxt(), nxt())               # per-point features (N, 64)
    h = lin_relu(h2, nxt(), nxt())
    h = lin_relu(h, nxt(), nxt())
    h = lin_relu(h, nxt(), nxt())                 # (N, 256)
    g = jnp.max(h, axis=0, keepdims=True)         # global feature (1, 256)

    # concat([point_feat, global, one_hot]) @ W6  as split matmuls (global/one-hot
    # rows are constant over points -> a single (1, 256) row added to every point)
    w6a, w6b, w6c, b6 = nxt(), nxt(), nxt(), nxt()
    glob_row = dot(g, w6b) + odot(oh, w6c) + b6[...]
    h = jnp.maximum(dot(h2, w6a) + glob_row, 0.0)
    h = lin_relu(h, nxt(), nxt())
    h = lin_relu(h, nxt(), nxt())
    h9 = lin_relu(h, nxt(), nxt())                # seg features (N, 128)

    # seg head (Dropout == identity): lane-dense padded logits, lanes 0..1 valid
    logits_ref[0] = lin(h9, nxt(), nxt())         # (N, 128)

    # ---- point cloud masking (no width-1 lane slices) ----
    diff = lin(h9, nxt(), nxt())                  # fg-bg logit replicated over Cin lanes
    mask = (diff > 0.0).astype(jnp.float32)       # (N, Cin)
    cnt = jnp.maximum(jnp.sum(mask, axis=0, keepdims=True), 1.0)
    mean = jnp.sum(x * mask, axis=0, keepdims=True) / cnt        # (1, Cin); lanes 0..2 = xyz mean
    # TODO(synk): gather_object_pc randomly resamples masked points to num_object_points;
    # replaced with deterministic mask-weighted centering (num_object_points == num_frustum_point).
    obj = (x - mean) * mask                        # (N, Cin); lane 3 killed by zero weight rows below

    # ---- center regression T-net ----
    c = lin_relu(obj, nxt(), nxt())
    c = lin_relu(c, nxt(), nxt())
    c = lin_relu(c, nxt(), nxt())                  # (N, 256)
    cg = jnp.max(c, axis=0, keepdims=True)         # (1, 256)
    wc1, wc1_oh, bc1 = nxt(), nxt(), nxt()
    hc = jnp.maximum(dot(cg, wc1) + odot(oh, wc1_oh) + bc1[...], 0.0)
    hc = lin_relu(hc, nxt(), nxt())
    center = lin(hc, nxt(), nxt())                 # center_tnet (1, Cin); lane 3 == 0
    stage1 = center + mean                         # stage1_center (lane 3 junk, dropped by `place`)

    # ---- box estimation ----
    bx = obj - center
    bx = lin_relu(bx, nxt(), nxt())
    bx = lin_relu(bx, nxt(), nxt())
    bx = lin_relu(bx, nxt(), nxt())
    bx = lin_relu(bx, nxt(), nxt())                # (N, 512)
    bg = jnp.max(bx, axis=0, keepdims=True)        # (1, 512)
    wb1, wb1_oh, bb1 = nxt(), nxt(), nxt()
    hb = jnp.maximum(dot(bg, wb1) + odot(oh, wb1_oh) + bb1[...], 0.0)
    hb = lin_relu(hb, nxt(), nxt())
    box_res = lin(hb, nxt(), nxt())                # (1, 128): lanes 0..18 box outputs, rest 0

    place = nxt()                                  # f32 scatter matrix keeps stage1 exact
    packed_ref[0] = box_res + jnp.dot(stage1, place[...],
                                      preferred_element_type=jnp.float32)


# ----------------------------------------------------------------------------
# pallas_call wrapper + glue
# ----------------------------------------------------------------------------
def run_fused_fpointnet(pc_bnc, one_hot, flat_params):
    B, N, Cin = pc_bnc.shape
    oh3 = one_hot.reshape(B, 1, ONE_HOT_DIM)
    in_specs = [pl.BlockSpec((1, N, Cin), lambda b: (b, 0, 0)),
                pl.BlockSpec((1, 1, ONE_HOT_DIM), lambda b: (b, 0, 0))]
    # weights/biases: constant block index across the grid -> fetched once
    in_specs += [pl.BlockSpec(p.shape, lambda b: (0, 0)) for p in flat_params]
    logits_pad, packed = pl.pallas_call(
        fpointnet_fused_kernel,
        out_shape=(jax.ShapeDtypeStruct((B, N, 128), jnp.float32),
                   jax.ShapeDtypeStruct((B, 1, 128), jnp.float32)),
        grid=(B,),
        in_specs=in_specs,
        out_specs=(pl.BlockSpec((1, N, 128), lambda b: (b, 0, 0)),
                   pl.BlockSpec((1, 1, 128), lambda b: (b, 0, 0))),
        compiler_params=pltpu.CompilerParams(dimension_semantics=("parallel",)),
    )(pc_bnc, oh3, *flat_params)
    return logits_pad[:, :, :2], packed[:, 0, :]


def parse_outputs(box_results, nh, ns, mean_size_arr, out):
    c = 3
    out["center_boxnet"] = box_results[:, :c]
    out["heading_scores"] = box_results[:, c:c + nh]
    hrn = box_results[:, c + nh:c + 2 * nh]
    out["heading_residuals_normalized"] = hrn
    out["heading_residuals"] = hrn * jnp.float32(math.pi / nh)
    out["size_scores"] = box_results[:, c + 2 * nh:c + 2 * nh + ns]
    srn = box_results[:, c + 2 * nh + ns:c + 2 * nh + 4 * ns].reshape(-1, ns, 3)
    out["size_residuals_normalized"] = srn
    out["size_residuals"] = srn * mean_size_arr[None, :, :]
    return out


def fpointnet_forward(params, point_cloud, one_hot_vec):
    """point_cloud: (B, C_in, N) (torch NCW), one_hot_vec: (B, 3)."""
    out = {}
    pc_bnc = jnp.transpose(point_cloud, (0, 2, 1))     # tiny one-time NCW -> BNC transpose

    logits, packed = run_fused_fpointnet(pc_bnc, one_hot_vec, params["flat"])
    out["mask_logits"] = logits                                          # (B, N, 2)
    out["mask"] = (logits[..., 1] > logits[..., 0]).astype(jnp.float32)

    box_results = packed[:, :BOX_OUT]                                    # (B, 19)
    stage1_center = packed[:, BOX_OUT:BOX_OUT + 3]                       # (B, 3)
    out["stage1_center"] = stage1_center
    out = parse_outputs(box_results, NUM_HEADING_BIN, NUM_SIZE_CLUSTER,
                        params["mean_size_arr"], out)
    out["center"] = out["center_boxnet"] + stage1_center
    return out


if __name__ == "__main__":
    key = jax.random.PRNGKey(0)
    kp, kpc = jax.random.split(key)
    raw = build_params(kp)
    params = dict(flat=prepare_fused_params(raw), mean_size_arr=raw["mean_size_arr"])

    B, Cin, N = BATCH, CFG["input_channel"], CFG["num_frustum_point"]
    point_cloud = jax.random.normal(kpc, (B, Cin, N), jnp.float32)   # torch NCW layout
    one_hot_vec = jax.nn.one_hot(jnp.array([0, 2]), ONE_HOT_DIM, dtype=jnp.float32)

    out = jax.jit(fpointnet_forward)(params, point_cloud, one_hot_vec)
    out = jax.block_until_ready(out)

    assert out["mask_logits"].shape == (B, N, 2)
    assert out["stage1_center"].shape == (B, 3)
    assert out["center_boxnet"].shape == (B, 3)
    assert out["heading_scores"].shape == (B, NUM_HEADING_BIN)
    assert out["heading_residuals"].shape == (B, NUM_HEADING_BIN)
    assert out["size_scores"].shape == (B, NUM_SIZE_CLUSTER)
    assert out["size_residuals"].shape == (B, NUM_SIZE_CLUSTER, 3)
    assert out["center"].shape == (B, 3)
    assert all(bool(jnp.all(jnp.isfinite(v))) for v in jax.tree_util.tree_leaves(out))
    print("KERNEL_OK")
</pallas_src>

<mosaic_0001>
module attributes {stable_mosaic.version = 11 : i64} {
  func.func @fpointnet_fused_kernel(%arg0: i32, %arg1: memref<1x128x4xf32, #tpu.memory_space<vmem>>, %arg2: memref<1x1x3xf32, #tpu.memory_space<vmem>>, %arg3: memref<4x64xbf16, #tpu.memory_space<vmem>>, %arg4: memref<1x64xf32, #tpu.memory_space<vmem>>, %arg5: memref<64x64xbf16, #tpu.memory_space<vmem>>, %arg6: memref<1x64xf32, #tpu.memory_space<vmem>>, %arg7: memref<64x64xbf16, #tpu.memory_space<vmem>>, %arg8: memref<1x64xf32, #tpu.memory_space<vmem>>, %arg9: memref<64x128xbf16, #tpu.memory_space<vmem>>, %arg10: memref<1x128xf32, #tpu.memory_space<vmem>>, %arg11: memref<128x256xbf16, #tpu.memory_space<vmem>>, %arg12: memref<1x256xf32, #tpu.memory_space<vmem>>, %arg13: memref<64x256xbf16, #tpu.memory_space<vmem>>, %arg14: memref<256x256xbf16, #tpu.memory_space<vmem>>, %arg15: memref<3x256xf32, #tpu.memory_space<vmem>>, %arg16: memref<1x256xf32, #tpu.memory_space<vmem>>, %arg17: memref<256x128xbf16, #tpu.memory_space<vmem>>, %arg18: memref<1x128xf32, #tpu.memory_space<vmem>>, %arg19: memref<128x128xbf16, #tpu.memory_space<vmem>>, %arg20: memref<1x128xf32, #tpu.memory_space<vmem>>, %arg21: memref<128x128xbf16, #tpu.memory_space<vmem>>, %arg22: memref<1x128xf32, #tpu.memory_space<vmem>>, %arg23: memref<128x128xbf16, #tpu.memory_space<vmem>>, %arg24: memref<1x128xf32, #tpu.memory_space<vmem>>, %arg25: memref<128x4xbf16, #tpu.memory_space<vmem>>, %arg26: memref<1x4xf32, #tpu.memory_space<vmem>>, %arg27: memref<4x128xbf16, #tpu.memory_space<vmem>>, %arg28: memref<1x128xf32, #tpu.memory_space<vmem>>, %arg29: memref<128x128xbf16, #tpu.memory_space<vmem>>, %arg30: memref<1x128xf32, #tpu.memory_space<vmem>>, %arg31: memref<128x256xbf16, #tpu.memory_space<vmem>>, %arg32: memref<1x256xf32, #tpu.memory_space<vmem>>, %arg33: memref<256x256xbf16, #tpu.memory_space<vmem>>, %arg34: memref<3x256xf32, #tpu.memory_space<vmem>>, %arg35: memref<1x256xf32, #tpu.memory_space<vmem>>, %arg36: memref<256x128xbf16, #tpu.memory_space<vmem>>, %arg37: memref<1x128xf32, #tpu.memory_space<vmem>>, %arg38: memref<128x4xbf16, #tpu.memory_space<vmem>>, %arg39: memref<1x4xf32, #tpu.memory_space<vmem>>, %arg40: memref<4x128xbf16, #tpu.memory_space<vmem>>, %arg41: memref<1x128xf32, #tpu.memory_space<vmem>>, %arg42: memref<128x128xbf16, #tpu.memory_space<vmem>>, %arg43: memref<1x128xf32, #tpu.memory_space<vmem>>, %arg44: memref<128x256xbf16, #tpu.memory_space<vmem>>, %arg45: memref<1x256xf32, #tpu.memory_space<vmem>>, %arg46: memref<256x512xbf16, #tpu.memory_space<vmem>>, %arg47: memref<1x512xf32, #tpu.memory_space<vmem>>, %arg48: memref<512x512xbf16, #tpu.memory_space<vmem>>, %arg49: memref<3x512xf32, #tpu.memory_space<vmem>>, %arg50: memref<1x512xf32, #tpu.memory_space<vmem>>, %arg51: memref<512x256xbf16, #tpu.memory_space<vmem>>, %arg52: memref<1x256xf32, #tpu.memory_space<vmem>>, %arg53: memref<256x128xbf16, #tpu.memory_space<vmem>>, %arg54: memref<1x128xf32, #tpu.memory_space<vmem>>, %arg55: memref<4x128xf32, #tpu.memory_space<vmem>>, %arg56: memref<1x128x128xf32, #tpu.memory_space<vmem>>, %arg57: memref<1x1x128xf32, #tpu.memory_space<vmem>>) attributes {dimension_semantics = [#tpu.dimension_semantics<parallel>], iteration_bounds = array<i64: 2>, scalar_prefetch = 0 : i64, scratch_operands = 0 : i64, tpu.core_type = #tpu.core_type<tc>, window_params = [{transform_indices = @transform_0, window_bounds = array<i64: 1, 128, 4>}, {transform_indices = @transform_1, window_bounds = array<i64: 1, 1, 3>}, {pipeline_mode = #tpu.pipeline_mode<synchronous>, transform_indices = @transform_2, window_bounds = array<i64: 4, 64>}, {pipeline_mode = #tpu.pipeline_mode<synchronous>, transform_indices = @transform_3, window_bounds = array<i64: 1, 64>}, {pipeline_mode = #tpu.pipeline_mode<synchronous>, transform_indices = @transform_4, window_bounds = array<i64: 64, 64>}, {pipeline_mode = #tpu.pipeline_mode<synchronous>, transform_indices = @transform_5, window_bounds = array<i64: 1, 64>}, {pipeline_mode = #tpu.pipeline_mode<synchronous>, transform_indices = @transform_6, window_bounds = array<i64: 64, 64>}, {pipeline_mode = #tpu.pipeline_mode<synchronous>, transform_indices = @transform_7, window_bounds = array<i64: 1, 64>}, {pipeline_mode = #tpu.pipeline_mode<synchronous>, transform_indices = @transform_8, window_bounds = array<i64: 64, 128>}, {pipeline_mode = #tpu.pipeline_mode<synchronous>, transform_indices = @transform_9, window_bounds = array<i64: 1, 128>}, {pipeline_mode = #tpu.pipeline_mode<synchronous>, transform_indices = @transform_10, window_bounds = array<i64: 128, 256>}, {pipeline_mode = #tpu.pipeline_mode<synchronous>, transform_indices = @transform_11, window_bounds = array<i64: 1, 256>}, {pipeline_mode = #tpu.pipeline_mode<synchronous>, transform_indices = @transform_12, window_bounds = array<i64: 64, 256>}, {pipeline_mode = #tpu.pipeline_mode<synchronous>, transform_indices = @transform_13, window_bounds = array<i64: 256, 256>}, {pipeline_mode = #tpu.pipeline_mode<synchronous>, transform_indices = @transform_14, window_bounds = array<i64: 3, 256>}, {pipeline_mode = #tpu.pipeline_mode<synchronous>, transform_indices = @transform_15, window_bounds = array<i64: 1, 256>}, {pipeline_mode = #tpu.pipeline_mode<synchronous>, transform_indices = @transform_16, window_bounds = array<i64: 256, 128>}, {pipeline_mode = #tpu.pipeline_mode<synchronous>, transform_indices = @transform_17, window_bounds = array<i64: 1, 128>}, {pipeline_mode = #tpu.pipeline_mode<synchronous>, transform_indices = @transform_18, window_bounds = array<i64: 128, 128>}, {pipeline_mode = #tpu.pipeline_mode<synchronous>, transform_indices = @transform_19, window_bounds = array<i64: 1, 128>}, {pipeline_mode = #tpu.pipeline_mode<synchronous>, transform_indices = @transform_20, window_bounds = array<i64: 128, 128>}, {pipeline_mode = #tpu.pipeline_mode<synchronous>, transform_indices = @transform_21, window_bounds = array<i64: 1, 128>}, {pipeline_mode = #tpu.pipeline_mode<synchronous>, transform_indices = @transform_22, window_bounds = array<i64: 128, 128>}, {pipeline_mode = #tpu.pipeline_mode<synchronous>, transform_indices = @transform_23, window_bounds = array<i64: 1, 128>}, {pipeline_mode = #tpu.pipeline_mode<synchronous>, transform_indices = @transform_24, window_bounds = array<i64: 128, 4>}, {pipeline_mode = #tpu.pipeline_mode<synchronous>, transform_indices = @transform_25, window_bounds = array<i64: 1, 4>}, {pipeline_mode = #tpu.pipeline_mode<synchronous>, transform_indices = @transform_26, window_bounds = array<i64: 4, 128>}, {pipeline_mode = #tpu.pipeline_mode<synchronous>, transform_indices = @transform_27, window_bounds = array<i64: 1, 128>}, {pipeline_mode = #tpu.pipeline_mode<synchronous>, transform_indices = @transform_28, window_bounds = array<i64: 128, 128>}, {pipeline_mode = #tpu.pipeline_mode<synchronous>, transform_indices = @transform_29, window_bounds = array<i64: 1, 128>}, {pipeline_mode = #tpu.pipeline_mode<synchronous>, transform_indices = @transform_30, window_bounds = array<i64: 128, 256>}, {pipeline_mode = #tpu.pipeline_mode<synchronous>, transform_indices = @transform_31, window_bounds = array<i64: 1, 256>}, {pipeline_mode = #tpu.pipeline_mode<synchronous>, transform_indices = @transform_32, window_bounds = array<i64: 256, 256>}, {pipeline_mode = #tpu.pipeline_mode<synchronous>, transform_indices = @transform_33, window_bounds = array<i64: 3, 256>}, {pipeline_mode = #tpu.pipeline_mode<synchronous>, transform_indices = @transform_34, window_bounds = array<i64: 1, 256>}, {pipeline_mode = #tpu.pipeline_mode<synchronous>, transform_indices = @transform_35, window_bounds = array<i64: 256, 128>}, {pipeline_mode = #tpu.pipeline_mode<synchronous>, transform_indices = @transform_36, window_bounds = array<i64: 1, 128>}, {pipeline_mode = #tpu.pipeline_mode<synchronous>, transform_indices = @transform_37, window_bounds = array<i64: 128, 4>}, {pipeline_mode = #tpu.pipeline_mode<synchronous>, transform_indices = @transform_38, window_bounds = array<i64: 1, 4>}, {pipeline_mode = #tpu.pipeline_mode<synchronous>, transform_indices = @transform_39, window_bounds = array<i64: 4, 128>}, {pipeline_mode = #tpu.pipeline_mode<synchronous>, transform_indices = @transform_40, window_bounds = array<i64: 1, 128>}, {pipeline_mode = #tpu.pipeline_mode<synchronous>, transform_indices = @transform_41, window_bounds = array<i64: 128, 128>}, {pipeline_mode = #tpu.pipeline_mode<synchronous>, transform_indices = @transform_42, window_bounds = array<i64: 1, 128>}, {pipeline_mode = #tpu.pipeline_mode<synchronous>, transform_indices = @transform_43, window_bounds = array<i64: 128, 256>}, {pipeline_mode = #tpu.pipeline_mode<synchronous>, transform_indices = @transform_44, window_bounds = array<i64: 1, 256>}, {pipeline_mode = #tpu.pipeline_mode<synchronous>, transform_indices = @transform_45, window_bounds = array<i64: 256, 512>}, {pipeline_mode = #tpu.pipeline_mode<synchronous>, transform_indices = @transform_46, window_bounds = array<i64: 1, 512>}, {pipeline_mode = #tpu.pipeline_mode<synchronous>, transform_indices = @transform_47, window_bounds = array<i64: 512, 512>}, {pipeline_mode = #tpu.pipeline_mode<synchronous>, transform_indices = @transform_48, window_bounds = array<i64: 3, 512>}, {pipeline_mode = #tpu.pipeline_mode<synchronous>, transform_indices = @transform_49, window_bounds = array<i64: 1, 512>}, {pipeline_mode = #tpu.pipeline_mode<synchronous>, transform_indices = @transform_50, window_bounds = array<i64: 512, 256>}, {pipeline_mode = #tpu.pipeline_mode<synchronous>, transform_indices = @transform_51, window_bounds = array<i64: 1, 256>}, {pipeline_mode = #tpu.pipeline_mode<synchronous>, transform_indices = @transform_52, window_bounds = array<i64: 256, 128>}, {pipeline_mode = #tpu.pipeline_mode<synchronous>, transform_indices = @transform_53, window_bounds = array<i64: 1, 128>}, {pipeline_mode = #tpu.pipeline_mode<synchronous>, transform_indices = @transform_54, window_bounds = array<i64: 4, 128>}, {transform_indices = @transform_55, window_bounds = array<i64: 1, 128, 128>}, {transform_indices = @transform_56, window_bounds = array<i64: 1, 1, 128>}]} {
    %c0 = arith.constant 0 : index
    %c0_0 = arith.constant 0 : index
    %c0_1 = arith.constant 0 : index
    %0 = vector.load %arg1[%c0, %c0_0, %c0_1] : memref<1x128x4xf32, #tpu.memory_space<vmem>>, vector<1x128x4xf32>
    %1 = vector.shape_cast %0 : vector<1x128x4xf32> to vector<128x4xf32>
    %c0_2 = arith.constant 0 : index
    %c0_3 = arith.constant 0 : index
    %c0_4 = arith.constant 0 : index
    %2 = vector.load %arg2[%c0_2, %c0_3, %c0_4] : memref<1x1x3xf32, #tpu.memory_space<vmem>>, vector<1x1x3xf32>
    %3 = vector.shape_cast %2 : vector<1x1x3xf32> to vector<1x3xf32>
    %4 = arith.truncf %1 : vector<128x4xf32> to vector<128x4xbf16>
    %c0_5 = arith.constant 0 : index
    %c0_6 = arith.constant 0 : index
    %5 = vector.load %arg3[%c0_5, %c0_6] : memref<4x64xbf16, #tpu.memory_space<vmem>>, vector<4x64xbf16>
    %cst = arith.constant dense<0.000000e+00> : vector<128x64xf32>
    %6 = tpu.matmul %4, %5, %cst {dimension_numbers = #tpu.dot_dimension_numbers<[1], [0], [0], [1], [0, 0, 1, 1], [], []>} : vector<128x4xbf16>, vector<4x64xbf16>, vector<128x64xf32> -> vector<128x64xf32>
    %c0_7 = arith.constant 0 : index
    %c0_8 = arith.constant 0 : index
    %7 = vector.load %arg4[%c0_7, %c0_8] : memref<1x64xf32, #tpu.memory_space<vmem>>, vector<1x64xf32>
    %8 = vector.broadcast %7 : vector<1x64xf32> to vector<128x64xf32>
    %9 = arith.addf %6, %8 : vector<128x64xf32>
    %cst_9 = arith.constant 0.000000e+00 : f32
    %10 = vector.broadcast %cst_9 : f32 to vector<128x64xf32>
    %11 = arith.maximumf %9, %10 : vector<128x64xf32>
    %12 = arith.truncf %11 : vector<128x64xf32> to vector<128x64xbf16>
    %c0_10 = arith.constant 0 : index
    %c0_11 = arith.constant 0 : index
    %13 = vector.load %arg5[%c0_10, %c0_11] : memref<64x64xbf16, #tpu.memory_space<vmem>>, vector<64x64xbf16>
    %cst_12 = arith.constant dense<0.000000e+00> : vector<128x64xf32>
    %14 = tpu.matmul %12, %13, %cst_12 {dimension_numbers = #tpu.dot_dimension_numbers<[1], [0], [0], [1], [0, 0, 1, 1], [], []>} : vector<128x64xbf16>, vector<64x64xbf16>, vector<128x64xf32> -> vector<128x64xf32>
    %c0_13 = arith.constant 0 : index
    %c0_14 = arith.constant 0 : index
    %15 = vector.load %arg6[%c0_13, %c0_14] : memref<1x64xf32, #tpu.memory_space<vmem>>, vector<1x64xf32>
    %16 = vector.broadcast %15 : vector<1x64xf32> to vector<128x64xf32>
    %17 = arith.addf %14, %16 : vector<128x64xf32>
    %cst_15 = arith.constant 0.000000e+00 : f32
    %18 = vector.broadcast %cst_15 : f32 to vector<128x64xf32>
    %19 = arith.maximumf %17, %18 : vector<128x64xf32>
    %20 = arith.truncf %19 : vector<128x64xf32> to vector<128x64xbf16>
    %c0_16 = arith.constant 0 : index
    %c0_17 = arith.constant 0 : index
    %21 = vector.load %arg7[%c0_16, %c0_17] : memref<64x64xbf16, #tpu.memory_space<vmem>>, vector<64x64xbf16>
    %cst_18 = arith.constant dense<0.000000e+00> : vector<128x64xf32>
    %22 = tpu.matmul %20, %21, %cst_18 {dimension_numbers = #tpu.dot_dimension_numbers<[1], [0], [0], [1], [0, 0, 1, 1], [], []>} : vector<128x64xbf16>, vector<64x64xbf16>, vector<128x64xf32> -> vector<128x64xf32>
    %c0_19 = arith.constant 0 : index
    %c0_20 = arith.constant 0 : index
    %23 = vector.load %arg8[%c0_19, %c0_20] : memref<1x64xf32, #tpu.memory_space<vmem>>, vector<1x64xf32>
    %24 = vector.broadcast %23 : vector<1x64xf32> to vector<128x64xf32>
    %25 = arith.addf %22, %24 : vector<128x64xf32>
    %cst_21 = arith.constant 0.000000e+00 : f32
    %26 = vector.broadcast %cst_21 : f32 to vector<128x64xf32>
    %27 = arith.maximumf %25, %26 : vector<128x64xf32>
    %28 = arith.truncf %27 : vector<128x64xf32> to vector<128x64xbf16>
    %c0_22 = arith.constant 0 : index
    %c0_23 = arith.constant 0 : index
    %29 = vector.load %arg9[%c0_22, %c0_23] : memref<64x128xbf16, #tpu.memory_space<vmem>>, vector<64x128xbf16>
    %cst_24 = arith.constant dense<0.000000e+00> : vector<128x128xf32>
    %30 = tpu.matmul %28, %29, %cst_24 {dimension_numbers = #tpu.dot_dimension_numbers<[1], [0], [0], [1], [0, 0, 1, 1], [], []>} : vector<128x64xbf16>, vector<64x128xbf16>, vector<128x128xf32> -> vector<128x128xf32>
    %c0_25 = arith.constant 0 : index
    %c0_26 = arith.constant 0 : index
    %31 = vector.load %arg10[%c0_25, %c0_26] : memref<1x128xf32, #tpu.memory_space<vmem>>, vector<1x128xf32>
    %32 = vector.broadcast %31 : vector<1x128xf32> to vector<128x128xf32>
    %33 = arith.addf %30, %32 : vector<128x128xf32>
    %cst_27 = arith.constant 0.000000e+00 : f32
    %34 = vector.broadcast %cst_27 : f32 to vector<128x128xf32>
    %35 = arith.maximumf %33, %34 : vector<128x128xf32>
    %36 = arith.truncf %35 : vector<128x128xf32> to vector<128x128xbf16>
    %c0_28 = arith.constant 0 : index
    %c0_29 = arith.constant 0 : index
    %37 = vector.load %arg11[%c0_28, %c0_29] : memref<128x256xbf16, #tpu.memory_space<vmem>>, vector<128x256xbf16>
    %cst_30 = arith.constant dense<0.000000e+00> : vector<128x256xf32>
    %38 = tpu.matmul %36, %37, %cst_30 {dimension_numbers = #tpu.dot_dimension_numbers<[1], [0], [0], [1], [0, 0, 1, 1], [], []>} : vector<128x128xbf16>, vector<128x256xbf16>, vector<128x256xf32> -> vector<128x256xf32>
    %c0_31 = arith.constant 0 : index
    %c0_32 = arith.constant 0 : index
    %39 = vector.load %arg12[%c0_31, %c0_32] : memref<1x256xf32, #tpu.memory_space<vmem>>, vector<1x256xf32>
    %40 = vector.broadcast %39 : vector<1x256xf32> to vector<128x256xf32>
    %41 = arith.addf %38, %40 : vector<128x256xf32>
    %cst_33 = arith.constant 0.000000e+00 : f32
    %42 = vector.broadcast %cst_33 : f32 to vector<128x256xf32>
    %43 = arith.maximumf %41, %42 : vector<128x256xf32>
    %cst_34 = arith.constant dense<0xFF800000> : vector<256xf32>
    %44 = vector.multi_reduction <maximumf>, %43, %cst_34 [0] : vector<128x256xf32> to vector<256xf32>
    %45 = vector.shape_cast %44 : vector<256xf32> to vector<1x256xf32>
    %46 = arith.truncf %45 : vector<1x256xf32> to vector<1x256xbf16>
    %c0_35 = arith.constant 0 : index
    %c0_36 = arith.constant 0 : index
    %47 = vector.load %arg14[%c0_35, %c0_36] : memref<256x256xbf16, #tpu.memory_space<vmem>>, vector<256x256xbf16>
    %cst_37 = arith.constant dense<0.000000e+00> : vector<1x256xf32>
    %48 = tpu.matmul %46, %47, %cst_37 {dimension_numbers = #tpu.dot_dimension_numbers<[1], [0], [0], [1], [0, 0, 1, 1], [], []>} : vector<1x256xbf16>, vector<256x256xbf16>, vector<1x256xf32> -> vector<1x256xf32>
    %c0_38 = arith.constant 0 : index
    %c0_39 = arith.constant 0 : index
    %49 = vector.load %arg15[%c0_38, %c0_39] : memref<3x256xf32, #tpu.memory_space<vmem>>, vector<3x256xf32>
    %cst_40 = arith.constant dense<0.000000e+00> : vector<1x256xf32>
    %50 = tpu.matmul %3, %49, %cst_40 {dimension_numbers = #tpu.dot_dimension_numbers<[1], [0], [0], [1], [0, 0, 1, 1], [], []>} : vector<1x3xf32>, vector<3x256xf32>, vector<1x256xf32> -> vector<1x256xf32>
    %51 = arith.addf %48, %50 : vector<1x256xf32>
    %c0_41 = arith.constant 0 : index
    %c0_42 = arith.constant 0 : index
    %52 = vector.load %arg16[%c0_41, %c0_42] : memref<1x256xf32, #tpu.memory_space<vmem>>, vector<1x256xf32>
    %53 = arith.addf %51, %52 : vector<1x256xf32>
    %54 = arith.truncf %19 : vector<128x64xf32> to vector<128x64xbf16>
    %c0_43 = arith.constant 0 : index
    %c0_44 = arith.constant 0 : index
    %55 = vector.load %arg13[%c0_43, %c0_44] : memref<64x256xbf16, #tpu.memory_space<vmem>>, vector<64x256xbf16>
    %cst_45 = arith.constant dense<0.000000e+00> : vector<128x256xf32>
    %56 = tpu.matmul %54, %55, %cst_45 {dimension_numbers = #tpu.dot_dimension_numbers<[1], [0], [0], [1], [0, 0, 1, 1], [], []>} : vector<128x64xbf16>, vector<64x256xbf16>, vector<128x256xf32> -> vector<128x256xf32>
    %57 = vector.broadcast %53 : vector<1x256xf32> to vector<128x256xf32>
    %58 = arith.addf %56, %57 : vector<128x256xf32>
    %cst_46 = arith.constant 0.000000e+00 : f32
    %59 = vector.broadcast %cst_46 : f32 to vector<128x256xf32>
    %60 = arith.maximumf %58, %59 : vector<128x256xf32>
    %61 = arith.truncf %60 : vector<128x256xf32> to vector<128x256xbf16>
    %c0_47 = arith.constant 0 : index
    %c0_48 = arith.constant 0 : index
    %62 = vector.load %arg17[%c0_47, %c0_48] : memref<256x128xbf16, #tpu.memory_space<vmem>>, vector<256x128xbf16>
    %cst_49 = arith.constant dense<0.000000e+00> : vector<128x128xf32>
    %63 = tpu.matmul %61, %62, %cst_49 {dimension_numbers = #tpu.dot_dimension_numbers<[1], [0], [0], [1], [0, 0, 1, 1], [], []>} : vector<128x256xbf16>, vector<256x128xbf16>, vector<128x128xf32> -> vector<128x128xf32>
    %c0_50 = arith.constant 0 : index
    %c0_51 = arith.constant 0 : index
    %64 = vector.load %arg18[%c0_50, %c0_51] : memref<1x128xf32, #tpu.memory_space<vmem>>, vector<1x128xf32>
    %65 = vector.broadcast %64 : vector<1x128xf32> to vector<128x128xf32>
    %66 = arith.addf %63, %65 : vector<128x128xf32>
    %cst_52 = arith.constant 0.000000e+00 : f32
    %67 = vector.broadcast %cst_52 : f32 to vector<128x128xf32>
    %68 = arith.maximumf %66, %67 : vector<128x128xf32>
    %69 = arith.truncf %68 : vector<128x128xf32> to vector<128x128xbf16>
    %c0_53 = arith.constant 0 : index
    %c0_54 = arith.constant 0 : index
    %70 = vector.load %arg19[%c0_53, %c0_54] : memref<128x128xbf16, #tpu.memory_space<vmem>>, vector<128x128xbf16>
    %cst_55 = arith.constant dense<0.000000e+00> : vector<128x128xf32>
    %71 = tpu.matmul %69, %70, %cst_55 {dimension_numbers = #tpu.dot_dimension_numbers<[1], [0], [0], [1], [0, 0, 1, 1], [], []>} : vector<128x128xbf16>, vector<128x128xbf16>, vector<128x128xf32> -> vector<128x128xf32>
    %c0_56 = arith.constant 0 : index
    %c0_57 = arith.constant 0 : index
    %72 = vector.load %arg20[%c0_56, %c0_57] : memref<1x128xf32, #tpu.memory_space<vmem>>, vector<1x128xf32>
    %73 = vector.broadcast %72 : vector<1x128xf32> to vector<128x128xf32>
    %74 = arith.addf %71, %73 : vector<128x128xf32>
    %cst_58 = arith.constant 0.000000e+00 : f32
    %75 = vector.broadcast %cst_58 : f32 to vector<128x128xf32>
    %76 = arith.maximumf %74, %75 : vector<128x128xf32>
    %77 = arith.truncf %76 : vector<128x128xf32> to vector<128x128xbf16>
    %c0_59 = arith.constant 0 : index
    %c0_60 = arith.constant 0 : index
    %78 = vector.load %arg21[%c0_59, %c0_60] : memref<128x128xbf16, #tpu.memory_space<vmem>>, vector<128x128xbf16>
    %cst_61 = arith.constant dense<0.000000e+00> : vector<128x128xf32>
    %79 = tpu.matmul %77, %78, %cst_61 {dimension_numbers = #tpu.dot_dimension_numbers<[1], [0], [0], [1], [0, 0, 1, 1], [], []>} : vector<128x128xbf16>, vector<128x128xbf16>, vector<128x128xf32> -> vector<128x128xf32>
    %c0_62 = arith.constant 0 : index
    %c0_63 = arith.constant 0 : index
    %80 = vector.load %arg22[%c0_62, %c0_63] : memref<1x128xf32, #tpu.memory_space<vmem>>, vector<1x128xf32>
    %81 = vector.broadcast %80 : vector<1x128xf32> to vector<128x128xf32>
    %82 = arith.addf %79, %81 : vector<128x128xf32>
    %cst_64 = arith.constant 0.000000e+00 : f32
    %83 = vector.broadcast %cst_64 : f32 to vector<128x128xf32>
    %84 = arith.maximumf %82, %83 : vector<128x128xf32>
    %85 = arith.truncf %84 : vector<128x128xf32> to vector<128x128xbf16>
    %c0_65 = arith.constant 0 : index
    %c0_66 = arith.constant 0 : index
    %86 = vector.load %arg23[%c0_65, %c0_66] : memref<128x128xbf16, #tpu.memory_space<vmem>>, vector<128x128xbf16>
    %cst_67 = arith.constant dense<0.000000e+00> : vector<128x128xf32>
    %87 = tpu.matmul %85, %86, %cst_67 {dimension_numbers = #tpu.dot_dimension_numbers<[1], [0], [0], [1], [0, 0, 1, 1], [], []>} : vector<128x128xbf16>, vector<128x128xbf16>, vector<128x128xf32> -> vector<128x128xf32>
    %c0_68 = arith.constant 0 : index
    %c0_69 = arith.constant 0 : index
    %88 = vector.load %arg24[%c0_68, %c0_69] : memref<1x128xf32, #tpu.memory_space<vmem>>, vector<1x128xf32>
    %89 = vector.broadcast %88 : vector<1x128xf32> to vector<128x128xf32>
    %90 = arith.addf %87, %89 : vector<128x128xf32>
    %c0_70 = arith.constant 0 : index
    %c0_71 = arith.constant 0 : index
    %c0_72 = arith.constant 0 : index
    %91 = vector.load %arg56[%c0_70, %c0_71, %c0_72] : memref<1x128x128xf32, #tpu.memory_space<vmem>>, vector<1x128x128xf32>
    %92 = vector.shape_cast %91 : vector<1x128x128xf32> to vector<128x128xf32>
    %93 = vector.shape_cast %90 : vector<128x128xf32> to vector<1x128x128xf32>
    tpu.vector_store %arg56[%c0_70, %c0_71, %c0_72], %93 {strides = array<i32>} : memref<1x128x128xf32, #tpu.memory_space<vmem>>, vector<1x128x128xf32>,
    %94 = arith.truncf %84 : vector<128x128xf32> to vector<128x128xbf16>
    %c0_73 = arith.constant 0 : index
    %c0_74 = arith.constant 0 : index
    %95 = vector.load %arg25[%c0_73, %c0_74] : memref<128x4xbf16, #tpu.memory_space<vmem>>, vector<128x4xbf16>
    %cst_75 = arith.constant dense<0.000000e+00> : vector<128x4xf32>
    %96 = tpu.matmul %94, %95, %cst_75 {dimension_numbers = #tpu.dot_dimension_numbers<[1], [0], [0], [1], [0, 0, 1, 1], [], []>} : vector<128x128xbf16>, vector<128x4xbf16>, vector<128x4xf32> -> vector<128x4xf32>
    %c0_76 = arith.constant 0 : index
    %c0_77 = arith.constant 0 : index
    %97 = vector.load %arg26[%c0_76, %c0_77] : memref<1x4xf32, #tpu.memory_space<vmem>>, vector<1x4xf32>
    %98 = vector.broadcast %97 : vector<1x4xf32> to vector<128x4xf32>
    %99 = arith.addf %96, %98 : vector<128x4xf32>
    %cst_78 = arith.constant 0.000000e+00 : f32
    %100 = vector.broadcast %cst_78 : f32 to vector<128x4xf32>
    %101 = arith.cmpf ogt, %99, %100 : vector<128x4xf32>
    %102 = arith.extui %101 : vector<128x4xi1> to vector<128x4xi32>
    %103 = arith.sitofp %102 : vector<128x4xi32> to vector<128x4xf32>
    %cst_79 = arith.constant dense<0.000000e+00> : vector<4xf32>
    %104 = vector.multi_reduction <add>, %103, %cst_79 [0] : vector<128x4xf32> to vector<4xf32>
    %105 = vector.shape_cast %104 : vector<4xf32> to vector<1x4xf32>
    %cst_80 = arith.constant 1.000000e+00 : f32
    %106 = vector.broadcast %cst_80 : f32 to vector<1x4xf32>
    %107 = arith.maximumf %105, %106 : vector<1x4xf32>
    %108 = arith.mulf %1, %103 : vector<128x4xf32>
    %cst_81 = arith.constant dense<0.000000e+00> : vector<4xf32>
    %109 = vector.multi_reduction <add>, %108, %cst_81 [0] : vector<128x4xf32> to vector<4xf32>
    %110 = vector.shape_cast %109 : vector<4xf32> to vector<1x4xf32>
    %111 = arith.divf %110, %107 : vector<1x4xf32>
    %112 = vector.broadcast %111 : vector<1x4xf32> to vector<128x4xf32>
    %113 = arith.subf %1, %112 : vector<128x4xf32>
    %114 = arith.mulf %113, %103 : vector<128x4xf32>
    %115 = arith.truncf %114 : vector<128x4xf32> to vector<128x4xbf16>
    %c0_82 = arith.constant 0 : index
    %c0_83 = arith.constant 0 : index
    %116 = vector.load %arg27[%c0_82, %c0_83] : memref<4x128xbf16, #tpu.memory_space<vmem>>, vector<4x128xbf16>
    %cst_84 = arith.constant dense<0.000000e+00> : vector<128x128xf32>
    %117 = tpu.matmul %115, %116, %cst_84 {dimension_numbers = #tpu.dot_dimension_numbers<[1], [0], [0], [1], [0, 0, 1, 1], [], []>} : vector<128x4xbf16>, vector<4x128xbf16>, vector<128x128xf32> -> vector<128x128xf32>
    %c0_85 = arith.constant 0 : index
    %c0_86 = arith.constant 0 : index
    %118 = vector.load %arg28[%c0_85, %c0_86] : memref<1x128xf32, #tpu.memory_space<vmem>>, vector<1x128xf32>
    %119 = vector.broadcast %118 : vector<1x128xf32> to vector<128x128xf32>
    %120 = arith.addf %117, %119 : vector<128x128xf32>
    %cst_87 = arith.constant 0.000000e+00 : f32
    %121 = vector.broadcast %cst_87 : f32 to vector<128x128xf32>
    %122 = arith.maximumf %120, %121 : vector<128x128xf32>
    %123 = arith.truncf %122 : vector<128x128xf32> to vector<128x128xbf16>
    %c0_88 = arith.constant 0 : index
    %c0_89 = arith.constant 0 : index
    %124 = vector.load %arg29[%c0_88, %c0_89] : memref<128x128xbf16, #tpu.memory_space<vmem>>, vector<128x128xbf16>
    %cst_90 = arith.constant dense<0.000000e+00> : vector<128x128xf32>
    %125 = tpu.matmul %123, %124, %cst_90 {dimension_numbers = #tpu.dot_dimension_numbers<[1], [0], [0], [1], [0, 0, 1, 1], [], []>} : vector<128x128xbf16>, vector<128x128xbf16>, vector<128x128xf32> -> vector<128x128xf32>
    %c0_91 = arith.constant 0 : index
    %c0_92 = arith.constant 0 : index
    %126 = vector.load %arg30[%c0_91, %c0_92] : memref<1x128xf32, #tpu.memory_space<vmem>>, vector<1x128xf32>
    %127 = vector.broadcast %126 : vector<1x128xf32> to vector<128x128xf32>
    %128 = arith.addf %125, %127 : vector<128x128xf32>
    %cst_93 = arith.constant 0.000000e+00 : f32
    %129 = vector.broadcast %cst_93 : f32 to vector<128x128xf32>
    %130 = arith.maximumf %128, %129 : vector<128x128xf32>
    %131 = arith.truncf %130 : vector<128x128xf32> to vector<128x128xbf16>
    %c0_94 = arith.constant 0 : index
    %c0_95 = arith.constant 0 : index
    %132 = vector.load %arg31[%c0_94, %c0_95] : memref<128x256xbf16, #tpu.memory_space<vmem>>, vector<128x256xbf16>
    %cst_96 = arith.constant dense<0.000000e+00> : vector<128x256xf32>
    %133 = tpu.matmul %131, %132, %cst_96 {dimension_numbers = #tpu.dot_dimension_numbers<[1], [0], [0], [1], [0, 0, 1, 1], [], []>} : vector<128x128xbf16>, vector<128x256xbf16>, vector<128x256xf32> -> vector<128x256xf32>
    %c0_97 = arith.constant 0 : index
    %c0_98 = arith.constant 0 : index
    %134 = vector.load %arg32[%c0_97, %c0_98] : memref<1x256xf32, #tpu.memory_space<vmem>>, vector<1x256xf32>
    %135 = vector.broadcast %134 : vector<1x256xf32> to vector<128x256xf32>
    %136 = arith.addf %133, %135 : vector<128x256xf32>
    %cst_99 = arith.constant 0.000000e+00 : f32
    %137 = vector.broadcast %cst_99 : f32 to vector<128x256xf32>
    %138 = arith.maximumf %136, %137 : vector<128x256xf32>
    %cst_100 = arith.constant dense<0xFF800000> : vector<256xf32>
    %139 = vector.multi_reduction <maximumf>, %138, %cst_100 [0] : vector<128x256xf32> to vector<256xf32>
    %140 = vector.shape_cast %139 : vector<256xf32> to vector<1x256xf32>
    %141 = arith.truncf %140 : vector<1x256xf32> to vector<1x256xbf16>
    %c0_101 = arith.constant 0 : index
    %c0_102 = arith.constant 0 : index
    %142 = vector.load %arg33[%c0_101, %c0_102] : memref<256x256xbf16, #tpu.memory_space<vmem>>, vector<256x256xbf16>
    %cst_103 = arith.constant dense<0.000000e+00> : vector<1x256xf32>
    %143 = tpu.matmul %141, %142, %cst_103 {dimension_numbers = #tpu.dot_dimension_numbers<[1], [0], [0], [1], [0, 0, 1, 1], [], []>} : vector<1x256xbf16>, vector<256x256xbf16>, vector<1x256xf32> -> vector<1x256xf32>
    %c0_104 = arith.constant 0 : index
    %c0_105 = arith.constant 0 : index
    %144 = vector.load %arg34[%c0_104, %c0_105] : memref<3x256xf32, #tpu.memory_space<vmem>>, vector<3x256xf32>
    %cst_106 = arith.constant dense<0.000000e+00> : vector<1x256xf32>
    %145 = tpu.matmul %3, %144, %cst_106 {dimension_numbers = #tpu.dot_dimension_numbers<[1], [0], [0], [1], [0, 0, 1, 1], [], []>} : vector<1x3xf32>, vector<3x256xf32>, vector<1x256xf32> -> vector<1x256xf32>
    %146 = arith.addf %143, %145 : vector<1x256xf32>
    %c0_107 = arith.constant 0 : index
    %c0_108 = arith.constant 0 : index
    %147 = vector.load %arg35[%c0_107, %c0_108] : memref<1x256xf32, #tpu.memory_space<vmem>>, vector<1x256xf32>
    %148 = arith.addf %146, %147 : vector<1x256xf32>
    %cst_109 = arith.constant 0.000000e+00 : f32
    %149 = vector.broadcast %cst_109 : f32 to vector<1x256xf32>
    %150 = arith.maximumf %148, %149 : vector<1x256xf32>
    %151 = arith.truncf %150 : vector<1x256xf32> to vector<1x256xbf16>
    %c0_110 = arith.constant 0 : index
    %c0_111 = arith.constant 0 : index
    %152 = vector.load %arg36[%c0_110, %c0_111] : memref<256x128xbf16, #tpu.memory_space<vmem>>, vector<256x128xbf16>
    %cst_112 = arith.constant dense<0.000000e+00> : vector<1x128xf32>
    %153 = tpu.matmul %151, %152, %cst_112 {dimension_numbers = #tpu.dot_dimension_numbers<[1], [0], [0], [1], [0, 0, 1, 1], [], []>} : vector<1x256xbf16>, vector<256x128xbf16>, vector<1x128xf32> -> vector<1x128xf32>
    %c0_113 = arith.constant 0 : index
    %c0_114 = arith.constant 0 : index
    %154 = vector.load %arg37[%c0_113, %c0_114] : memref<1x128xf32, #tpu.memory_space<vmem>>, vector<1x128xf32>
    %155 = arith.addf %153, %154 : vector<1x128xf32>
    %cst_115 = arith.constant 0.000000e+00 : f32
    %156 = vector.broadcast %cst_115 : f32 to vector<1x128xf32>
    %157 = arith.maximumf %155, %156 : vector<1x128xf32>
    %158 = arith.truncf %157 : vector<1x128xf32> to vector<1x128xbf16>
    %c0_116 = arith.constant 0 : index
    %c0_117 = arith.constant 0 : index
    %159 = vector.load %arg38[%c0_116, %c0_117] : memref<128x4xbf16, #tpu.memory_space<vmem>>, vector<128x4xbf16>
    %cst_118 = arith.constant dense<0.000000e+00> : vector<1x4xf32>
    %160 = tpu.matmul %158, %159, %cst_118 {dimension_numbers = #tpu.dot_dimension_numbers<[1], [0], [0], [1], [0, 0, 1, 1], [], []>} : vector<1x128xbf16>, vector<128x4xbf16>, vector<1x4xf32> -> vector<1x4xf32>
    %c0_119 = arith.constant 0 : index
    %c0_120 = arith.constant 0 : index
    %161 = vector.load %arg39[%c0_119, %c0_120] : memref<1x4xf32, #tpu.memory_space<vmem>>, vector<1x4xf32>
    %162 = arith.addf %160, %161 : vector<1x4xf32>
    %163 = arith.addf %162, %111 : vector<1x4xf32>
    %164 = vector.broadcast %162 : vector<1x4xf32> to vector<128x4xf32>
    %165 = arith.subf %114, %164 : vector<128x4xf32>
    %166 = arith.truncf %165 : vector<128x4xf32> to vector<128x4xbf16>
    %c0_121 = arith.constant 0 : index
    %c0_122 = arith.constant 0 : index
    %167 = vector.load %arg40[%c0_121, %c0_122] : memref<4x128xbf16, #tpu.memory_space<vmem>>, vector<4x128xbf16>
    %cst_123 = arith.constant dense<0.000000e+00> : vector<128x128xf32>
    %168 = tpu.matmul %166, %167, %cst_123 {dimension_numbers = #tpu.dot_dimension_numbers<[1], [0], [0], [1], [0, 0, 1, 1], [], []>} : vector<128x4xbf16>, vector<4x128xbf16>, vector<128x128xf32> -> vector<128x128xf32>
    %c0_124 = arith.constant 0 : index
    %c0_125 = arith.constant 0 : index
    %169 = vector.load %arg41[%c0_124, %c0_125] : memref<1x128xf32, #tpu.memory_space<vmem>>, vector<1x128xf32>
    %170 = vector.broadcast %169 : vector<1x128xf32> to vector<128x128xf32>
    %171 = arith.addf %168, %170 : vector<128x128xf32>
    %cst_126 = arith.constant 0.000000e+00 : f32
    %172 = vector.broadcast %cst_126 : f32 to vector<128x128xf32>
    %173 = arith.maximumf %171, %172 : vector<128x128xf32>
    %174 = arith.truncf %173 : vector<128x128xf32> to vector<128x128xbf16>
    %c0_127 = arith.constant 0 : index
    %c0_128 = arith.constant 0 : index
    %175 = vector.load %arg42[%c0_127, %c0_128] : memref<128x128xbf16, #tpu.memory_space<vmem>>, vector<128x128xbf16>
    %cst_129 = arith.constant dense<0.000000e+00> : vector<128x128xf32>
    %176 = tpu.matmul %174, %175, %cst_129 {dimension_numbers = #tpu.dot_dimension_numbers<[1], [0], [0], [1], [0, 0, 1, 1], [], []>} : vector<128x128xbf16>, vector<128x128xbf16>, vector<128x128xf32> -> vector<128x128xf32>
    %c0_130 = arith.constant 0 : index
    %c0_131 = arith.constant 0 : index
    %177 = vector.load %arg43[%c0_130, %c0_131] : memref<1x128xf32, #tpu.memory_space<vmem>>, vector<1x128xf32>
    %178 = vector.broadcast %177 : vector<1x128xf32> to vector<128x128xf32>
    %179 = arith.addf %176, %178 : vector<128x128xf32>
    %cst_132 = arith.constant 0.000000e+00 : f32
    %180 = vector.broadcast %cst_132 : f32 to vector<128x128xf32>
    %181 = arith.maximumf %179, %180 : vector<128x128xf32>
    %182 = arith.truncf %181 : vector<128x128xf32> to vector<128x128xbf16>
    %c0_133 = arith.constant 0 : index
    %c0_134 = arith.constant 0 : index
    %183 = vector.load %arg44[%c0_133, %c0_134] : memref<128x256xbf16, #tpu.memory_space<vmem>>, vector<128x256xbf16>
    %cst_135 = arith.constant dense<0.000000e+00> : vector<128x256xf32>
    %184 = tpu.matmul %182, %183, %cst_135 {dimension_numbers = #tpu.dot_dimension_numbers<[1], [0], [0], [1], [0, 0, 1, 1], [], []>} : vector<128x128xbf16>, vector<128x256xbf16>, vector<128x256xf32> -> vector<128x256xf32>
    %c0_136 = arith.constant 0 : index
    %c0_137 = arith.constant 0 : index
    %185 = vector.load %arg45[%c0_136, %c0_137] : memref<1x256xf32, #tpu.memory_space<vmem>>, vector<1x256xf32>
    %186 = vector.broadcast %185 : vector<1x256xf32> to vector<128x256xf32>
    %187 = arith.addf %184, %186 : vector<128x256xf32>
    %cst_138 = arith.constant 0.000000e+00 : f32
    %188 = vector.broadcast %cst_138 : f32 to vector<128x256xf32>
    %189 = arith.maximumf %187, %188 : vector<128x256xf32>
    %190 = arith.truncf %189 : vector<128x256xf32> to vector<128x256xbf16>
    %c0_139 = arith.constant 0 : index
    %c0_140 = arith.constant 0 : index
    %191 = vector.load %arg46[%c0_139, %c0_140] : memref<256x512xbf16, #tpu.memory_space<vmem>>, vector<256x512xbf16>
    %cst_141 = arith.constant dense<0.000000e+00> : vector<128x512xf32>
    %192 = tpu.matmul %190, %191, %cst_141 {dimension_numbers = #tpu.dot_dimension_numbers<[1], [0], [0], [1], [0, 0, 1, 1], [], []>} : vector<128x256xbf16>, vector<256x512xbf16>, vector<128x512xf32> -> vector<128x512xf32>
    %c0_142 = arith.constant 0 : index
    %c0_143 = arith.constant 0 : index
    %193 = vector.load %arg47[%c0_142, %c0_143] : memref<1x512xf32, #tpu.memory_space<vmem>>, vector<1x512xf32>
    %194 = vector.broadcast %193 : vector<1x512xf32> to vector<128x512xf32>
    %195 = arith.addf %192, %194 : vector<128x512xf32>
    %cst_144 = arith.constant 0.000000e+00 : f32
    %196 = vector.broadcast %cst_144 : f32 to vector<128x512xf32>
    %197 = arith.maximumf %195, %196 : vector<128x512xf32>
    %cst_145 = arith.constant dense<0xFF800000> : vector<512xf32>
    %198 = vector.multi_reduction <maximumf>, %197, %cst_145 [0] : vector<128x512xf32> to vector<512xf32>
    %199 = vector.shape_cast %198 : vector<512xf32> to vector<1x512xf32>
    %200 = arith.truncf %199 : vector<1x512xf32> to vector<1x512xbf16>
    %c0_146 = arith.constant 0 : index
    %c0_147 = arith.constant 0 : index
    %201 = vector.load %arg48[%c0_146, %c0_147] : memref<512x512xbf16, #tpu.memory_space<vmem>>, vector<512x512xbf16>
    %cst_148 = arith.constant dense<0.000000e+00> : vector<1x512xf32>
    %202 = tpu.matmul %200, %201, %cst_148 {dimension_numbers = #tpu.dot_dimension_numbers<[1], [0], [0], [1], [0, 0, 1, 1], [], []>} : vector<1x512xbf16>, vector<512x512xbf16>, vector<1x512xf32> -> vector<1x512xf32>
    %c0_149 = arith.constant 0 : index
    %c0_150 = arith.constant 0 : index
    %203 = vector.load %arg49[%c0_149, %c0_150] : memref<3x512xf32, #tpu.memory_space<vmem>>, vector<3x512xf32>
    %cst_151 = arith.constant dense<0.000000e+00> : vector<1x512xf32>
    %204 = tpu.matmul %3, %203, %cst_151 {dimension_numbers = #tpu.dot_dimension_numbers<[1], [0], [0], [1], [0, 0, 1, 1], [], []>} : vector<1x3xf32>, vector<3x512xf32>, vector<1x512xf32> -> vector<1x512xf32>
    %205 = arith.addf %202, %204 : vector<1x512xf32>
    %c0_152 = arith.constant 0 : index
    %c0_153 = arith.constant 0 : index
    %206 = vector.load %arg50[%c0_152, %c0_153] : memref<1x512xf32, #tpu.memory_space<vmem>>, vector<1x512xf32>
    %207 = arith.addf %205, %206 : vector<1x512xf32>
    %cst_154 = arith.constant 0.000000e+00 : f32
    %208 = vector.broadcast %cst_154 : f32 to vector<1x512xf32>
    %209 = arith.maximumf %207, %208 : vector<1x512xf32>
    %210 = arith.truncf %209 : vector<1x512xf32> to vector<1x512xbf16>
    %c0_155 = arith.constant 0 : index
    %c0_156 = arith.constant 0 : index
    %211 = vector.load %arg51[%c0_155, %c0_156] : memref<512x256xbf16, #tpu.memory_space<vmem>>, vector<512x256xbf16>
    %cst_157 = arith.constant dense<0.000000e+00> : vector<1x256xf32>
    %212 = tpu.matmul %210, %211, %cst_157 {dimension_numbers = #tpu.dot_dimension_numbers<[1], [0], [0], [1], [0, 0, 1, 1], [], []>} : vector<1x512xbf16>, vector<512x256xbf16>, vector<1x256xf32> -> vector<1x256xf32>
    %c0_158 = arith.constant 0 : index
    %c0_159 = arith.constant 0 : index
    %213 = vector.load %arg52[%c0_158, %c0_159] : memref<1x256xf32, #tpu.memory_space<vmem>>, vector<1x256xf32>
    %214 = arith.addf %212, %213 : vector<1x256xf32>
    %cst_160 = arith.constant 0.000000e+00 : f32
    %215 = vector.broadcast %cst_160 : f32 to vector<1x256xf32>
    %216 = arith.maximumf %214, %215 : vector<1x256xf32>
    %217 = arith.truncf %216 : vector<1x256xf32> to vector<1x256xbf16>
    %c0_161 = arith.constant 0 : index
    %c0_162 = arith.constant 0 : index
    %218 = vector.load %arg53[%c0_161, %c0_162] : memref<256x128xbf16, #tpu.memory_space<vmem>>, vector<256x128xbf16>
    %cst_163 = arith.constant dense<0.000000e+00> : vector<1x128xf32>
    %219 = tpu.matmul %217, %218, %cst_163 {dimension_numbers = #tpu.dot_dimension_numbers<[1], [0], [0], [1], [0, 0, 1, 1], [], []>} : vector<1x256xbf16>, vector<256x128xbf16>, vector<1x128xf32> -> vector<1x128xf32>
    %c0_164 = arith.constant 0 : index
    %c0_165 = arith.constant 0 : index
    %220 = vector.load %arg54[%c0_164, %c0_165] : memref<1x128xf32, #tpu.memory_space<vmem>>, vector<1x128xf32>
    %221 = arith.addf %219, %220 : vector<1x128xf32>
    %c0_166 = arith.constant 0 : index
    %c0_167 = arith.constant 0 : index
    %222 = vector.load %arg55[%c0_166, %c0_167] : memref<4x128xf32, #tpu.memory_space<vmem>>, vector<4x128xf32>
    %cst_168 = arith.constant dense<0.000000e+00> : vector<1x128xf32>
    %223 = tpu.matmul %163, %222, %cst_168 {dimension_numbers = #tpu.dot_dimension_numbers<[1], [0], [0], [1], [0, 0, 1, 1], [], []>} : vector<1x4xf32>, vector<4x128xf32>, vector<1x128xf32> -> vector<1x128xf32>
    %224 = arith.addf %221, %223 : vector<1x128xf32>
    %c0_169 = arith.constant 0 : index
    %c0_170 = arith.constant 0 : index
    %c0_171 = arith.constant 0 : index
    %225 = vector.load %arg57[%c0_169, %c0_170, %c0_171] : memref<1x1x128xf32, #tpu.memory_space<vmem>>, vector<1x1x128xf32>
    %226 = vector.shape_cast %225 : vector<1x1x128xf32> to vector<1x128xf32>
    %227 = vector.shape_cast %224 : vector<1x128xf32> to vector<1x1x128xf32>
    tpu.vector_store %arg57[%c0_169, %c0_170, %c0_171], %227 {strides = array<i32>} : memref<1x1x128xf32, #tpu.memory_space<vmem>>, vector<1x1x128xf32>,
    return
  }
  func.func @transform_0(%arg0: i32) -> (i32, i32, i32) {
    %c0_i32 = arith.constant 0 : i32
    %c0_i32_0 = arith.constant 0 : i32
    %c0_i32_1 = arith.constant 0 : i32
    return %arg0, %c0_i32, %c0_i32_0 : i32, i32, i32
  }
  func.func @transform_1(%arg0: i32) -> (i32, i32, i32) {
    %c0_i32 = arith.constant 0 : i32
    %c0_i32_0 = arith.constant 0 : i32
    %c0_i32_1 = arith.constant 0 : i32
    return %arg0, %c0_i32, %c0_i32_0 : i32, i32, i32
  }
  func.func @transform_2(%arg0: i32) -> (i32, i32) {
    %c0_i32 = arith.constant 0 : i32
    %c0_i32_0 = arith.constant 0 : i32
    %c0_i32_1 = arith.constant 0 : i32
    return %c0_i32, %c0_i32_0 : i32, i32
  }
  func.func @transform_3(%arg0: i32) -> (i32, i32) {
    %c0_i32 = arith.constant 0 : i32
    %c0_i32_0 = arith.constant 0 : i32
    %c0_i32_1 = arith.constant 0 : i32
    return %c0_i32, %c0_i32_0 : i32, i32
  }
  func.func @transform_4(%arg0: i32) -> (i32, i32) {
    %c0_i32 = arith.constant 0 : i32
    %c0_i32_0 = arith.constant 0 : i32
    %c0_i32_1 = arith.constant 0 : i32
    return %c0_i32, %c0_i32_0 : i32, i32
  }
  func.func @transform_5(%arg0: i32) -> (i32, i32) {
    %c0_i32 = arith.constant 0 : i32
    %c0_i32_0 = arith.constant 0 : i32
    %c0_i32_1 = arith.constant 0 : i32
    return %c0_i32, %c0_i32_0 : i32, i32
  }
  func.func @transform_6(%arg0: i32) -> (i32, i32) {
    %c0_i32 = arith.constant 0 : i32
    %c0_i32_0 = arith.constant 0 : i32
    %c0_i32_1 = arith.constant 0 : i32
    return %c0_i32, %c0_i32_0 : i32, i32
  }
  func.func @transform_7(%arg0: i32) -> (i32, i32) {
    %c0_i32 = arith.constant 0 : i32
    %c0_i32_0 = arith.constant 0 : i32
    %c0_i32_1 = arith.constant 0 : i32
    return %c0_i32, %c0_i32_0 : i32, i32
  }
  func.func @transform_8(%arg0: i32) -> (i32, i32) {
    %c0_i32 = arith.constant 0 : i32
    %c0_i32_0 = arith.constant 0 : i32
    %c0_i32_1 = arith.constant 0 : i32
    return %c0_i32, %c0_i32_0 : i32, i32
  }
  func.func @transform_9(%arg0: i32) -> (i32, i32) {
    %c0_i32 = arith.constant 0 : i32
    %c0_i32_0 = arith.constant 0 : i32
    %c0_i32_1 = arith.constant 0 : i32
    return %c0_i32, %c0_i32_0 : i32, i32
  }
  func.func @transform_10(%arg0: i32) -> (i32, i32) {
    %c0_i32 = arith.constant 0 : i32
    %c0_i32_0 = arith.constant 0 : i32
    %c0_i32_1 = arith.constant 0 : i32
    return %c0_i32, %c0_i32_0 : i32, i32
  }
  func.func @transform_11(%arg0: i32) -> (i32, i32) {
    %c0_i32 = arith.constant 0 : i32
    %c0_i32_0 = arith.constant 0 : i32
    %c0_i32_1 = arith.constant 0 : i32
    return %c0_i32, %c0_i32_0 : i32, i32
  }
  func.func @transform_12(%arg0: i32) -> (i32, i32) {
    %c0_i32 = arith.constant 0 : i32
    %c0_i32_0 = arith.constant 0 : i32
    %c0_i32_1 = arith.constant 0 : i32
    return %c0_i32, %c0_i32_0 : i32, i32
  }
  func.func @transform_13(%arg0: i32) -> (i32, i32) {
    %c0_i32 = arith.constant 0 : i32
    %c0_i32_0 = arith.constant 0 : i32
    %c0_i32_1 = arith.constant 0 : i32
    return %c0_i32, %c0_i32_0 : i32, i32
  }
  func.func @transform_14(%arg0: i32) -> (i32, i32) {
    %c0_i32 = arith.constant 0 : i32
    %c0_i32_0 = arith.constant 0 : i32
    %c0_i32_1 = arith.constant 0 : i32
    return %c0_i32, %c0_i32_0 : i32, i32
  }
  func.func @transform_15(%arg0: i32) -> (i32, i32) {
    %c0_i32 = arith.constant 0 : i32
    %c0_i32_0 = arith.constant 0 : i32
    %c0_i32_1 = arith.constant 0 : i32
    return %c0_i32, %c0_i32_0 : i32, i32
  }
  func.func @transform_16(%arg0: i32) -> (i32, i32) {
    %c0_i32 = arith.constant 0 : i32
    %c0_i32_0 = arith.constant 0 : i32
    %c0_i32_1 = arith.constant 0 : i32
    return %c0_i32, %c0_i32_0 : i32, i32
  }
  func.func @transform_17(%arg0: i32) -> (i32, i32) {
    %c0_i32 = arith.constant 0 : i32
    %c0_i32_0 = arith.constant 0 : i32
    %c0_i32_1 = arith.constant 0 : i32
    return %c0_i32, %c0_i32_0 : i32, i32
  }
  func.func @transform_18(%arg0: i32) -> (i32, i32) {
    %c0_i32 = arith.constant 0 : i32
    %c0_i32_0 = arith.constant 0 : i32
    %c0_i32_1 = arith.constant 0 : i32
    return %c0_i32, %c0_i32_0 : i32, i32
  }
  func.func @transform_19(%arg0: i32) -> (i32, i32) {
    %c0_i32 = arith.constant 0 : i32
    %c0_i32_0 = arith.constant 0 : i32
    %c0_i32_1 = arith.constant 0 : i32
    return %c0_i32, %c0_i32_0 : i32, i32
  }
  func.func @transform_20(%arg0: i32) -> (i32, i32) {
    %c0_i32 = arith.constant 0 : i32
    %c0_i32_0 = arith.constant 0 : i32
    %c0_i32_1 = arith.constant 0 : i32
    return %c0_i32, %c0_i32_0 : i32, i32
  }
  func.func @transform_21(%arg0: i32) -> (i32, i32) {
    %c0_i32 = arith.constant 0 : i32
    %c0_i32_0 = arith.constant 0 : i32
    %c0_i32_1 = arith.constant 0 : i32
    return %c0_i32, %c0_i32_0 : i32, i32
  }
  func.func @transform_22(%arg0: i32) -> (i32, i32) {
    %c0_i32 = arith.constant 0 : i32
    %c0_i32_0 = arith.constant 0 : i32
    %c0_i32_1 = arith.constant 0 : i32
    return %c0_i32, %c0_i32_0 : i32, i32
  }
  func.func @transform_23(%arg0: i32) -> (i32, i32) {
    %c0_i32 = arith.constant 0 : i32
    %c0_i32_0 = arith.constant 0 : i32
    %c0_i32_1 = arith.constant 0 : i32
    return %c0_i32, %c0_i32_0 : i32, i32
  }
  func.func @transform_24(%arg0: i32) -> (i32, i32) {
    %c0_i32 = arith.constant 0 : i32
    %c0_i32_0 = arith.constant 0 : i32
    %c0_i32_1 = arith.constant 0 : i32
    return %c0_i32, %c0_i32_0 : i32, i32
  }
  func.func @transform_25(%arg0: i32) -> (i32, i32) {
    %c0_i32 = arith.constant 0 : i32
    %c0_i32_0 = arith.constant 0 : i32
    %c0_i32_1 = arith.constant 0 : i32
    return %c0_i32, %c0_i32_0 : i32, i32
  }
  func.func @transform_26(%arg0: i32) -> (i32, i32) {
    %c0_i32 = arith.constant 0 : i32
    %c0_i32_0 = arith.constant 0 : i32
    %c0_i32_1 = arith.constant 0 : i32
    return %c0_i32, %c0_i32_0 : i32, i32
  }
  func.func @transform_27(%arg0: i32) -> (i32, i32) {
    %c0_i32 = arith.constant 0 : i32
    %c0_i32_0 = arith.constant 0 : i32
    %c0_i32_1 = arith.constant 0 : i32
    return %c0_i32, %c0_i32_0 : i32, i32
  }
  func.func @transform_28(%arg0: i32) -> (i32, i32) {
    %c0_i32 = arith.constant 0 : i32
    %c0_i32_0 = arith.constant 0 : i32
    %c0_i32_1 = arith.constant 0 : i32
    return %c0_i32, %c0_i32_0 : i32, i32
  }
  func.func @transform_29(%arg0: i32) -> (i32, i32) {
    %c0_i32 = arith.constant 0 : i32
    %c0_i32_0 = arith.constant 0 : i32
    %c0_i32_1 = arith.constant 0 : i32
    return %c0_i32, %c0_i32_0 : i32, i32
  }
  func.func @transform_30(%arg0: i32) -> (i32, i32) {
    %c0_i32 = arith.constant 0 : i32
    %c0_i32_0 = arith.constant 0 : i32
    %c0_i32_1 = arith.constant 0 : i32
    return %c0_i32, %c0_i32_0 : i32, i32
  }
  func.func @transform_31(%arg0: i32) -> (i32, i32) {
    %c0_i32 = arith.constant 0 : i32
    %c0_i32_0 = arith.constant 0 : i32
    %c0_i32_1 = arith.constant 0 : i32
    return %c0_i32, %c0_i32_0 : i32, i32
  }
  func.func @transform_32(%arg0: i32) -> (i32, i32) {
    %c0_i32 = arith.constant 0 : i32
    %c0_i32_0 = arith.constant 0 : i32
    %c0_i32_1 = arith.constant 0 : i32
    return %c0_i32, %c0_i32_0 : i32, i32
  }
  func.func @transform_33(%arg0: i32) -> (i32, i32) {
    %c0_i32 = arith.constant 0 : i32
    %c0_i32_0 = arith.constant 0 : i32
    %c0_i32_1 = arith.constant 0 : i32
    return %c0_i32, %c0_i32_0 : i32, i32
  }
  func.func @transform_34(%arg0: i32) -> (i32, i32) {
    %c0_i32 = arith.constant 0 : i32
    %c0_i32_0 = arith.constant 0 : i32
    %c0_i32_1 = arith.constant 0 : i32
    return %c0_i32, %c0_i32_0 : i32, i32
  }
  func.func @transform_35(%arg0: i32) -> (i32, i32) {
    %c0_i32 = arith.constant 0 : i32
    %c0_i32_0 = arith.constant 0 : i32
    %c0_i32_1 = arith.constant 0 : i32
    return %c0_i32, %c0_i32_0 : i32, i32
  }
  func.func @transform_36(%arg0: i32) -> (i32, i32) {
    %c0_i32 = arith.constant 0 : i32
    %c0_i32_0 = arith.constant 0 : i32
    %c0_i32_1 = arith.constant 0 : i32
    return %c0_i32, %c0_i32_0 : i32, i32
  }
  func.func @transform_37(%arg0: i32) -> (i32, i32) {
    %c0_i32 = arith.constant 0 : i32
    %c0_i32_0 = arith.constant 0 : i32
    %c0_i32_1 = arith.constant 0 : i32
    return %c0_i32, %c0_i32_0 : i32, i32
  }
  func.func @transform_38(%arg0: i32) -> (i32, i32) {
    %c0_i32 = arith.constant 0 : i32
    %c0_i32_0 = arith.constant 0 : i32
    %c0_i32_1 = arith.constant 0 : i32
    return %c0_i32, %c0_i32_0 : i32, i32
  }
  func.func @transform_39(%arg0: i32) -> (i32, i32) {
    %c0_i32 = arith.constant 0 : i32
    %c0_i32_0 = arith.constant 0 : i32
    %c0_i32_1 = arith.constant 0 : i32
    return %c0_i32, %c0_i32_0 : i32, i32
  }
  func.func @transform_40(%arg0: i32) -> (i32, i32) {
    %c0_i32 = arith.constant 0 : i32
    %c0_i32_0 = arith.constant 0 : i32
    %c0_i32_1 = arith.constant 0 : i32
    return %c0_i32, %c0_i32_0 : i32, i32
  }
  func.func @transform_41(%arg0: i32) -> (i32, i32) {
    %c0_i32 = arith.constant 0 : i32
    %c0_i32_0 = arith.constant 0 : i32
    %c0_i32_1 = arith.constant 0 : i32
    return %c0_i32, %c0_i32_0 : i32, i32
  }
  func.func @transform_42(%arg0: i32) -> (i32, i32) {
    %c0_i32 = arith.constant 0 : i32
    %c0_i32_0 = arith.constant 0 : i32
    %c0_i32_1 = arith.constant 0 : i32
    return %c0_i32, %c0_i32_0 : i32, i32
  }
  func.func @transform_43(%arg0: i32) -> (i32, i32) {
    %c0_i32 = arith.constant 0 : i32
    %c0_i32_0 = arith.constant 0 : i32
    %c0_i32_1 = arith.constant 0 : i32
    return %c0_i32, %c0_i32_0 : i32, i32
  }
  func.func @transform_44(%arg0: i32) -> (i32, i32) {
    %c0_i32 = arith.constant 0 : i32
    %c0_i32_0 = arith.constant 0 : i32
    %c0_i32_1 = arith.constant 0 : i32
    return %c0_i32, %c0_i32_0 : i32, i32
  }
  func.func @transform_45(%arg0: i32) -> (i32, i32) {
    %c0_i32 = arith.constant 0 : i32
    %c0_i32_0 = arith.constant 0 : i32
    %c0_i32_1 = arith.constant 0 : i32
    return %c0_i32, %c0_i32_0 : i32, i32
  }
  func.func @transform_46(%arg0: i32) -> (i32, i32) {
    %c0_i32 = arith.constant 0 : i32
    %c0_i32_0 = arith.constant 0 : i32
    %c0_i32_1 = arith.constant 0 : i32
    return %c0_i32, %c0_i32_0 : i32, i32
  }
  func.func @transform_47(%arg0: i32) -> (i32, i32) {
    %c0_i32 = arith.constant 0 : i32
    %c0_i32_0 = arith.constant 0 : i32
    %c0_i32_1 = arith.constant 0 : i32
    return %c0_i32, %c0_i32_0 : i32, i32
  }
  func.func @transform_48(%arg0: i32) -> (i32, i32) {
    %c0_i32 = arith.constant 0 : i32
    %c0_i32_0 = arith.constant 0 : i32
    %c0_i32_1 = arith.constant 0 : i32
    return %c0_i32, %c0_i32_0 : i32, i32
  }
  func.func @transform_49(%arg0: i32) -> (i32, i32) {
    %c0_i32 = arith.constant 0 : i32
    %c0_i32_0 = arith.constant 0 : i32
    %c0_i32_1 = arith.constant 0 : i32
    return %c0_i32, %c0_i32_0 : i32, i32
  }
  func.func @transform_50(%arg0: i32) -> (i32, i32) {
    %c0_i32 = arith.constant 0 : i32
    %c0_i32_0 = arith.constant 0 : i32
    %c0_i32_1 = arith.constant 0 : i32
    return %c0_i32, %c0_i32_0 : i32, i32
  }
  func.func @transform_51(%arg0: i32) -> (i32, i32) {
    %c0_i32 = arith.constant 0 : i32
    %c0_i32_0 = arith.constant 0 : i32
    %c0_i32_1 = arith.constant 0 : i32
    return %c0_i32, %c0_i32_0 : i32, i32
  }
  func.func @transform_52(%arg0: i32) -> (i32, i32) {
    %c0_i32 = arith.constant 0 : i32
    %c0_i32_0 = arith.constant 0 : i32
    %c0_i32_1 = arith.constant 0 : i32
    return %c0_i32, %c0_i32_0 : i32, i32
  }
  func.func @transform_53(%arg0: i32) -> (i32, i32) {
    %c0_i32 = arith.constant 0 : i32
    %c0_i32_0 = arith.constant 0 : i32
    %c0_i32_1 = arith.constant 0 : i32
    return %c0_i32, %c0_i32_0 : i32, i32
  }
  func.func @transform_54(%arg0: i32) -> (i32, i32) {
    %c0_i32 = arith.constant 0 : i32
    %c0_i32_0 = arith.constant 0 : i32
    %c0_i32_1 = arith.constant 0 : i32
    return %c0_i32, %c0_i32_0 : i32, i32
  }
  func.func @transform_55(%arg0: i32) -> (i32, i32, i32) {
    %c0_i32 = arith.constant 0 : i32
    %c0_i32_0 = arith.constant 0 : i32
    %c0_i32_1 = arith.constant 0 : i32
    return %arg0, %c0_i32, %c0_i32_0 : i32, i32, i32
  }
  func.func @transform_56(%arg0: i32) -> (i32, i32, i32) {
    %c0_i32 = arith.constant 0 : i32
    %c0_i32_0 = arith.constant 0 : i32
    %c0_i32_1 = arith.constant 0 : i32
    return %arg0, %c0_i32, %c0_i32_0 : i32, i32, i32
  }
}

</mosaic_0001>

<llo_original>
// kernel: fpointnet_forward.1
$region0: #{fpointnet_forward.1}
  #allocation0 [shape = 'u32[]', space=smem, size = 0x4, offset = 0x4, fixed_abs, tag = 'smem constant byte address 0x4 - core index']
  #allocation1 [shape = 'u32[72,128]{1,0:T(1,128)}', space=vmem, size = 0x9000, scoped, tag = 'internal scratch']
  %s0 = inlined_call_operand.smem [shape: u32[57], index: -1, kind: input, shape index: {}]
  %s1 = sld [smem:[%s0]]
  %s2 = scalar_lea.smem %s0, 1
  %s3 = sld [smem:[%s2]]
  %s4 = scalar_lea.smem %s0, 2
  %s5 = sld [smem:[%s4]]
  %s6 = scalar_lea.smem %s0, 3
  %s7 = sld [smem:[%s6]]
  %s8 = scalar_lea.smem %s0, 4
  %s9 = sld [smem:[%s8]]
  %s10 = scalar_lea.smem %s0, 5
  %s11 = sld [smem:[%s10]]
  %s12 = scalar_lea.smem %s0, 6
  %s13 = sld [smem:[%s12]]
  %s14 = scalar_lea.smem %s0, 7
  %s15 = sld [smem:[%s14]]
  %s16 = scalar_lea.smem %s0, 8
  %s17 = sld [smem:[%s16]]
  %s18 = scalar_lea.smem %s0, 9
  %s19 = sld [smem:[%s18]]
  %s20 = scalar_lea.smem %s0, 10
  %s21 = sld [smem:[%s20]]
  %s22 = scalar_lea.smem %s0, 11
  %s23 = sld [smem:[%s22]]
  %s24 = scalar_lea.smem %s0, 12
  %s25 = sld [smem:[%s24]]
  %s26 = scalar_lea.smem %s0, 13
  %s27 = sld [smem:[%s26]]
  %s28 = scalar_lea.smem %s0, 14
  %s29 = sld [smem:[%s28]]
  %s30 = scalar_lea.smem %s0, 15
  %s31 = sld [smem:[%s30]]
  %s32 = scalar_lea.smem %s0, 16
  %s33 = sld [smem:[%s32]]
  %s34 = scalar_lea.smem %s0, 17
  %s35 = sld [smem:[%s34]]
  %s36 = scalar_lea.smem %s0, 18
  %s37 = sld [smem:[%s36]]
  %s38 = scalar_lea.smem %s0, 19
  %s39 = sld [smem:[%s38]]
  %s40 = scalar_lea.smem %s0, 20
  %s41 = sld [smem:[%s40]]
  %s42 = scalar_lea.smem %s0, 21
  %s43 = sld [smem:[%s42]]
  %s44 = scalar_lea.smem %s0, 22
  %s45 = sld [smem:[%s44]]
  %s46 = scalar_lea.smem %s0, 23
  %s47 = sld [smem:[%s46]]
  %s48 = scalar_lea.smem %s0, 24
  %s49 = sld [smem:[%s48]]
  %s50 = scalar_lea.smem %s0, 25
  %s51 = sld [smem:[%s50]]
  %s52 = scalar_lea.smem %s0, 26
  %s53 = sld [smem:[%s52]]
  %s54 = scalar_lea.smem %s0, 27
  %s55 = sld [smem:[%s54]]
  %s56 = scalar_lea.smem %s0, 28
  %s57 = sld [smem:[%s56]]
  %s58 = scalar_lea.smem %s0, 29
  %s59 = sld [smem:[%s58]]
  %s60 = scalar_lea.smem %s0, 30
  %s61 = sld [smem:[%s60]]
  %s62 = scalar_lea.smem %s0, 31
  %s63 = sld [smem:[%s62]]
  %s64 = scalar_lea.smem %s0, 32
  %s65 = sld [smem:[%s64]]
  %s66 = scalar_lea.smem %s0, 33
  %s67 = sld [smem:[%s66]]
  %s68 = scalar_lea.smem %s0, 34
  %s69 = sld [smem:[%s68]]
  %s70 = scalar_lea.smem %s0, 35
  %s71 = sld [smem:[%s70]]
  %s72 = scalar_lea.smem %s0, 36
  %s73 = sld [smem:[%s72]]
  %s74 = scalar_lea.smem %s0, 37
  %s75 = sld [smem:[%s74]]
  %s76 = scalar_lea.smem %s0, 38
  %s77 = sld [smem:[%s76]]
  %s78 = scalar_lea.smem %s0, 39
  %s79 = sld [smem:[%s78]]
  %s80 = scalar_lea.smem %s0, 40
  %s81 = sld [smem:[%s80]]
  %s82 = scalar_lea.smem %s0, 41
  %s83 = sld [smem:[%s82]]
  %s84 = scalar_lea.smem %s0, 42
  %s85 = sld [smem:[%s84]]
  %s86 = scalar_lea.smem %s0, 43
  %s87 = sld [smem:[%s86]]
  %s88 = scalar_lea.smem %s0, 44
  %s89 = sld [smem:[%s88]]
  %s90 = scalar_lea.smem %s0, 45
  %s91 = sld [smem:[%s90]]
  %s92 = scalar_lea.smem %s0, 46
  %s93 = sld [smem:[%s92]]
  %s94 = scalar_lea.smem %s0, 47
  %s95 = sld [smem:[%s94]]
  %s96 = scalar_lea.smem %s0, 48
  %s97 = sld [smem:[%s96]]
  %s98 = scalar_lea.smem %s0, 49
  %s99 = sld [smem:[%s98]]
  %s100 = scalar_lea.smem %s0, 50
  %s101 = sld [smem:[%s100]]
  %s102 = scalar_lea.smem %s0, 51
  %s103 = sld [smem:[%s102]]
  %s104 = scalar_lea.smem %s0, 52
  %s105 = sld [smem:[%s104]]
  %s106 = scalar_lea.smem %s0, 53
  %s107 = sld [smem:[%s106]]
  %s108 = scalar_lea.smem %s0, 54
  %s109 = sld [smem:[%s108]]
  %s110 = scalar_lea.smem %s0, 55
  %s111 = sld [smem:[%s110]]
  %s112 = scalar_lea.smem %s0, 56
  %s113 = sld [smem:[%s112]]
  %114 = xla_tuple %s111, %s113
  %s115 = sld [smem:[#allocation0]]
  $region425: #{fpointnet_forward.1} parent=0
    _
  %s117 = ssub.s32 1, %s115
  %s118 = scalar_select 0, %s117, %s115
  $region1: #{fpointnet_forward.1} parent=0
    #allocation2 [shape = 'u8[1024]{0}', space=vmem, size = 0x400, scoped, tag = 'input window, operand 2, single buffered']
    #allocation3 [shape = 's32[2]{0}', space=sflag, size = 0x8, scoped, tag = 'scoped memory for fpointnet_forward.1']
    #allocation4 [shape = 'u8[512]{0}', space=vmem, size = 0x400, scoped, tag = 'input window, operand 3, single buffered']
    #allocation5 [shape = 's32[1]{0}', space=sflag, size = 0x4, scoped, tag = 'scoped memory for fpointnet_forward.1']
    #allocation6 [shape = 'u8[16384]{0}', space=vmem, size = 0x4000, scoped, tag = 'input window, operand 4, single buffered']
    #allocation7 [shape = 'u8[512]{0}', space=vmem, size = 0x400, scoped, tag = 'input window, operand 5, single buffered']
    #allocation8 [shape = 's32[1]{0}', space=sflag, size = 0x4, scoped, tag = 'scoped memory for fpointnet_forward.1']
    #allocation9 [shape = 'u8[16384]{0}', space=vmem, size = 0x4000, scoped, tag = 'input window, operand 6, single buffered']
    #allocation10 [shape = 'u8[512]{0}', space=vmem, size = 0x400, scoped, tag = 'input window, operand 7, single buffered']
    #allocation11 [shape = 's32[1]{0}', space=sflag, size = 0x4, scoped, tag = 'scoped memory for fpointnet_forward.1']
    #allocation12 [shape = 'u8[16384]{0}', space=vmem, size = 0x4000, scoped, tag = 'input window, operand 8, single buffered']
    #allocation13 [shape = 'u8[512]{0}', space=vmem, size = 0x400, scoped, tag = 'input window, operand 9, single buffered']
    #allocation14 [shape = 's32[1]{0}', space=sflag, size = 0x4, scoped, tag = 'scoped memory for fpointnet_forward.1']
    #allocation15 [shape = 'u8[65536]{0}', space=vmem, size = 0x10000, scoped, tag = 'input window, operand 10, single buffered']
    #allocation16 [shape = 'u8[1024]{0}', space=vmem, size = 0x400, scoped, tag = 'input window, operand 11, single buffered']
    #allocation17 [shape = 's32[1]{0}', space=sflag, size = 0x4, scoped, tag = 'scoped memory for fpointnet_forward.1']
    #allocation18 [shape = 'u8[4096]{0}', space=vmem, size = 0x1000, scoped, tag = 'input window, operand 14, single buffered']
    #allocation19 [shape = 'u8[1024]{0}', space=vmem, size = 0x400, scoped, tag = 'input window, operand 15, single buffered']
    #allocation20 [shape = 's32[1]{0}', space=sflag, size = 0x4, scoped, tag = 'scoped memory for fpointnet_forward.1']
    #allocation21 [shape = 'u8[65536]{0}', space=vmem, size = 0x10000, scoped, tag = 'input window, operand 16, single buffered']
    #allocation22 [shape = 'u8[512]{0}', space=vmem, size = 0x400, scoped, tag = 'input window, operand 17, single buffered']
    #allocation23 [shape = 's32[1]{0}', space=sflag, size = 0x4, scoped, tag = 'scoped memory for fpointnet_forward.1']
    #allocation24 [shape = 'u8[512]{0}', space=vmem, size = 0x400, scoped, tag = 'input window, operand 19, single buffered']
    #allocation25 [shape = 'u8[32768]{0}', space=vmem, size = 0x8000, scoped, tag = 'input window, operand 20, single buffered']
    #allocation26 [shape = 's32[1]{0}', space=sflag, size = 0x4, scoped, tag = 'scoped memory for fpointnet_forward.1']
    #allocation27 [shape = 'u8[512]{0}', space=vmem, size = 0x400, scoped, tag = 'input window, operand 21, single buffered']
    #allocation28 [shape = 'u8[32768]{0}', space=vmem, size = 0x8000, scoped, tag = 'input window, operand 22, single buffered']
    #allocation29 [shape = 's32[1]{0}', space=sflag, size = 0x4, scoped, tag = 'scoped memory for fpointnet_forward.1']
    #allocation30 [shape = 'u8[512]{0}', space=vmem, size = 0x400, scoped, tag = 'input window, operand 23, single buffered']
    #allocation31 [shape = 'u8[512]{0}', space=vmem, size = 0x400, scoped, tag = 'input window, operand 25, single buffered']
    #allocation32 [shape = 's32[1]{0}', space=sflag, size = 0x4, scoped, tag = 'scoped memory for fpointnet_forward.1']
    #allocation33 [shape = 'u8[1024]{0}', space=vmem, size = 0x400, scoped, tag = 'input window, operand 26, single buffered']
    #allocation34 [shape = 'u8[512]{0}', space=vmem, size = 0x400, scoped, tag = 'input window, operand 27, single buffered']
    #allocation35 [shape = 's32[1]{0}', space=sflag, size = 0x4, scoped, tag = 'scoped memory for fpointnet_forward.1']
    #allocation36 [shape = 'u8[32768]{0}', space=vmem, size = 0x8000, scoped, tag = 'input window, operand 28, single buffered']
    #allocation37 [shape = 'u8[512]{0}', space=vmem, size = 0x400, scoped, tag = 'input window, operand 29, single buffered']
    #allocation38 [shape = 's32[1]{0}', space=sflag, size = 0x4, scoped, tag = 'scoped memory for fpointnet_forward.1']
    #allocation39 [shape = 'u8[65536]{0}', space=vmem, size = 0x10000, scoped, tag = 'input window, operand 30, single buffered']
    #allocation40 [shape = 'u8[1024]{0}', space=vmem, size = 0x400, scoped, tag = 'input window, operand 31, single buffered']
    #allocation41 [shape = 's32[1]{0}', space=sflag, size = 0x4, scoped, tag = 'scoped memory for fpointnet_forward.1']
    #allocation42 [shape = 'u8[131072]{0}', space=vmem, size = 0x20000, scoped, tag = 'input window, operand 32, single buffered']
    #allocation43 [shape = 'u8[1024]{0}', space=vmem, size = 0x400, scoped, tag = 'input window, operand 34, single buffered']
    #allocation44 [shape = 's32[1]{0}', space=sflag, size = 0x4, scoped, tag = 'scoped memory for fpointnet_forward.1']
    #allocation45 [shape = 'u8[65536]{0}', space=vmem, size = 0x10000, scoped, tag = 'input window, operand 35, single buffered']
    #allocation46 [shape = 'u8[512]{0}', space=vmem, size = 0x400, scoped, tag = 'input window, operand 36, single buffered']
    #allocation47 [shape = 's32[1]{0}', space=sflag, size = 0x4, scoped, tag = 'scoped memory for fpointnet_forward.1']
    #allocation48 [shape = 'u8[512]{0}', space=vmem, size = 0x400, scoped, tag = 'input window, operand 38, single buffered']
    #allocation49 [shape = 'u8[1024]{0}', space=vmem, size = 0x400, scoped, tag = 'input window, operand 39, single buffered']
    #allocation50 [shape = 's32[1]{0}', space=sflag, size = 0x4, scoped, tag = 'scoped memory for fpointnet_forward.1']
    #allocation51 [shape = 'u8[512]{0}', space=vmem, size = 0x400, scoped, tag = 'input window, operand 40, single buffered']
    #allocation52 [shape = 'u8[32768]{0}', space=vmem, size = 0x8000, scoped, tag = 'input window, operand 41, single buffered']
    #allocation53 [shape = 's32[1]{0}', space=sflag, size = 0x4, scoped, tag = 'scoped memory for fpointnet_forward.1']
    #allocation54 [shape = 'u8[512]{0}', space=vmem, size = 0x400, scoped, tag = 'input window, operand 42, single buffered']
    #allocation55 [shape = 'u8[65536]{0}', space=vmem, size = 0x10000, scoped, tag = 'input window, operand 43, single buffered']
    #allocation56 [shape = 's32[1]{0}', space=sflag, size = 0x4, scoped, tag = 'scoped memory for fpointnet_forward.1']
    #allocation57 [shape = 'u8[1024]{0}', space=vmem, size = 0x400, scoped, tag = 'input window, operand 44, single buffered']
    #allocation58 [shape = 'u8[262144]{0}', space=vmem, size = 0x40000, scoped, tag = 'input window, operand 45, single buffered']
    #allocation59 [shape = 's32[1]{0}', space=sflag, size = 0x4, scoped, tag = 'scoped memory for fpointnet_forward.1']
    #allocation60 [shape = 'u8[524288]{0}', space=vmem, size = 0x80000, scoped, tag = 'input window, operand 47, single buffered']
    #allocation61 [shape = 'u8[262144]{0}', space=vmem, size = 0x40000, scoped, tag = 'input window, operand 50, single buffered']
    #allocation62 [shape = 's32[1]{0}', space=sflag, size = 0x4, scoped, tag = 'scoped memory for fpointnet_forward.1']
    #allocation63 [shape = 'u8[65536]{0}', space=vmem, size = 0x10000, scoped, tag = 'input window, operand 52, single buffered']
    %119 = vsyncpa [#allocation3], 0
    %120 = vsyncpa [#allocation5], 0
    %121 = vsyncpa [#allocation8], 0
    %122 = vsyncpa [#allocation11], 0
    %123 = vsyncpa [#allocation14], 0
    %124 = vsyncpa [#allocation17], 0
    %125 = vsyncpa [#allocation20], 0
    %126 = vsyncpa [#allocation23], 0
    %127 = vsyncpa [#allocation26], 0
    %128 = vsyncpa [#allocation29], 0
    %129 = vsyncpa [#allocation32], 0
    %130 = vsyncpa [#allocation35], 0
    %131 = vsyncpa [#allocation38], 0
    %132 = vsyncpa [#allocation41], 0
    %133 = vsyncpa [#allocation44], 0
    %134 = vsyncpa [#allocation47], 0
    %135 = vsyncpa [#allocation50], 0
    %136 = vsyncpa [#allocation53], 0
    %137 = vsyncpa [#allocation56], 0
    %138 = vsyncpa [#allocation59], 0
    %139 = vsyncpa [#allocation62], 0
    loop: start=0, step=1, limit=4
    $region2: #{fpointnet_forward.1} parent=1 // loop_pre_header
      _
    $region3: #{fpointnet_forward.1} parent=1 // loop_header
      %s141 = sphi 0, %s145
      %p142 = scmp.ge.s32.totalorder %s141, 4
      %s151 = sphi 0, %s153
      %s154 = sphi 0, %s151
      %s155 = sphi 0, %s154
      %s171 = sphi 0, %s155
      %s177 = sphi 0, %s179
      %s180 = sphi 0, %s177
      %s181 = sphi 0, %s180
      %s197 = sphi 0, %s181
      %s201 = sphi 0, %s201
      %s203 = sphi 0, %s201
      %s204 = sphi 0, %s203
      %s218 = sphi 0, %s204
      %s222 = sphi 0, %s222
      %s224 = sphi 0, %s222
      %s225 = sphi 0, %s224
      %s239 = sphi 0, %s225
      %s243 = sphi 0, %s243
      %s245 = sphi 0, %s243
      %s246 = sphi 0, %s245
      %s260 = sphi 0, %s246
      %s264 = sphi 0, %s264
      %s266 = sphi 0, %s264
      %s267 = sphi 0, %s266
      %s281 = sphi 0, %s267
      %s285 = sphi 0, %s285
      %s287 = sphi 0, %s285
      %s288 = sphi 0, %s287
      %s302 = sphi 0, %s288
      %s306 = sphi 0, %s306
      %s308 = sphi 0, %s306
      %s309 = sphi 0, %s308
      %s323 = sphi 0, %s309
      %s327 = sphi 0, %s327
      %s329 = sphi 0, %s327
      %s330 = sphi 0, %s329
      %s344 = sphi 0, %s330
      %s348 = sphi 0, %s348
      %s350 = sphi 0, %s348
      %s351 = sphi 0, %s350
      %s365 = sphi 0, %s351
      %s369 = sphi 0, %s369
      %s371 = sphi 0, %s369
      %s372 = sphi 0, %s371
      %s386 = sphi 0, %s372
      %s390 = sphi 0, %s390
      %s392 = sphi 0, %s390
      %s393 = sphi 0, %s392
      %s407 = sphi 0, %s393
      %s411 = sphi 0, %s411
      %s413 = sphi 0, %s411
      %s414 = sphi 0, %s413
      %s428 = sphi 0, %s414
      %s432 = sphi 0, %s432
      %s434 = sphi 0, %s432
      %s435 = sphi 0, %s434
      %s449 = sphi 0, %s435
      %s453 = sphi 0, %s453
      %s455 = sphi 0, %s453
      %s456 = sphi 0, %s455
      %s470 = sphi 0, %s456
      %s474 = sphi 0, %s474
      %s476 = sphi 0, %s474
      %s477 = sphi 0, %s476
      %s491 = sphi 0, %s477
      %s495 = sphi 0, %s495
      %s497 = sphi 0, %s495
      %s498 = sphi 0, %s497
      %s512 = sphi 0, %s498
      %s516 = sphi 0, %s516
      %s518 = sphi 0, %s516
      %s519 = sphi 0, %s518
      %s533 = sphi 0, %s519
      %s537 = sphi 0, %s537
      %s539 = sphi 0, %s537
      %s540 = sphi 0, %s539
      %s554 = sphi 0, %s540
      %s558 = sphi 0, %s558
      %s560 = sphi 0, %s558
      %s561 = sphi 0, %s560
      %s575 = sphi 0, %s561
      %s579 = sphi 0, %s579
      %s581 = sphi 0, %s579
      %s582 = sphi 0, %s581
      %s596 = sphi 0, %s582
      %s600 = sphi 0, %s600
      %s602 = sphi 0, %s600
      %s603 = sphi 0, %s602
      %s617 = sphi 0, %s603
      %s621 = sphi 0, %s621
      %s623 = sphi 0, %s621
      %s624 = sphi 0, %s623
      %s638 = sphi 0, %s624
      %s642 = sphi 0, %s642
      %s644 = sphi 0, %s642
      %s645 = sphi 0, %s644
      %s659 = sphi 0, %s645
      %s663 = sphi 0, %s663
      %s665 = sphi 0, %s663
      %s666 = sphi 0, %s665
      %s680 = sphi 0, %s666
      %s684 = sphi 0, %s684
      %s686 = sphi 0, %s684
      %s687 = sphi 0, %s686
      %s701 = sphi 0, %s687
      %s705 = sphi 0, %s705
      %s707 = sphi 0, %s705
      %s708 = sphi 0, %s707
      %s722 = sphi 0, %s708
      %s726 = sphi 0, %s726
      %s728 = sphi 0, %s726
      %s729 = sphi 0, %s728
      %s743 = sphi 0, %s729
      %s747 = sphi 0, %s747
      %s749 = sphi 0, %s747
      %s750 = sphi 0, %s749
      %s764 = sphi 0, %s750
      %s768 = sphi 0, %s768
      %s770 = sphi 0, %s768
      %s771 = sphi 0, %s770
      %s785 = sphi 0, %s771
      %s789 = sphi 0, %s789
      %s791 = sphi 0, %s789
      %s792 = sphi 0, %s791
      %s806 = sphi 0, %s792
      %s810 = sphi 0, %s810
      %s812 = sphi 0, %s810
      %s813 = sphi 0, %s812
      %s827 = sphi 0, %s813
      %s831 = sphi 0, %s831
      %s833 = sphi 0, %s831
      %s834 = sphi 0, %s833
      %s848 = sphi 0, %s834
      %s852 = sphi 0, %s852
      %s854 = sphi 0, %s852
      %s855 = sphi 0, %s854
      %s869 = sphi 0, %s855
      %s873 = sphi 0, %s873
      %s875 = sphi 0, %s873
      %s876 = sphi 0, %s875
      %s890 = sphi 0, %s876
      %s894 = sphi 0, %s894
      %s896 = sphi 0, %s894
      %s897 = sphi 0, %s896
      %s911 = sphi 0, %s897
      %s915 = sphi 0, %s915
      %s917 = sphi 0, %s915
      %s918 = sphi 0, %s917
      %s932 = sphi 0, %s918
      %s936 = sphi 0, %s936
      %s938 = sphi 0, %s936
      %s939 = sphi 0, %s938
      %s953 = sphi 0, %s939
      %s957 = sphi 0, %s957
      %s959 = sphi 0, %s957
      %s960 = sphi 0, %s959
      %s974 = sphi 0, %s960
      %s978 = sphi 0, %s978
      %s980 = sphi 0, %s978
      %s981 = sphi 0, %s980
      %s995 = sphi 0, %s981
      %s999 = sphi 0, %s999
      %s1001 = sphi 0, %s999
      %s1002 = sphi 0, %s1001
      %s1016 = sphi 0, %s1002
      %s1020 = sphi 0, %s1020
      %s1022 = sphi 0, %s1020
      %s1023 = sphi 0, %s1022
      %s1037 = sphi 0, %s1023
      %s1041 = sphi 0, %s1041
      %s1043 = sphi 0, %s1041
      %s1044 = sphi 0, %s1043
      %s1058 = sphi 0, %s1044
      %s1062 = sphi 0, %s1062
      %s1064 = sphi 0, %s1062
      %s1065 = sphi 0, %s1064
      %s1079 = sphi 0, %s1065
      %s1083 = sphi 0, %s1083
      %s1085 = sphi 0, %s1083
      %s1086 = sphi 0, %s1085
      %s1100 = sphi 0, %s1086
      %s1104 = sphi 0, %s1104
      %s1106 = sphi 0, %s1104
      %s1107 = sphi 0, %s1106
      %s1121 = sphi 0, %s1107
      %s1125 = sphi 0, %s1125
      %s1127 = sphi 0, %s1125
      %s1128 = sphi 0, %s1127
      %s1142 = sphi 0, %s1128
      %s1146 = sphi 0, %s1146
      %s1148 = sphi 0, %s1146
      %s1149 = sphi 0, %s1148
      %s1163 = sphi 0, %s1149
      %s1167 = sphi 0, %s1167
      %s1169 = sphi 0, %s1167
      %s1170 = sphi 0, %s1169
      %s1184 = sphi 0, %s1170
      %s1188 = sphi 0, %s1188
      %s1190 = sphi 0, %s1188
      %s1191 = sphi 0, %s1190
      %s1205 = sphi 0, %s1191
      %s1209 = sphi 0, %s1209
      %s1211 = sphi 0, %s1209
      %s1212 = sphi 0, %s1211
      %s1226 = sphi 0, %s1212
      %s1230 = sphi 0, %s1230
      %s1232 = sphi 0, %s1230
      %s1233 = sphi 0, %s1232
      %s1247 = sphi 0, %s1233
      %s1251 = sphi 0, %s1251
      %s1253 = sphi 0, %s1251
      %s1254 = sphi 0, %s1253
      %s1268 = sphi 0, %s1254
      %s1272 = sphi 0, %s1272
      %s1274 = sphi 0, %s1272
      %s1275 = sphi 0, %s1274
      %s1289 = sphi 0, %s1275
      %s1293 = sphi 0, %s1293
      %s1295 = sphi 0, %s1293
      %s1296 = sphi 0, %s1295
      %s1310 = sphi 0, %s1296
      %s1316 = sphi 0, %s1318
      %s1319 = sphi 0, %s1316
      %s1320 = sphi 0, %s1319
      %s1336 = sphi 0, %s1320
      %s1342 = sphi 0, %s1344
      %s1345 = sphi 0, %s1342
      %s1346 = sphi 0, %s1345
      %s1362 = sphi 0, %s1346
    $region4: #{fpointnet_forward.1} parent=1 // loop_header_branch
      %144 = sbr.rel (%p142) target = $region8
    $region5: #{fpointnet_forward.1} parent=1 // loop_body
      %s146 = ssub.s32 %s141, 1
      %s147 = ssub.s32 %s141, 2
      %s148 = sadd.s32 %s141, 1
      %s149 = ssub.s32 %s141, %s148
      %p150 = scmp.eq.s32.totalorder %s149, 0
      %s152 = sadd.s32 %s151, 1
      %s153 = scalar_select %p150, %s151, %s152
      %p156 = pneg %p150
      %p157 = scmp.eq.s32.totalorder %s141, 1
      %p158 = por %p156, %p157
      %p159 = scmp.ne.s32.totalorder %s151, %s154
      %p160 = scmp.eq.s32.totalorder %s141, 0
      %p161 = por %p159, %p160
      %p162 = scmp.ne.s32.totalorder %s151, %s154
      %p163 = scmp.eq.s32.totalorder %s146, 1
      %p164 = por %p162, %p163
      %p165 = scmp.ne.s32.totalorder %s154, %s155
      %p166 = scmp.eq.s32.totalorder %s146, 0
      %p167 = por %p165, %p166
      %p168 = scmp.ne.s32.totalorder %s154, %s155
      %p169 = scmp.eq.s32.totalorder %s147, 1
      %p170 = por %p168, %p169
      %p172 = scmp.ne.s32.totalorder %s155, %s171
      %p173 = scmp.eq.s32.totalorder %s147, 0
      %p174 = por %p172, %p173
      %s175 = ssub.s32 %s141, %s148
      %p176 = scmp.eq.s32.totalorder %s175, 0
      %s178 = sadd.s32 %s177, 1
      %s179 = scalar_select %p176, %s177, %s178
      %p182 = pneg %p176
      %p183 = scmp.eq.s32.totalorder %s141, 1
      %p184 = por %p182, %p183
      %p185 = scmp.ne.s32.totalorder %s177, %s180
      %p186 = scmp.eq.s32.totalorder %s141, 0
      %p187 = por %p185, %p186
      %p188 = scmp.ne.s32.totalorder %s177, %s180
      %p189 = scmp.eq.s32.totalorder %s146, 1
      %p190 = por %p188, %p189
      %p191 = scmp.ne.s32.totalorder %s180, %s181
      %p192 = scmp.eq.s32.totalorder %s146, 0
      %p193 = por %p191, %p192
      %p194 = scmp.ne.s32.totalorder %s180, %s181
      %p195 = scmp.eq.s32.totalorder %s147, 1
      %p196 = por %p194, %p195
      %p198 = scmp.ne.s32.totalorder %s181, %s197
      %p199 = scmp.eq.s32.totalorder %s147, 0
      %p200 = por %p198, %p199
      %s202 = sadd.s32 %s201, 1
      %p205 = scmp.eq.s32.totalorder %s141, 1
      %p206 = scmp.ne.s32.totalorder %s201, %s203
      %p207 = scmp.eq.s32.totalorder %s141, 0
      %p208 = por %p206, %p207
      %p209 = scmp.ne.s32.totalorder %s201, %s203
      %p210 = scmp.eq.s32.totalorder %s146, 1
      %p211 = por %p209, %p210
      %p212 = scmp.ne.s32.totalorder %s203, %s204
      %p213 = scmp.eq.s32.totalorder %s146, 0
      %p214 = por %p212, %p213
      %p215 = scmp.ne.s32.totalorder %s203, %s204
      %p216 = scmp.eq.s32.totalorder %s147, 1
      %p217 = por %p215, %p216
      %p219 = scmp.ne.s32.totalorder %s204, %s218
      %p220 = scmp.eq.s32.totalorder %s147, 0
      %p221 = por %p219, %p220
      %s223 = sadd.s32 %s222, 1
      %p226 = scmp.eq.s32.totalorder %s141, 1
      %p227 = scmp.ne.s32.totalorder %s222, %s224
      %p228 = scmp.eq.s32.totalorder %s141, 0
      %p229 = por %p227, %p228
      %p230 = scmp.ne.s32.totalorder %s222, %s224
      %p231 = scmp.eq.s32.totalorder %s146, 1
      %p232 = por %p230, %p231
      %p233 = scmp.ne.s32.totalorder %s224, %s225
      %p234 = scmp.eq.s32.totalorder %s146, 0
      %p235 = por %p233, %p234
      %p236 = scmp.ne.s32.totalorder %s224, %s225
      %p237 = scmp.eq.s32.totalorder %s147, 1
      %p238 = por %p236, %p237
      %p240 = scmp.ne.s32.totalorder %s225, %s239
      %p241 = scmp.eq.s32.totalorder %s147, 0
      %p242 = por %p240, %p241
      %s244 = sadd.s32 %s243, 1
      %p247 = scmp.eq.s32.totalorder %s141, 1
      %p248 = scmp.ne.s32.totalorder %s243, %s245
      %p249 = scmp.eq.s32.totalorder %s141, 0
      %p250 = por %p248, %p249
      %p251 = scmp.ne.s32.totalorder %s243, %s245
      %p252 = scmp.eq.s32.totalorder %s146, 1
      %p253 = por %p251, %p252
      %p254 = scmp.ne.s32.totalorder %s245, %s246
      %p255 = scmp.eq.s32.totalorder %s146, 0
      %p256 = por %p254, %p255
      %p257 = scmp.ne.s32.totalorder %s245, %s246
      %p258 = scmp.eq.s32.totalorder %s147, 1
      %p259 = por %p257, %p258
      %p261 = scmp.ne.s32.totalorder %s246, %s260
      %p262 = scmp.eq.s32.totalorder %s147, 0
      %p263 = por %p261, %p262
      %s265 = sadd.s32 %s264, 1
      %p268 = scmp.eq.s32.totalorder %s141, 1
      %p269 = scmp.ne.s32.totalorder %s264, %s266
      %p270 = scmp.eq.s32.totalorder %s141, 0
      %p271 = por %p269, %p270
      %p272 = scmp.ne.s32.totalorder %s264, %s266
      %p273 = scmp.eq.s32.totalorder %s146, 1
      %p274 = por %p272, %p273
      %p275 = scmp.ne.s32.totalorder %s266, %s267
      %p276 = scmp.eq.s32.totalorder %s146, 0
      %p277 = por %p275, %p276
      %p278 = scmp.ne.s32.totalorder %s266, %s267
      %p279 = scmp.eq.s32.totalorder %s147, 1
      %p280 = por %p278, %p279
      %p282 = scmp.ne.s32.totalorder %s267, %s281
      %p283 = scmp.eq.s32.totalorder %s147, 0
      %p284 = por %p282, %p283
      %s286 = sadd.s32 %s285, 1
      %p289 = scmp.eq.s32.totalorder %s141, 1
      %p290 = scmp.ne.s32.totalorder %s285, %s287
      %p291 = scmp.eq.s32.totalorder %s141, 0
      %p292 = por %p290, %p291
      %p293 = scmp.ne.s32.totalorder %s285, %s287
      %p294 = scmp.eq.s32.totalorder %s146, 1
      %p295 = por %p293, %p294
      %p296 = scmp.ne.s32.totalorder %s287, %s288
      %p297 = scmp.eq.s32.totalorder %s146, 0
      %p298 = por %p296, %p297
      %p299 = scmp.ne.s32.totalorder %s287, %s288
      %p300 = scmp.eq.s32.totalorder %s147, 1
      %p301 = por %p299, %p300
      %p303 = scmp.ne.s32.totalorder %s288, %s302
      %p304 = scmp.eq.s32.totalorder %s147, 0
      %p305 = por %p303, %p304
      %s307 = sadd.s32 %s306, 1
      %p310 = scmp.eq.s32.totalorder %s141, 1
      %p311 = scmp.ne.s32.totalorder %s306, %s308
      %p312 = scmp.eq.s32.totalorder %s141, 0
      %p313 = por %p311, %p312
      %p314 = scmp.ne.s32.totalorder %s306, %s308
      %p315 = scmp.eq.s32.totalorder %s146, 1
      %p316 = por %p314, %p315
      %p317 = scmp.ne.s32.totalorder %s308, %s309
      %p318 = scmp.eq.s32.totalorder %s146, 0
      %p319 = por %p317, %p318
      %p320 = scmp.ne.s32.totalorder %s308, %s309
      %p321 = scmp.eq.s32.totalorder %s147, 1
      %p322 = por %p320, %p321
      %p324 = scmp.ne.s32.totalorder %s309, %s323
      %p325 = scmp.eq.s32.totalorder %s147, 0
      %p326 = por %p324, %p325
      %s328 = sadd.s32 %s327, 1
      %p331 = scmp.eq.s32.totalorder %s141, 1
      %p332 = scmp.ne.s32.totalorder %s327, %s329
      %p333 = scmp.eq.s32.totalorder %s141, 0
      %p334 = por %p332, %p333
      %p335 = scmp.ne.s32.totalorder %s327, %s329
      %p336 = scmp.eq.s32.totalorder %s146, 1
      %p337 = por %p335, %p336
      %p338 = scmp.ne.s32.totalorder %s329, %s330
      %p339 = scmp.eq.s32.totalorder %s146, 0
      %p340 = por %p338, %p339
      %p341 = scmp.ne.s32.totalorder %s329, %s330
      %p342 = scmp.eq.s32.totalorder %s147, 1
      %p343 = por %p341, %p342
      %p345 = scmp.ne.s32.totalorder %s330, %s344
      %p346 = scmp.eq.s32.totalorder %s147, 0
      %p347 = por %p345, %p346
      %s349 = sadd.s32 %s348, 1
      %p352 = scmp.eq.s32.totalorder %s141, 1
      %p353 = scmp.ne.s32.totalorder %s348, %s350
      %p354 = scmp.eq.s32.totalorder %s141, 0
      %p355 = por %p353, %p354
      %p356 = scmp.ne.s32.totalorder %s348, %s350
      %p357 = scmp.eq.s32.totalorder %s146, 1
      %p358 = por %p356, %p357
      %p359 = scmp.ne.s32.totalorder %s350, %s351
      %p360 = scmp.eq.s32.totalorder %s146, 0
      %p361 = por %p359, %p360
      %p362 = scmp.ne.s32.totalorder %s350, %s351
      %p363 = scmp.eq.s32.totalorder %s147, 1
      %p364 = por %p362, %p363
      %p366 = scmp.ne.s32.totalorder %s351, %s365
      %p367 = scmp.eq.s32.totalorder %s147, 0
      %p368 = por %p366, %p367
      %s370 = sadd.s32 %s369, 1
      %p373 = scmp.eq.s32.totalorder %s141, 1
      %p374 = scmp.ne.s32.totalorder %s369, %s371
      %p375 = scmp.eq.s32.totalorder %s141, 0
      %p376 = por %p374, %p375
      %p377 = scmp.ne.s32.totalorder %s369, %s371
      %p378 = scmp.eq.s32.totalorder %s146, 1
      %p379 = por %p377, %p378
      %p380 = scmp.ne.s32.totalorder %s371, %s372
      %p381 = scmp.eq.s32.totalorder %s146, 0
      %p382 = por %p380, %p381
      %p383 = scmp.ne.s32.totalorder %s371, %s372
      %p384 = scmp.eq.s32.totalorder %s147, 1
      %p385 = por %p383, %p384
      %p387 = scmp.ne.s32.totalorder %s372, %s386
      %p388 = scmp.eq.s32.totalorder %s147, 0
      %p389 = por %p387, %p388
      %s391 = sadd.s32 %s390, 1
      %p394 = scmp.eq.s32.totalorder %s141, 1
      %p395 = scmp.ne.s32.totalorder %s390, %s392
      %p396 = scmp.eq.s32.totalorder %s141, 0
      %p397 = por %p395, %p396
      %p398 = scmp.ne.s32.totalorder %s390, %s392
      %p399 = scmp.eq.s32.totalorder %s146, 1
      %p400 = por %p398, %p399
      %p401 = scmp.ne.s32.totalorder %s392, %s393
      %p402 = scmp.eq.s32.totalorder %s146, 0
      %p403 = por %p401, %p402
      %p404 = scmp.ne.s32.totalorder %s392, %s393
      %p405 = scmp.eq.s32.totalorder %s147, 1
      %p406 = por %p404, %p405
      %p408 = scmp.ne.s32.totalorder %s393, %s407
      %p409 = scmp.eq.s32.totalorder %s147, 0
      %p410 = por %p408, %p409
      %s412 = sadd.s32 %s411, 1
      %p415 = scmp.eq.s32.totalorder %s141, 1
      %p416 = scmp.ne.s32.totalorder %s411, %s413
      %p417 = scmp.eq.s32.totalorder %s141, 0
      %p418 = por %p416, %p417
      %p419 = scmp.ne.s32.totalorder %s411, %s413
      %p420 = scmp.eq.s32.totalorder %s146, 1
      %p421 = por %p419, %p420
      %p422 = scmp.ne.s32.totalorder %s413, %s414
      %p423 = scmp.eq.s32.totalorder %s146, 0
      %p424 = por %p422, %p423
      %p425 = scmp.ne.s32.totalorder %s413, %s414
      %p426 = scmp.eq.s32.totalorder %s147, 1
      %p427 = por %p425, %p426
      %p429 = scmp.ne.s32.totalorder %s414, %s428
      %p430 = scmp.eq.s32.totalorder %s147, 0
      %p431 = por %p429, %p430
      %s433 = sadd.s32 %s432, 1
      %p436 = scmp.eq.s32.totalorder %s141, 1
      %p437 = scmp.ne.s32.totalorder %s432, %s434
      %p438 = scmp.eq.s32.totalorder %s141, 0
      %p439 = por %p437, %p438
      %p440 = scmp.ne.s32.totalorder %s432, %s434
      %p441 = scmp.eq.s32.totalorder %s146, 1
      %p442 = por %p440, %p441
      %p443 = scmp.ne.s32.totalorder %s434, %s435
      %p444 = scmp.eq.s32.totalorder %s146, 0
      %p445 = por %p443, %p444
      %p446 = scmp.ne.s32.totalorder %s434, %s435
      %p447 = scmp.eq.s32.totalorder %s147, 1
      %p448 = por %p446, %p447
      %p450 = scmp.ne.s32.totalorder %s435, %s449
      %p451 = scmp.eq.s32.totalorder %s147, 0
      %p452 = por %p450, %p451
      %s454 = sadd.s32 %s453, 1
      %p457 = scmp.eq.s32.totalorder %s141, 1
      %p458 = scmp.ne.s32.totalorder %s453, %s455
      %p459 = scmp.eq.s32.totalorder %s141, 0
      %p460 = por %p458, %p459
      %p461 = scmp.ne.s32.totalorder %s453, %s455
      %p462 = scmp.eq.s32.totalorder %s146, 1
      %p463 = por %p461, %p462
      %p464 = scmp.ne.s32.totalorder %s455, %s456
      %p465 = scmp.eq.s32.totalorder %s146, 0
      %p466 = por %p464, %p465
      %p467 = scmp.ne.s32.totalorder %s455, %s456
      %p468 = scmp.eq.s32.totalorder %s147, 1
      %p469 = por %p467, %p468
      %p471 = scmp.ne.s32.totalorder %s456, %s470
      %p472 = scmp.eq.s32.totalorder %s147, 0
      %p473 = por %p471, %p472
      %s475 = sadd.s32 %s474, 1
      %p478 = scmp.eq.s32.totalorder %s141, 1
      %p479 = scmp.ne.s32.totalorder %s474, %s476
      %p480 = scmp.eq.s32.totalorder %s141, 0
      %p481 = por %p479, %p480
      %p482 = scmp.ne.s32.totalorder %s474, %s476
      %p483 = scmp.eq.s32.totalorder %s146, 1
      %p484 = por %p482, %p483
      %p485 = scmp.ne.s32.totalorder %s476, %s477
      %p486 = scmp.eq.s32.totalorder %s146, 0
      %p487 = por %p485, %p486
      %p488 = scmp.ne.s32.totalorder %s476, %s477
      %p489 = scmp.eq.s32.totalorder %s147, 1
      %p490 = por %p488, %p489
      %p492 = scmp.ne.s32.totalorder %s477, %s491
      %p493 = scmp.eq.s32.totalorder %s147, 0
      %p494 = por %p492, %p493
      %s496 = sadd.s32 %s495, 1
      %p499 = scmp.eq.s32.totalorder %s141, 1
      %p500 = scmp.ne.s32.totalorder %s495, %s497
      %p501 = scmp.eq.s32.totalorder %s141, 0
      %p502 = por %p500, %p501
      %p503 = scmp.ne.s32.totalorder %s495, %s497
      %p504 = scmp.eq.s32.totalorder %s146, 1
      %p505 = por %p503, %p504
      %p506 = scmp.ne.s32.totalorder %s497, %s498
      %p507 = scmp.eq.s32.totalorder %s146, 0
      %p508 = por %p506, %p507
      %p509 = scmp.ne.s32.totalorder %s497, %s498
      %p510 = scmp.eq.s32.totalorder %s147, 1
      %p511 = por %p509, %p510
      %p513 = scmp.ne.s32.totalorder %s498, %s512
      %p514 = scmp.eq.s32.totalorder %s147, 0
      %p515 = por %p513, %p514
      %s517 = sadd.s32 %s516, 1
      %p520 = scmp.eq.s32.totalorder %s141, 1
      %p521 = scmp.ne.s32.totalorder %s516, %s518
      %p522 = scmp.eq.s32.totalorder %s141, 0
      %p523 = por %p521, %p522
      %p524 = scmp.ne.s32.totalorder %s516, %s518
      %p525 = scmp.eq.s32.totalorder %s146, 1
      %p526 = por %p524, %p525
      %p527 = scmp.ne.s32.totalorder %s518, %s519
      %p528 = scmp.eq.s32.totalorder %s146, 0
      %p529 = por %p527, %p528
      %p530 = scmp.ne.s32.totalorder %s518, %s519
      %p531 = scmp.eq.s32.totalorder %s147, 1
      %p532 = por %p530, %p531
      %p534 = scmp.ne.s32.totalorder %s519, %s533
      %p535 = scmp.eq.s32.totalorder %s147, 0
      %p536 = por %p534, %p535
      %s538 = sadd.s32 %s537, 1
      %p541 = scmp.eq.s32.totalorder %s141, 1
      %p542 = scmp.ne.s32.totalorder %s537, %s539
      %p543 = scmp.eq.s32.totalorder %s141, 0
      %p544 = por %p542, %p543
      %p545 = scmp.ne.s32.totalorder %s537, %s539
      %p546 = scmp.eq.s32.totalorder %s146, 1
      %p547 = por %p545, %p546
      %p548 = scmp.ne.s32.totalorder %s539, %s540
      %p549 = scmp.eq.s32.totalorder %s146, 0
      %p550 = por %p548, %p549
      %p551 = scmp.ne.s32.totalorder %s539, %s540
      %p552 = scmp.eq.s32.totalorder %s147, 1
      %p553 = por %p551, %p552
      %p555 = scmp.ne.s32.totalorder %s540, %s554
      %p556 = scmp.eq.s32.totalorder %s147, 0
      %p557 = por %p555, %p556
      %s559 = sadd.s32 %s558, 1
      %p562 = scmp.eq.s32.totalorder %s141, 1
      %p563 = scmp.ne.s32.totalorder %s558, %s560
      %p564 = scmp.eq.s32.totalorder %s141, 0
      %p565 = por %p563, %p564
      %p566 = scmp.ne.s32.totalorder %s558, %s560
      %p567 = scmp.eq.s32.totalorder %s146, 1
      %p568 = por %p566, %p567
      %p569 = scmp.ne.s32.totalorder %s560, %s561
      %p570 = scmp.eq.s32.totalorder %s146, 0
      %p571 = por %p569, %p570
      %p572 = scmp.ne.s32.totalorder %s560, %s561
      %p573 = scmp.eq.s32.totalorder %s147, 1
      %p574 = por %p572, %p573
      %p576 = scmp.ne.s32.totalorder %s561, %s575
      %p577 = scmp.eq.s32.totalorder %s147, 0
      %p578 = por %p576, %p577
      %s580 = sadd.s32 %s579, 1
      %p583 = scmp.eq.s32.totalorder %s141, 1
      %p584 = scmp.ne.s32.totalorder %s579, %s581
      %p585 = scmp.eq.s32.totalorder %s141, 0
      %p586 = por %p584, %p585
      %p587 = scmp.ne.s32.totalorder %s579, %s581
      %p588 = scmp.eq.s32.totalorder %s146, 1
      %p589 = por %p587, %p588
      %p590 = scmp.ne.s32.totalorder %s581, %s582
      %p591 = scmp.eq.s32.totalorder %s146, 0
      %p592 = por %p590, %p591
      %p593 = scmp.ne.s32.totalorder %s581, %s582
      %p594 = scmp.eq.s32.totalorder %s147, 1
      %p595 = por %p593, %p594
      %p597 = scmp.ne.s32.totalorder %s582, %s596
      %p598 = scmp.eq.s32.totalorder %s147, 0
      %p599 = por %p597, %p598
      %s601 = sadd.s32 %s600, 1
      %p604 = scmp.eq.s32.totalorder %s141, 1
      %p605 = scmp.ne.s32.totalorder %s600, %s602
      %p606 = scmp.eq.s32.totalorder %s141, 0
      %p607 = por %p605, %p606
      %p608 = scmp.ne.s32.totalorder %s600, %s602
      %p609 = scmp.eq.s32.totalorder %s146, 1
      %p610 = por %p608, %p609
      %p611 = scmp.ne.s32.totalorder %s602, %s603
      %p612 = scmp.eq.s32.totalorder %s146, 0
      %p613 = por %p611, %p612
      %p614 = scmp.ne.s32.totalorder %s602, %s603
      %p615 = scmp.eq.s32.totalorder %s147, 1
      %p616 = por %p614, %p615
      %p618 = scmp.ne.s32.totalorder %s603, %s617
      %p619 = scmp.eq.s32.totalorder %s147, 0
      %p620 = por %p618, %p619
      %s622 = sadd.s32 %s621, 1
      %p625 = scmp.eq.s32.totalorder %s141, 1
      %p626 = scmp.ne.s32.totalorder %s621, %s623
      %p627 = scmp.eq.s32.totalorder %s141, 0
      %p628 = por %p626, %p627
      %p629 = scmp.ne.s32.totalorder %s621, %s623
      %p630 = scmp.eq.s32.totalorder %s146, 1
      %p631 = por %p629, %p630
      %p632 = scmp.ne.s32.totalorder %s623, %s624
      %p633 = scmp.eq.s32.totalorder %s146, 0
      %p634 = por %p632, %p633
      %p635 = scmp.ne.s32.totalorder %s623, %s624
      %p636 = scmp.eq.s32.totalorder %s147, 1
      %p637 = por %p635, %p636
      %p639 = scmp.ne.s32.totalorder %s624, %s638
      %p640 = scmp.eq.s32.totalorder %s147, 0
      %p641 = por %p639, %p640
      %s643 = sadd.s32 %s642, 1
      %p646 = scmp.eq.s32.totalorder %s141, 1
      %p647 = scmp.ne.s32.totalorder %s642, %s644
      %p648 = scmp.eq.s32.totalorder %s141, 0
      %p649 = por %p647, %p648
      %p650 = scmp.ne.s32.totalorder %s642, %s644
      %p651 = scmp.eq.s32.totalorder %s146, 1
      %p652 = por %p650, %p651
      %p653 = scmp.ne.s32.totalorder %s644, %s645
      %p654 = scmp.eq.s32.totalorder %s146, 0
      %p655 = por %p653, %p654
      %p656 = scmp.ne.s32.totalorder %s644, %s645
      %p657 = scmp.eq.s32.totalorder %s147, 1
      %p658 = por %p656, %p657
      %p660 = scmp.ne.s32.totalorder %s645, %s659
      %p661 = scmp.eq.s32.totalorder %s147, 0
      %p662 = por %p660, %p661
      %s664 = sadd.s32 %s663, 1
      %p667 = scmp.eq.s32.totalorder %s141, 1
      %p668 = scmp.ne.s32.totalorder %s663, %s665
      %p669 = scmp.eq.s32.totalorder %s141, 0
      %p670 = por %p668, %p669
      %p671 = scmp.ne.s32.totalorder %s663, %s665
      %p672 = scmp.eq.s32.totalorder %s146, 1
      %p673 = por %p671, %p672
      %p674 = scmp.ne.s32.totalorder %s665, %s666
      %p675 = scmp.eq.s32.totalorder %s146, 0
      %p676 = por %p674, %p675
      %p677 = scmp.ne.s32.totalorder %s665, %s666
      %p678 = scmp.eq.s32.totalorder %s147, 1
      %p679 = por %p677, %p678
      %p681 = scmp.ne.s32.totalorder %s666, %s680
      %p682 = scmp.eq.s32.totalorder %s147, 0
      %p683 = por %p681, %p682
      %s685 = sadd.s32 %s684, 1
      %p688 = scmp.eq.s32.totalorder %s141, 1
      %p689 = scmp.ne.s32.totalorder %s684, %s686
      %p690 = scmp.eq.s32.totalorder %s141, 0
      %p691 = por %p689, %p690
      %p692 = scmp.ne.s32.totalorder %s684, %s686
      %p693 = scmp.eq.s32.totalorder %s146, 1
      %p694 = por %p692, %p693
      %p695 = scmp.ne.s32.totalorder %s686, %s687
      %p696 = scmp.eq.s32.totalorder %s146, 0
      %p697 = por %p695, %p696
      %p698 = scmp.ne.s32.totalorder %s686, %s687
      %p699 = scmp.eq.s32.totalorder %s147, 1
      %p700 = por %p698, %p699
      %p702 = scmp.ne.s32.totalorder %s687, %s701
      %p703 = scmp.eq.s32.totalorder %s147, 0
      %p704 = por %p702, %p703
      %s706 = sadd.s32 %s705, 1
      %p709 = scmp.eq.s32.totalorder %s141, 1
      %p710 = scmp.ne.s32.totalorder %s705, %s707
      %p711 = scmp.eq.s32.totalorder %s141, 0
      %p712 = por %p710, %p711
      %p713 = scmp.ne.s32.totalorder %s705, %s707
      %p714 = scmp.eq.s32.totalorder %s146, 1
      %p715 = por %p713, %p714
      %p716 = scmp.ne.s32.totalorder %s707, %s708
      %p717 = scmp.eq.s32.totalorder %s146, 0
      %p718 = por %p716, %p717
      %p719 = scmp.ne.s32.totalorder %s707, %s708
      %p720 = scmp.eq.s32.totalorder %s147, 1
      %p721 = por %p719, %p720
      %p723 = scmp.ne.s32.totalorder %s708, %s722
      %p724 = scmp.eq.s32.totalorder %s147, 0
      %p725 = por %p723, %p724
      %s727 = sadd.s32 %s726, 1
      %p730 = scmp.eq.s32.totalorder %s141, 1
      %p731 = scmp.ne.s32.totalorder %s726, %s728
      %p732 = scmp.eq.s32.totalorder %s141, 0
      %p733 = por %p731, %p732
      %p734 = scmp.ne.s32.totalorder %s726, %s728
      %p735 = scmp.eq.s32.totalorder %s146, 1
      %p736 = por %p734, %p735
      %p737 = scmp.ne.s32.totalorder %s728, %s729
      %p738 = scmp.eq.s32.totalorder %s146, 0
      %p739 = por %p737, %p738
      %p740 = scmp.ne.s32.totalorder %s728, %s729
      %p741 = scmp.eq.s32.totalorder %s147, 1
      %p742 = por %p740, %p741
      %p744 = scmp.ne.s32.totalorder %s729, %s743
      %p745 = scmp.eq.s32.totalorder %s147, 0
      %p746 = por %p744, %p745
      %s748 = sadd.s32 %s747, 1
      %p751 = scmp.eq.s32.totalorder %s141, 1
      %p752 = scmp.ne.s32.totalorder %s747, %s749
      %p753 = scmp.eq.s32.totalorder %s141, 0
      %p754 = por %p752, %p753
      %p755 = scmp.ne.s32.totalorder %s747, %s749
      %p756 = scmp.eq.s32.totalorder %s146, 1
      %p757 = por %p755, %p756
      %p758 = scmp.ne.s32.totalorder %s749, %s750
      %p759 = scmp.eq.s32.totalorder %s146, 0
      %p760 = por %p758, %p759
      %p761 = scmp.ne.s32.totalorder %s749, %s750
      %p762 = scmp.eq.s32.totalorder %s147, 1
      %p763 = por %p761, %p762
      %p765 = scmp.ne.s32.totalorder %s750, %s764
      %p766 = scmp.eq.s32.totalorder %s147, 0
      %p767 = por %p765, %p766
      %s769 = sadd.s32 %s768, 1
      %p772 = scmp.eq.s32.totalorder %s141, 1
      %p773 = scmp.ne.s32.totalorder %s768, %s770
      %p774 = scmp.eq.s32.totalorder %s141, 0
      %p775 = por %p773, %p774
      %p776 = scmp.ne.s32.totalorder %s768, %s770
      %p777 = scmp.eq.s32.totalorder %s146, 1
      %p778 = por %p776, %p777
      %p779 = scmp.ne.s32.totalorder %s770, %s771
      %p780 = scmp.eq.s32.totalorder %s146, 0
      %p781 = por %p779, %p780
      %p782 = scmp.ne.s32.totalorder %s770, %s771
      %p783 = scmp.eq.s32.totalorder %s147, 1
      %p784 = por %p782, %p783
      %p786 = scmp.ne.s32.totalorder %s771, %s785
      %p787 = scmp.eq.s32.totalorder %s147, 0
      %p788 = por %p786, %p787
      %s790 = sadd.s32 %s789, 1
      %p793 = scmp.eq.s32.totalorder %s141, 1
      %p794 = scmp.ne.s32.totalorder %s789, %s791
      %p795 = scmp.eq.s32.totalorder %s141, 0
      %p796 = por %p794, %p795
      %p797 = scmp.ne.s32.totalorder %s789, %s791
      %p798 = scmp.eq.s32.totalorder %s146, 1
      %p799 = por %p797, %p798
      %p800 = scmp.ne.s32.totalorder %s791, %s792
      %p801 = scmp.eq.s32.totalorder %s146, 0
      %p802 = por %p800, %p801
      %p803 = scmp.ne.s32.totalorder %s791, %s792
      %p804 = scmp.eq.s32.totalorder %s147, 1
      %p805 = por %p803, %p804
      %p807 = scmp.ne.s32.totalorder %s792, %s806
      %p808 = scmp.eq.s32.totalorder %s147, 0
      %p809 = por %p807, %p808
      %s811 = sadd.s32 %s810, 1
      %p814 = scmp.eq.s32.totalorder %s141, 1
      %p815 = scmp.ne.s32.totalorder %s810, %s812
      %p816 = scmp.eq.s32.totalorder %s141, 0
      %p817 = por %p815, %p816
      %p818 = scmp.ne.s32.totalorder %s810, %s812
      %p819 = scmp.eq.s32.totalorder %s146, 1
      %p820 = por %p818, %p819
      %p821 = scmp.ne.s32.totalorder %s812, %s813
      %p822 = scmp.eq.s32.totalorder %s146, 0
      %p823 = por %p821, %p822
      %p824 = scmp.ne.s32.totalorder %s812, %s813
      %p825 = scmp.eq.s32.totalorder %s147, 1
      %p826 = por %p824, %p825
      %p828 = scmp.ne.s32.totalorder %s813, %s827
      %p829 = scmp.eq.s32.totalorder %s147, 0
      %p830 = por %p828, %p829
      %s832 = sadd.s32 %s831, 1
      %p835 = scmp.eq.s32.totalorder %s141, 1
      %p836 = scmp.ne.s32.totalorder %s831, %s833
      %p837 = scmp.eq.s32.totalorder %s141, 0
      %p838 = por %p836, %p837
      %p839 = scmp.ne.s32.totalorder %s831, %s833
      %p840 = scmp.eq.s32.totalorder %s146, 1
      %p841 = por %p839, %p840
      %p842 = scmp.ne.s32.totalorder %s833, %s834
      %p843 = scmp.eq.s32.totalorder %s146, 0
      %p844 = por %p842, %p843
      %p845 = scmp.ne.s32.totalorder %s833, %s834
      %p846 = scmp.eq.s32.totalorder %s147, 1
      %p847 = por %p845, %p846
      %p849 = scmp.ne.s32.totalorder %s834, %s848
      %p850 = scmp.eq.s32.totalorder %s147, 0
      %p851 = por %p849, %p850
      %s853 = sadd.s32 %s852, 1
      %p856 = scmp.eq.s32.totalorder %s141, 1
      %p857 = scmp.ne.s32.totalorder %s852, %s854
      %p858 = scmp.eq.s32.totalorder %s141, 0
      %p859 = por %p857, %p858
      %p860 = scmp.ne.s32.totalorder %s852, %s854
      %p861 = scmp.eq.s32.totalorder %s146, 1
      %p862 = por %p860, %p861
      %p863 = scmp.ne.s32.totalorder %s854, %s855
      %p864 = scmp.eq.s32.totalorder %s146, 0
      %p865 = por %p863, %p864
      %p866 = scmp.ne.s32.totalorder %s854, %s855
      %p867 = scmp.eq.s32.totalorder %s147, 1
      %p868 = por %p866, %p867
      %p870 = scmp.ne.s32.totalorder %s855, %s869
      %p871 = scmp.eq.s32.totalorder %s147, 0
      %p872 = por %p870, %p871
      %s874 = sadd.s32 %s873, 1
      %p877 = scmp.eq.s32.totalorder %s141, 1
      %p878 = scmp.ne.s32.totalorder %s873, %s875
      %p879 = scmp.eq.s32.totalorder %s141, 0
      %p880 = por %p878, %p879
      %p881 = scmp.ne.s32.totalorder %s873, %s875
      %p882 = scmp.eq.s32.totalorder %s146, 1
      %p883 = por %p881, %p882
      %p884 = scmp.ne.s32.totalorder %s875, %s876
      %p885 = scmp.eq.s32.totalorder %s146, 0
      %p886 = por %p884, %p885
      %p887 = scmp.ne.s32.totalorder %s875, %s876
      %p888 = scmp.eq.s32.totalorder %s147, 1
      %p889 = por %p887, %p888
      %p891 = scmp.ne.s32.totalorder %s876, %s890
      %p892 = scmp.eq.s32.totalorder %s147, 0
      %p893 = por %p891, %p892
      %s895 = sadd.s32 %s894, 1
      %p898 = scmp.eq.s32.totalorder %s141, 1
      %p899 = scmp.ne.s32.totalorder %s894, %s896
      %p900 = scmp.eq.s32.totalorder %s141, 0
      %p901 = por %p899, %p900
      %p902 = scmp.ne.s32.totalorder %s894, %s896
      %p903 = scmp.eq.s32.totalorder %s146, 1
      %p904 = por %p902, %p903
      %p905 = scmp.ne.s32.totalorder %s896, %s897
      %p906 = scmp.eq.s32.totalorder %s146, 0
      %p907 = por %p905, %p906
      %p908 = scmp.ne.s32.totalorder %s896, %s897
      %p909 = scmp.eq.s32.totalorder %s147, 1
      %p910 = por %p908, %p909
      %p912 = scmp.ne.s32.totalorder %s897, %s911
      %p913 = scmp.eq.s32.totalorder %s147, 0
      %p914 = por %p912, %p913
      %s916 = sadd.s32 %s915, 1
      %p919 = scmp.eq.s32.totalorder %s141, 1
      %p920 = scmp.ne.s32.totalorder %s915, %s917
      %p921 = scmp.eq.s32.totalorder %s141, 0
      %p922 = por %p920, %p921
      %p923 = scmp.ne.s32.totalorder %s915, %s917
      %p924 = scmp.eq.s32.totalorder %s146, 1
      %p925 = por %p923, %p924
      %p926 = scmp.ne.s32.totalorder %s917, %s918
      %p927 = scmp.eq.s32.totalorder %s146, 0
      %p928 = por %p926, %p927
      %p929 = scmp.ne.s32.totalorder %s917, %s918
      %p930 = scmp.eq.s32.totalorder %s147, 1
      %p931 = por %p929, %p930
      %p933 = scmp.ne.s32.totalorder %s918, %s932
      %p934 = scmp.eq.s32.totalorder %s147, 0
      %p935 = por %p933, %p934
      %s937 = sadd.s32 %s936, 1
      %p940 = scmp.eq.s32.totalorder %s141, 1
      %p941 = scmp.ne.s32.totalorder %s936, %s938
      %p942 = scmp.eq.s32.totalorder %s141, 0
      %p943 = por %p941, %p942
      %p944 = scmp.ne.s32.totalorder %s936, %s938
      %p945 = scmp.eq.s32.totalorder %s146, 1
      %p946 = por %p944, %p945
      %p947 = scmp.ne.s32.totalorder %s938, %s939
      %p948 = scmp.eq.s32.totalorder %s146, 0
      %p949 = por %p947, %p948
      %p950 = scmp.ne.s32.totalorder %s938, %s939
      %p951 = scmp.eq.s32.totalorder %s147, 1
      %p952 = por %p950, %p951
      %p954 = scmp.ne.s32.totalorder %s939, %s953
      %p955 = scmp.eq.s32.totalorder %s147, 0
      %p956 = por %p954, %p955
      %s958 = sadd.s32 %s957, 1
      %p961 = scmp.eq.s32.totalorder %s141, 1
      %p962 = scmp.ne.s32.totalorder %s957, %s959
      %p963 = scmp.eq.s32.totalorder %s141, 0
      %p964 = por %p962, %p963
      %p965 = scmp.ne.s32.totalorder %s957, %s959
      %p966 = scmp.eq.s32.totalorder %s146, 1
      %p967 = por %p965, %p966
      %p968 = scmp.ne.s32.totalorder %s959, %s960
      %p969 = scmp.eq.s32.totalorder %s146, 0
      %p970 = por %p968, %p969
      %p971 = scmp.ne.s32.totalorder %s959, %s960
      %p972 = scmp.eq.s32.totalorder %s147, 1
      %p973 = por %p971, %p972
      %p975 = scmp.ne.s32.totalorder %s960, %s974
      %p976 = scmp.eq.s32.totalorder %s147, 0
      %p977 = por %p975, %p976
      %s979 = sadd.s32 %s978, 1
      %p982 = scmp.eq.s32.totalorder %s141, 1
      %p983 = scmp.ne.s32.totalorder %s978, %s980
      %p984 = scmp.eq.s32.totalorder %s141, 0
      %p985 = por %p983, %p984
      %p986 = scmp.ne.s32.totalorder %s978, %s980
      %p987 = scmp.eq.s32.totalorder %s146, 1
      %p988 = por %p986, %p987
      %p989 = scmp.ne.s32.totalorder %s980, %s981
      %p990 = scmp.eq.s32.totalorder %s146, 0
      %p991 = por %p989, %p990
      %p992 = scmp.ne.s32.totalorder %s980, %s981
      %p993 = scmp.eq.s32.totalorder %s147, 1
      %p994 = por %p992, %p993
      %p996 = scmp.ne.s32.totalorder %s981, %s995
      %p997 = scmp.eq.s32.totalorder %s147, 0
      %p998 = por %p996, %p997
      %s1000 = sadd.s32 %s999, 1
      %p1003 = scmp.eq.s32.totalorder %s141, 1
      %p1004 = scmp.ne.s32.totalorder %s999, %s1001
      %p1005 = scmp.eq.s32.totalorder %s141, 0
      %p1006 = por %p1004, %p1005
      %p1007 = scmp.ne.s32.totalorder %s999, %s1001
      %p1008 = scmp.eq.s32.totalorder %s146, 1
      %p1009 = por %p1007, %p1008
      %p1010 = scmp.ne.s32.totalorder %s1001, %s1002
      %p1011 = scmp.eq.s32.totalorder %s146, 0
      %p1012 = por %p1010, %p1011
      %p1013 = scmp.ne.s32.totalorder %s1001, %s1002
      %p1014 = scmp.eq.s32.totalorder %s147, 1
      %p1015 = por %p1013, %p1014
      %p1017 = scmp.ne.s32.totalorder %s1002, %s1016
      %p1018 = scmp.eq.s32.totalorder %s147, 0
      %p1019 = por %p1017, %p1018
      %s1021 = sadd.s32 %s1020, 1
      %p1024 = scmp.eq.s32.totalorder %s141, 1
      %p1025 = scmp.ne.s32.totalorder %s1020, %s1022
      %p1026 = scmp.eq.s32.totalorder %s141, 0
      %p1027 = por %p1025, %p1026
      %p1028 = scmp.ne.s32.totalorder %s1020, %s1022
      %p1029 = scmp.eq.s32.totalorder %s146, 1
      %p1030 = por %p1028, %p1029
      %p1031 = scmp.ne.s32.totalorder %s1022, %s1023
      %p1032 = scmp.eq.s32.totalorder %s146, 0
      %p1033 = por %p1031, %p1032
      %p1034 = scmp.ne.s32.totalorder %s1022, %s1023
      %p1035 = scmp.eq.s32.totalorder %s147, 1
      %p1036 = por %p1034, %p1035
      %p1038 = scmp.ne.s32.totalorder %s1023, %s1037
      %p1039 = scmp.eq.s32.totalorder %s147, 0
      %p1040 = por %p1038, %p1039
      %s1042 = sadd.s32 %s1041, 1
      %p1045 = scmp.eq.s32.totalorder %s141, 1
      %p1046 = scmp.ne.s32.totalorder %s1041, %s1043
      %p1047 = scmp.eq.s32.totalorder %s141, 0
      %p1048 = por %p1046, %p1047
      %p1049 = scmp.ne.s32.totalorder %s1041, %s1043
      %p1050 = scmp.eq.s32.totalorder %s146, 1
      %p1051 = por %p1049, %p1050
      %p1052 = scmp.ne.s32.totalorder %s1043, %s1044
      %p1053 = scmp.eq.s32.totalorder %s146, 0
      %p1054 = por %p1052, %p1053
      %p1055 = scmp.ne.s32.totalorder %s1043, %s1044
      %p1056 = scmp.eq.s32.totalorder %s147, 1
      %p1057 = por %p1055, %p1056
      %p1059 = scmp.ne.s32.totalorder %s1044, %s1058
      %p1060 = scmp.eq.s32.totalorder %s147, 0
      %p1061 = por %p1059, %p1060
      %s1063 = sadd.s32 %s1062, 1
      %p1066 = scmp.eq.s32.totalorder %s141, 1
      %p1067 = scmp.ne.s32.totalorder %s1062, %s1064
      %p1068 = scmp.eq.s32.totalorder %s141, 0
      %p1069 = por %p1067, %p1068
      %p1070 = scmp.ne.s32.totalorder %s1062, %s1064
      %p1071 = scmp.eq.s32.totalorder %s146, 1
      %p1072 = por %p1070, %p1071
      %p1073 = scmp.ne.s32.totalorder %s1064, %s1065
      %p1074 = scmp.eq.s32.totalorder %s146, 0
      %p1075 = por %p1073, %p1074
      %p1076 = scmp.ne.s32.totalorder %s1064, %s1065
      %p1077 = scmp.eq.s32.totalorder %s147, 1
      %p1078 = por %p1076, %p1077
      %p1080 = scmp.ne.s32.totalorder %s1065, %s1079
      %p1081 = scmp.eq.s32.totalorder %s147, 0
      %p1082 = por %p1080, %p1081
      %s1084 = sadd.s32 %s1083, 1
      %p1087 = scmp.eq.s32.totalorder %s141, 1
      %p1088 = scmp.ne.s32.totalorder %s1083, %s1085
      %p1089 = scmp.eq.s32.totalorder %s141, 0
      %p1090 = por %p1088, %p1089
      %p1091 = scmp.ne.s32.totalorder %s1083, %s1085
      %p1092 = scmp.eq.s32.totalorder %s146, 1
      %p1093 = por %p1091, %p1092
      %p1094 = scmp.ne.s32.totalorder %s1085, %s1086
      %p1095 = scmp.eq.s32.totalorder %s146, 0
      %p1096 = por %p1094, %p1095
      %p1097 = scmp.ne.s32.totalorder %s1085, %s1086
      %p1098 = scmp.eq.s32.totalorder %s147, 1
      %p1099 = por %p1097, %p1098
      %p1101 = scmp.ne.s32.totalorder %s1086, %s1100
      %p1102 = scmp.eq.s32.totalorder %s147, 0
      %p1103 = por %p1101, %p1102
      %s1105 = sadd.s32 %s1104, 1
      %p1108 = scmp.eq.s32.totalorder %s141, 1
      %p1109 = scmp.ne.s32.totalorder %s1104, %s1106
      %p1110 = scmp.eq.s32.totalorder %s141, 0
      %p1111 = por %p1109, %p1110
      %p1112 = scmp.ne.s32.totalorder %s1104, %s1106
      %p1113 = scmp.eq.s32.totalorder %s146, 1
      %p1114 = por %p1112, %p1113
      %p1115 = scmp.ne.s32.totalorder %s1106, %s1107
      %p1116 = scmp.eq.s32.totalorder %s146, 0
      %p1117 = por %p1115, %p1116
      %p1118 = scmp.ne.s32.totalorder %s1106, %s1107
      %p1119 = scmp.eq.s32.totalorder %s147, 1
      %p1120 = por %p1118, %p1119
      %p1122 = scmp.ne.s32.totalorder %s1107, %s1121
      %p1123 = scmp.eq.s32.totalorder %s147, 0
      %p1124 = por %p1122, %p1123
      %s1126 = sadd.s32 %s1125, 1
      %p1129 = scmp.eq.s32.totalorder %s141, 1
      %p1130 = scmp.ne.s32.totalorder %s1125, %s1127
      %p1131 = scmp.eq.s32.totalorder %s141, 0
      %p1132 = por %p1130, %p1131
      %p1133 = scmp.ne.s32.totalorder %s1125, %s1127
      %p1134 = scmp.eq.s32.totalorder %s146, 1
      %p1135 = por %p1133, %p1134
      %p1136 = scmp.ne.s32.totalorder %s1127, %s1128
      %p1137 = scmp.eq.s32.totalorder %s146, 0
      %p1138 = por %p1136, %p1137
      %p1139 = scmp.ne.s32.totalorder %s1127, %s1128
      %p1140 = scmp.eq.s32.totalorder %s147, 1
      %p1141 = por %p1139, %p1140
      %p1143 = scmp.ne.s32.totalorder %s1128, %s1142
      %p1144 = scmp.eq.s32.totalorder %s147, 0
      %p1145 = por %p1143, %p1144
      %s1147 = sadd.s32 %s1146, 1
      %p1150 = scmp.eq.s32.totalorder %s141, 1
      %p1151 = scmp.ne.s32.totalorder %s1146, %s1148
      %p1152 = scmp.eq.s32.totalorder %s141, 0
      %p1153 = por %p1151, %p1152
      %p1154 = scmp.ne.s32.totalorder %s1146, %s1148
      %p1155 = scmp.eq.s32.totalorder %s146, 1
      %p1156 = por %p1154, %p1155
      %p1157 = scmp.ne.s32.totalorder %s1148, %s1149
      %p1158 = scmp.eq.s32.totalorder %s146, 0
      %p1159 = por %p1157, %p1158
      %p1160 = scmp.ne.s32.totalorder %s1148, %s1149
      %p1161 = scmp.eq.s32.totalorder %s147, 1
      %p1162 = por %p1160, %p1161
      %p1164 = scmp.ne.s32.totalorder %s1149, %s1163
      %p1165 = scmp.eq.s32.totalorder %s147, 0
      %p1166 = por %p1164, %p1165
      %s1168 = sadd.s32 %s1167, 1
      %p1171 = scmp.eq.s32.totalorder %s141, 1
      %p1172 = scmp.ne.s32.totalorder %s1167, %s1169
      %p1173 = scmp.eq.s32.totalorder %s141, 0
      %p1174 = por %p1172, %p1173
      %p1175 = scmp.ne.s32.totalorder %s1167, %s1169
      %p1176 = scmp.eq.s32.totalorder %s146, 1
      %p1177 = por %p1175, %p1176
      %p1178 = scmp.ne.s32.totalorder %s1169, %s1170
      %p1179 = scmp.eq.s32.totalorder %s146, 0
      %p1180 = por %p1178, %p1179
      %p1181 = scmp.ne.s32.totalorder %s1169, %s1170
      %p1182 = scmp.eq.s32.totalorder %s147, 1
      %p1183 = por %p1181, %p1182
      %p1185 = scmp.ne.s32.totalorder %s1170, %s1184
      %p1186 = scmp.eq.s32.totalorder %s147, 0
      %p1187 = por %p1185, %p1186
      %s1189 = sadd.s32 %s1188, 1
      %p1192 = scmp.eq.s32.totalorder %s141, 1
      %p1193 = scmp.ne.s32.totalorder %s1188, %s1190
      %p1194 = scmp.eq.s32.totalorder %s141, 0
      %p1195 = por %p1193, %p1194
      %p1196 = scmp.ne.s32.totalorder %s1188, %s1190
      %p1197 = scmp.eq.s32.totalorder %s146, 1
      %p1198 = por %p1196, %p1197
      %p1199 = scmp.ne.s32.totalorder %s1190, %s1191
      %p1200 = scmp.eq.s32.totalorder %s146, 0
      %p1201 = por %p1199, %p1200
      %p1202 = scmp.ne.s32.totalorder %s1190, %s1191
      %p1203 = scmp.eq.s32.totalorder %s147, 1
      %p1204 = por %p1202, %p1203
      %p1206 = scmp.ne.s32.totalorder %s1191, %s1205
      %p1207 = scmp.eq.s32.totalorder %s147, 0
      %p1208 = por %p1206, %p1207
      %s1210 = sadd.s32 %s1209, 1
      %p1213 = scmp.eq.s32.totalorder %s141, 1
      %p1214 = scmp.ne.s32.totalorder %s1209, %s1211
      %p1215 = scmp.eq.s32.totalorder %s141, 0
      %p1216 = por %p1214, %p1215
      %p1217 = scmp.ne.s32.totalorder %s1209, %s1211
      %p1218 = scmp.eq.s32.totalorder %s146, 1
      %p1219 = por %p1217, %p1218
      %p1220 = scmp.ne.s32.totalorder %s1211, %s1212
      %p1221 = scmp.eq.s32.totalorder %s146, 0
      %p1222 = por %p1220, %p1221
      %p1223 = scmp.ne.s32.totalorder %s1211, %s1212
      %p1224 = scmp.eq.s32.totalorder %s147, 1
      %p1225 = por %p1223, %p1224
      %p1227 = scmp.ne.s32.totalorder %s1212, %s1226
      %p1228 = scmp.eq.s32.totalorder %s147, 0
      %p1229 = por %p1227, %p1228
      %s1231 = sadd.s32 %s1230, 1
      %p1234 = scmp.eq.s32.totalorder %s141, 1
      %p1235 = scmp.ne.s32.totalorder %s1230, %s1232
      %p1236 = scmp.eq.s32.totalorder %s141, 0
      %p1237 = por %p1235, %p1236
      %p1238 = scmp.ne.s32.totalorder %s1230, %s1232
      %p1239 = scmp.eq.s32.totalorder %s146, 1
      %p1240 = por %p1238, %p1239
      %p1241 = scmp.ne.s32.totalorder %s1232, %s1233
      %p1242 = scmp.eq.s32.totalorder %s146, 0
      %p1243 = por %p1241, %p1242
      %p1244 = scmp.ne.s32.totalorder %s1232, %s1233
      %p1245 = scmp.eq.s32.totalorder %s147, 1
      %p1246 = por %p1244, %p1245
      %p1248 = scmp.ne.s32.totalorder %s1233, %s1247
      %p1249 = scmp.eq.s32.totalorder %s147, 0
      %p1250 = por %p1248, %p1249
      %s1252 = sadd.s32 %s1251, 1
      %p1255 = scmp.eq.s32.totalorder %s141, 1
      %p1256 = scmp.ne.s32.totalorder %s1251, %s1253
      %p1257 = scmp.eq.s32.totalorder %s141, 0
      %p1258 = por %p1256, %p1257
      %p1259 = scmp.ne.s32.totalorder %s1251, %s1253
      %p1260 = scmp.eq.s32.totalorder %s146, 1
      %p1261 = por %p1259, %p1260
      %p1262 = scmp.ne.s32.totalorder %s1253, %s1254
      %p1263 = scmp.eq.s32.totalorder %s146, 0
      %p1264 = por %p1262, %p1263
      %p1265 = scmp.ne.s32.totalorder %s1253, %s1254
      %p1266 = scmp.eq.s32.totalorder %s147, 1
      %p1267 = por %p1265, %p1266
      %p1269 = scmp.ne.s32.totalorder %s1254, %s1268
      %p1270 = scmp.eq.s32.totalorder %s147, 0
      %p1271 = por %p1269, %p1270
      %s1273 = sadd.s32 %s1272, 1
      %p1276 = scmp.eq.s32.totalorder %s141, 1
      %p1277 = scmp.ne.s32.totalorder %s1272, %s1274
      %p1278 = scmp.eq.s32.totalorder %s141, 0
      %p1279 = por %p1277, %p1278
      %p1280 = scmp.ne.s32.totalorder %s1272, %s1274
      %p1281 = scmp.eq.s32.totalorder %s146, 1
      %p1282 = por %p1280, %p1281
      %p1283 = scmp.ne.s32.totalorder %s1274, %s1275
      %p1284 = scmp.eq.s32.totalorder %s146, 0
      %p1285 = por %p1283, %p1284
      %p1286 = scmp.ne.s32.totalorder %s1274, %s1275
      %p1287 = scmp.eq.s32.totalorder %s147, 1
      %p1288 = por %p1286, %p1287
      %p1290 = scmp.ne.s32.totalorder %s1275, %s1289
      %p1291 = scmp.eq.s32.totalorder %s147, 0
      %p1292 = por %p1290, %p1291
      %s1294 = sadd.s32 %s1293, 1
      %p1297 = scmp.eq.s32.totalorder %s141, 1
      %p1298 = scmp.ne.s32.totalorder %s1293, %s1295
      %p1299 = scmp.eq.s32.totalorder %s141, 0
      %p1300 = por %p1298, %p1299
      %p1301 = scmp.ne.s32.totalorder %s1293, %s1295
      %p1302 = scmp.eq.s32.totalorder %s146, 1
      %p1303 = por %p1301, %p1302
      %p1304 = scmp.ne.s32.totalorder %s1295, %s1296
      %p1305 = scmp.eq.s32.totalorder %s146, 0
      %p1306 = por %p1304, %p1305
      %p1307 = scmp.ne.s32.totalorder %s1295, %s1296
      %p1308 = scmp.eq.s32.totalorder %s147, 1
      %p1309 = por %p1307, %p1308
      %p1311 = scmp.ne.s32.totalorder %s1296, %s1310
      %p1312 = scmp.eq.s32.totalorder %s147, 0
      %p1313 = por %p1311, %p1312
      %s1314 = ssub.s32 %s141, %s148
      %p1315 = scmp.eq.s32.totalorder %s1314, 0
      %s1317 = sadd.s32 %s1316, 1
      %s1318 = scalar_select %p1315, %s1316, %s1317
      %p1321 = pneg %p1315
      %p1322 = scmp.eq.s32.totalorder %s141, 1
      %p1323 = por %p1321, %p1322
      %p1324 = scmp.ne.s32.totalorder %s1316, %s1319
      %p1325 = scmp.eq.s32.totalorder %s141, 0
      %p1326 = por %p1324, %p1325
      %p1327 = scmp.ne.s32.totalorder %s1316, %s1319
      %p1328 = scmp.eq.s32.totalorder %s146, 1
      %p1329 = por %p1327, %p1328
      %p1330 = scmp.ne.s32.totalorder %s1319, %s1320
      %p1331 = scmp.eq.s32.totalorder %s146, 0
      %p1332 = por %p1330, %p1331
      %p1333 = scmp.ne.s32.totalorder %s1319, %s1320
      %p1334 = scmp.eq.s32.totalorder %s147, 1
      %p1335 = por %p1333, %p1334
      %p1337 = scmp.ne.s32.totalorder %s1320, %s1336
      %p1338 = scmp.eq.s32.totalorder %s147, 0
      %p1339 = por %p1337, %p1338
      %s1340 = ssub.s32 %s141, %s148
      %p1341 = scmp.eq.s32.totalorder %s1340, 0
      %s1343 = sadd.s32 %s1342, 1
      %s1344 = scalar_select %p1341, %s1342, %s1343
      %p1347 = pneg %p1341
      %p1348 = scmp.eq.s32.totalorder %s141, 1
      %p1349 = por %p1347, %p1348
      %p1350 = scmp.ne.s32.totalorder %s1342, %s1345
      %p1351 = scmp.eq.s32.totalorder %s141, 0
      %p1352 = por %p1350, %p1351
      %p1353 = scmp.ne.s32.totalorder %s1342, %s1345
      %p1354 = scmp.eq.s32.totalorder %s146, 1
      %p1355 = por %p1353, %p1354
      %p1356 = scmp.ne.s32.totalorder %s1345, %s1346
      %p1357 = scmp.eq.s32.totalorder %s146, 0
      %p1358 = por %p1356, %p1357
      %p1359 = scmp.ne.s32.totalorder %s1345, %s1346
      %p1360 = scmp.eq.s32.totalorder %s147, 1
      %p1361 = por %p1359, %p1360
      %p1363 = scmp.ne.s32.totalorder %s1346, %s1362
      %p1364 = scmp.eq.s32.totalorder %s147, 0
      %p1365 = por %p1363, %p1364
      %p1366 = scmp.le.s32.totalorder 1, %s141
      %p1367 = scmp.lt.s32.totalorder %s141, 3
      %p1368 = pnand %p1366, %p1367
      %p1369 = pneg %p1368
      // Predicated region
      $region9: #{fpointnet_forward.1} parent=5 // pred_check
        _
      $region10: #{fpointnet_forward.1} parent=5 // pred_check_branch
        %1371 = sbr.rel (%p1368) target = $region12
      $region11: #{fpointnet_forward.1} parent=5 // pred_region
        %s1372 = ssub.s32 %s141, 1
        // Predicated region
        $region13: #{fpointnet_forward.1} parent=11 // pred_check
          %p1373 = pneg %p214
        $region14: #{fpointnet_forward.1} parent=11 // pred_check_branch
          %1375 = sbr.rel (%p1373) target = $region16
        $region15: #{fpointnet_forward.1} parent=11 // pred_region
          %1377 = vsyncadd [#allocation3], 0
          %s1379 = sshll.u32 %s5, 4
          %s1380 = int_to_ptr.hbm [resolvable:$true] %s1379
          %s1381 = sshll.u32 [#allocation2], 4
          %s1382 = int_to_ptr.vmem [resolvable:$true] %s1381
          %1384 = dma.hbm_to_vmem [thread:$0]  %s1380, 32, %s1382, [#allocation3]
        $region16: #{fpointnet_forward.1} parent=11 // pred_fallthru
          _
        // Predicated region
        $region17: #{fpointnet_forward.1} parent=11 // pred_check
          %p1385 = pneg %p235
        $region18: #{fpointnet_forward.1} parent=11 // pred_check_branch
          %1387 = sbr.rel (%p1385) target = $region20
        $region19: #{fpointnet_forward.1} parent=11 // pred_region
          %1389 = vsyncadd [#allocation5], 0
          %s1391 = sshll.u32 %s7, 4
          %s1392 = int_to_ptr.hbm [resolvable:$true] %s1391
          %s1393 = sshll.u32 [#allocation4], 4
          %s1394 = int_to_ptr.vmem [resolvable:$true] %s1393
          %1396 = dma.hbm_to_vmem [thread:$0]  %s1392, 16, %s1394, [#allocation5]
        $region20: #{fpointnet_forward.1} parent=11 // pred_fallthru
          _
        // Predicated region
        $region21: #{fpointnet_forward.1} parent=11 // pred_check
          %p1397 = pneg %p256
        $region22: #{fpointnet_forward.1} parent=11 // pred_check_branch
          %1399 = sbr.rel (%p1397) target = $region24
        $region23: #{fpointnet_forward.1} parent=11 // pred_region
          %1401 = vsyncadd [#allocation5], 0
          %s1402 = sshll.u32 %s9, 4
          %s1403 = int_to_ptr.hbm [resolvable:$true] %s1402
          %s1404 = sshll.u32 [#allocation6], 4
          %s1405 = int_to_ptr.vmem [resolvable:$true] %s1404
          %1410 = dma.hbm_to_vmem [thread:$0]  %s1403, 512, %s1405, [#allocation5], 64, 64, 4
        $region24: #{fpointnet_forward.1} parent=11 // pred_fallthru
          _
        // Predicated region
        $region25: #{fpointnet_forward.1} parent=11 // pred_check
          %p1411 = pneg %p277
        $region26: #{fpointnet_forward.1} parent=11 // pred_check_branch
          %1413 = sbr.rel (%p1411) target = $region28
        $region27: #{fpointnet_forward.1} parent=11 // pred_region
          %1415 = vsyncadd [#allocation8], 0
          %s1417 = sshll.u32 %s11, 4
          %s1418 = int_to_ptr.hbm [resolvable:$true] %s1417
          %s1419 = sshll.u32 [#allocation7], 4
          %s1420 = int_to_ptr.vmem [resolvable:$true] %s1419
          %1422 = dma.hbm_to_vmem [thread:$0]  %s1418, 16, %s1420, [#allocation8]
        $region28: #{fpointnet_forward.1} parent=11 // pred_fallthru
          _
        // Predicated region
        $region29: #{fpointnet_forward.1} parent=11 // pred_check
          %p1423 = pneg %p298
        $region30: #{fpointnet_forward.1} parent=11 // pred_check_branch
          %1425 = sbr.rel (%p1423) target = $region32
        $region31: #{fpointnet_forward.1} parent=11 // pred_region
          %1427 = vsyncadd [#allocation8], 0
          %s1428 = sshll.u32 %s13, 4
          %s1429 = int_to_ptr.hbm [resolvable:$true] %s1428
          %s1430 = sshll.u32 [#allocation9], 4
          %s1431 = int_to_ptr.vmem [resolvable:$true] %s1430
          %1436 = dma.hbm_to_vmem [thread:$0]  %s1429, 512, %s1431, [#allocation8], 64, 64, 4
        $region32: #{fpointnet_forward.1} parent=11 // pred_fallthru
          _
        // Predicated region
        $region33: #{fpointnet_forward.1} parent=11 // pred_check
          %p1437 = pneg %p319
        $region34: #{fpointnet_forward.1} parent=11 // pred_check_branch
          %1439 = sbr.rel (%p1437) target = $region36
        $region35: #{fpointnet_forward.1} parent=11 // pred_region
          %1441 = vsyncadd [#allocation11], 0
          %s1443 = sshll.u32 %s15, 4
          %s1444 = int_to_ptr.hbm [resolvable:$true] %s1443
          %s1445 = sshll.u32 [#allocation10], 4
          %s1446 = int_to_ptr.vmem [resolvable:$true] %s1445
          %1448 = dma.hbm_to_vmem [thread:$0]  %s1444, 16, %s1446, [#allocation11]
        $region36: #{fpointnet_forward.1} parent=11 // pred_fallthru
          _
        // Predicated region
        $region37: #{fpointnet_forward.1} parent=11 // pred_check
          %p1449 = pneg %p340
        $region38: #{fpointnet_forward.1} parent=11 // pred_check_branch
          %1451 = sbr.rel (%p1449) target = $region40
        $region39: #{fpointnet_forward.1} parent=11 // pred_region
          %1453 = vsyncadd [#allocation11], 0
          %s1454 = sshll.u32 %s17, 4
          %s1455 = int_to_ptr.hbm [resolvable:$true] %s1454
          %s1456 = sshll.u32 [#allocation12], 4
          %s1457 = int_to_ptr.vmem [resolvable:$true] %s1456
          %1462 = dma.hbm_to_vmem [thread:$0]  %s1455, 512, %s1457, [#allocation11], 64, 64, 4
        $region40: #{fpointnet_forward.1} parent=11 // pred_fallthru
          _
        // Predicated region
        $region41: #{fpointnet_forward.1} parent=11 // pred_check
          %p1463 = pneg %p361
        $region42: #{fpointnet_forward.1} parent=11 // pred_check_branch
          %1465 = sbr.rel (%p1463) target = $region44
        $region43: #{fpointnet_forward.1} parent=11 // pred_region
          %1467 = vsyncadd [#allocation14], 0
          %s1469 = sshll.u32 %s19, 4
          %s1470 = int_to_ptr.hbm [resolvable:$true] %s1469
          %s1471 = sshll.u32 [#allocation13], 4
          %s1472 = int_to_ptr.vmem [resolvable:$true] %s1471
          %1474 = dma.hbm_to_vmem [thread:$0]  %s1470, 16, %s1472, [#allocation14]
        $region44: #{fpointnet_forward.1} parent=11 // pred_fallthru
          _
        // Predicated region
        $region45: #{fpointnet_forward.1} parent=11 // pred_check
          %p1475 = pneg %p382
        $region46: #{fpointnet_forward.1} parent=11 // pred_check_branch
          %1477 = sbr.rel (%p1475) target = $region48
        $region47: #{fpointnet_forward.1} parent=11 // pred_region
          %1479 = vsyncadd [#allocation14], 0
          %s1480 = sshll.u32 %s21, 4
          %s1481 = int_to_ptr.hbm [resolvable:$true] %s1480
          %s1482 = sshll.u32 [#allocation15], 4
          %s1483 = int_to_ptr.vmem [resolvable:$true] %s1482
          %1488 = dma.hbm_to_vmem [thread:$0]  %s1481, 2048, %s1483, [#allocation14], 128, 128, 8
        $region48: #{fpointnet_forward.1} parent=11 // pred_fallthru
          _
        // Predicated region
        $region49: #{fpointnet_forward.1} parent=11 // pred_check
          %p1489 = pneg %p403
        $region50: #{fpointnet_forward.1} parent=11 // pred_check_branch
          %1491 = sbr.rel (%p1489) target = $region52
        $region51: #{fpointnet_forward.1} parent=11 // pred_region
          %1493 = vsyncadd [#allocation17], 0
          %s1495 = sshll.u32 %s23, 4
          %s1496 = int_to_ptr.hbm [resolvable:$true] %s1495
          %s1497 = sshll.u32 [#allocation16], 4
          %s1498 = int_to_ptr.vmem [resolvable:$true] %s1497
          %1500 = dma.hbm_to_vmem [thread:$0]  %s1496, 32, %s1498, [#allocation17]
        $region52: #{fpointnet_forward.1} parent=11 // pred_fallthru
          _
        // Predicated region
        $region53: #{fpointnet_forward.1} parent=11 // pred_check
          %p1501 = pneg %p424
        $region54: #{fpointnet_forward.1} parent=11 // pred_check_branch
          %1503 = sbr.rel (%p1501) target = $region56
        $region55: #{fpointnet_forward.1} parent=11 // pred_region
          _
        $region56: #{fpointnet_forward.1} parent=11 // pred_fallthru
          _
        // Predicated region
        $region57: #{fpointnet_forward.1} parent=11 // pred_check
          %p1504 = pneg %p445
        $region58: #{fpointnet_forward.1} parent=11 // pred_check_branch
          %1506 = sbr.rel (%p1504) target = $region60
        $region59: #{fpointnet_forward.1} parent=11 // pred_region
          _
        $region60: #{fpointnet_forward.1} parent=11 // pred_fallthru
          _
        // Predicated region
        $region61: #{fpointnet_forward.1} parent=11 // pred_check
          %p1507 = pneg %p466
        $region62: #{fpointnet_forward.1} parent=11 // pred_check_branch
          %1509 = sbr.rel (%p1507) target = $region64
        $region63: #{fpointnet_forward.1} parent=11 // pred_region
          %1511 = vsyncadd [#allocation17], 0
          %s1513 = sshll.u32 %s29, 4
          %s1514 = int_to_ptr.hbm [resolvable:$true] %s1513
          %s1515 = sshll.u32 [#allocation18], 4
          %s1516 = int_to_ptr.vmem [resolvable:$true] %s1515
          %1518 = dma.hbm_to_vmem [thread:$0]  %s1514, 128, %s1516, [#allocation17]
        $region64: #{fpointnet_forward.1} parent=11 // pred_fallthru
          _
        // Predicated region
        $region65: #{fpointnet_forward.1} parent=11 // pred_check
          %p1519 = pneg %p487
        $region66: #{fpointnet_forward.1} parent=11 // pred_check_branch
          %1521 = sbr.rel (%p1519) target = $region68
        $region67: #{fpointnet_forward.1} parent=11 // pred_region
          %1523 = vsyncadd [#allocation20], 0
          %s1525 = sshll.u32 %s31, 4
          %s1526 = int_to_ptr.hbm [resolvable:$true] %s1525
          %s1527 = sshll.u32 [#allocation19], 4
          %s1528 = int_to_ptr.vmem [resolvable:$true] %s1527
          %1530 = dma.hbm_to_vmem [thread:$0]  %s1526, 32, %s1528, [#allocation20]
        $region68: #{fpointnet_forward.1} parent=11 // pred_fallthru
          _
        // Predicated region
        $region69: #{fpointnet_forward.1} parent=11 // pred_check
          %p1531 = pneg %p508
        $region70: #{fpointnet_forward.1} parent=11 // pred_check_branch
          %1533 = sbr.rel (%p1531) target = $region72
        $region71: #{fpointnet_forward.1} parent=11 // pred_region
          %1535 = vsyncadd [#allocation20], 0
          %s1536 = sshll.u32 %s33, 4
          %s1537 = int_to_ptr.hbm [resolvable:$true] %s1536
          %s1538 = sshll.u32 [#allocation21], 4
          %s1539 = int_to_ptr.vmem [resolvable:$true] %s1538
          %1544 = dma.hbm_to_vmem [thread:$0]  %s1537, 2048, %s1539, [#allocation20], 64, 64, 4
        $region72: #{fpointnet_forward.1} parent=11 // pred_fallthru
          _
        // Predicated region
        $region73: #{fpointnet_forward.1} parent=11 // pred_check
          %p1545 = pneg %p529
        $region74: #{fpointnet_forward.1} parent=11 // pred_check_branch
          %1547 = sbr.rel (%p1545) target = $region76
        $region75: #{fpointnet_forward.1} parent=11 // pred_region
          %1549 = vsyncadd [#allocation23], 0
          %s1551 = sshll.u32 %s35, 4
          %s1552 = int_to_ptr.hbm [resolvable:$true] %s1551
          %s1553 = sshll.u32 [#allocation22], 4
          %s1554 = int_to_ptr.vmem [resolvable:$true] %s1553
          %1556 = dma.hbm_to_vmem [thread:$0]  %s1552, 16, %s1554, [#allocation23]
        $region76: #{fpointnet_forward.1} parent=11 // pred_fallthru
          _
        // Predicated region
        $region77: #{fpointnet_forward.1} parent=11 // pred_check
          %p1557 = pneg %p550
        $region78: #{fpointnet_forward.1} parent=11 // pred_check_branch
          %1559 = sbr.rel (%p1557) target = $region80
        $region79: #{fpointnet_forward.1} parent=11 // pred_region
          _
        $region80: #{fpointnet_forward.1} parent=11 // pred_fallthru
          _
        // Predicated region
        $region81: #{fpointnet_forward.1} parent=11 // pred_check
          %p1560 = pneg %p571
        $region82: #{fpointnet_forward.1} parent=11 // pred_check_branch
          %1562 = sbr.rel (%p1560) target = $region84
        $region83: #{fpointnet_forward.1} parent=11 // pred_region
          %1564 = vsyncadd [#allocation23], 0
          %s1566 = sshll.u32 %s39, 4
          %s1567 = int_to_ptr.hbm [resolvable:$true] %s1566
          %s1568 = sshll.u32 [#allocation24], 4
          %s1569 = int_to_ptr.vmem [resolvable:$true] %s1568
          %1571 = dma.hbm_to_vmem [thread:$0]  %s1567, 16, %s1569, [#allocation23]
        $region84: #{fpointnet_forward.1} parent=11 // pred_fallthru
          _
        // Predicated region
        $region85: #{fpointnet_forward.1} parent=11 // pred_check
          %p1572 = pneg %p592
        $region86: #{fpointnet_forward.1} parent=11 // pred_check_branch
          %1574 = sbr.rel (%p1572) target = $region88
        $region87: #{fpointnet_forward.1} parent=11 // pred_region
          %1576 = vsyncadd [#allocation26], 0
          %s1577 = sshll.u32 %s41, 4
          %s1578 = int_to_ptr.hbm [resolvable:$true] %s1577
          %s1579 = sshll.u32 [#allocation25], 4
          %s1580 = int_to_ptr.vmem [resolvable:$true] %s1579
          %1585 = dma.hbm_to_vmem [thread:$0]  %s1578, 1024, %s1580, [#allocation26], 64, 64, 4
        $region88: #{fpointnet_forward.1} parent=11 // pred_fallthru
          _
        // Predicated region
        $region89: #{fpointnet_forward.1} parent=11 // pred_check
          %p1586 = pneg %p613
        $region90: #{fpointnet_forward.1} parent=11 // pred_check_branch
          %1588 = sbr.rel (%p1586) target = $region92
        $region91: #{fpointnet_forward.1} parent=11 // pred_region
          %1590 = vsyncadd [#allocation26], 0
          %s1592 = sshll.u32 %s43, 4
          %s1593 = int_to_ptr.hbm [resolvable:$true] %s1592
          %s1594 = sshll.u32 [#allocation27], 4
          %s1595 = int_to_ptr.vmem [resolvable:$true] %s1594
          %1597 = dma.hbm_to_vmem [thread:$0]  %s1593, 16, %s1595, [#allocation26]
        $region92: #{fpointnet_forward.1} parent=11 // pred_fallthru
          _
        // Predicated region
        $region93: #{fpointnet_forward.1} parent=11 // pred_check
          %p1598 = pneg %p634
        $region94: #{fpointnet_forward.1} parent=11 // pred_check_branch
          %1600 = sbr.rel (%p1598) target = $region96
        $region95: #{fpointnet_forward.1} parent=11 // pred_region
          %1602 = vsyncadd [#allocation29], 0
          %s1603 = sshll.u32 %s45, 4
          %s1604 = int_to_ptr.hbm [resolvable:$true] %s1603
          %s1605 = sshll.u32 [#allocation28], 4
          %s1606 = int_to_ptr.vmem [resolvable:$true] %s1605
          %1611 = dma.hbm_to_vmem [thread:$0]  %s1604, 1024, %s1606, [#allocation29], 64, 64, 4
        $region96: #{fpointnet_forward.1} parent=11 // pred_fallthru
          _
        // Predicated region
        $region97: #{fpointnet_forward.1} parent=11 // pred_check
          %p1612 = pneg %p655
        $region98: #{fpointnet_forward.1} parent=11 // pred_check_branch
          %1614 = sbr.rel (%p1612) target = $region100
        $region99: #{fpointnet_forward.1} parent=11 // pred_region
          %1616 = vsyncadd [#allocation29], 0
          %s1618 = sshll.u32 %s47, 4
          %s1619 = int_to_ptr.hbm [resolvable:$true] %s1618
          %s1620 = sshll.u32 [#allocation30], 4
          %s1621 = int_to_ptr.vmem [resolvable:$true] %s1620
          %1623 = dma.hbm_to_vmem [thread:$0]  %s1619, 16, %s1621, [#allocation29]
        $region100: #{fpointnet_forward.1} parent=11 // pred_fallthru
          _
        // Predicated region
        $region101: #{fpointnet_forward.1} parent=11 // pred_check
          %p1624 = pneg %p676
        $region102: #{fpointnet_forward.1} parent=11 // pred_check_branch
          %1626 = sbr.rel (%p1624) target = $region104
        $region103: #{fpointnet_forward.1} parent=11 // pred_region
          _
        $region104: #{fpointnet_forward.1} parent=11 // pred_fallthru
          _
        // Predicated region
        $region105: #{fpointnet_forward.1} parent=11 // pred_check
          %p1627 = pneg %p697
        $region106: #{fpointnet_forward.1} parent=11 // pred_check_branch
          %1629 = sbr.rel (%p1627) target = $region108
        $region107: #{fpointnet_forward.1} parent=11 // pred_region
          %1631 = vsyncadd [#allocation32], 0
          %s1633 = sshll.u32 %s51, 4
          %s1634 = int_to_ptr.hbm [resolvable:$true] %s1633
          %s1635 = sshll.u32 [#allocation31], 4
          %s1636 = int_to_ptr.vmem [resolvable:$true] %s1635
          %1638 = dma.hbm_to_vmem [thread:$0]  %s1634, 16, %s1636, [#allocation32]
        $region108: #{fpointnet_forward.1} parent=11 // pred_fallthru
          _
        // Predicated region
        $region109: #{fpointnet_forward.1} parent=11 // pred_check
          %p1639 = pneg %p718
        $region110: #{fpointnet_forward.1} parent=11 // pred_check_branch
          %1641 = sbr.rel (%p1639) target = $region112
        $region111: #{fpointnet_forward.1} parent=11 // pred_region
          %1643 = vsyncadd [#allocation32], 0
          %s1645 = sshll.u32 %s53, 4
          %s1646 = int_to_ptr.hbm [resolvable:$true] %s1645
          %s1647 = sshll.u32 [#allocation33], 4
          %s1648 = int_to_ptr.vmem [resolvable:$true] %s1647
          %1650 = dma.hbm_to_vmem [thread:$0]  %s1646, 32, %s1648, [#allocation32]
        $region112: #{fpointnet_forward.1} parent=11 // pred_fallthru
          _
        // Predicated region
        $region113: #{fpointnet_forward.1} parent=11 // pred_check
          %p1651 = pneg %p739
        $region114: #{fpointnet_forward.1} parent=11 // pred_check_branch
          %1653 = sbr.rel (%p1651) target = $region116
        $region115: #{fpointnet_forward.1} parent=11 // pred_region
          %1655 = vsyncadd [#allocation35], 0
          %s1657 = sshll.u32 %s55, 4
          %s1658 = int_to_ptr.hbm [resolvable:$true] %s1657
          %s1659 = sshll.u32 [#allocation34], 4
          %s1660 = int_to_ptr.vmem [resolvable:$true] %s1659
          %1662 = dma.hbm_to_vmem [thread:$0]  %s1658, 16, %s1660, [#allocation35]
        $region116: #{fpointnet_forward.1} parent=11 // pred_fallthru
          _
        // Predicated region
        $region117: #{fpointnet_forward.1} parent=11 // pred_check
          %p1663 = pneg %p760
        $region118: #{fpointnet_forward.1} parent=11 // pred_check_branch
          %1665 = sbr.rel (%p1663) target = $region120
        $region119: #{fpointnet_forward.1} parent=11 // pred_region
          %1667 = vsyncadd [#allocation35], 0
          %s1668 = sshll.u32 %s57, 4
          %s1669 = int_to_ptr.hbm [resolvable:$true] %s1668
          %s1670 = sshll.u32 [#allocation36], 4
          %s1671 = int_to_ptr.vmem [resolvable:$true] %s1670
          %1676 = dma.hbm_to_vmem [thread:$0]  %s1669, 1024, %s1671, [#allocation35], 64, 64, 4
        $region120: #{fpointnet_forward.1} parent=11 // pred_fallthru
          _
        // Predicated region
        $region121: #{fpointnet_forward.1} parent=11 // pred_check
          %p1677 = pneg %p781
        $region122: #{fpointnet_forward.1} parent=11 // pred_check_branch
          %1679 = sbr.rel (%p1677) target = $region124
        $region123: #{fpointnet_forward.1} parent=11 // pred_region
          %1681 = vsyncadd [#allocation38], 0
          %s1683 = sshll.u32 %s59, 4
          %s1684 = int_to_ptr.hbm [resolvable:$true] %s1683
          %s1685 = sshll.u32 [#allocation37], 4
          %s1686 = int_to_ptr.vmem [resolvable:$true] %s1685
          %1688 = dma.hbm_to_vmem [thread:$0]  %s1684, 16, %s1686, [#allocation38]
        $region124: #{fpointnet_forward.1} parent=11 // pred_fallthru
          _
        // Predicated region
        $region125: #{fpointnet_forward.1} parent=11 // pred_check
          %p1689 = pneg %p802
        $region126: #{fpointnet_forward.1} parent=11 // pred_check_branch
          %1691 = sbr.rel (%p1689) target = $region128
        $region127: #{fpointnet_forward.1} parent=11 // pred_region
          %1693 = vsyncadd [#allocation38], 0
          %s1694 = sshll.u32 %s61, 4
          %s1695 = int_to_ptr.hbm [resolvable:$true] %s1694
          %s1696 = sshll.u32 [#allocation39], 4
          %s1697 = int_to_ptr.vmem [resolvable:$true] %s1696
          %1702 = dma.hbm_to_vmem [thread:$0]  %s1695, 2048, %s1697, [#allocation38], 128, 128, 8
        $region128: #{fpointnet_forward.1} parent=11 // pred_fallthru
          _
        // Predicated region
        $region129: #{fpointnet_forward.1} parent=11 // pred_check
          %p1703 = pneg %p823
        $region130: #{fpointnet_forward.1} parent=11 // pred_check_branch
          %1705 = sbr.rel (%p1703) target = $region132
        $region131: #{fpointnet_forward.1} parent=11 // pred_region
          %1707 = vsyncadd [#allocation41], 0
          %s1709 = sshll.u32 %s63, 4
          %s1710 = int_to_ptr.hbm [resolvable:$true] %s1709
          %s1711 = sshll.u32 [#allocation40], 4
          %s1712 = int_to_ptr.vmem [resolvable:$true] %s1711
          %1714 = dma.hbm_to_vmem [thread:$0]  %s1710, 32, %s1712, [#allocation41]
        $region132: #{fpointnet_forward.1} parent=11 // pred_fallthru
          _
        // Predicated region
        $region133: #{fpointnet_forward.1} parent=11 // pred_check
          %p1715 = pneg %p844
        $region134: #{fpointnet_forward.1} parent=11 // pred_check_branch
          %1717 = sbr.rel (%p1715) target = $region136
        $region135: #{fpointnet_forward.1} parent=11 // pred_region
          %1719 = vsyncadd [#allocation41], 0
          %s1720 = sshll.u32 %s65, 4
          %s1721 = int_to_ptr.hbm [resolvable:$true] %s1720
          %s1722 = sshll.u32 [#allocation42], 4
          %s1723 = int_to_ptr.vmem [resolvable:$true] %s1722
          %1728 = dma.hbm_to_vmem [thread:$0]  %s1721, 4096, %s1723, [#allocation41], 128, 128, 8
        $region136: #{fpointnet_forward.1} parent=11 // pred_fallthru
          _
        // Predicated region
        $region137: #{fpointnet_forward.1} parent=11 // pred_check
          %p1729 = pneg %p865
        $region138: #{fpointnet_forward.1} parent=11 // pred_check_branch
          %1731 = sbr.rel (%p1729) target = $region140
        $region139: #{fpointnet_forward.1} parent=11 // pred_region
          _
        $region140: #{fpointnet_forward.1} parent=11 // pred_fallthru
          _
        // Predicated region
        $region141: #{fpointnet_forward.1} parent=11 // pred_check
          %p1732 = pneg %p886
        $region142: #{fpointnet_forward.1} parent=11 // pred_check_branch
          %1734 = sbr.rel (%p1732) target = $region144
        $region143: #{fpointnet_forward.1} parent=11 // pred_region
          %1736 = vsyncadd [#allocation44], 0
          %s1738 = sshll.u32 %s69, 4
          %s1739 = int_to_ptr.hbm [resolvable:$true] %s1738
          %s1740 = sshll.u32 [#allocation43], 4
          %s1741 = int_to_ptr.vmem [resolvable:$true] %s1740
          %1743 = dma.hbm_to_vmem [thread:$0]  %s1739, 32, %s1741, [#allocation44]
        $region144: #{fpointnet_forward.1} parent=11 // pred_fallthru
          _
        // Predicated region
        $region145: #{fpointnet_forward.1} parent=11 // pred_check
          %p1744 = pneg %p907
        $region146: #{fpointnet_forward.1} parent=11 // pred_check_branch
          %1746 = sbr.rel (%p1744) target = $region148
        $region147: #{fpointnet_forward.1} parent=11 // pred_region
          %1748 = vsyncadd [#allocation44], 0
          %s1749 = sshll.u32 %s71, 4
          %s1750 = int_to_ptr.hbm [resolvable:$true] %s1749
          %s1751 = sshll.u32 [#allocation45], 4
          %s1752 = int_to_ptr.vmem [resolvable:$true] %s1751
          %1757 = dma.hbm_to_vmem [thread:$0]  %s1750, 2048, %s1752, [#allocation44], 64, 64, 4
        $region148: #{fpointnet_forward.1} parent=11 // pred_fallthru
          _
        // Predicated region
        $region149: #{fpointnet_forward.1} parent=11 // pred_check
          %p1758 = pneg %p928
        $region150: #{fpointnet_forward.1} parent=11 // pred_check_branch
          %1760 = sbr.rel (%p1758) target = $region152
        $region151: #{fpointnet_forward.1} parent=11 // pred_region
          %1762 = vsyncadd [#allocation47], 0
          %s1764 = sshll.u32 %s73, 4
          %s1765 = int_to_ptr.hbm [resolvable:$true] %s1764
          %s1766 = sshll.u32 [#allocation46], 4
          %s1767 = int_to_ptr.vmem [resolvable:$true] %s1766
          %1769 = dma.hbm_to_vmem [thread:$0]  %s1765, 16, %s1767, [#allocation47]
        $region152: #{fpointnet_forward.1} parent=11 // pred_fallthru
          _
        // Predicated region
        $region153: #{fpointnet_forward.1} parent=11 // pred_check
          %p1770 = pneg %p949
        $region154: #{fpointnet_forward.1} parent=11 // pred_check_branch
          %1772 = sbr.rel (%p1770) target = $region156
        $region155: #{fpointnet_forward.1} parent=11 // pred_region
          _
        $region156: #{fpointnet_forward.1} parent=11 // pred_fallthru
          _
        // Predicated region
        $region157: #{fpointnet_forward.1} parent=11 // pred_check
          %p1773 = pneg %p970
        $region158: #{fpointnet_forward.1} parent=11 // pred_check_branch
          %1775 = sbr.rel (%p1773) target = $region160
        $region159: #{fpointnet_forward.1} parent=11 // pred_region
          %1777 = vsyncadd [#allocation47], 0
          %s1779 = sshll.u32 %s77, 4
          %s1780 = int_to_ptr.hbm [resolvable:$true] %s1779
          %s1781 = sshll.u32 [#allocation48], 4
          %s1782 = int_to_ptr.vmem [resolvable:$true] %s1781
          %1784 = dma.hbm_to_vmem [thread:$0]  %s1780, 16, %s1782, [#allocation47]
        $region160: #{fpointnet_forward.1} parent=11 // pred_fallthru
          _
        // Predicated region
        $region161: #{fpointnet_forward.1} parent=11 // pred_check
          %p1785 = pneg %p991
        $region162: #{fpointnet_forward.1} parent=11 // pred_check_branch
          %1787 = sbr.rel (%p1785) target = $region164
        $region163: #{fpointnet_forward.1} parent=11 // pred_region
          %1789 = vsyncadd [#allocation50], 0
          %s1791 = sshll.u32 %s79, 4
          %s1792 = int_to_ptr.hbm [resolvable:$true] %s1791
          %s1793 = sshll.u32 [#allocation49], 4
          %s1794 = int_to_ptr.vmem [resolvable:$true] %s1793
          %1796 = dma.hbm_to_vmem [thread:$0]  %s1792, 32, %s1794, [#allocation50]
        $region164: #{fpointnet_forward.1} parent=11 // pred_fallthru
          _
        // Predicated region
        $region165: #{fpointnet_forward.1} parent=11 // pred_check
          %p1797 = pneg %p1012
        $region166: #{fpointnet_forward.1} parent=11 // pred_check_branch
          %1799 = sbr.rel (%p1797) target = $region168
        $region167: #{fpointnet_forward.1} parent=11 // pred_region
          %1801 = vsyncadd [#allocation50], 0
          %s1803 = sshll.u32 %s81, 4
          %s1804 = int_to_ptr.hbm [resolvable:$true] %s1803
          %s1805 = sshll.u32 [#allocation51], 4
          %s1806 = int_to_ptr.vmem [resolvable:$true] %s1805
          %1808 = dma.hbm_to_vmem [thread:$0]  %s1804, 16, %s1806, [#allocation50]
        $region168: #{fpointnet_forward.1} parent=11 // pred_fallthru
          _
        // Predicated region
        $region169: #{fpointnet_forward.1} parent=11 // pred_check
          %p1809 = pneg %p1033
        $region170: #{fpointnet_forward.1} parent=11 // pred_check_branch
          %1811 = sbr.rel (%p1809) target = $region172
        $region171: #{fpointnet_forward.1} parent=11 // pred_region
          %1813 = vsyncadd [#allocation53], 0
          %s1814 = sshll.u32 %s83, 4
          %s1815 = int_to_ptr.hbm [resolvable:$true] %s1814
          %s1816 = sshll.u32 [#allocation52], 4
          %s1817 = int_to_ptr.vmem [resolvable:$true] %s1816
          %1822 = dma.hbm_to_vmem [thread:$0]  %s1815, 1024, %s1817, [#allocation53], 64, 64, 4
        $region172: #{fpointnet_forward.1} parent=11 // pred_fallthru
          _
        // Predicated region
        $region173: #{fpointnet_forward.1} parent=11 // pred_check
          %p1823 = pneg %p1054
        $region174: #{fpointnet_forward.1} parent=11 // pred_check_branch
          %1825 = sbr.rel (%p1823) target = $region176
        $region175: #{fpointnet_forward.1} parent=11 // pred_region
          %1827 = vsyncadd [#allocation53], 0
          %s1829 = sshll.u32 %s85, 4
          %s1830 = int_to_ptr.hbm [resolvable:$true] %s1829
          %s1831 = sshll.u32 [#allocation54], 4
          %s1832 = int_to_ptr.vmem [resolvable:$true] %s1831
          %1834 = dma.hbm_to_vmem [thread:$0]  %s1830, 16, %s1832, [#allocation53]
        $region176: #{fpointnet_forward.1} parent=11 // pred_fallthru
          _
        // Predicated region
        $region177: #{fpointnet_forward.1} parent=11 // pred_check
          %p1835 = pneg %p1075
        $region178: #{fpointnet_forward.1} parent=11 // pred_check_branch
          %1837 = sbr.rel (%p1835) target = $region180
        $region179: #{fpointnet_forward.1} parent=11 // pred_region
          %1839 = vsyncadd [#allocation56], 0
          %s1840 = sshll.u32 %s87, 4
          %s1841 = int_to_ptr.hbm [resolvable:$true] %s1840
          %s1842 = sshll.u32 [#allocation55], 4
          %s1843 = int_to_ptr.vmem [resolvable:$true] %s1842
          %1848 = dma.hbm_to_vmem [thread:$0]  %s1841, 2048, %s1843, [#allocation56], 128, 128, 8
        $region180: #{fpointnet_forward.1} parent=11 // pred_fallthru
          _
        // Predicated region
        $region181: #{fpointnet_forward.1} parent=11 // pred_check
          %p1849 = pneg %p1096
        $region182: #{fpointnet_forward.1} parent=11 // pred_check_branch
          %1851 = sbr.rel (%p1849) target = $region184
        $region183: #{fpointnet_forward.1} parent=11 // pred_region
          %1853 = vsyncadd [#allocation56], 0
          %s1855 = sshll.u32 %s89, 4
          %s1856 = int_to_ptr.hbm [resolvable:$true] %s1855
          %s1857 = sshll.u32 [#allocation57], 4
          %s1858 = int_to_ptr.vmem [resolvable:$true] %s1857
          %1860 = dma.hbm_to_vmem [thread:$0]  %s1856, 32, %s1858, [#allocation56]
        $region184: #{fpointnet_forward.1} parent=11 // pred_fallthru
          _
        // Predicated region
        $region185: #{fpointnet_forward.1} parent=11 // pred_check
          %p1861 = pneg %p1117
        $region186: #{fpointnet_forward.1} parent=11 // pred_check_branch
          %1863 = sbr.rel (%p1861) target = $region188
        $region187: #{fpointnet_forward.1} parent=11 // pred_region
          %1865 = vsyncadd [#allocation59], 0
          %s1866 = sshll.u32 %s91, 4
          %s1867 = int_to_ptr.hbm [resolvable:$true] %s1866
          %s1868 = sshll.u32 [#allocation58], 4
          %s1869 = int_to_ptr.vmem [resolvable:$true] %s1868
          %1874 = dma.hbm_to_vmem [thread:$0]  %s1867, 8192, %s1869, [#allocation59], 256, 256, 16
        $region188: #{fpointnet_forward.1} parent=11 // pred_fallthru
          _
        // Predicated region
        $region189: #{fpointnet_forward.1} parent=11 // pred_check
          %p1875 = pneg %p1138
        $region190: #{fpointnet_forward.1} parent=11 // pred_check_branch
          %1877 = sbr.rel (%p1875) target = $region192
        $region191: #{fpointnet_forward.1} parent=11 // pred_region
          _
        $region192: #{fpointnet_forward.1} parent=11 // pred_fallthru
          _
        // Predicated region
        $region193: #{fpointnet_forward.1} parent=11 // pred_check
          %p1878 = pneg %p1159
        $region194: #{fpointnet_forward.1} parent=11 // pred_check_branch
          %1880 = sbr.rel (%p1878) target = $region196
        $region195: #{fpointnet_forward.1} parent=11 // pred_region
          %1882 = vsyncadd [#allocation59], 0
          %s1883 = sshll.u32 %s95, 4
          %s1884 = int_to_ptr.hbm [resolvable:$true] %s1883
          %s1885 = sshll.u32 [#allocation60], 4
          %s1886 = int_to_ptr.vmem [resolvable:$true] %s1885
          %1891 = dma.hbm_to_vmem [thread:$0]  %s1884, 16384, %s1886, [#allocation59], 256, 256, 16
        $region196: #{fpointnet_forward.1} parent=11 // pred_fallthru
          _
        // Predicated region
        $region197: #{fpointnet_forward.1} parent=11 // pred_check
          %p1892 = pneg %p1180
        $region198: #{fpointnet_forward.1} parent=11 // pred_check_branch
          %1894 = sbr.rel (%p1892) target = $region200
        $region199: #{fpointnet_forward.1} parent=11 // pred_region
          _
        $region200: #{fpointnet_forward.1} parent=11 // pred_fallthru
          _
        // Predicated region
        $region201: #{fpointnet_forward.1} parent=11 // pred_check
          %p1895 = pneg %p1201
        $region202: #{fpointnet_forward.1} parent=11 // pred_check_branch
          %1897 = sbr.rel (%p1895) target = $region204
        $region203: #{fpointnet_forward.1} parent=11 // pred_region
          _
        $region204: #{fpointnet_forward.1} parent=11 // pred_fallthru
          _
        // Predicated region
        $region205: #{fpointnet_forward.1} parent=11 // pred_check
          %p1898 = pneg %p1222
        $region206: #{fpointnet_forward.1} parent=11 // pred_check_branch
          %1900 = sbr.rel (%p1898) target = $region208
        $region207: #{fpointnet_forward.1} parent=11 // pred_region
          %1902 = vsyncadd [#allocation62], 0
          %s1903 = sshll.u32 %s101, 4
          %s1904 = int_to_ptr.hbm [resolvable:$true] %s1903
          %s1905 = sshll.u32 [#allocation61], 4
          %s1906 = int_to_ptr.vmem [resolvable:$true] %s1905
          %1911 = dma.hbm_to_vmem [thread:$0]  %s1904, 8192, %s1906, [#allocation62], 128, 128, 8
        $region208: #{fpointnet_forward.1} parent=11 // pred_fallthru
          _
        // Predicated region
        $region209: #{fpointnet_forward.1} parent=11 // pred_check
          %p1912 = pneg %p1243
        $region210: #{fpointnet_forward.1} parent=11 // pred_check_branch
          %1914 = sbr.rel (%p1912) target = $region212
        $region211: #{fpointnet_forward.1} parent=11 // pred_region
          _
        $region212: #{fpointnet_forward.1} parent=11 // pred_fallthru
          _
        // Predicated region
        $region213: #{fpointnet_forward.1} parent=11 // pred_check
          %p1915 = pneg %p1264
        $region214: #{fpointnet_forward.1} parent=11 // pred_check_branch
          %1917 = sbr.rel (%p1915) target = $region216
        $region215: #{fpointnet_forward.1} parent=11 // pred_region
          %1919 = vsyncadd [#allocation62], 0
          %s1920 = sshll.u32 %s105, 4
          %s1921 = int_to_ptr.hbm [resolvable:$true] %s1920
          %s1922 = sshll.u32 [#allocation63], 4
          %s1923 = int_to_ptr.vmem [resolvable:$true] %s1922
          %1928 = dma.hbm_to_vmem [thread:$0]  %s1921, 2048, %s1923, [#allocation62], 64, 64, 4
        $region216: #{fpointnet_forward.1} parent=11 // pred_fallthru
          _
        // Predicated region
        $region217: #{fpointnet_forward.1} parent=11 // pred_check
          %p1929 = pneg %p1285
        $region218: #{fpointnet_forward.1} parent=11 // pred_check_branch
          %1931 = sbr.rel (%p1929) target = $region220
        $region219: #{fpointnet_forward.1} parent=11 // pred_region
          _
        $region220: #{fpointnet_forward.1} parent=11 // pred_fallthru
          _
        // Predicated region
        $region221: #{fpointnet_forward.1} parent=11 // pred_check
          %p1932 = pneg %p1306
        $region222: #{fpointnet_forward.1} parent=11 // pred_check_branch
          %1934 = sbr.rel (%p1932) target = $region224
        $region223: #{fpointnet_forward.1} parent=11 // pred_region
          _
        $region224: #{fpointnet_forward.1} parent=11 // pred_fallthru
          _
      $region12: #{fpointnet_forward.1} parent=5 // pred_fallthru
        _
      %p1935 = scmp.lt.s32.totalorder %s141, 2
      // Predicated region
      $region225: #{fpointnet_forward.1} parent=5 // pred_check
        %p1936 = pneg %p1935
      $region226: #{fpointnet_forward.1} parent=5 // pred_check_branch
        %1938 = sbr.rel (%p1936) target = $region228
      $region227: #{fpointnet_forward.1} parent=5 // pred_region
        // Predicated region
        $region229: #{fpointnet_forward.1} parent=227 // pred_check
          %p1939 = pneg %p161
        $region230: #{fpointnet_forward.1} parent=227 // pred_check_branch
          %1941 = sbr.rel (%p1939) target = $region232
        $region231: #{fpointnet_forward.1} parent=227 // pred_region
          %p1942 = scmp.lt.s32.totalorder %s141, 1
          %s1943 = scalar_select %p1942, %s141, 1
          %s1944 = smul.addr %s1943, 16
          %s1945 = smul.addr %s1944, 8
          %s1946 = scalar_lea.vmem %s1, %s1945
        $region232: #{fpointnet_forward.1} parent=227 // pred_fallthru
          _
        // Predicated region
        $region233: #{fpointnet_forward.1} parent=227 // pred_check
          %p1947 = pneg %p187
        $region234: #{fpointnet_forward.1} parent=227 // pred_check_branch
          %1949 = sbr.rel (%p1947) target = $region236
        $region235: #{fpointnet_forward.1} parent=227 // pred_region
          %p1950 = scmp.lt.s32.totalorder %s141, 1
          %s1951 = scalar_select %p1950, %s141, 1
          %s1952 = scalar_lea.vmem %s3, %s1951
        $region236: #{fpointnet_forward.1} parent=227 // pred_fallthru
          _
      $region228: #{fpointnet_forward.1} parent=5 // pred_fallthru
        _
      %p1953 = scmp.le.s32.totalorder 1, %s141
      %p1954 = scmp.lt.s32.totalorder %s141, 3
      %p1955 = pnand %p1953, %p1954
      %p1956 = pneg %p1955
      // Predicated region
      $region237: #{fpointnet_forward.1} parent=5 // pred_check
        _
      $region238: #{fpointnet_forward.1} parent=5 // pred_check_branch
        %1958 = sbr.rel (%p1955) target = $region240
      $region239: #{fpointnet_forward.1} parent=5 // pred_region
        %s1959 = ssub.s32 %s141, 1
        // Predicated region
        $region241: #{fpointnet_forward.1} parent=239 // pred_check
          %p1960 = pneg %p214
        $region242: #{fpointnet_forward.1} parent=239 // pred_check_branch
          %1962 = sbr.rel (%p1960) target = $region244
        $region243: #{fpointnet_forward.1} parent=239 // pred_region
          %1964 = dma.done [#allocation3], 32
        $region244: #{fpointnet_forward.1} parent=239 // pred_fallthru
          _
        // Predicated region
        $region245: #{fpointnet_forward.1} parent=239 // pred_check
          %p1965 = pneg %p235
        $region246: #{fpointnet_forward.1} parent=239 // pred_check_branch
          %1967 = sbr.rel (%p1965) target = $region248
        $region247: #{fpointnet_forward.1} parent=239 // pred_region
          %1969 = dma.done [#allocation5], 16
        $region248: #{fpointnet_forward.1} parent=239 // pred_fallthru
          _
        // Predicated region
        $region249: #{fpointnet_forward.1} parent=239 // pred_check
          %p1970 = pneg %p256
        $region250: #{fpointnet_forward.1} parent=239 // pred_check_branch
          %1972 = sbr.rel (%p1970) target = $region252
        $region251: #{fpointnet_forward.1} parent=239 // pred_region
          %1974 = dma.done [#allocation5], 512
        $region252: #{fpointnet_forward.1} parent=239 // pred_fallthru
          _
        // Predicated region
        $region253: #{fpointnet_forward.1} parent=239 // pred_check
          %p1975 = pneg %p277
        $region254: #{fpointnet_forward.1} parent=239 // pred_check_branch
          %1977 = sbr.rel (%p1975) target = $region256
        $region255: #{fpointnet_forward.1} parent=239 // pred_region
          %1979 = dma.done [#allocation8], 16
        $region256: #{fpointnet_forward.1} parent=239 // pred_fallthru
          _
        // Predicated region
        $region257: #{fpointnet_forward.1} parent=239 // pred_check
          %p1980 = pneg %p298
        $region258: #{fpointnet_forward.1} parent=239 // pred_check_branch
          %1982 = sbr.rel (%p1980) target = $region260
        $region259: #{fpointnet_forward.1} parent=239 // pred_region
          %1984 = dma.done [#allocation8], 512
        $region260: #{fpointnet_forward.1} parent=239 // pred_fallthru
          _
        // Predicated region
        $region261: #{fpointnet_forward.1} parent=239 // pred_check
          %p1985 = pneg %p319
        $region262: #{fpointnet_forward.1} parent=239 // pred_check_branch
          %1987 = sbr.rel (%p1985) target = $region264
        $region263: #{fpointnet_forward.1} parent=239 // pred_region
          %1989 = dma.done [#allocation11], 16
        $region264: #{fpointnet_forward.1} parent=239 // pred_fallthru
          _
        // Predicated region
        $region265: #{fpointnet_forward.1} parent=239 // pred_check
          %p1990 = pneg %p340
        $region266: #{fpointnet_forward.1} parent=239 // pred_check_branch
          %1992 = sbr.rel (%p1990) target = $region268
        $region267: #{fpointnet_forward.1} parent=239 // pred_region
          %1994 = dma.done [#allocation11], 512
        $region268: #{fpointnet_forward.1} parent=239 // pred_fallthru
          _
        // Predicated region
        $region269: #{fpointnet_forward.1} parent=239 // pred_check
          %p1995 = pneg %p361
        $region270: #{fpointnet_forward.1} parent=239 // pred_check_branch
          %1997 = sbr.rel (%p1995) target = $region272
        $region271: #{fpointnet_forward.1} parent=239 // pred_region
          %1999 = dma.done [#allocation14], 16
        $region272: #{fpointnet_forward.1} parent=239 // pred_fallthru
          _
        // Predicated region
        $region273: #{fpointnet_forward.1} parent=239 // pred_check
          %p2000 = pneg %p382
        $region274: #{fpointnet_forward.1} parent=239 // pred_check_branch
          %2002 = sbr.rel (%p2000) target = $region276
        $region275: #{fpointnet_forward.1} parent=239 // pred_region
          %2004 = dma.done [#allocation14], 2048
        $region276: #{fpointnet_forward.1} parent=239 // pred_fallthru
          _
        // Predicated region
        $region277: #{fpointnet_forward.1} parent=239 // pred_check
          %p2005 = pneg %p403
        $region278: #{fpointnet_forward.1} parent=239 // pred_check_branch
          %2007 = sbr.rel (%p2005) target = $region280
        $region279: #{fpointnet_forward.1} parent=239 // pred_region
          %2009 = dma.done [#allocation17], 32
        $region280: #{fpointnet_forward.1} parent=239 // pred_fallthru
          _
        // Predicated region
        $region281: #{fpointnet_forward.1} parent=239 // pred_check
          %p2010 = pneg %p466
        $region282: #{fpointnet_forward.1} parent=239 // pred_check_branch
          %2012 = sbr.rel (%p2010) target = $region284
        $region283: #{fpointnet_forward.1} parent=239 // pred_region
          %2014 = dma.done [#allocation17], 128
        $region284: #{fpointnet_forward.1} parent=239 // pred_fallthru
          _
        // Predicated region
        $region285: #{fpointnet_forward.1} parent=239 // pred_check
          %p2015 = pneg %p487
        $region286: #{fpointnet_forward.1} parent=239 // pred_check_branch
          %2017 = sbr.rel (%p2015) target = $region288
        $region287: #{fpointnet_forward.1} parent=239 // pred_region
          %2019 = dma.done [#allocation20], 32
        $region288: #{fpointnet_forward.1} parent=239 // pred_fallthru
          _
        // Predicated region
        $region289: #{fpointnet_forward.1} parent=239 // pred_check
          %p2020 = pneg %p508
        $region290: #{fpointnet_forward.1} parent=239 // pred_check_branch
          %2022 = sbr.rel (%p2020) target = $region292
        $region291: #{fpointnet_forward.1} parent=239 // pred_region
          %2024 = dma.done [#allocation20], 2048
        $region292: #{fpointnet_forward.1} parent=239 // pred_fallthru
          _
        // Predicated region
        $region293: #{fpointnet_forward.1} parent=239 // pred_check
          %p2025 = pneg %p529
        $region294: #{fpointnet_forward.1} parent=239 // pred_check_branch
          %2027 = sbr.rel (%p2025) target = $region296
        $region295: #{fpointnet_forward.1} parent=239 // pred_region
          %2029 = dma.done [#allocation23], 16
        $region296: #{fpointnet_forward.1} parent=239 // pred_fallthru
          _
        // Predicated region
        $region297: #{fpointnet_forward.1} parent=239 // pred_check
          %p2030 = pneg %p571
        $region298: #{fpointnet_forward.1} parent=239 // pred_check_branch
          %2032 = sbr.rel (%p2030) target = $region300
        $region299: #{fpointnet_forward.1} parent=239 // pred_region
          %2034 = dma.done [#allocation23], 16
        $region300: #{fpointnet_forward.1} parent=239 // pred_fallthru
          _
        // Predicated region
        $region301: #{fpointnet_forward.1} parent=239 // pred_check
          %p2035 = pneg %p592
        $region302: #{fpointnet_forward.1} parent=239 // pred_check_branch
          %2037 = sbr.rel (%p2035) target = $region304
        $region303: #{fpointnet_forward.1} parent=239 // pred_region
          %2039 = dma.done [#allocation26], 1024
        $region304: #{fpointnet_forward.1} parent=239 // pred_fallthru
          _
        // Predicated region
        $region305: #{fpointnet_forward.1} parent=239 // pred_check
          %p2040 = pneg %p613
        $region306: #{fpointnet_forward.1} parent=239 // pred_check_branch
          %2042 = sbr.rel (%p2040) target = $region308
        $region307: #{fpointnet_forward.1} parent=239 // pred_region
          %2044 = dma.done [#allocation26], 16
        $region308: #{fpointnet_forward.1} parent=239 // pred_fallthru
          _
        // Predicated region
        $region309: #{fpointnet_forward.1} parent=239 // pred_check
          %p2045 = pneg %p634
        $region310: #{fpointnet_forward.1} parent=239 // pred_check_branch
          %2047 = sbr.rel (%p2045) target = $region312
        $region311: #{fpointnet_forward.1} parent=239 // pred_region
          %2049 = dma.done [#allocation29], 1024
        $region312: #{fpointnet_forward.1} parent=239 // pred_fallthru
          _
        // Predicated region
        $region313: #{fpointnet_forward.1} parent=239 // pred_check
          %p2050 = pneg %p655
        $region314: #{fpointnet_forward.1} parent=239 // pred_check_branch
          %2052 = sbr.rel (%p2050) target = $region316
        $region315: #{fpointnet_forward.1} parent=239 // pred_region
          %2054 = dma.done [#allocation29], 16
        $region316: #{fpointnet_forward.1} parent=239 // pred_fallthru
          _
        // Predicated region
        $region317: #{fpointnet_forward.1} parent=239 // pred_check
          %p2055 = pneg %p697
        $region318: #{fpointnet_forward.1} parent=239 // pred_check_branch
          %2057 = sbr.rel (%p2055) target = $region320
        $region319: #{fpointnet_forward.1} parent=239 // pred_region
          %2059 = dma.done [#allocation32], 16
        $region320: #{fpointnet_forward.1} parent=239 // pred_fallthru
          _
        // Predicated region
        $region321: #{fpointnet_forward.1} parent=239 // pred_check
          %p2060 = pneg %p718
        $region322: #{fpointnet_forward.1} parent=239 // pred_check_branch
          %2062 = sbr.rel (%p2060) target = $region324
        $region323: #{fpointnet_forward.1} parent=239 // pred_region
          %2064 = dma.done [#allocation32], 32
        $region324: #{fpointnet_forward.1} parent=239 // pred_fallthru
          _
        // Predicated region
        $region325: #{fpointnet_forward.1} parent=239 // pred_check
          %p2065 = pneg %p739
        $region326: #{fpointnet_forward.1} parent=239 // pred_check_branch
          %2067 = sbr.rel (%p2065) target = $region328
        $region327: #{fpointnet_forward.1} parent=239 // pred_region
          %2069 = dma.done [#allocation35], 16
        $region328: #{fpointnet_forward.1} parent=239 // pred_fallthru
          _
        // Predicated region
        $region329: #{fpointnet_forward.1} parent=239 // pred_check
          %p2070 = pneg %p760
        $region330: #{fpointnet_forward.1} parent=239 // pred_check_branch
          %2072 = sbr.rel (%p2070) target = $region332
        $region331: #{fpointnet_forward.1} parent=239 // pred_region
          %2074 = dma.done [#allocation35], 1024
        $region332: #{fpointnet_forward.1} parent=239 // pred_fallthru
          _
        // Predicated region
        $region333: #{fpointnet_forward.1} parent=239 // pred_check
          %p2075 = pneg %p781
        $region334: #{fpointnet_forward.1} parent=239 // pred_check_branch
          %2077 = sbr.rel (%p2075) target = $region336
        $region335: #{fpointnet_forward.1} parent=239 // pred_region
          %2079 = dma.done [#allocation38], 16
        $region336: #{fpointnet_forward.1} parent=239 // pred_fallthru
          _
        // Predicated region
        $region337: #{fpointnet_forward.1} parent=239 // pred_check
          %p2080 = pneg %p802
        $region338: #{fpointnet_forward.1} parent=239 // pred_check_branch
          %2082 = sbr.rel (%p2080) target = $region340
        $region339: #{fpointnet_forward.1} parent=239 // pred_region
          %2084 = dma.done [#allocation38], 2048
        $region340: #{fpointnet_forward.1} parent=239 // pred_fallthru
          _
        // Predicated region
        $region341: #{fpointnet_forward.1} parent=239 // pred_check
          %p2085 = pneg %p823
        $region342: #{fpointnet_forward.1} parent=239 // pred_check_branch
          %2087 = sbr.rel (%p2085) target = $region344
        $region343: #{fpointnet_forward.1} parent=239 // pred_region
          %2089 = dma.done [#allocation41], 32
        $region344: #{fpointnet_forward.1} parent=239 // pred_fallthru
          _
        // Predicated region
        $region345: #{fpointnet_forward.1} parent=239 // pred_check
          %p2090 = pneg %p844
        $region346: #{fpointnet_forward.1} parent=239 // pred_check_branch
          %2092 = sbr.rel (%p2090) target = $region348
        $region347: #{fpointnet_forward.1} parent=239 // pred_region
          %2094 = dma.done [#allocation41], 4096
        $region348: #{fpointnet_forward.1} parent=239 // pred_fallthru
          _
        // Predicated region
        $region349: #{fpointnet_forward.1} parent=239 // pred_check
          %p2095 = pneg %p886
        $region350: #{fpointnet_forward.1} parent=239 // pred_check_branch
          %2097 = sbr.rel (%p2095) target = $region352
        $region351: #{fpointnet_forward.1} parent=239 // pred_region
          %2099 = dma.done [#allocation44], 32
        $region352: #{fpointnet_forward.1} parent=239 // pred_fallthru
          _
        // Predicated region
        $region353: #{fpointnet_forward.1} parent=239 // pred_check
          %p2100 = pneg %p907
        $region354: #{fpointnet_forward.1} parent=239 // pred_check_branch
          %2102 = sbr.rel (%p2100) target = $region356
        $region355: #{fpointnet_forward.1} parent=239 // pred_region
          %2104 = dma.done [#allocation44], 2048
        $region356: #{fpointnet_forward.1} parent=239 // pred_fallthru
          _
        // Predicated region
        $region357: #{fpointnet_forward.1} parent=239 // pred_check
          %p2105 = pneg %p928
        $region358: #{fpointnet_forward.1} parent=239 // pred_check_branch
          %2107 = sbr.rel (%p2105) target = $region360
        $region359: #{fpointnet_forward.1} parent=239 // pred_region
          %2109 = dma.done [#allocation47], 16
        $region360: #{fpointnet_forward.1} parent=239 // pred_fallthru
          _
        // Predicated region
        $region361: #{fpointnet_forward.1} parent=239 // pred_check
          %p2110 = pneg %p970
        $region362: #{fpointnet_forward.1} parent=239 // pred_check_branch
          %2112 = sbr.rel (%p2110) target = $region364
        $region363: #{fpointnet_forward.1} parent=239 // pred_region
          %2114 = dma.done [#allocation47], 16
        $region364: #{fpointnet_forward.1} parent=239 // pred_fallthru
          _
        // Predicated region
        $region365: #{fpointnet_forward.1} parent=239 // pred_check
          %p2115 = pneg %p991
        $region366: #{fpointnet_forward.1} parent=239 // pred_check_branch
          %2117 = sbr.rel (%p2115) target = $region368
        $region367: #{fpointnet_forward.1} parent=239 // pred_region
          %2119 = dma.done [#allocation50], 32
        $region368: #{fpointnet_forward.1} parent=239 // pred_fallthru
          _
        // Predicated region
        $region369: #{fpointnet_forward.1} parent=239 // pred_check
          %p2120 = pneg %p1012
        $region370: #{fpointnet_forward.1} parent=239 // pred_check_branch
          %2122 = sbr.rel (%p2120) target = $region372
        $region371: #{fpointnet_forward.1} parent=239 // pred_region
          %2124 = dma.done [#allocation50], 16
        $region372: #{fpointnet_forward.1} parent=239 // pred_fallthru
          _
        // Predicated region
        $region373: #{fpointnet_forward.1} parent=239 // pred_check
          %p2125 = pneg %p1033
        $region374: #{fpointnet_forward.1} parent=239 // pred_check_branch
          %2127 = sbr.rel (%p2125) target = $region376
        $region375: #{fpointnet_forward.1} parent=239 // pred_region
          %2129 = dma.done [#allocation53], 1024
        $region376: #{fpointnet_forward.1} parent=239 // pred_fallthru
          _
        // Predicated region
        $region377: #{fpointnet_forward.1} parent=239 // pred_check
          %p2130 = pneg %p1054
        $region378: #{fpointnet_forward.1} parent=239 // pred_check_branch
          %2132 = sbr.rel (%p2130) target = $region380
        $region379: #{fpointnet_forward.1} parent=239 // pred_region
          %2134 = dma.done [#allocation53], 16
        $region380: #{fpointnet_forward.1} parent=239 // pred_fallthru
          _
        // Predicated region
        $region381: #{fpointnet_forward.1} parent=239 // pred_check
          %p2135 = pneg %p1075
        $region382: #{fpointnet_forward.1} parent=239 // pred_check_branch
          %2137 = sbr.rel (%p2135) target = $region384
        $region383: #{fpointnet_forward.1} parent=239 // pred_region
          %2139 = dma.done [#allocation56], 2048
        $region384: #{fpointnet_forward.1} parent=239 // pred_fallthru
          _
        // Predicated region
        $region385: #{fpointnet_forward.1} parent=239 // pred_check
          %p2140 = pneg %p1096
        $region386: #{fpointnet_forward.1} parent=239 // pred_check_branch
          %2142 = sbr.rel (%p2140) target = $region388
        $region387: #{fpointnet_forward.1} parent=239 // pred_region
          %2144 = dma.done [#allocation56], 32
        $region388: #{fpointnet_forward.1} parent=239 // pred_fallthru
          _
        // Predicated region
        $region389: #{fpointnet_forward.1} parent=239 // pred_check
          %p2145 = pneg %p1117
        $region390: #{fpointnet_forward.1} parent=239 // pred_check_branch
          %2147 = sbr.rel (%p2145) target = $region392
        $region391: #{fpointnet_forward.1} parent=239 // pred_region
          %2149 = dma.done [#allocation59], 8192
        $region392: #{fpointnet_forward.1} parent=239 // pred_fallthru
          _
        // Predicated region
        $region393: #{fpointnet_forward.1} parent=239 // pred_check
          %p2150 = pneg %p1159
        $region394: #{fpointnet_forward.1} parent=239 // pred_check_branch
          %2152 = sbr.rel (%p2150) target = $region396
        $region395: #{fpointnet_forward.1} parent=239 // pred_region
          %2154 = dma.done [#allocation59], 16384
        $region396: #{fpointnet_forward.1} parent=239 // pred_fallthru
          _
        // Predicated region
        $region397: #{fpointnet_forward.1} parent=239 // pred_check
          %p2155 = pneg %p1222
        $region398: #{fpointnet_forward.1} parent=239 // pred_check_branch
          %2157 = sbr.rel (%p2155) target = $region400
        $region399: #{fpointnet_forward.1} parent=239 // pred_region
          %2159 = dma.done [#allocation62], 8192
        $region400: #{fpointnet_forward.1} parent=239 // pred_fallthru
          _
        // Predicated region
        $region401: #{fpointnet_forward.1} parent=239 // pred_check
          %p2160 = pneg %p1264
        $region402: #{fpointnet_forward.1} parent=239 // pred_check_branch
          %2162 = sbr.rel (%p2160) target = $region404
        $region403: #{fpointnet_forward.1} parent=239 // pred_region
          %2164 = dma.done [#allocation62], 2048
        $region404: #{fpointnet_forward.1} parent=239 // pred_fallthru
          _
        %p2165 = scmp.lt.s32.totalorder %s146, 1
        %s2166 = scalar_select %p2165, %s146, 1
        %s2167 = smul.addr %s2166, 16
        %s2168 = smul.addr %s2167, 8
        %s2169 = scalar_lea.vmem %s1, %s2168
        %p2170 = pneg %p167
        %p2171 = pneg %p164
        %p2172 = scmp.lt.s32.totalorder %s146, 1
        %s2173 = scalar_select %p2172, %s146, 1
        %s2174 = scalar_lea.vmem %s3, %s2173
        %p2175 = pneg %p193
        %p2176 = pneg %p190
        %p2177 = pneg %p214
        %p2178 = pneg %p211
        %p2179 = pneg %p235
        %p2180 = pneg %p232
        %p2181 = pneg %p256
        %p2182 = pneg %p253
        %p2183 = pneg %p277
        %p2184 = pneg %p274
        %p2185 = pneg %p298
        %p2186 = pneg %p295
        %p2187 = pneg %p319
        %p2188 = pneg %p316
        %p2189 = pneg %p340
        %p2190 = pneg %p337
        %p2191 = pneg %p361
        %p2192 = pneg %p358
        %p2193 = pneg %p382
        %p2194 = pneg %p379
        %p2195 = pneg %p403
        %p2196 = pneg %p400
        %p2197 = pneg %p424
        %p2198 = pneg %p421
        %p2199 = pneg %p445
        %p2200 = pneg %p442
        %p2201 = pneg %p466
        %p2202 = pneg %p463
        %p2203 = pneg %p487
        %p2204 = pneg %p484
        %p2205 = pneg %p508
        %p2206 = pneg %p505
        %p2207 = pneg %p529
        %p2208 = pneg %p526
        %p2209 = pneg %p550
        %p2210 = pneg %p547
        %p2211 = pneg %p571
        %p2212 = pneg %p568
        %p2213 = pneg %p592
        %p2214 = pneg %p589
        %p2215 = pneg %p613
        %p2216 = pneg %p610
        %p2217 = pneg %p634
        %p2218 = pneg %p631
        %p2219 = pneg %p655
        %p2220 = pneg %p652
        %p2221 = pneg %p676
        %p2222 = pneg %p673
        %p2223 = pneg %p697
        %p2224 = pneg %p694
        %p2225 = pneg %p718
        %p2226 = pneg %p715
        %p2227 = pneg %p739
        %p2228 = pneg %p736
        %p2229 = pneg %p760
        %p2230 = pneg %p757
        %p2231 = pneg %p781
        %p2232 = pneg %p778
        %p2233 = pneg %p802
        %p2234 = pneg %p799
        %p2235 = pneg %p823
        %p2236 = pneg %p820
        %p2237 = pneg %p844
        %p2238 = pneg %p841
        %p2239 = pneg %p865
        %p2240 = pneg %p862
        %p2241 = pneg %p886
        %p2242 = pneg %p883
        %p2243 = pneg %p907
        %p2244 = pneg %p904
        %p2245 = pneg %p928
        %p2246 = pneg %p925
        %p2247 = pneg %p949
        %p2248 = pneg %p946
        %p2249 = pneg %p970
        %p2250 = pneg %p967
        %p2251 = pneg %p991
        %p2252 = pneg %p988
        %p2253 = pneg %p1012
        %p2254 = pneg %p1009
        %p2255 = pneg %p1033
        %p2256 = pneg %p1030
        %p2257 = pneg %p1054
        %p2258 = pneg %p1051
        %p2259 = pneg %p1075
        %p2260 = pneg %p1072
        %p2261 = pneg %p1096
        %p2262 = pneg %p1093
        %p2263 = pneg %p1117
        %p2264 = pneg %p1114
        %p2265 = pneg %p1138
        %p2266 = pneg %p1135
        %p2267 = pneg %p1159
        %p2268 = pneg %p1156
        %p2269 = pneg %p1180
        %p2270 = pneg %p1177
        %p2271 = pneg %p1201
        %p2272 = pneg %p1198
        %p2273 = pneg %p1222
        %p2274 = pneg %p1219
        %p2275 = pneg %p1243
        %p2276 = pneg %p1240
        %p2277 = pneg %p1264
        %p2278 = pneg %p1261
        %p2279 = pneg %p1285
        %p2280 = pneg %p1282
        %p2281 = pneg %p1306
        %p2282 = pneg %p1303
        %p2283 = pneg %p1332
        %p2284 = pneg %p1329
        %p2285 = scmp.lt.s32.totalorder %s146, 1
        %s2286 = scalar_select %p2285, %s146, 1
        %s2287 = smul.addr %s2286, 16
        %s2288 = smul.addr %s2287, 8
        %s2289 = scalar_lea.vmem %s111, %s2288
        %p2290 = pneg %p1358
        %p2291 = pneg %p1355
        %p2292 = scmp.lt.s32.totalorder %s146, 1
        %s2293 = scalar_select %p2292, %s146, 1
        %s2294 = scalar_lea.vmem %s113, %s2293
        %p2295 = scmp.lt.s32.totalorder %s146, 1
        %s2296 = scalar_select %p2295, %s146, 1
        %s2297 = smul.addr %s2296, 16
        %s2298 = smul.addr %s2297, 8
        %s2299 = scalar_lea.vmem %s1, %s2298
        %p2300 = scmp.lt.s32.totalorder %s146, 1
        %s2301 = scalar_select %p2300, %s146, 1
        %s2302 = scalar_lea.vmem %s3, %s2301
        %p2303 = scmp.lt.s32.totalorder %s146, 1
        %s2304 = scalar_select %p2303, %s146, 1
        %s2305 = smul.addr %s2304, 16
        %s2306 = smul.addr %s2305, 8
        %s2307 = scalar_lea.vmem %s111, %s2306
        %p2308 = scmp.lt.s32.totalorder %s146, 1
        %s2309 = scalar_select %p2308, %s146, 1
        %s2310 = scalar_lea.vmem %s113, %s2309
        %v2312 = vld [vmem:[%s2299] sm:$0xff]
        %v2313 = vld [vmem:[%s2299 + $0x8] sm:$0xff]
        %v2314 = vld [vmem:[%s2299 + $0x10] sm:$0xff]
        %v2315 = vld [vmem:[%s2299 + $0x18] sm:$0xff]
        %v2316 = vld [vmem:[%s2299 + $0x20] sm:$0xff]
        %v2317 = vld [vmem:[%s2299 + $0x28] sm:$0xff]
        %v2318 = vld [vmem:[%s2299 + $0x30] sm:$0xff]
        %v2319 = vld [vmem:[%s2299 + $0x38] sm:$0xff]
        %v2320 = vld [vmem:[%s2299 + $0x40] sm:$0xff]
        %v2321 = vld [vmem:[%s2299 + $0x48] sm:$0xff]
        %v2322 = vld [vmem:[%s2299 + $0x50] sm:$0xff]
        %v2323 = vld [vmem:[%s2299 + $0x58] sm:$0xff]
        %v2324 = vld [vmem:[%s2299 + $0x60] sm:$0xff]
        %v2325 = vld [vmem:[%s2299 + $0x68] sm:$0xff]
        %v2326 = vld [vmem:[%s2299 + $0x70] sm:$0xff]
        %v2327 = vld [vmem:[%s2299 + $0x78] sm:$0xff]
        %v2328 = vld [vmem:[%s2302] sm:$0x1]
        %v2329 = vpack.c.bf16 %v2313, %v2312
        %v2330 = vpack.c.bf16 %v2315, %v2314
        %v2331 = vpack.c.bf16 %v2317, %v2316
        %v2332 = vpack.c.bf16 %v2319, %v2318
        %v2333 = vpack.c.bf16 %v2321, %v2320
        %v2334 = vpack.c.bf16 %v2323, %v2322
        %v2335 = vpack.c.bf16 %v2325, %v2324
        %v2336 = vpack.c.bf16 %v2327, %v2326
        %v2337 = vld [vmem:[#allocation2] sm:$0x3]
        %v2338 = vld [vmem:[#allocation4] sm:$0x1]
        %v2340 = vperm.slane %v2338, 0
        %vm2342 = vcmask 31744
        %v2344 = vsel %vm2342, %v2329, 0
        %v2347 = vsel %vm2342, %v2330, 0
        %v2350 = vsel %vm2342, %v2331, 0
        %v2353 = vsel %vm2342, %v2332, 0
        %v2356 = vsel %vm2342, %v2333, 0
        %v2359 = vsel %vm2342, %v2334, 0
        %v2362 = vsel %vm2342, %v2335, 0
        %v2365 = vsel %vm2342, %v2336, 0
        %vm2367 = vcmask 1041408
        %v2369 = vsel %vm2367, %v2337, 0
        %2371 = vmatpush.bf16.msra.mxu0 0
        %2372 = vmatpush.bf16.msra.mxu0 0
        %2373 = vmatpush.bf16.msra.mxu0 0
        %2374 = vmatpush.bf16.msra.mxu0 0
        %2375 = vmatpush.bf16.msra.mxu0 0
        %2376 = vmatpush.bf16.msra.mxu0 0
        %2377 = vmatpush.bf16.msra.mxu0 0
        %2378 = vmatpush.bf16.msra.mxu0 %v2369
        %2379 = vmatmul.bf16.gmra.mxu0 %v2344
        %v2380 = vpop.f32.mrf.mxu0
        %v2381 = vadd.f32 %v2340, %v2380
        %v2382 = vpop.f32.mrf.mxu0
        %v2383 = vadd.f32 %v2340, %v2382
        %2384 = vmatmul.bf16.gmra.mxu0 %v2347
        %v2385 = vpop.f32.mrf.mxu0
        %v2386 = vadd.f32 %v2340, %v2385
        %v2387 = vpop.f32.mrf.mxu0
        %v2388 = vadd.f32 %v2340, %v2387
        %2389 = vmatmul.bf16.gmra.mxu0 %v2350
        %v2390 = vpop.f32.mrf.mxu0
        %v2391 = vadd.f32 %v2340, %v2390
        %v2392 = vpop.f32.mrf.mxu0
        %v2393 = vadd.f32 %v2340, %v2392
        %2394 = vmatmul.bf16.gmra.mxu0 %v2353
        %v2395 = vpop.f32.mrf.mxu0
        %v2396 = vadd.f32 %v2340, %v2395
        %v2397 = vpop.f32.mrf.mxu0
        %v2398 = vadd.f32 %v2340, %v2397
        %2399 = vmatmul.bf16.gmra.mxu0 %v2356
        %v2400 = vpop.f32.mrf.mxu0
        %v2401 = vadd.f32 %v2340, %v2400
        %v2402 = vpop.f32.mrf.mxu0
        %v2403 = vadd.f32 %v2340, %v2402
        %2404 = vmatmul.bf16.gmra.mxu0 %v2359
        %v2405 = vpop.f32.mrf.mxu0
        %v2406 = vadd.f32 %v2340, %v2405
        %v2407 = vpop.f32.mrf.mxu0
        %v2408 = vadd.f32 %v2340, %v2407
        %2409 = vmatmul.bf16.gmra.mxu0 %v2362
        %v2410 = vpop.f32.mrf.mxu0
        %v2411 = vadd.f32 %v2340, %v2410
        %v2412 = vpop.f32.mrf.mxu0
        %v2413 = vadd.f32 %v2340, %v2412
        %2414 = vmatmul.bf16.gmra.mxu0 %v2365
        %v2415 = vpop.f32.mrf.mxu0
        %v2416 = vadd.f32 %v2340, %v2415
        %v2417 = vpop.f32.mrf.mxu0
        %v2418 = vadd.f32 %v2340, %v2417
        %2419 = vdwg.mxu0
        %v2420 = vmax.f32 %v2381, 0.0
        %v2421 = vmax.f32 %v2383, 0.0
        %v2422 = vmax.f32 %v2386, 0.0
        %v2423 = vmax.f32 %v2388, 0.0
        %v2424 = vmax.f32 %v2391, 0.0
        %v2425 = vmax.f32 %v2393, 0.0
        %v2426 = vmax.f32 %v2396, 0.0
        %v2427 = vmax.f32 %v2398, 0.0
        %v2428 = vmax.f32 %v2401, 0.0
        %v2429 = vmax.f32 %v2403, 0.0
        %v2430 = vmax.f32 %v2406, 0.0
        %v2431 = vmax.f32 %v2408, 0.0
        %v2432 = vmax.f32 %v2411, 0.0
        %v2433 = vmax.f32 %v2413, 0.0
        %v2434 = vmax.f32 %v2416, 0.0
        %v2435 = vmax.f32 %v2418, 0.0
        %v2436 = vpack.c.bf16 %v2421, %v2420
        %v2437 = vpack.c.bf16 %v2423, %v2422
        %v2438 = vpack.c.bf16 %v2425, %v2424
        %v2439 = vpack.c.bf16 %v2427, %v2426
        %v2440 = vpack.c.bf16 %v2429, %v2428
        %v2441 = vpack.c.bf16 %v2431, %v2430
        %v2442 = vpack.c.bf16 %v2433, %v2432
        %v2443 = vpack.c.bf16 %v2435, %v2434
        %v2444 = vld [vmem:[#allocation6] sm:$0xf]
        %v2445 = vld [vmem:[#allocation6 + $0x4] sm:$0xf]
        %v2446 = vld [vmem:[#allocation6 + $0x8] sm:$0xf]
        %v2447 = vld [vmem:[#allocation6 + $0xc] sm:$0xf]
        %v2448 = vld [vmem:[#allocation6 + $0x10] sm:$0xf]
        %v2449 = vld [vmem:[#allocation6 + $0x14] sm:$0xf]
        %v2450 = vld [vmem:[#allocation6 + $0x18] sm:$0xf]
        %v2451 = vld [vmem:[#allocation6 + $0x1c] sm:$0xf]
        %v2452 = vld [vmem:[#allocation7] sm:$0x1]
        %v2454 = vperm.slane %v2452, 0
        %v2464 = vunpack.c.l.b16 %v2444
        %v2465 = vunpack.c.l.b16 %v2445
        %v2466 = vunpack.c.l.b16 %v2446
        %v2467 = vunpack.c.l.b16 %v2447
        %v2468 = vunpack.c.l.b16 %v2448
        %v2469 = vunpack.c.l.b16 %v2449
        %v2470 = vunpack.c.l.b16 %v2450
        %v2471 = vunpack.c.l.b16 %v2451
        %v2472 = vpack.c.b16 %v2465, %v2464
        %v2473 = vpack.c.b16 %v2467, %v2466
        %v2474 = vpack.c.b16 %v2469, %v2468
        %v2475 = vpack.c.b16 %v2471, %v2470
        %vm2480 = vcmask 523264
        %v2482 = vsel %vm2480, %v2436, 0
        %v2485 = vsel %vm2480, %v2437, 0
        %v2488 = vsel %vm2480, %v2438, 0
        %v2491 = vsel %vm2480, %v2439, 0
        %v2494 = vsel %vm2480, %v2440, 0
        %v2497 = vsel %vm2480, %v2441, 0
        %v2500 = vsel %vm2480, %v2442, 0
        %v2503 = vsel %vm2480, %v2443, 0
        %2505 = vmatpush.bf16.msra.mxu0 0
        %2506 = vmatpush.bf16.msra.mxu0 0
        %2507 = vmatpush.bf16.msra.mxu0 0
        %2508 = vmatpush.bf16.msra.mxu0 0
        %2509 = vmatpush.bf16.msra.mxu0 %v2475
        %2510 = vmatpush.bf16.msra.mxu0 %v2474
        %2511 = vmatpush.bf16.msra.mxu0 %v2473
        %2512 = vmatpush.bf16.msra.mxu0 %v2472
        %2513 = vmatmul.bf16.gmra.mxu0 %v2482
        %v2514 = vpop.f32.mrf.mxu0
        %v2515 = vadd.f32 %v2454, %v2514
        %v2516 = vpop.f32.mrf.mxu0
        %v2517 = vadd.f32 %v2454, %v2516
        %2518 = vmatmul.bf16.gmra.mxu0 %v2485
        %v2519 = vpop.f32.mrf.mxu0
        %v2520 = vadd.f32 %v2454, %v2519
        %v2521 = vpop.f32.mrf.mxu0
        %v2522 = vadd.f32 %v2454, %v2521
        %2523 = vmatmul.bf16.gmra.mxu0 %v2488
        %v2524 = vpop.f32.mrf.mxu0
        %v2525 = vadd.f32 %v2454, %v2524
        %v2526 = vpop.f32.mrf.mxu0
        %v2527 = vadd.f32 %v2454, %v2526
        %2528 = vmatmul.bf16.gmra.mxu0 %v2491
        %v2529 = vpop.f32.mrf.mxu0
        %v2530 = vadd.f32 %v2454, %v2529
        %v2531 = vpop.f32.mrf.mxu0
        %v2532 = vadd.f32 %v2454, %v2531
        %2533 = vmatmul.bf16.gmra.mxu0 %v2494
        %v2534 = vpop.f32.mrf.mxu0
        %v2535 = vadd.f32 %v2454, %v2534
        %v2536 = vpop.f32.mrf.mxu0
        %v2537 = vadd.f32 %v2454, %v2536
        %2538 = vmatmul.bf16.gmra.mxu0 %v2497
        %v2539 = vpop.f32.mrf.mxu0
        %v2540 = vadd.f32 %v2454, %v2539
        %v2541 = vpop.f32.mrf.mxu0
        %v2542 = vadd.f32 %v2454, %v2541
        %2543 = vmatmul.bf16.gmra.mxu0 %v2500
        %v2544 = vpop.f32.mrf.mxu0
        %v2545 = vadd.f32 %v2454, %v2544
        %v2546 = vpop.f32.mrf.mxu0
        %v2547 = vadd.f32 %v2454, %v2546
        %2548 = vmatmul.bf16.gmra.mxu0 %v2503
        %v2549 = vpop.f32.mrf.mxu0
        %v2550 = vadd.f32 %v2454, %v2549
        %v2551 = vpop.f32.mrf.mxu0
        %v2552 = vadd.f32 %v2454, %v2551
        %2553 = vdwg.mxu0
        %v2554 = vmax.f32 %v2515, 0.0
        %v2555 = vmax.f32 %v2517, 0.0
        %v2556 = vmax.f32 %v2520, 0.0
        %v2557 = vmax.f32 %v2522, 0.0
        %v2558 = vmax.f32 %v2525, 0.0
        %v2559 = vmax.f32 %v2527, 0.0
        %v2560 = vmax.f32 %v2530, 0.0
        %v2561 = vmax.f32 %v2532, 0.0
        %v2562 = vmax.f32 %v2535, 0.0
        %v2563 = vmax.f32 %v2537, 0.0
        %v2564 = vmax.f32 %v2540, 0.0
        %v2565 = vmax.f32 %v2542, 0.0
        %v2566 = vmax.f32 %v2545, 0.0
        %v2567 = vmax.f32 %v2547, 0.0
        %v2568 = vmax.f32 %v2550, 0.0
        %v2569 = vmax.f32 %v2552, 0.0
        %v2570 = vpack.c.bf16 %v2555, %v2554
        %v2571 = vpack.c.bf16 %v2557, %v2556
        %v2572 = vpack.c.bf16 %v2559, %v2558
        %v2573 = vpack.c.bf16 %v2561, %v2560
        %v2574 = vpack.c.bf16 %v2563, %v2562
        %v2575 = vpack.c.bf16 %v2565, %v2564
        %v2576 = vpack.c.bf16 %v2567, %v2566
        %v2577 = vpack.c.bf16 %v2569, %v2568
        %v2578 = vld [vmem:[#allocation9] sm:$0xf]
        %v2579 = vld [vmem:[#allocation9 + $0x4] sm:$0xf]
        %v2580 = vld [vmem:[#allocation9 + $0x8] sm:$0xf]
        %v2581 = vld [vmem:[#allocation9 + $0xc] sm:$0xf]
        %v2582 = vld [vmem:[#allocation9 + $0x10] sm:$0xf]
        %v2583 = vld [vmem:[#allocation9 + $0x14] sm:$0xf]
        %v2584 = vld [vmem:[#allocation9 + $0x18] sm:$0xf]
        %v2585 = vld [vmem:[#allocation9 + $0x1c] sm:$0xf]
        %v2586 = vld [vmem:[#allocation10] sm:$0x1]
        %v2588 = vperm.slane %v2586, 0
        %v2598 = vunpack.c.l.b16 %v2578
        %v2599 = vunpack.c.l.b16 %v2579
        %v2600 = vunpack.c.l.b16 %v2580
        %v2601 = vunpack.c.l.b16 %v2581
        %v2602 = vunpack.c.l.b16 %v2582
        %v2603 = vunpack.c.l.b16 %v2583
        %v2604 = vunpack.c.l.b16 %v2584
        %v2605 = vunpack.c.l.b16 %v2585
        %v2606 = vpack.c.b16 %v2599, %v2598
        %v2607 = vpack.c.b16 %v2601, %v2600
        %v2608 = vpack.c.b16 %v2603, %v2602
        %v2609 = vpack.c.b16 %v2605, %v2604
        %v2615 = vsel %vm2480, %v2570, 0
        %v2618 = vsel %vm2480, %v2571, 0
        %v2621 = vsel %vm2480, %v2572, 0
        %v2624 = vsel %vm2480, %v2573, 0
        %v2627 = vsel %vm2480, %v2574, 0
        %v2630 = vsel %vm2480, %v2575, 0
        %v2633 = vsel %vm2480, %v2576, 0
        %v2636 = vsel %vm2480, %v2577, 0
        %2638 = vmatpush.bf16.msra.mxu0 0
        %2639 = vmatpush.bf16.msra.mxu0 0
        %2640 = vmatpush.bf16.msra.mxu0 0
        %2641 = vmatpush.bf16.msra.mxu0 0
        %2642 = vmatpush.bf16.msra.mxu0 %v2609
        %2643 = vmatpush.bf16.msra.mxu0 %v2608
        %2644 = vmatpush.bf16.msra.mxu0 %v2607
        %2645 = vmatpush.bf16.msra.mxu0 %v2606
        %2646 = vmatmul.bf16.gmra.mxu0 %v2615
        %v2647 = vpop.f32.mrf.mxu0
        %v2648 = vadd.f32 %v2588, %v2647
        %v2649 = vpop.f32.mrf.mxu0
        %v2650 = vadd.f32 %v2588, %v2649
        %2651 = vmatmul.bf16.gmra.mxu0 %v2618
        %v2652 = vpop.f32.mrf.mxu0
        %v2653 = vadd.f32 %v2588, %v2652
        %v2654 = vpop.f32.mrf.mxu0
        %v2655 = vadd.f32 %v2588, %v2654
        %2656 = vmatmul.bf16.gmra.mxu0 %v2621
        %v2657 = vpop.f32.mrf.mxu0
        %v2658 = vadd.f32 %v2588, %v2657
        %v2659 = vpop.f32.mrf.mxu0
        %v2660 = vadd.f32 %v2588, %v2659
        %2661 = vmatmul.bf16.gmra.mxu0 %v2624
        %v2662 = vpop.f32.mrf.mxu0
        %v2663 = vadd.f32 %v2588, %v2662
        %v2664 = vpop.f32.mrf.mxu0
        %v2665 = vadd.f32 %v2588, %v2664
        %2666 = vmatmul.bf16.gmra.mxu0 %v2627
        %v2667 = vpop.f32.mrf.mxu0
        %v2668 = vadd.f32 %v2588, %v2667
        %v2669 = vpop.f32.mrf.mxu0
        %v2670 = vadd.f32 %v2588, %v2669
        %2671 = vmatmul.bf16.gmra.mxu0 %v2630
        %v2672 = vpop.f32.mrf.mxu0
        %v2673 = vadd.f32 %v2588, %v2672
        %v2674 = vpop.f32.mrf.mxu0
        %v2675 = vadd.f32 %v2588, %v2674
        %2676 = vmatmul.bf16.gmra.mxu0 %v2633
        %v2677 = vpop.f32.mrf.mxu0
        %v2678 = vadd.f32 %v2588, %v2677
        %v2679 = vpop.f32.mrf.mxu0
        %v2680 = vadd.f32 %v2588, %v2679
        %2681 = vmatmul.bf16.gmra.mxu0 %v2636
        %v2682 = vpop.f32.mrf.mxu0
        %v2683 = vadd.f32 %v2588, %v2682
        %v2684 = vpop.f32.mrf.mxu0
        %v2685 = vadd.f32 %v2588, %v2684
        %2686 = vdwg.mxu0
        %v2687 = vmax.f32 %v2648, 0.0
        %v2688 = vmax.f32 %v2650, 0.0
        %v2689 = vmax.f32 %v2653, 0.0
        %v2690 = vmax.f32 %v2655, 0.0
        %v2691 = vmax.f32 %v2658, 0.0
        %v2692 = vmax.f32 %v2660, 0.0
        %v2693 = vmax.f32 %v2663, 0.0
        %v2694 = vmax.f32 %v2665, 0.0
        %v2695 = vmax.f32 %v2668, 0.0
        %v2696 = vmax.f32 %v2670, 0.0
        %v2697 = vmax.f32 %v2673, 0.0
        %v2698 = vmax.f32 %v2675, 0.0
        %v2699 = vmax.f32 %v2678, 0.0
        %v2700 = vmax.f32 %v2680, 0.0
        %v2701 = vmax.f32 %v2683, 0.0
        %v2702 = vmax.f32 %v2685, 0.0
        %v2703 = vpack.c.bf16 %v2688, %v2687
        %v2704 = vpack.c.bf16 %v2690, %v2689
        %v2705 = vpack.c.bf16 %v2692, %v2691
        %v2706 = vpack.c.bf16 %v2694, %v2693
        %v2707 = vpack.c.bf16 %v2696, %v2695
        %v2708 = vpack.c.bf16 %v2698, %v2697
        %v2709 = vpack.c.bf16 %v2700, %v2699
        %v2710 = vpack.c.bf16 %v2702, %v2701
        %v2711 = vld [vmem:[#allocation12] sm:$0xf]
        %v2712 = vld [vmem:[#allocation12 + $0x4] sm:$0xf]
        %v2713 = vld [vmem:[#allocation12 + $0x8] sm:$0xf]
        %v2714 = vld [vmem:[#allocation12 + $0xc] sm:$0xf]
        %v2715 = vld [vmem:[#allocation12 + $0x10] sm:$0xf]
        %v2716 = vld [vmem:[#allocation12 + $0x14] sm:$0xf]
        %v2717 = vld [vmem:[#allocation12 + $0x18] sm:$0xf]
        %v2718 = vld [vmem:[#allocation12 + $0x1c] sm:$0xf]
        %v2719 = vld [vmem:[#allocation13] sm:$0x1]
        %v2721 = vperm.slane %v2719, 0
        %v2731 = vunpack.c.l.b16 %v2711
        %v2732 = vunpack.c.l.b16 %v2712
        %v2733 = vunpack.c.l.b16 %v2713
        %v2734 = vunpack.c.l.b16 %v2714
        %v2735 = vunpack.c.l.b16 %v2715
        %v2736 = vunpack.c.l.b16 %v2716
        %v2737 = vunpack.c.l.b16 %v2717
        %v2738 = vunpack.c.l.b16 %v2718
        %v2739 = vpack.c.b16 %v2732, %v2731
        %v2740 = vpack.c.b16 %v2734, %v2733
        %v2741 = vpack.c.b16 %v2736, %v2735
        %v2742 = vpack.c.b16 %v2738, %v2737
        %v2748 = vsel %vm2480, %v2703, 0
        %v2751 = vsel %vm2480, %v2704, 0
        %v2754 = vsel %vm2480, %v2705, 0
        %v2757 = vsel %vm2480, %v2706, 0
        %v2760 = vsel %vm2480, %v2707, 0
        %v2763 = vsel %vm2480, %v2708, 0
        %v2766 = vsel %vm2480, %v2709, 0
        %v2769 = vsel %vm2480, %v2710, 0
        %2771 = vmatpush.bf16.msra.mxu0 0
        %2772 = vmatpush.bf16.msra.mxu0 0
        %2773 = vmatpush.bf16.msra.mxu0 0
        %2774 = vmatpush.bf16.msra.mxu0 0
        %2775 = vmatpush.bf16.msra.mxu0 %v2742
        %2776 = vmatpush.bf16.msra.mxu0 %v2741
        %2777 = vmatpush.bf16.msra.mxu0 %v2740
        %2778 = vmatpush.bf16.msra.mxu0 %v2739
        %2779 = vmatmul.bf16.gmra.mxu0 %v2748
        %v2780 = vpop.f32.mrf.mxu0
        %v2781 = vadd.f32 %v2721, %v2780
        %v2782 = vpop.f32.mrf.mxu0
        %v2783 = vadd.f32 %v2721, %v2782
        %2784 = vmatmul.bf16.gmra.mxu0 %v2751
        %v2785 = vpop.f32.mrf.mxu0
        %v2786 = vadd.f32 %v2721, %v2785
        %v2787 = vpop.f32.mrf.mxu0
        %v2788 = vadd.f32 %v2721, %v2787
        %2789 = vmatmul.bf16.gmra.mxu0 %v2754
        %v2790 = vpop.f32.mrf.mxu0
        %v2791 = vadd.f32 %v2721, %v2790
        %v2792 = vpop.f32.mrf.mxu0
        %v2793 = vadd.f32 %v2721, %v2792
        %2794 = vmatmul.bf16.gmra.mxu0 %v2757
        %v2795 = vpop.f32.mrf.mxu0
        %v2796 = vadd.f32 %v2721, %v2795
        %v2797 = vpop.f32.mrf.mxu0
        %v2798 = vadd.f32 %v2721, %v2797
        %2799 = vmatmul.bf16.gmra.mxu0 %v2760
        %v2800 = vpop.f32.mrf.mxu0
        %v2801 = vadd.f32 %v2721, %v2800
        %v2802 = vpop.f32.mrf.mxu0
        %v2803 = vadd.f32 %v2721, %v2802
        %2804 = vmatmul.bf16.gmra.mxu0 %v2763
        %v2805 = vpop.f32.mrf.mxu0
        %v2806 = vadd.f32 %v2721, %v2805
        %v2807 = vpop.f32.mrf.mxu0
        %v2808 = vadd.f32 %v2721, %v2807
        %2809 = vmatmul.bf16.gmra.mxu0 %v2766
        %v2810 = vpop.f32.mrf.mxu0
        %v2811 = vadd.f32 %v2721, %v2810
        %v2812 = vpop.f32.mrf.mxu0
        %v2813 = vadd.f32 %v2721, %v2812
        %2814 = vmatmul.bf16.gmra.mxu0 %v2769
        %v2815 = vpop.f32.mrf.mxu0
        %v2816 = vadd.f32 %v2721, %v2815
        %v2817 = vpop.f32.mrf.mxu0
        %v2818 = vadd.f32 %v2721, %v2817
        %2819 = vdwg.mxu0
        %v2820 = vmax.f32 %v2781, 0.0
        %v2821 = vmax.f32 %v2783, 0.0
        %v2822 = vmax.f32 %v2786, 0.0
        %v2823 = vmax.f32 %v2788, 0.0
        %v2824 = vmax.f32 %v2791, 0.0
        %v2825 = vmax.f32 %v2793, 0.0
        %v2826 = vmax.f32 %v2796, 0.0
        %v2827 = vmax.f32 %v2798, 0.0
        %v2828 = vmax.f32 %v2801, 0.0
        %v2829 = vmax.f32 %v2803, 0.0
        %v2830 = vmax.f32 %v2806, 0.0
        %v2831 = vmax.f32 %v2808, 0.0
        %v2832 = vmax.f32 %v2811, 0.0
        %v2833 = vmax.f32 %v2813, 0.0
        %v2834 = vmax.f32 %v2816, 0.0
        %v2835 = vmax.f32 %v2818, 0.0
        %v2836 = vpack.c.bf16 %v2821, %v2820
        %v2837 = vpack.c.bf16 %v2823, %v2822
        %v2838 = vpack.c.bf16 %v2825, %v2824
        %v2839 = vpack.c.bf16 %v2827, %v2826
        %v2840 = vpack.c.bf16 %v2829, %v2828
        %v2841 = vpack.c.bf16 %v2831, %v2830
        %v2842 = vpack.c.bf16 %v2833, %v2832
        %v2843 = vpack.c.bf16 %v2835, %v2834
        %v2844 = vld [vmem:[#allocation15] sm:$0xff]
        %v2845 = vld [vmem:[#allocation15 + $0x8] sm:$0xff]
        %v2846 = vld [vmem:[#allocation15 + $0x10] sm:$0xff]
        %v2847 = vld [vmem:[#allocation15 + $0x18] sm:$0xff]
        %v2848 = vld [vmem:[#allocation15 + $0x20] sm:$0xff]
        %v2849 = vld [vmem:[#allocation15 + $0x28] sm:$0xff]
        %v2850 = vld [vmem:[#allocation15 + $0x30] sm:$0xff]
        %v2851 = vld [vmem:[#allocation15 + $0x38] sm:$0xff]
        %v2852 = vld [vmem:[#allocation15 + $0x40] sm:$0xff]
        %v2853 = vld [vmem:[#allocation15 + $0x48] sm:$0xff]
        %v2854 = vld [vmem:[#allocation15 + $0x50] sm:$0xff]
        %v2855 = vld [vmem:[#allocation15 + $0x58] sm:$0xff]
        %v2856 = vld [vmem:[#allocation15 + $0x60] sm:$0xff]
        %v2857 = vld [vmem:[#allocation15 + $0x68] sm:$0xff]
        %v2858 = vld [vmem:[#allocation15 + $0x70] sm:$0xff]
        %v2859 = vld [vmem:[#allocation15 + $0x78] sm:$0xff]
        %v2860 = vld [vmem:[#allocation16] sm:$0x3]
        %v2862 = vperm.slane %v2860, 0
        %v2863 = vperm.slane %v2860, 1
        %v2882 = vunpack.c.l.b16 %v2844
        %v2883 = vunpack.c.h.b16 %v2844
        %v2884 = vunpack.c.l.b16 %v2845
        %v2885 = vunpack.c.h.b16 %v2845
        %v2886 = vunpack.c.l.b16 %v2846
        %v2887 = vunpack.c.h.b16 %v2846
        %v2888 = vunpack.c.l.b16 %v2847
        %v2889 = vunpack.c.h.b16 %v2847
        %v2890 = vunpack.c.l.b16 %v2848
        %v2891 = vunpack.c.h.b16 %v2848
        %v2892 = vunpack.c.l.b16 %v2849
        %v2893 = vunpack.c.h.b16 %v2849
        %v2894 = vunpack.c.l.b16 %v2850
        %v2895 = vunpack.c.h.b16 %v2850
        %v2896 = vunpack.c.l.b16 %v2851
        %v2897 = vunpack.c.h.b16 %v2851
        %v2898 = vunpack.c.l.b16 %v2852
        %v2899 = vunpack.c.h.b16 %v2852
        %v2900 = vunpack.c.l.b16 %v2853
        %v2901 = vunpack.c.h.b16 %v2853
        %v2902 = vunpack.c.l.b16 %v2854
        %v2903 = vunpack.c.h.b16 %v2854
        %v2904 = vunpack.c.l.b16 %v2855
        %v2905 = vunpack.c.h.b16 %v2855
        %v2906 = vunpack.c.l.b16 %v2856
        %v2907 = vunpack.c.h.b16 %v2856
        %v2908 = vunpack.c.l.b16 %v2857
        %v2909 = vunpack.c.h.b16 %v2857
        %v2910 = vunpack.c.l.b16 %v2858
        %v2911 = vunpack.c.h.b16 %v2858
        %v2912 = vunpack.c.l.b16 %v2859
        %v2913 = vunpack.c.h.b16 %v2859
        %v2914 = vpack.c.b16 %v2884, %v2882
        %v2915 = vpack.c.b16 %v2885, %v2883
        %v2916 = vpack.c.b16 %v2888, %v2886
        %v2917 = vpack.c.b16 %v2889, %v2887
        %v2918 = vpack.c.b16 %v2892, %v2890
        %v2919 = vpack.c.b16 %v2893, %v2891
        %v2920 = vpack.c.b16 %v2896, %v2894
        %v2921 = vpack.c.b16 %v2897, %v2895
        %v2922 = vpack.c.b16 %v2900, %v2898
        %v2923 = vpack.c.b16 %v2901, %v2899
        %v2924 = vpack.c.b16 %v2904, %v2902
        %v2925 = vpack.c.b16 %v2905, %v2903
        %v2926 = vpack.c.b16 %v2908, %v2906
        %v2927 = vpack.c.b16 %v2909, %v2907
        %v2928 = vpack.c.b16 %v2912, %v2910
        %v2929 = vpack.c.b16 %v2913, %v2911
        %2946 = vmatpush.bf16.msra.mxu0 %v2928
        %2947 = vmatpush.bf16.msra.mxu0 %v2926
        %2948 = vmatpush.bf16.msra.mxu0 %v2924
        %2949 = vmatpush.bf16.msra.mxu0 %v2922
        %2950 = vmatpush.bf16.msra.mxu0 %v2920
        %2951 = vmatpush.bf16.msra.mxu0 %v2918
        %2952 = vmatpush.bf16.msra.mxu0 %v2916
        %2953 = vmatpush.bf16.msra.mxu0 %v2914
        %2954 = vmatmul.bf16.gmra.mxu0 %v2836
        %v2955 = vpop.f32.mrf.mxu0
        %v2956 = vadd.f32 %v2862, %v2955
        %v2957 = vpop.f32.mrf.mxu0
        %v2958 = vadd.f32 %v2862, %v2957
        %2959 = vmatmul.bf16.gmra.mxu0 %v2837
        %v2960 = vpop.f32.mrf.mxu0
        %v2961 = vadd.f32 %v2862, %v2960
        %v2962 = vpop.f32.mrf.mxu0
        %v2963 = vadd.f32 %v2862, %v2962
        %2964 = vmatmul.bf16.gmra.mxu0 %v2838
        %v2965 = vpop.f32.mrf.mxu0
        %v2966 = vadd.f32 %v2862, %v2965
        %v2967 = vpop.f32.mrf.mxu0
        %v2968 = vadd.f32 %v2862, %v2967
        %2969 = vmatmul.bf16.gmra.mxu0 %v2839
        %v2970 = vpop.f32.mrf.mxu0
        %v2971 = vadd.f32 %v2862, %v2970
        %v2972 = vpop.f32.mrf.mxu0
        %v2973 = vadd.f32 %v2862, %v2972
        %2974 = vmatmul.bf16.gmra.mxu0 %v2840
        %v2975 = vpop.f32.mrf.mxu0
        %v2976 = vadd.f32 %v2862, %v2975
        %v2977 = vpop.f32.mrf.mxu0
        %v2978 = vadd.f32 %v2862, %v2977
        %2979 = vmatmul.bf16.gmra.mxu0 %v2841
        %v2980 = vpop.f32.mrf.mxu0
        %v2981 = vadd.f32 %v2862, %v2980
        %v2982 = vpop.f32.mrf.mxu0
        %v2983 = vadd.f32 %v2862, %v2982
        %2984 = vmatmul.bf16.gmra.mxu0 %v2842
        %v2985 = vpop.f32.mrf.mxu0
        %v2986 = vadd.f32 %v2862, %v2985
        %v2987 = vpop.f32.mrf.mxu0
        %v2988 = vadd.f32 %v2862, %v2987
        %2989 = vmatmul.bf16.gmra.mxu0 %v2843
        %v2990 = vpop.f32.mrf.mxu0
        %v2991 = vadd.f32 %v2862, %v2990
        %v2992 = vpop.f32.mrf.mxu0
        %v2993 = vadd.f32 %v2862, %v2992
        %2994 = vdwg.mxu0
        %2995 = vmatpush.bf16.msra.mxu0 %v2929
        %2996 = vmatpush.bf16.msra.mxu0 %v2927
        %2997 = vmatpush.bf16.msra.mxu0 %v2925
        %2998 = vmatpush.bf16.msra.mxu0 %v2923
        %2999 = vmatpush.bf16.msra.mxu0 %v2921
        %3000 = vmatpush.bf16.msra.mxu0 %v2919
        %3001 = vmatpush.bf16.msra.mxu0 %v2917
        %3002 = vmatpush.bf16.msra.mxu0 %v2915
        %3003 = vmatmul.bf16.gmra.mxu0 %v2836
        %v3004 = vpop.f32.mrf.mxu0
        %v3005 = vadd.f32 %v2863, %v3004
        %v3006 = vpop.f32.mrf.mxu0
        %v3007 = vadd.f32 %v2863, %v3006
        %3008 = vmatmul.bf16.gmra.mxu0 %v2837
        %v3009 = vpop.f32.mrf.mxu0
        %v3010 = vadd.f32 %v2863, %v3009
        %v3011 = vpop.f32.mrf.mxu0
        %v3012 = vadd.f32 %v2863, %v3011
        %3013 = vmatmul.bf16.gmra.mxu0 %v2838
        %v3014 = vpop.f32.mrf.mxu0
        %v3015 = vadd.f32 %v2863, %v3014
        %v3016 = vpop.f32.mrf.mxu0
        %v3017 = vadd.f32 %v2863, %v3016
        %3018 = vmatmul.bf16.gmra.mxu0 %v2839
        %v3019 = vpop.f32.mrf.mxu0
        %v3020 = vadd.f32 %v2863, %v3019
        %v3021 = vpop.f32.mrf.mxu0
        %v3022 = vadd.f32 %v2863, %v3021
        %3023 = vmatmul.bf16.gmra.mxu0 %v2840
        %v3024 = vpop.f32.mrf.mxu0
        %v3025 = vadd.f32 %v2863, %v3024
        %v3026 = vpop.f32.mrf.mxu0
        %v3027 = vadd.f32 %v2863, %v3026
        %3028 = vmatmul.bf16.gmra.mxu0 %v2841
        %v3029 = vpop.f32.mrf.mxu0
        %v3030 = vadd.f32 %v2863, %v3029
        %v3031 = vpop.f32.mrf.mxu0
        %v3032 = vadd.f32 %v2863, %v3031
        %3033 = vmatmul.bf16.gmra.mxu0 %v2842
        %v3034 = vpop.f32.mrf.mxu0
        %v3035 = vadd.f32 %v2863, %v3034
        %v3036 = vpop.f32.mrf.mxu0
        %v3037 = vadd.f32 %v2863, %v3036
        %3038 = vmatmul.bf16.gmra.mxu0 %v2843
        %v3039 = vpop.f32.mrf.mxu0
        %v3040 = vadd.f32 %v2863, %v3039
        %v3041 = vpop.f32.mrf.mxu0
        %v3042 = vadd.f32 %v2863, %v3041
        %3043 = vdwg.mxu0
        %v3044 = vmax.f32 %v2956, 0.0
        %v3045 = vmax.f32 %v3005, 0.0
        %v3046 = vmax.f32 %v2958, 0.0
        %v3047 = vmax.f32 %v3007, 0.0
        %v3048 = vmax.f32 %v2961, 0.0
        %v3049 = vmax.f32 %v3010, 0.0
        %v3050 = vmax.f32 %v2963, 0.0
        %v3051 = vmax.f32 %v3012, 0.0
        %v3052 = vmax.f32 %v2966, 0.0
        %v3053 = vmax.f32 %v3015, 0.0
        %v3054 = vmax.f32 %v2968, 0.0
        %v3055 = vmax.f32 %v3017, 0.0
        %v3056 = vmax.f32 %v2971, 0.0
        %v3057 = vmax.f32 %v3020, 0.0
        %v3058 = vmax.f32 %v2973, 0.0
        %v3059 = vmax.f32 %v3022, 0.0
        %v3060 = vmax.f32 %v2976, 0.0
        %v3061 = vmax.f32 %v3025, 0.0
        %v3062 = vmax.f32 %v2978, 0.0
        %v3063 = vmax.f32 %v3027, 0.0
        %v3064 = vmax.f32 %v2981, 0.0
        %v3065 = vmax.f32 %v3030, 0.0
        %v3066 = vmax.f32 %v2983, 0.0
        %v3067 = vmax.f32 %v3032, 0.0
        %v3068 = vmax.f32 %v2986, 0.0
        %v3069 = vmax.f32 %v3035, 0.0
        %v3070 = vmax.f32 %v2988, 0.0
        %v3071 = vmax.f32 %v3037, 0.0
        %v3072 = vmax.f32 %v2991, 0.0
        %v3073 = vmax.f32 %v3040, 0.0
        %v3074 = vmax.f32 %v2993, 0.0
        %v3075 = vmax.f32 %v3042, 0.0
        %v3076 = vmax.f32 %v3044, %v3048
        %v3077 = vmax.f32 %v3046, %v3050
        %v3078 = vmax.f32 %v3076, %v3052
        %v3079 = vmax.f32 %v3077, %v3054
        %v3080 = vmax.f32 %v3078, %v3056
        %v3081 = vmax.f32 %v3079, %v3058
        %v3082 = vmax.f32 %v3080, %v3060
        %v3083 = vmax.f32 %v3081, %v3062
        %v3084 = vmax.f32 %v3082, %v3064
        %v3085 = vmax.f32 %v3083, %v3066
        %v3086 = vmax.f32 %v3084, %v3068
        %v3087 = vmax.f32 %v3085, %v3070
        %v3088 = vmax.f32 %v3086, %v3072
        %v3089 = vmax.f32 %v3087, %v3074
        %v3090 = vmax.f32 %v3088, %v3089
        %v3091 = vrot.slane %v3090, 4
        %v3092 = vmax.f32 %v3090, %v3091
        %v3093 = vrot.slane %v3092, 2
        %v3094 = vmax.f32 %v3092, %v3093
        %v3095 = vrot.slane %v3094, 1
        %v3096 = vmax.f32 %v3094, %v3095
        %v3097 = vmax.f32 %v3045, %v3049
        %v3098 = vmax.f32 %v3047, %v3051
        %v3099 = vmax.f32 %v3097, %v3053
        %v3100 = vmax.f32 %v3098, %v3055
        %v3101 = vmax.f32 %v3099, %v3057
        %v3102 = vmax.f32 %v3100, %v3059
        %v3103 = vmax.f32 %v3101, %v3061
        %v3104 = vmax.f32 %v3102, %v3063
        %v3105 = vmax.f32 %v3103, %v3065
        %v3106 = vmax.f32 %v3104, %v3067
        %v3107 = vmax.f32 %v3105, %v3069
        %v3108 = vmax.f32 %v3106, %v3071
        %v3109 = vmax.f32 %v3107, %v3073
        %v3110 = vmax.f32 %v3108, %v3075
        %v3111 = vmax.f32 %v3109, %v3110
        %v3112 = vrot.slane %v3111, 4
        %v3113 = vmax.f32 %v3111, %v3112
        %v3114 = vrot.slane %v3113, 2
        %v3115 = vmax.f32 %v3113, %v3114
        %v3116 = vrot.slane %v3115, 1
        %v3117 = vmax.f32 %v3115, %v3116
        %v3118 = vpack.c.bf16 %v3096, %v3096
        %v3119 = vpack.c.bf16 %v3117, %v3117
        %v3120 = vld [vmem:[%s27] sm:$0xff]
        %v3121 = vld [vmem:[%s27 + $0x8] sm:$0xff]
        %v3122 = vld [vmem:[%s27 + $0x10] sm:$0xff]
        %v3123 = vld [vmem:[%s27 + $0x18] sm:$0xff]
        %v3124 = vld [vmem:[%s27 + $0x20] sm:$0xff]
        %v3125 = vld [vmem:[%s27 + $0x28] sm:$0xff]
        %v3126 = vld [vmem:[%s27 + $0x30] sm:$0xff]
        %v3127 = vld [vmem:[%s27 + $0x38] sm:$0xff]
        %v3128 = vld [vmem:[%s27 + $0x40] sm:$0xff]
        %v3129 = vld [vmem:[%s27 + $0x48] sm:$0xff]
        %v3130 = vld [vmem:[%s27 + $0x50] sm:$0xff]
        %v3131 = vld [vmem:[%s27 + $0x58] sm:$0xff]
        %v3132 = vld [vmem:[%s27 + $0x60] sm:$0xff]
        %v3133 = vld [vmem:[%s27 + $0x68] sm:$0xff]
        %v3134 = vld [vmem:[%s27 + $0x70] sm:$0xff]
        %v3135 = vld [vmem:[%s27 + $0x78] sm:$0xff]
        %v3136 = vld [vmem:[%s27 + $0x80] sm:$0xff]
        %v3137 = vld [vmem:[%s27 + $0x88] sm:$0xff]
        %v3138 = vld [vmem:[%s27 + $0x90] sm:$0xff]
        %v3139 = vld [vmem:[%s27 + $0x98] sm:$0xff]
        %v3140 = vld [vmem:[%s27 + $0xa0] sm:$0xff]
        %v3141 = vld [vmem:[%s27 + $0xa8] sm:$0xff]
        %v3142 = vld [vmem:[%s27 + $0xb0] sm:$0xff]
        %v3143 = vld [vmem:[%s27 + $0xb8] sm:$0xff]
        %v3144 = vld [vmem:[%s27 + $0xc0] sm:$0xff]
        %v3145 = vld [vmem:[%s27 + $0xc8] sm:$0xff]
        %v3146 = vld [vmem:[%s27 + $0xd0] sm:$0xff]
        %v3147 = vld [vmem:[%s27 + $0xd8] sm:$0xff]
        %v3148 = vld [vmem:[%s27 + $0xe0] sm:$0xff]
        %v3149 = vld [vmem:[%s27 + $0xe8] sm:$0xff]
        %v3150 = vld [vmem:[%s27 + $0xf0] sm:$0xff]
        %v3151 = vld [vmem:[%s27 + $0xf8] sm:$0xff]
        %v3152 = vld [vmem:[#allocation18] sm:$0x77]
        %3154 = vst [vmem:[#allocation1] ss:$2 sm:$0xff] %v3152
        %v3155 = vld.sshfl [vmem:[#allocation1] sm:$0xff pattern:$0x75316420]
        %v3156 = vld.sshfl [vmem:[#allocation1 + $0x8] sm:$0xff pattern:$0x75316420]
        %vm3157 = vcmask 23552
        %v3159 = vsel %vm3157, %v2328, 0
        %vm3161 = vcmask 1042432
        %v3162 = vsel %vm3161, %v3155, 0
        %v3164 = vsel %vm3161, %v3156, 0
        %3166 = vmatpush.msra.mxu0 0.0
        %3167 = vmatpush.msra.mxu0 0.0
        %3168 = vmatpush.msra.mxu0 0.0
        %3169 = vmatpush.msra.mxu0 0.0
        %3170 = vmatpush.msra.mxu0 0.0
        %3171 = vmatpush.msra.mxu0 0.0
        %3172 = vmatpush.msra.mxu0 0.0
        %3173 = vmatpush.msra.mxu0 0.0
        %3174 = vmatpush.msra.mxu0 0.0
        %3175 = vmatpush.msra.mxu0 0.0
        %3176 = vmatpush.msra.mxu0 0.0
        %3177 = vmatpush.msra.mxu0 0.0
        %3178 = vmatpush.msra.mxu0 0.0
        %3179 = vmatpush.msra.mxu0 0.0
        %3180 = vmatpush.msra.mxu0 0.0
        %3181 = vmatpush.msra.mxu0 %v3162
        %3182 = vmatmul.f32.gmra.mxu0 %v3159
        %v3183 = vpop.f32.mrf.mxu0
        %v3184 = vadd.f32 0.0, %v3183
        %3185 = vdwg.mxu0
        %3186 = vmatpush.msra.mxu0 0.0
        %3187 = vmatpush.msra.mxu0 0.0
        %3188 = vmatpush.msra.mxu0 0.0
        %3189 = vmatpush.msra.mxu0 0.0
        %3190 = vmatpush.msra.mxu0 0.0
        %3191 = vmatpush.msra.mxu0 0.0
        %3192 = vmatpush.msra.mxu0 0.0
        %3193 = vmatpush.msra.mxu0 0.0
        %3194 = vmatpush.msra.mxu0 0.0
        %3195 = vmatpush.msra.mxu0 0.0
        %3196 = vmatpush.msra.mxu0 0.0
        %3197 = vmatpush.msra.mxu0 0.0
        %3198 = vmatpush.msra.mxu0 0.0
        %3199 = vmatpush.msra.mxu0 0.0
        %3200 = vmatpush.msra.mxu0 0.0
        %3201 = vmatpush.msra.mxu0 %v3164
        %3202 = vmatmul.f32.gmra.mxu0 %v3159
        %v3203 = vpop.f32.mrf.mxu0
        %v3204 = vadd.f32 0.0, %v3203
        %3205 = vdwg.mxu0
        %v3238 = vunpack.c.l.b16 %v3120
        %v3239 = vunpack.c.h.b16 %v3120
        %v3240 = vunpack.c.l.b16 %v3121
        %v3241 = vunpack.c.h.b16 %v3121
        %v3242 = vunpack.c.l.b16 %v3122
        %v3243 = vunpack.c.h.b16 %v3122
        %v3244 = vunpack.c.l.b16 %v3123
        %v3245 = vunpack.c.h.b16 %v3123
        %v3246 = vunpack.c.l.b16 %v3124
        %v3247 = vunpack.c.h.b16 %v3124
        %v3248 = vunpack.c.l.b16 %v3125
        %v3249 = vunpack.c.h.b16 %v3125
        %v3250 = vunpack.c.l.b16 %v3126
        %v3251 = vunpack.c.h.b16 %v3126
        %v3252 = vunpack.c.l.b16 %v3127
        %v3253 = vunpack.c.h.b16 %v3127
        %v3254 = vunpack.c.l.b16 %v3128
        %v3255 = vunpack.c.h.b16 %v3128
        %v3256 = vunpack.c.l.b16 %v3129
        %v3257 = vunpack.c.h.b16 %v3129
        %v3258 = vunpack.c.l.b16 %v3130
        %v3259 = vunpack.c.h.b16 %v3130
        %v3260 = vunpack.c.l.b16 %v3131
        %v3261 = vunpack.c.h.b16 %v3131
        %v3262 = vunpack.c.l.b16 %v3132
        %v3263 = vunpack.c.h.b16 %v3132
        %v3264 = vunpack.c.l.b16 %v3133
        %v3265 = vunpack.c.h.b16 %v3133
        %v3266 = vunpack.c.l.b16 %v3134
        %v3267 = vunpack.c.h.b16 %v3134
        %v3268 = vunpack.c.l.b16 %v3135
        %v3269 = vunpack.c.h.b16 %v3135
        %v3270 = vunpack.c.l.b16 %v3136
        %v3271 = vunpack.c.h.b16 %v3136
        %v3272 = vunpack.c.l.b16 %v3137
        %v3273 = vunpack.c.h.b16 %v3137
        %v3274 = vunpack.c.l.b16 %v3138
        %v3275 = vunpack.c.h.b16 %v3138
        %v3276 = vunpack.c.l.b16 %v3139
        %v3277 = vunpack.c.h.b16 %v3139
        %v3278 = vunpack.c.l.b16 %v3140
        %v3279 = vunpack.c.h.b16 %v3140
        %v3280 = vunpack.c.l.b16 %v3141
        %v3281 = vunpack.c.h.b16 %v3141
        %v3282 = vunpack.c.l.b16 %v3142
        %v3283 = vunpack.c.h.b16 %v3142
        %v3284 = vunpack.c.l.b16 %v3143
        %v3285 = vunpack.c.h.b16 %v3143
        %v3286 = vunpack.c.l.b16 %v3144
        %v3287 = vunpack.c.h.b16 %v3144
        %v3288 = vunpack.c.l.b16 %v3145
        %v3289 = vunpack.c.h.b16 %v3145
        %v3290 = vunpack.c.l.b16 %v3146
        %v3291 = vunpack.c.h.b16 %v3146
        %v3292 = vunpack.c.l.b16 %v3147
        %v3293 = vunpack.c.h.b16 %v3147
        %v3294 = vunpack.c.l.b16 %v3148
        %v3295 = vunpack.c.h.b16 %v3148
        %v3296 = vunpack.c.l.b16 %v3149
        %v3297 = vunpack.c.h.b16 %v3149
        %v3298 = vunpack.c.l.b16 %v3150
        %v3299 = vunpack.c.h.b16 %v3150
        %v3300 = vunpack.c.l.b16 %v3151
        %v3301 = vunpack.c.h.b16 %v3151
        %v3302 = vpack.c.b16 %v3240, %v3238
        %v3303 = vpack.c.b16 %v3241, %v3239
        %v3304 = vpack.c.b16 %v3244, %v3242
        %v3305 = vpack.c.b16 %v3245, %v3243
        %v3306 = vpack.c.b16 %v3248, %v3246
        %v3307 = vpack.c.b16 %v3249, %v3247
        %v3308 = vpack.c.b16 %v3252, %v3250
        %v3309 = vpack.c.b16 %v3253, %v3251
        %v3310 = vpack.c.b16 %v3256, %v3254
        %v3311 = vpack.c.b16 %v3257, %v3255
        %v3312 = vpack.c.b16 %v3260, %v3258
        %v3313 = vpack.c.b16 %v3261, %v3259
        %v3314 = vpack.c.b16 %v3264, %v3262
        %v3315 = vpack.c.b16 %v3265, %v3263
        %v3316 = vpack.c.b16 %v3268, %v3266
        %v3317 = vpack.c.b16 %v3269, %v3267
        %v3318 = vpack.c.b16 %v3272, %v3270
        %v3319 = vpack.c.b16 %v3273, %v3271
        %v3320 = vpack.c.b16 %v3276, %v3274
        %v3321 = vpack.c.b16 %v3277, %v3275
        %v3322 = vpack.c.b16 %v3280, %v3278
        %v3323 = vpack.c.b16 %v3281, %v3279
        %v3324 = vpack.c.b16 %v3284, %v3282
        %v3325 = vpack.c.b16 %v3285, %v3283
        %v3326 = vpack.c.b16 %v3288, %v3286
        %v3327 = vpack.c.b16 %v3289, %v3287
        %v3328 = vpack.c.b16 %v3292, %v3290
        %v3329 = vpack.c.b16 %v3293, %v3291
        %v3330 = vpack.c.b16 %v3296, %v3294
        %v3331 = vpack.c.b16 %v3297, %v3295
        %v3332 = vpack.c.b16 %v3300, %v3298
        %v3333 = vpack.c.b16 %v3301, %v3299
        %3366 = vmatpush.bf16.msra.mxu0 %v3316
        %3367 = vmatpush.bf16.msra.mxu0 %v3314
        %3368 = vmatpush.bf16.msra.mxu0 %v3312
        %3369 = vmatpush.bf16.msra.mxu0 %v3310
        %3370 = vmatpush.bf16.msra.mxu0 %v3308
        %3371 = vmatpush.bf16.msra.mxu0 %v3306
        %3372 = vmatpush.bf16.msra.mxu0 %v3304
        %3373 = vmatpush.bf16.msra.mxu0 %v3302
        %3374 = vmatmul.bf16.gmra.mxu0 %v3118
        %v3375 = vpop.f32.mrf.mxu0
        %v3376 = vadd.f32 %v3184, %v3375
        %v3377 = vpop.f32.mrf.mxu0
        %3378 = vdwg.mxu0
        %3379 = vmatpush.bf16.msra.mxu0 %v3332
        %3380 = vmatpush.bf16.msra.mxu0 %v3330
        %3381 = vmatpush.bf16.msra.mxu0 %v3328
        %3382 = vmatpush.bf16.msra.mxu0 %v3326
        %3383 = vmatpush.bf16.msra.mxu0 %v3324
        %3384 = vmatpush.bf16.msra.mxu0 %v3322
        %3385 = vmatpush.bf16.msra.mxu0 %v3320
        %3386 = vmatpush.bf16.msra.mxu0 %v3318
        %3387 = vmatmul.bf16.gmra.mxu0 %v3119
        %v3388 = vpop.f32.mrf.mxu0
        %v3389 = vadd.f32 %v3376, %v3388
        %v3390 = vpop.f32.mrf.mxu0
        %3391 = vdwg.mxu0
        %3392 = vmatpush.bf16.msra.mxu0 %v3317
        %3393 = vmatpush.bf16.msra.mxu0 %v3315
        %3394 = vmatpush.bf16.msra.mxu0 %v3313
        %3395 = vmatpush.bf16.msra.mxu0 %v3311
        %3396 = vmatpush.bf16.msra.mxu0 %v3309
        %3397 = vmatpush.bf16.msra.mxu0 %v3307
        %3398 = vmatpush.bf16.msra.mxu0 %v3305
        %3399 = vmatpush.bf16.msra.mxu0 %v3303
        %3400 = vmatmul.bf16.gmra.mxu0 %v3118
        %v3401 = vpop.f32.mrf.mxu0
        %v3402 = vadd.f32 %v3204, %v3401
        %v3403 = vpop.f32.mrf.mxu0
        %3404 = vdwg.mxu0
        %3405 = vmatpush.bf16.msra.mxu0 %v3333
        %3406 = vmatpush.bf16.msra.mxu0 %v3331
        %3407 = vmatpush.bf16.msra.mxu0 %v3329
        %3408 = vmatpush.bf16.msra.mxu0 %v3327
        %3409 = vmatpush.bf16.msra.mxu0 %v3325
        %3410 = vmatpush.bf16.msra.mxu0 %v3323
        %3411 = vmatpush.bf16.msra.mxu0 %v3321
        %3412 = vmatpush.bf16.msra.mxu0 %v3319
        %3413 = vmatmul.bf16.gmra.mxu0 %v3119
        %v3414 = vpop.f32.mrf.mxu0
        %v3415 = vadd.f32 %v3402, %v3414
        %v3416 = vpop.f32.mrf.mxu0
        %3417 = vdwg.mxu0
        %v3418 = vld [vmem:[#allocation19] sm:$0x3]
        %v3420 = vperm.slane %v3418, 0
        %v3421 = vperm.slane %v3418, 1
        %v3424 = vadd.f32 %v3389, %v3420
        %v3425 = vadd.f32 %v3415, %v3421
        %v3426 = vld [vmem:[%s25] sm:$0xff]
        %v3427 = vld [vmem:[%s25 + $0x8] sm:$0xff]
        %v3428 = vld [vmem:[%s25 + $0x10] sm:$0xff]
        %v3429 = vld [vmem:[%s25 + $0x18] sm:$0xff]
        %v3430 = vld [vmem:[%s25 + $0x20] sm:$0xff]
        %v3431 = vld [vmem:[%s25 + $0x28] sm:$0xff]
        %v3432 = vld [vmem:[%s25 + $0x30] sm:$0xff]
        %v3433 = vld [vmem:[%s25 + $0x38] sm:$0xff]
        %v3434 = vperm.slane %v3424, 0
        %v3435 = vperm.slane %v3425, 0
        %v3444 = vunpack.c.l.b16 %v3426
        %v3445 = vunpack.c.h.b16 %v3426
        %v3446 = vunpack.c.l.b16 %v3427
        %v3447 = vunpack.c.h.b16 %v3427
        %v3448 = vunpack.c.l.b16 %v3428
        %v3449 = vunpack.c.h.b16 %v3428
        %v3450 = vunpack.c.l.b16 %v3429
        %v3451 = vunpack.c.h.b16 %v3429
        %v3452 = vunpack.c.l.b16 %v3430
        %v3453 = vunpack.c.h.b16 %v3430
        %v3454 = vunpack.c.l.b16 %v3431
        %v3455 = vunpack.c.h.b16 %v3431
        %v3456 = vunpack.c.l.b16 %v3432
        %v3457 = vunpack.c.h.b16 %v3432
        %v3458 = vunpack.c.l.b16 %v3433
        %v3459 = vunpack.c.h.b16 %v3433
        %v3460 = vpack.c.b16 %v3446, %v3444
        %v3461 = vpack.c.b16 %v3447, %v3445
        %v3462 = vpack.c.b16 %v3450, %v3448
        %v3463 = vpack.c.b16 %v3451, %v3449
        %v3464 = vpack.c.b16 %v3454, %v3452
        %v3465 = vpack.c.b16 %v3455, %v3453
        %v3466 = vpack.c.b16 %v3458, %v3456
        %v3467 = vpack.c.b16 %v3459, %v3457
        %3476 = vmatpush.bf16.msra.mxu0 0
        %3477 = vmatpush.bf16.msra.mxu0 0
        %3478 = vmatpush.bf16.msra.mxu0 0
        %3479 = vmatpush.bf16.msra.mxu0 0
        %3480 = vmatpush.bf16.msra.mxu0 %v3466
        %3481 = vmatpush.bf16.msra.mxu0 %v3464
        %3482 = vmatpush.bf16.msra.mxu0 %v3462
        %3483 = vmatpush.bf16.msra.mxu0 %v3460
        %3484 = vmatmul.bf16.gmra.mxu0 %v2615
        %v3485 = vpop.f32.mrf.mxu0
        %v3486 = vadd.f32 %v3434, %v3485
        %v3487 = vpop.f32.mrf.mxu0
        %v3488 = vadd.f32 %v3434, %v3487
        %3489 = vmatmul.bf16.gmra.mxu0 %v2618
        %v3490 = vpop.f32.mrf.mxu0
        %v3491 = vadd.f32 %v3434, %v3490
        %v3492 = vpop.f32.mrf.mxu0
        %v3493 = vadd.f32 %v3434, %v3492
        %3494 = vmatmul.bf16.gmra.mxu0 %v2621
        %v3495 = vpop.f32.mrf.mxu0
        %v3496 = vadd.f32 %v3434, %v3495
        %v3497 = vpop.f32.mrf.mxu0
        %v3498 = vadd.f32 %v3434, %v3497
        %3499 = vmatmul.bf16.gmra.mxu0 %v2624
        %v3500 = vpop.f32.mrf.mxu0
        %v3501 = vadd.f32 %v3434, %v3500
        %v3502 = vpop.f32.mrf.mxu0
        %v3503 = vadd.f32 %v3434, %v3502
        %3504 = vmatmul.bf16.gmra.mxu0 %v2627
        %v3505 = vpop.f32.mrf.mxu0
        %v3506 = vadd.f32 %v3434, %v3505
        %v3507 = vpop.f32.mrf.mxu0
        %v3508 = vadd.f32 %v3434, %v3507
        %3509 = vmatmul.bf16.gmra.mxu0 %v2630
        %v3510 = vpop.f32.mrf.mxu0
        %v3511 = vadd.f32 %v3434, %v3510
        %v3512 = vpop.f32.mrf.mxu0
        %v3513 = vadd.f32 %v3434, %v3512
        %3514 = vmatmul.bf16.gmra.mxu0 %v2633
        %v3515 = vpop.f32.mrf.mxu0
        %v3516 = vadd.f32 %v3434, %v3515
        %v3517 = vpop.f32.mrf.mxu0
        %v3518 = vadd.f32 %v3434, %v3517
        %3519 = vmatmul.bf16.gmra.mxu0 %v2636
        %v3520 = vpop.f32.mrf.mxu0
        %v3521 = vadd.f32 %v3434, %v3520
        %v3522 = vpop.f32.mrf.mxu0
        %v3523 = vadd.f32 %v3434, %v3522
        %3524 = vdwg.mxu0
        %3525 = vmatpush.bf16.msra.mxu0 0
        %3526 = vmatpush.bf16.msra.mxu0 0
        %3527 = vmatpush.bf16.msra.mxu0 0
        %3528 = vmatpush.bf16.msra.mxu0 0
        %3529 = vmatpush.bf16.msra.mxu0 %v3467
        %3530 = vmatpush.bf16.msra.mxu0 %v3465
        %3531 = vmatpush.bf16.msra.mxu0 %v3463
        %3532 = vmatpush.bf16.msra.mxu0 %v3461
        %3533 = vmatmul.bf16.gmra.mxu0 %v2615
        %v3534 = vpop.f32.mrf.mxu0
        %v3535 = vadd.f32 %v3435, %v3534
        %v3536 = vpop.f32.mrf.mxu0
        %v3537 = vadd.f32 %v3435, %v3536
        %3538 = vmatmul.bf16.gmra.mxu0 %v2618
        %v3539 = vpop.f32.mrf.mxu0
        %v3540 = vadd.f32 %v3435, %v3539
        %v3541 = vpop.f32.mrf.mxu0
        %v3542 = vadd.f32 %v3435, %v3541
        %3543 = vmatmul.bf16.gmra.mxu0 %v2621
        %v3544 = vpop.f32.mrf.mxu0
        %v3545 = vadd.f32 %v3435, %v3544
        %v3546 = vpop.f32.mrf.mxu0
        %v3547 = vadd.f32 %v3435, %v3546
        %3548 = vmatmul.bf16.gmra.mxu0 %v2624
        %v3549 = vpop.f32.mrf.mxu0
        %v3550 = vadd.f32 %v3435, %v3549
        %v3551 = vpop.f32.mrf.mxu0
        %v3552 = vadd.f32 %v3435, %v3551
        %3553 = vmatmul.bf16.gmra.mxu0 %v2627
        %v3554 = vpop.f32.mrf.mxu0
        %v3555 = vadd.f32 %v3435, %v3554
        %v3556 = vpop.f32.mrf.mxu0
        %v3557 = vadd.f32 %v3435, %v3556
        %3558 = vmatmul.bf16.gmra.mxu0 %v2630
        %v3559 = vpop.f32.mrf.mxu0
        %v3560 = vadd.f32 %v3435, %v3559
        %v3561 = vpop.f32.mrf.mxu0
        %v3562 = vadd.f32 %v3435, %v3561
        %3563 = vmatmul.bf16.gmra.mxu0 %v2633
        %v3564 = vpop.f32.mrf.mxu0
        %v3565 = vadd.f32 %v3435, %v3564
        %v3566 = vpop.f32.mrf.mxu0
        %v3567 = vadd.f32 %v3435, %v3566
        %3568 = vmatmul.bf16.gmra.mxu0 %v2636
        %v3569 = vpop.f32.mrf.mxu0
        %v3570 = vadd.f32 %v3435, %v3569
        %v3571 = vpop.f32.mrf.mxu0
        %v3572 = vadd.f32 %v3435, %v3571
        %3573 = vdwg.mxu0
        %v3574 = vmax.f32 %v3486, 0.0
        %v3575 = vmax.f32 %v3535, 0.0
        %v3576 = vmax.f32 %v3488, 0.0
        %v3577 = vmax.f32 %v3537, 0.0
        %v3578 = vmax.f32 %v3491, 0.0
        %v3579 = vmax.f32 %v3540, 0.0
        %v3580 = vmax.f32 %v3493, 0.0
        %v3581 = vmax.f32 %v3542, 0.0
        %v3582 = vmax.f32 %v3496, 0.0
        %v3583 = vmax.f32 %v3545, 0.0
        %v3584 = vmax.f32 %v3498, 0.0
        %v3585 = vmax.f32 %v3547, 0.0
        %v3586 = vmax.f32 %v3501, 0.0
        %v3587 = vmax.f32 %v3550, 0.0
        %v3588 = vmax.f32 %v3503, 0.0
        %v3589 = vmax.f32 %v3552, 0.0
        %v3590 = vmax.f32 %v3506, 0.0
        %v3591 = vmax.f32 %v3555, 0.0
        %v3592 = vmax.f32 %v3508, 0.0
        %v3593 = vmax.f32 %v3557, 0.0
        %v3594 = vmax.f32 %v3511, 0.0
        %v3595 = vmax.f32 %v3560, 0.0
        %v3596 = vmax.f32 %v3513, 0.0
        %v3597 = vmax.f32 %v3562, 0.0
        %v3598 = vmax.f32 %v3516, 0.0
        %v3599 = vmax.f32 %v3565, 0.0
        %v3600 = vmax.f32 %v3518, 0.0
        %v3601 = vmax.f32 %v3567, 0.0
        %v3602 = vmax.f32 %v3521, 0.0
        %v3603 = vmax.f32 %v3570, 0.0
        %v3604 = vmax.f32 %v3523, 0.0
        %v3605 = vmax.f32 %v3572, 0.0
        %v3606 = vpack.c.bf16 %v3576, %v3574
        %v3607 = vpack.c.bf16 %v3577, %v3575
        %v3608 = vpack.c.bf16 %v3580, %v3578
        %v3609 = vpack.c.bf16 %v3581, %v3579
        %v3610 = vpack.c.bf16 %v3584, %v3582
        %v3611 = vpack.c.bf16 %v3585, %v3583
        %v3612 = vpack.c.bf16 %v3588, %v3586
        %v3613 = vpack.c.bf16 %v3589, %v3587
        %v3614 = vpack.c.bf16 %v3592, %v3590
        %v3615 = vpack.c.bf16 %v3593, %v3591
        %v3616 = vpack.c.bf16 %v3596, %v3594
        %v3617 = vpack.c.bf16 %v3597, %v3595
        %v3618 = vpack.c.bf16 %v3600, %v3598
        %v3619 = vpack.c.bf16 %v3601, %v3599
        %v3620 = vpack.c.bf16 %v3604, %v3602
        %v3621 = vpack.c.bf16 %v3605, %v3603
        %v3622 = vld [vmem:[#allocation21] sm:$0xf]
        %v3623 = vld [vmem:[#allocation21 + $0x4] sm:$0xf]
        %v3624 = vld [vmem:[#allocation21 + $0x8] sm:$0xf]
        %v3625 = vld [vmem:[#allocation21 + $0xc] sm:$0xf]
        %v3626 = vld [vmem:[#allocation21 + $0x10] sm:$0xf]
        %v3627 = vld [vmem:[#allocation21 + $0x14] sm:$0xf]
        %v3628 = vld [vmem:[#allocation21 + $0x18] sm:$0xf]
        %v3629 = vld [vmem:[#allocation21 + $0x1c] sm:$0xf]
        %v3630 = vld [vmem:[#allocation21 + $0x20] sm:$0xf]
        %v3631 = vld [vmem:[#allocation21 + $0x24] sm:$0xf]
        %v3632 = vld [vmem:[#allocation21 + $0x28] sm:$0xf]
        %v3633 = vld [vmem:[#allocation21 + $0x2c] sm:$0xf]
        %v3634 = vld [vmem:[#allocation21 + $0x30] sm:$0xf]
        %v3635 = vld [vmem:[#allocation21 + $0x34] sm:$0xf]
        %v3636 = vld [vmem:[#allocation21 + $0x38] sm:$0xf]
        %v3637 = vld [vmem:[#allocation21 + $0x3c] sm:$0xf]
        %v3638 = vld [vmem:[#allocation21 + $0x40] sm:$0xf]
        %v3639 = vld [vmem:[#allocation21 + $0x44] sm:$0xf]
        %v3640 = vld [vmem:[#allocation21 + $0x48] sm:$0xf]
        %v3641 = vld [vmem:[#allocation21 + $0x4c] sm:$0xf]
        %v3642 = vld [vmem:[#allocation21 + $0x50] sm:$0xf]
        %v3643 = vld [vmem:[#allocation21 + $0x54] sm:$0xf]
        %v3644 = vld [vmem:[#allocation21 + $0x58] sm:$0xf]
        %v3645 = vld [vmem:[#allocation21 + $0x5c] sm:$0xf]
        %v3646 = vld [vmem:[#allocation21 + $0x60] sm:$0xf]
        %v3647 = vld [vmem:[#allocation21 + $0x64] sm:$0xf]
        %v3648 = vld [vmem:[#allocation21 + $0x68] sm:$0xf]
        %v3649 = vld [vmem:[#allocation21 + $0x6c] sm:$0xf]
        %v3650 = vld [vmem:[#allocation21 + $0x70] sm:$0xf]
        %v3651 = vld [vmem:[#allocation21 + $0x74] sm:$0xf]
        %v3652 = vld [vmem:[#allocation21 + $0x78] sm:$0xf]
        %v3653 = vld [vmem:[#allocation21 + $0x7c] sm:$0xf]
        %v3654 = vld [vmem:[#allocation22] sm:$0x1]
        %v3656 = vperm.slane %v3654, 0
        %v3690 = vunpack.c.l.b16 %v3622
        %v3691 = vunpack.c.l.b16 %v3623
        %v3692 = vunpack.c.l.b16 %v3624
        %v3693 = vunpack.c.l.b16 %v3625
        %v3694 = vunpack.c.l.b16 %v3626
        %v3695 = vunpack.c.l.b16 %v3627
        %v3696 = vunpack.c.l.b16 %v3628
        %v3697 = vunpack.c.l.b16 %v3629
        %v3698 = vunpack.c.l.b16 %v3630
        %v3699 = vunpack.c.l.b16 %v3631
        %v3700 = vunpack.c.l.b16 %v3632
        %v3701 = vunpack.c.l.b16 %v3633
        %v3702 = vunpack.c.l.b16 %v3634
        %v3703 = vunpack.c.l.b16 %v3635
        %v3704 = vunpack.c.l.b16 %v3636
        %v3705 = vunpack.c.l.b16 %v3637
        %v3706 = vunpack.c.l.b16 %v3638
        %v3707 = vunpack.c.l.b16 %v3639
        %v3708 = vunpack.c.l.b16 %v3640
        %v3709 = vunpack.c.l.b16 %v3641
        %v3710 = vunpack.c.l.b16 %v3642
        %v3711 = vunpack.c.l.b16 %v3643
        %v3712 = vunpack.c.l.b16 %v3644
        %v3713 = vunpack.c.l.b16 %v3645
        %v3714 = vunpack.c.l.b16 %v3646
        %v3715 = vunpack.c.l.b16 %v3647
        %v3716 = vunpack.c.l.b16 %v3648
        %v3717 = vunpack.c.l.b16 %v3649
        %v3718 = vunpack.c.l.b16 %v3650
        %v3719 = vunpack.c.l.b16 %v3651
        %v3720 = vunpack.c.l.b16 %v3652
        %v3721 = vunpack.c.l.b16 %v3653
        %v3722 = vpack.c.b16 %v3691, %v3690
        %v3723 = vpack.c.b16 %v3693, %v3692
        %v3724 = vpack.c.b16 %v3695, %v3694
        %v3725 = vpack.c.b16 %v3697, %v3696
        %v3726 = vpack.c.b16 %v3699, %v3698
        %v3727 = vpack.c.b16 %v3701, %v3700
        %v3728 = vpack.c.b16 %v3703, %v3702
        %v3729 = vpack.c.b16 %v3705, %v3704
        %v3730 = vpack.c.b16 %v3707, %v3706
        %v3731 = vpack.c.b16 %v3709, %v3708
        %v3732 = vpack.c.b16 %v3711, %v3710
        %v3733 = vpack.c.b16 %v3713, %v3712
        %v3734 = vpack.c.b16 %v3715, %v3714
        %v3735 = vpack.c.b16 %v3717, %v3716
        %v3736 = vpack.c.b16 %v3719, %v3718
        %v3737 = vpack.c.b16 %v3721, %v3720
        %3754 = vmatpush.bf16.msra.mxu0 %v3729
        %3755 = vmatpush.bf16.msra.mxu0 %v3728
        %3756 = vmatpush.bf16.msra.mxu0 %v3727
        %3757 = vmatpush.bf16.msra.mxu0 %v3726
        %3758 = vmatpush.bf16.msra.mxu0 %v3725
        %3759 = vmatpush.bf16.msra.mxu0 %v3724
        %3760 = vmatpush.bf16.msra.mxu0 %v3723
        %3761 = vmatpush.bf16.msra.mxu0 %v3722
        %3762 = vmatmul.bf16.gmra.mxu0 %v3606
        %v3763 = vpop.f32.mrf.mxu0
        %v3764 = vadd.f32 %v3656, %v3763
        %v3765 = vpop.f32.mrf.mxu0
        %v3766 = vadd.f32 %v3656, %v3765
        %3767 = vmatmul.bf16.gmra.mxu0 %v3608
        %v3768 = vpop.f32.mrf.mxu0
        %v3769 = vadd.f32 %v3656, %v3768
        %v3770 = vpop.f32.mrf.mxu0
        %v3771 = vadd.f32 %v3656, %v3770
        %3772 = vmatmul.bf16.gmra.mxu0 %v3610
        %v3773 = vpop.f32.mrf.mxu0
        %v3774 = vadd.f32 %v3656, %v3773
        %v3775 = vpop.f32.mrf.mxu0
        %v3776 = vadd.f32 %v3656, %v3775
        %3777 = vmatmul.bf16.gmra.mxu0 %v3612
        %v3778 = vpop.f32.mrf.mxu0
        %v3779 = vadd.f32 %v3656, %v3778
        %v3780 = vpop.f32.mrf.mxu0
        %v3781 = vadd.f32 %v3656, %v3780
        %3782 = vmatmul.bf16.gmra.mxu0 %v3614
        %v3783 = vpop.f32.mrf.mxu0
        %v3784 = vadd.f32 %v3656, %v3783
        %v3785 = vpop.f32.mrf.mxu0
        %v3786 = vadd.f32 %v3656, %v3785
        %3787 = vmatmul.bf16.gmra.mxu0 %v3616
        %v3788 = vpop.f32.mrf.mxu0
        %v3789 = vadd.f32 %v3656, %v3788
        %v3790 = vpop.f32.mrf.mxu0
        %v3791 = vadd.f32 %v3656, %v3790
        %3792 = vmatmul.bf16.gmra.mxu0 %v3618
        %v3793 = vpop.f32.mrf.mxu0
        %v3794 = vadd.f32 %v3656, %v3793
        %v3795 = vpop.f32.mrf.mxu0
        %v3796 = vadd.f32 %v3656, %v3795
        %3797 = vmatmul.bf16.gmra.mxu0 %v3620
        %v3798 = vpop.f32.mrf.mxu0
        %v3799 = vadd.f32 %v3656, %v3798
        %v3800 = vpop.f32.mrf.mxu0
        %v3801 = vadd.f32 %v3656, %v3800
        %3802 = vdwg.mxu0
        %3803 = vmatpush.bf16.msra.mxu0 %v3737
        %3804 = vmatpush.bf16.msra.mxu0 %v3736
        %3805 = vmatpush.bf16.msra.mxu0 %v3735
        %3806 = vmatpush.bf16.msra.mxu0 %v3734
        %3807 = vmatpush.bf16.msra.mxu0 %v3733
        %3808 = vmatpush.bf16.msra.mxu0 %v3732
        %3809 = vmatpush.bf16.msra.mxu0 %v3731
        %3810 = vmatpush.bf16.msra.mxu0 %v3730
        %3811 = vmatmul.bf16.gmra.mxu0 %v3607
        %v3812 = vpop.f32.mrf.mxu0
        %v3813 = vadd.f32 %v3764, %v3812
        %v3814 = vpop.f32.mrf.mxu0
        %v3815 = vadd.f32 %v3766, %v3814
        %3816 = vmatmul.bf16.gmra.mxu0 %v3609
        %v3817 = vpop.f32.mrf.mxu0
        %v3818 = vadd.f32 %v3769, %v3817
        %v3819 = vpop.f32.mrf.mxu0
        %v3820 = vadd.f32 %v3771, %v3819
        %3821 = vmatmul.bf16.gmra.mxu0 %v3611
        %v3822 = vpop.f32.mrf.mxu0
        %v3823 = vadd.f32 %v3774, %v3822
        %v3824 = vpop.f32.mrf.mxu0
        %v3825 = vadd.f32 %v3776, %v3824
        %3826 = vmatmul.bf16.gmra.mxu0 %v3613
        %v3827 = vpop.f32.mrf.mxu0
        %v3828 = vadd.f32 %v3779, %v3827
        %v3829 = vpop.f32.mrf.mxu0
        %v3830 = vadd.f32 %v3781, %v3829
        %3831 = vmatmul.bf16.gmra.mxu0 %v3615
        %v3832 = vpop.f32.mrf.mxu0
        %v3833 = vadd.f32 %v3784, %v3832
        %v3834 = vpop.f32.mrf.mxu0
        %v3835 = vadd.f32 %v3786, %v3834
        %3836 = vmatmul.bf16.gmra.mxu0 %v3617
        %v3837 = vpop.f32.mrf.mxu0
        %v3838 = vadd.f32 %v3789, %v3837
        %v3839 = vpop.f32.mrf.mxu0
        %v3840 = vadd.f32 %v3791, %v3839
        %3841 = vmatmul.bf16.gmra.mxu0 %v3619
        %v3842 = vpop.f32.mrf.mxu0
        %v3843 = vadd.f32 %v3794, %v3842
        %v3844 = vpop.f32.mrf.mxu0
        %v3845 = vadd.f32 %v3796, %v3844
        %3846 = vmatmul.bf16.gmra.mxu0 %v3621
        %v3847 = vpop.f32.mrf.mxu0
        %v3848 = vadd.f32 %v3799, %v3847
        %v3849 = vpop.f32.mrf.mxu0
        %v3850 = vadd.f32 %v3801, %v3849
        %3851 = vdwg.mxu0
        %v3852 = vmax.f32 %v3813, 0.0
        %v3853 = vmax.f32 %v3815, 0.0
        %v3854 = vmax.f32 %v3818, 0.0
        %v3855 = vmax.f32 %v3820, 0.0
        %v3856 = vmax.f32 %v3823, 0.0
        %v3857 = vmax.f32 %v3825, 0.0
        %v3858 = vmax.f32 %v3828, 0.0
        %v3859 = vmax.f32 %v3830, 0.0
        %v3860 = vmax.f32 %v3833, 0.0
        %v3861 = vmax.f32 %v3835, 0.0
        %v3862 = vmax.f32 %v3838, 0.0
        %v3863 = vmax.f32 %v3840, 0.0
        %v3864 = vmax.f32 %v3843, 0.0
        %v3865 = vmax.f32 %v3845, 0.0
        %v3866 = vmax.f32 %v3848, 0.0
        %v3867 = vmax.f32 %v3850, 0.0
        %v3868 = vpack.c.bf16 %v3853, %v3852
        %v3869 = vpack.c.bf16 %v3855, %v3854
        %v3870 = vpack.c.bf16 %v3857, %v3856
        %v3871 = vpack.c.bf16 %v3859, %v3858
        %v3872 = vpack.c.bf16 %v3861, %v3860
        %v3873 = vpack.c.bf16 %v3863, %v3862
        %v3874 = vpack.c.bf16 %v3865, %v3864
        %v3875 = vpack.c.bf16 %v3867, %v3866
        %v3876 = vld [vmem:[%s37] sm:$0xf]
        %v3877 = vld [vmem:[%s37 + $0x4] sm:$0xf]
        %v3878 = vld [vmem:[%s37 + $0x8] sm:$0xf]
        %v3879 = vld [vmem:[%s37 + $0xc] sm:$0xf]
        %v3880 = vld [vmem:[%s37 + $0x10] sm:$0xf]
        %v3881 = vld [vmem:[%s37 + $0x14] sm:$0xf]
        %v3882 = vld [vmem:[%s37 + $0x18] sm:$0xf]
        %v3883 = vld [vmem:[%s37 + $0x1c] sm:$0xf]
        %v3884 = vld [vmem:[%s37 + $0x20] sm:$0xf]
        %v3885 = vld [vmem:[%s37 + $0x24] sm:$0xf]
        %v3886 = vld [vmem:[%s37 + $0x28] sm:$0xf]
        %v3887 = vld [vmem:[%s37 + $0x2c] sm:$0xf]
        %v3888 = vld [vmem:[%s37 + $0x30] sm:$0xf]
        %v3889 = vld [vmem:[%s37 + $0x34] sm:$0xf]
        %v3890 = vld [vmem:[%s37 + $0x38] sm:$0xf]
        %v3891 = vld [vmem:[%s37 + $0x3c] sm:$0xf]
        %v3892 = vld [vmem:[#allocation24] sm:$0x1]
        %v3894 = vperm.slane %v3892, 0
        %v3912 = vunpack.c.l.b16 %v3876
        %v3913 = vunpack.c.l.b16 %v3877
        %v3914 = vunpack.c.l.b16 %v3878
        %v3915 = vunpack.c.l.b16 %v3879
        %v3916 = vunpack.c.l.b16 %v3880
        %v3917 = vunpack.c.l.b16 %v3881
        %v3918 = vunpack.c.l.b16 %v3882
        %v3919 = vunpack.c.l.b16 %v3883
        %v3920 = vunpack.c.l.b16 %v3884
        %v3921 = vunpack.c.l.b16 %v3885
        %v3922 = vunpack.c.l.b16 %v3886
        %v3923 = vunpack.c.l.b16 %v3887
        %v3924 = vunpack.c.l.b16 %v3888
        %v3925 = vunpack.c.l.b16 %v3889
        %v3926 = vunpack.c.l.b16 %v3890
        %v3927 = vunpack.c.l.b16 %v3891
        %v3928 = vpack.c.b16 %v3913, %v3912
        %v3929 = vpack.c.b16 %v3915, %v3914
        %v3930 = vpack.c.b16 %v3917, %v3916
        %v3931 = vpack.c.b16 %v3919, %v3918
        %v3932 = vpack.c.b16 %v3921, %v3920
        %v3933 = vpack.c.b16 %v3923, %v3922
        %v3934 = vpack.c.b16 %v3925, %v3924
        %v3935 = vpack.c.b16 %v3927, %v3926
        %3944 = vmatpush.bf16.msra.mxu0 %v3935
        %3945 = vmatpush.bf16.msra.mxu0 %v3934
        %3946 = vmatpush.bf16.msra.mxu0 %v3933
        %3947 = vmatpush.bf16.msra.mxu0 %v3932
        %3948 = vmatpush.bf16.msra.mxu0 %v3931
        %3949 = vmatpush.bf16.msra.mxu0 %v3930
        %3950 = vmatpush.bf16.msra.mxu0 %v3929
        %3951 = vmatpush.bf16.msra.mxu0 %v3928
        %3952 = vmatmul.bf16.gmra.mxu0 %v3868
        %v3953 = vpop.f32.mrf.mxu0
        %v3954 = vadd.f32 %v3894, %v3953
        %v3955 = vpop.f32.mrf.mxu0
        %v3956 = vadd.f32 %v3894, %v3955
        %3957 = vmatmul.bf16.gmra.mxu0 %v3869
        %v3958 = vpop.f32.mrf.mxu0
        %v3959 = vadd.f32 %v3894, %v3958
        %v3960 = vpop.f32.mrf.mxu0
        %v3961 = vadd.f32 %v3894, %v3960
        %3962 = vmatmul.bf16.gmra.mxu0 %v3870
        %v3963 = vpop.f32.mrf.mxu0
        %v3964 = vadd.f32 %v3894, %v3963
        %v3965 = vpop.f32.mrf.mxu0
        %v3966 = vadd.f32 %v3894, %v3965
        %3967 = vmatmul.bf16.gmra.mxu0 %v3871
        %v3968 = vpop.f32.mrf.mxu0
        %v3969 = vadd.f32 %v3894, %v3968
        %v3970 = vpop.f32.mrf.mxu0
        %v3971 = vadd.f32 %v3894, %v3970
        %3972 = vmatmul.bf16.gmra.mxu0 %v3872
        %v3973 = vpop.f32.mrf.mxu0
        %v3974 = vadd.f32 %v3894, %v3973
        %v3975 = vpop.f32.mrf.mxu0
        %v3976 = vadd.f32 %v3894, %v3975
        %3977 = vmatmul.bf16.gmra.mxu0 %v3873
        %v3978 = vpop.f32.mrf.mxu0
        %v3979 = vadd.f32 %v3894, %v3978
        %v3980 = vpop.f32.mrf.mxu0
        %v3981 = vadd.f32 %v3894, %v3980
        %3982 = vmatmul.bf16.gmra.mxu0 %v3874
        %v3983 = vpop.f32.mrf.mxu0
        %v3984 = vadd.f32 %v3894, %v3983
        %v3985 = vpop.f32.mrf.mxu0
        %v3986 = vadd.f32 %v3894, %v3985
        %3987 = vmatmul.bf16.gmra.mxu0 %v3875
        %v3988 = vpop.f32.mrf.mxu0
        %v3989 = vadd.f32 %v3894, %v3988
        %v3990 = vpop.f32.mrf.mxu0
        %v3991 = vadd.f32 %v3894, %v3990
        %3992 = vdwg.mxu0
        %v3993 = vmax.f32 %v3954, 0.0
        %v3994 = vmax.f32 %v3956, 0.0
        %v3995 = vmax.f32 %v3959, 0.0
        %v3996 = vmax.f32 %v3961, 0.0
        %v3997 = vmax.f32 %v3964, 0.0
        %v3998 = vmax.f32 %v3966, 0.0
        %v3999 = vmax.f32 %v3969, 0.0
        %v4000 = vmax.f32 %v3971, 0.0
        %v4001 = vmax.f32 %v3974, 0.0
        %v4002 = vmax.f32 %v3976, 0.0
        %v4003 = vmax.f32 %v3979, 0.0
        %v4004 = vmax.f32 %v3981, 0.0
        %v4005 = vmax.f32 %v3984, 0.0
        %v4006 = vmax.f32 %v3986, 0.0
        %v4007 = vmax.f32 %v3989, 0.0
        %v4008 = vmax.f32 %v3991, 0.0
        %v4009 = vpack.c.bf16 %v3994, %v3993
        %v4010 = vpack.c.bf16 %v3996, %v3995
        %v4011 = vpack.c.bf16 %v3998, %v3997
        %v4012 = vpack.c.bf16 %v4000, %v3999
        %v4013 = vpack.c.bf16 %v4002, %v4001
        %v4014 = vpack.c.bf16 %v4004, %v4003
        %v4015 = vpack.c.bf16 %v4006, %v4005
        %v4016 = vpack.c.bf16 %v4008, %v4007
        %v4017 = vld [vmem:[#allocation25] sm:$0xf]
        %v4018 = vld [vmem:[#allocation25 + $0x4] sm:$0xf]
        %v4019 = vld [vmem:[#allocation25 + $0x8] sm:$0xf]
        %v4020 = vld [vmem:[#allocation25 + $0xc] sm:$0xf]
        %v4021 = vld [vmem:[#allocation25 + $0x10] sm:$0xf]
        %v4022 = vld [vmem:[#allocation25 + $0x14] sm:$0xf]
        %v4023 = vld [vmem:[#allocation25 + $0x18] sm:$0xf]
        %v4024 = vld [vmem:[#allocation25 + $0x1c] sm:$0xf]
        %v4025 = vld [vmem:[#allocation25 + $0x20] sm:$0xf]
        %v4026 = vld [vmem:[#allocation25 + $0x24] sm:$0xf]
        %v4027 = vld [vmem:[#allocation25 + $0x28] sm:$0xf]
        %v4028 = vld [vmem:[#allocation25 + $0x2c] sm:$0xf]
        %v4029 = vld [vmem:[#allocation25 + $0x30] sm:$0xf]
        %v4030 = vld [vmem:[#allocation25 + $0x34] sm:$0xf]
        %v4031 = vld [vmem:[#allocation25 + $0x38] sm:$0xf]
        %v4032 = vld [vmem:[#allocation25 + $0x3c] sm:$0xf]
        %v4033 = vld [vmem:[#allocation27] sm:$0x1]
        %v4035 = vperm.slane %v4033, 0
        %v4053 = vunpack.c.l.b16 %v4017
        %v4054 = vunpack.c.l.b16 %v4018
        %v4055 = vunpack.c.l.b16 %v4019
        %v4056 = vunpack.c.l.b16 %v4020
        %v4057 = vunpack.c.l.b16 %v4021
        %v4058 = vunpack.c.l.b16 %v4022
        %v4059 = vunpack.c.l.b16 %v4023
        %v4060 = vunpack.c.l.b16 %v4024
        %v4061 = vunpack.c.l.b16 %v4025
        %v4062 = vunpack.c.l.b16 %v4026
        %v4063 = vunpack.c.l.b16 %v4027
        %v4064 = vunpack.c.l.b16 %v4028
        %v4065 = vunpack.c.l.b16 %v4029
        %v4066 = vunpack.c.l.b16 %v4030
        %v4067 = vunpack.c.l.b16 %v4031
        %v4068 = vunpack.c.l.b16 %v4032
        %v4069 = vpack.c.b16 %v4054, %v4053
        %v4070 = vpack.c.b16 %v4056, %v4055
        %v4071 = vpack.c.b16 %v4058, %v4057
        %v4072 = vpack.c.b16 %v4060, %v4059
        %v4073 = vpack.c.b16 %v4062, %v4061
        %v4074 = vpack.c.b16 %v4064, %v4063
        %v4075 = vpack.c.b16 %v4066, %v4065
        %v4076 = vpack.c.b16 %v4068, %v4067
        %4085 = vmatpush.bf16.msra.mxu0 %v4076
        %4086 = vmatpush.bf16.msra.mxu0 %v4075
        %4087 = vmatpush.bf16.msra.mxu0 %v4074
        %4088 = vmatpush.bf16.msra.mxu0 %v4073
        %4089 = vmatpush.bf16.msra.mxu0 %v4072
        %4090 = vmatpush.bf16.msra.mxu0 %v4071
        %4091 = vmatpush.bf16.msra.mxu0 %v4070
        %4092 = vmatpush.bf16.msra.mxu0 %v4069
        %4093 = vmatmul.bf16.gmra.mxu0 %v4009
        %v4094 = vpop.f32.mrf.mxu0
        %v4095 = vadd.f32 %v4035, %v4094
        %v4096 = vpop.f32.mrf.mxu0
        %v4097 = vadd.f32 %v4035, %v4096
        %4098 = vmatmul.bf16.gmra.mxu0 %v4010
        %v4099 = vpop.f32.mrf.mxu0
        %v4100 = vadd.f32 %v4035, %v4099
        %v4101 = vpop.f32.mrf.mxu0
        %v4102 = vadd.f32 %v4035, %v4101
        %4103 = vmatmul.bf16.gmra.mxu0 %v4011
        %v4104 = vpop.f32.mrf.mxu0
        %v4105 = vadd.f32 %v4035, %v4104
        %v4106 = vpop.f32.mrf.mxu0
        %v4107 = vadd.f32 %v4035, %v4106
        %4108 = vmatmul.bf16.gmra.mxu0 %v4012
        %v4109 = vpop.f32.mrf.mxu0
        %v4110 = vadd.f32 %v4035, %v4109
        %v4111 = vpop.f32.mrf.mxu0
        %v4112 = vadd.f32 %v4035, %v4111
        %4113 = vmatmul.bf16.gmra.mxu0 %v4013
        %v4114 = vpop.f32.mrf.mxu0
        %v4115 = vadd.f32 %v4035, %v4114
        %v4116 = vpop.f32.mrf.mxu0
        %v4117 = vadd.f32 %v4035, %v4116
        %4118 = vmatmul.bf16.gmra.mxu0 %v4014
        %v4119 = vpop.f32.mrf.mxu0
        %v4120 = vadd.f32 %v4035, %v4119
        %v4121 = vpop.f32.mrf.mxu0
        %v4122 = vadd.f32 %v4035, %v4121
        %4123 = vmatmul.bf16.gmra.mxu0 %v4015
        %v4124 = vpop.f32.mrf.mxu0
        %v4125 = vadd.f32 %v4035, %v4124
        %v4126 = vpop.f32.mrf.mxu0
        %v4127 = vadd.f32 %v4035, %v4126
        %4128 = vmatmul.bf16.gmra.mxu0 %v4016
        %v4129 = vpop.f32.mrf.mxu0
        %v4130 = vadd.f32 %v4035, %v4129
        %v4131 = vpop.f32.mrf.mxu0
        %v4132 = vadd.f32 %v4035, %v4131
        %4133 = vdwg.mxu0
        %v4134 = vmax.f32 %v4095, 0.0
        %v4135 = vmax.f32 %v4097, 0.0
        %v4136 = vmax.f32 %v4100, 0.0
        %v4137 = vmax.f32 %v4102, 0.0
        %v4138 = vmax.f32 %v4105, 0.0
        %v4139 = vmax.f32 %v4107, 0.0
        %v4140 = vmax.f32 %v4110, 0.0
        %v4141 = vmax.f32 %v4112, 0.0
        %v4142 = vmax.f32 %v4115, 0.0
        %v4143 = vmax.f32 %v4117, 0.0
        %v4144 = vmax.f32 %v4120, 0.0
        %v4145 = vmax.f32 %v4122, 0.0
        %v4146 = vmax.f32 %v4125, 0.0
        %v4147 = vmax.f32 %v4127, 0.0
        %v4148 = vmax.f32 %v4130, 0.0
        %v4149 = vmax.f32 %v4132, 0.0
        %v4150 = vpack.c.bf16 %v4135, %v4134
        %v4151 = vpack.c.bf16 %v4137, %v4136
        %v4152 = vpack.c.bf16 %v4139, %v4138
        %v4153 = vpack.c.bf16 %v4141, %v4140
        %v4154 = vpack.c.bf16 %v4143, %v4142
        %v4155 = vpack.c.bf16 %v4145, %v4144
        %v4156 = vpack.c.bf16 %v4147, %v4146
        %v4157 = vpack.c.bf16 %v4149, %v4148
        %v4158 = vld [vmem:[#allocation28] sm:$0xf]
        %v4159 = vld [vmem:[#allocation28 + $0x4] sm:$0xf]
        %v4160 = vld [vmem:[#allocation28 + $0x8] sm:$0xf]
        %v4161 = vld [vmem:[#allocation28 + $0xc] sm:$0xf]
        %v4162 = vld [vmem:[#allocation28 + $0x10] sm:$0xf]
        %v4163 = vld [vmem:[#allocation28 + $0x14] sm:$0xf]
        %v4164 = vld [vmem:[#allocation28 + $0x18] sm:$0xf]
        %v4165 = vld [vmem:[#allocation28 + $0x1c] sm:$0xf]
        %v4166 = vld [vmem:[#allocation28 + $0x20] sm:$0xf]
        %v4167 = vld [vmem:[#allocation28 + $0x24] sm:$0xf]
        %v4168 = vld [vmem:[#allocation28 + $0x28] sm:$0xf]
        %v4169 = vld [vmem:[#allocation28 + $0x2c] sm:$0xf]
        %v4170 = vld [vmem:[#allocation28 + $0x30] sm:$0xf]
        %v4171 = vld [vmem:[#allocation28 + $0x34] sm:$0xf]
        %v4172 = vld [vmem:[#allocation28 + $0x38] sm:$0xf]
        %v4173 = vld [vmem:[#allocation28 + $0x3c] sm:$0xf]
        %v4174 = vld [vmem:[#allocation30] sm:$0x1]
        %v4176 = vperm.slane %v4174, 0
        %v4194 = vunpack.c.l.b16 %v4158
        %v4195 = vunpack.c.l.b16 %v4159
        %v4196 = vunpack.c.l.b16 %v4160
        %v4197 = vunpack.c.l.b16 %v4161
        %v4198 = vunpack.c.l.b16 %v4162
        %v4199 = vunpack.c.l.b16 %v4163
        %v4200 = vunpack.c.l.b16 %v4164
        %v4201 = vunpack.c.l.b16 %v4165
        %v4202 = vunpack.c.l.b16 %v4166
        %v4203 = vunpack.c.l.b16 %v4167
        %v4204 = vunpack.c.l.b16 %v4168
        %v4205 = vunpack.c.l.b16 %v4169
        %v4206 = vunpack.c.l.b16 %v4170
        %v4207 = vunpack.c.l.b16 %v4171
        %v4208 = vunpack.c.l.b16 %v4172
        %v4209 = vunpack.c.l.b16 %v4173
        %v4210 = vpack.c.b16 %v4195, %v4194
        %v4211 = vpack.c.b16 %v4197, %v4196
        %v4212 = vpack.c.b16 %v4199, %v4198
        %v4213 = vpack.c.b16 %v4201, %v4200
        %v4214 = vpack.c.b16 %v4203, %v4202
        %v4215 = vpack.c.b16 %v4205, %v4204
        %v4216 = vpack.c.b16 %v4207, %v4206
        %v4217 = vpack.c.b16 %v4209, %v4208
        %4226 = vmatpush.bf16.msra.mxu0 %v4217
        %4227 = vmatpush.bf16.msra.mxu0 %v4216
        %4228 = vmatpush.bf16.msra.mxu0 %v4215
        %4229 = vmatpush.bf16.msra.mxu0 %v4214
        %4230 = vmatpush.bf16.msra.mxu0 %v4213
        %4231 = vmatpush.bf16.msra.mxu0 %v4212
        %4232 = vmatpush.bf16.msra.mxu0 %v4211
        %4233 = vmatpush.bf16.msra.mxu0 %v4210
        %4234 = vmatmul.bf16.gmra.mxu0 %v4150
        %v4235 = vpop.f32.mrf.mxu0
        %v4236 = vadd.f32 %v4176, %v4235
        %v4237 = vpop.f32.mrf.mxu0
        %v4238 = vadd.f32 %v4176, %v4237
        %4239 = vmatmul.bf16.gmra.mxu0 %v4151
        %v4240 = vpop.f32.mrf.mxu0
        %v4241 = vadd.f32 %v4176, %v4240
        %v4242 = vpop.f32.mrf.mxu0
        %v4243 = vadd.f32 %v4176, %v4242
        %4244 = vmatmul.bf16.gmra.mxu0 %v4152
        %v4245 = vpop.f32.mrf.mxu0
        %v4246 = vadd.f32 %v4176, %v4245
        %v4247 = vpop.f32.mrf.mxu0
        %v4248 = vadd.f32 %v4176, %v4247
        %4249 = vmatmul.bf16.gmra.mxu0 %v4153
        %v4250 = vpop.f32.mrf.mxu0
        %v4251 = vadd.f32 %v4176, %v4250
        %v4252 = vpop.f32.mrf.mxu0
        %v4253 = vadd.f32 %v4176, %v4252
        %4254 = vmatmul.bf16.gmra.mxu0 %v4154
        %v4255 = vpop.f32.mrf.mxu0
        %v4256 = vadd.f32 %v4176, %v4255
        %v4257 = vpop.f32.mrf.mxu0
        %v4258 = vadd.f32 %v4176, %v4257
        %4259 = vmatmul.bf16.gmra.mxu0 %v4155
        %v4260 = vpop.f32.mrf.mxu0
        %v4261 = vadd.f32 %v4176, %v4260
        %v4262 = vpop.f32.mrf.mxu0
        %v4263 = vadd.f32 %v4176, %v4262
        %4264 = vmatmul.bf16.gmra.mxu0 %v4156
        %v4265 = vpop.f32.mrf.mxu0
        %v4266 = vadd.f32 %v4176, %v4265
        %v4267 = vpop.f32.mrf.mxu0
        %v4268 = vadd.f32 %v4176, %v4267
        %4269 = vmatmul.bf16.gmra.mxu0 %v4157
        %v4270 = vpop.f32.mrf.mxu0
        %v4271 = vadd.f32 %v4176, %v4270
        %v4272 = vpop.f32.mrf.mxu0
        %v4273 = vadd.f32 %v4176, %v4272
        %4274 = vdwg.mxu0
        %4275 = vst [vmem:[%s2307] sm:$0xff] %v4236
        %4276 = vst [vmem:[%s2307 + $0x8] sm:$0xff] %v4238
        %4277 = vst [vmem:[%s2307 + $0x10] sm:$0xff] %v4241
        %4278 = vst [vmem:[%s2307 + $0x18] sm:$0xff] %v4243
        %4279 = vst [vmem:[%s2307 + $0x20] sm:$0xff] %v4246
        %4280 = vst [vmem:[%s2307 + $0x28] sm:$0xff] %v4248
        %4281 = vst [vmem:[%s2307 + $0x30] sm:$0xff] %v4251
        %4282 = vst [vmem:[%s2307 + $0x38] sm:$0xff] %v4253
        %4283 = vst [vmem:[%s2307 + $0x40] sm:$0xff] %v4256
        %4284 = vst [vmem:[%s2307 + $0x48] sm:$0xff] %v4258
        %4285 = vst [vmem:[%s2307 + $0x50] sm:$0xff] %v4261
        %4286 = vst [vmem:[%s2307 + $0x58] sm:$0xff] %v4263
        %4287 = vst [vmem:[%s2307 + $0x60] sm:$0xff] %v4266
        %4288 = vst [vmem:[%s2307 + $0x68] sm:$0xff] %v4268
        %4289 = vst [vmem:[%s2307 + $0x70] sm:$0xff] %v4271
        %4290 = vst [vmem:[%s2307 + $0x78] sm:$0xff] %v4273
        %v4291 = vld [vmem:[%s49] sm:$0xf]
        %v4292 = vld [vmem:[%s49 + $0x4] sm:$0xf]
        %v4293 = vld [vmem:[%s49 + $0x8] sm:$0xf]
        %v4294 = vld [vmem:[%s49 + $0xc] sm:$0xf]
        %v4295 = vld [vmem:[%s49 + $0x10] sm:$0xf]
        %v4296 = vld [vmem:[%s49 + $0x14] sm:$0xf]
        %v4297 = vld [vmem:[%s49 + $0x18] sm:$0xf]
        %v4298 = vld [vmem:[%s49 + $0x1c] sm:$0xf]
        %v4299 = vld [vmem:[%s49 + $0x20] sm:$0xf]
        %v4300 = vld [vmem:[%s49 + $0x24] sm:$0xf]
        %v4301 = vld [vmem:[%s49 + $0x28] sm:$0xf]
        %v4302 = vld [vmem:[%s49 + $0x2c] sm:$0xf]
        %v4303 = vld [vmem:[%s49 + $0x30] sm:$0xf]
        %v4304 = vld [vmem:[%s49 + $0x34] sm:$0xf]
        %v4305 = vld [vmem:[%s49 + $0x38] sm:$0xf]
        %v4306 = vld [vmem:[%s49 + $0x3c] sm:$0xf]
        %v4307 = vld [vmem:[#allocation31] sm:$0x1]
        %v4309 = vperm.slane %v4307, 0
        %v4327 = vunpack.c.l.b16 %v4291
        %v4328 = vunpack.c.l.b16 %v4292
        %v4329 = vunpack.c.l.b16 %v4293
        %v4330 = vunpack.c.l.b16 %v4294
        %v4331 = vunpack.c.l.b16 %v4295
        %v4332 = vunpack.c.l.b16 %v4296
        %v4333 = vunpack.c.l.b16 %v4297
        %v4334 = vunpack.c.l.b16 %v4298
        %v4335 = vunpack.c.l.b16 %v4299
        %v4336 = vunpack.c.l.b16 %v4300
        %v4337 = vunpack.c.l.b16 %v4301
        %v4338 = vunpack.c.l.b16 %v4302
        %v4339 = vunpack.c.l.b16 %v4303
        %v4340 = vunpack.c.l.b16 %v4304
        %v4341 = vunpack.c.l.b16 %v4305
        %v4342 = vunpack.c.l.b16 %v4306
        %v4343 = vpack.c.b16 %v4328, %v4327
        %v4344 = vpack.c.b16 %v4330, %v4329
        %v4345 = vpack.c.b16 %v4332, %v4331
        %v4346 = vpack.c.b16 %v4334, %v4333
        %v4347 = vpack.c.b16 %v4336, %v4335
        %v4348 = vpack.c.b16 %v4338, %v4337
        %v4349 = vpack.c.b16 %v4340, %v4339
        %v4350 = vpack.c.b16 %v4342, %v4341
        %4359 = vmatpush.bf16.msra.mxu0 %v4350
        %4360 = vmatpush.bf16.msra.mxu0 %v4349
        %4361 = vmatpush.bf16.msra.mxu0 %v4348
        %4362 = vmatpush.bf16.msra.mxu0 %v4347
        %4363 = vmatpush.bf16.msra.mxu0 %v4346
        %4364 = vmatpush.bf16.msra.mxu0 %v4345
        %4365 = vmatpush.bf16.msra.mxu0 %v4344
        %4366 = vmatpush.bf16.msra.mxu0 %v4343
        %4367 = vmatmul.bf16.gmra.mxu0 %v4150
        %v4368 = vpop.f32.mrf.mxu0
        %v4369 = vadd.f32 %v4309, %v4368
        %v4370 = vpop.f32.mrf.mxu0
        %v4371 = vadd.f32 %v4309, %v4370
        %4372 = vmatmul.bf16.gmra.mxu0 %v4151
        %v4373 = vpop.f32.mrf.mxu0
        %v4374 = vadd.f32 %v4309, %v4373
        %v4375 = vpop.f32.mrf.mxu0
        %v4376 = vadd.f32 %v4309, %v4375
        %4377 = vmatmul.bf16.gmra.mxu0 %v4152
        %v4378 = vpop.f32.mrf.mxu0
        %v4379 = vadd.f32 %v4309, %v4378
        %v4380 = vpop.f32.mrf.mxu0
        %v4381 = vadd.f32 %v4309, %v4380
        %4382 = vmatmul.bf16.gmra.mxu0 %v4153
        %v4383 = vpop.f32.mrf.mxu0
        %v4384 = vadd.f32 %v4309, %v4383
        %v4385 = vpop.f32.mrf.mxu0
        %v4386 = vadd.f32 %v4309, %v4385
        %4387 = vmatmul.bf16.gmra.mxu0 %v4154
        %v4388 = vpop.f32.mrf.mxu0
        %v4389 = vadd.f32 %v4309, %v4388
        %v4390 = vpop.f32.mrf.mxu0
        %v4391 = vadd.f32 %v4309, %v4390
        %4392 = vmatmul.bf16.gmra.mxu0 %v4155
        %v4393 = vpop.f32.mrf.mxu0
        %v4394 = vadd.f32 %v4309, %v4393
        %v4395 = vpop.f32.mrf.mxu0
        %v4396 = vadd.f32 %v4309, %v4395
        %4397 = vmatmul.bf16.gmra.mxu0 %v4156
        %v4398 = vpop.f32.mrf.mxu0
        %v4399 = vadd.f32 %v4309, %v4398
        %v4400 = vpop.f32.mrf.mxu0
        %v4401 = vadd.f32 %v4309, %v4400
        %4402 = vmatmul.bf16.gmra.mxu0 %v4157
        %v4403 = vpop.f32.mrf.mxu0
        %v4404 = vadd.f32 %v4309, %v4403
        %v4405 = vpop.f32.mrf.mxu0
        %v4406 = vadd.f32 %v4309, %v4405
        %4407 = vdwg.mxu0
        %vm4408 = vcmp.gt.f32.partialorder %v4369, 0.0
        %vm4409 = vcmp.gt.f32.partialorder %v4371, 0.0
        %vm4410 = vcmp.gt.f32.partialorder %v4374, 0.0
        %vm4411 = vcmp.gt.f32.partialorder %v4376, 0.0
        %vm4412 = vcmp.gt.f32.partialorder %v4379, 0.0
        %vm4413 = vcmp.gt.f32.partialorder %v4381, 0.0
        %vm4414 = vcmp.gt.f32.partialorder %v4384, 0.0
        %vm4415 = vcmp.gt.f32.partialorder %v4386, 0.0
        %vm4416 = vcmp.gt.f32.partialorder %v4389, 0.0
        %vm4417 = vcmp.gt.f32.partialorder %v4391, 0.0
        %vm4418 = vcmp.gt.f32.partialorder %v4394, 0.0
        %vm4419 = vcmp.gt.f32.partialorder %v4396, 0.0
        %vm4420 = vcmp.gt.f32.partialorder %v4399, 0.0
        %vm4421 = vcmp.gt.f32.partialorder %v4401, 0.0
        %vm4422 = vcmp.gt.f32.partialorder %v4404, 0.0
        %vm4423 = vcmp.gt.f32.partialorder %v4406, 0.0
        %v4424 = vsel %vm4408, 1, 0
        %v4425 = vsel %vm4409, 1, 0
        %v4426 = vsel %vm4410, 1, 0
        %v4427 = vsel %vm4411, 1, 0
        %v4428 = vsel %vm4412, 1, 0
        %v4429 = vsel %vm4413, 1, 0
        %v4430 = vsel %vm4414, 1, 0
        %v4431 = vsel %vm4415, 1, 0
        %v4432 = vsel %vm4416, 1, 0
        %v4433 = vsel %vm4417, 1, 0
        %v4434 = vsel %vm4418, 1, 0
        %v4435 = vsel %vm4419, 1, 0
        %v4436 = vsel %vm4420, 1, 0
        %v4437 = vsel %vm4421, 1, 0
        %v4438 = vsel %vm4422, 1, 0
        %v4439 = vsel %vm4423, 1, 0
        %v4440 = vcvt.s32.f32 %v4424
        %v4441 = vcvt.s32.f32 %v4425
        %v4442 = vcvt.s32.f32 %v4426
        %v4443 = vcvt.s32.f32 %v4427
        %v4444 = vcvt.s32.f32 %v4428
        %v4445 = vcvt.s32.f32 %v4429
        %v4446 = vcvt.s32.f32 %v4430
        %v4447 = vcvt.s32.f32 %v4431
        %v4448 = vcvt.s32.f32 %v4432
        %v4449 = vcvt.s32.f32 %v4433
        %v4450 = vcvt.s32.f32 %v4434
        %v4451 = vcvt.s32.f32 %v4435
        %v4452 = vcvt.s32.f32 %v4436
        %v4453 = vcvt.s32.f32 %v4437
        %v4454 = vcvt.s32.f32 %v4438
        %v4455 = vcvt.s32.f32 %v4439
        %v4456 = vsel %vm2342, %v4440, 0.0
        %v4457 = vsel %vm2342, %v4441, 0.0
        %v4458 = vadd.f32 %v4456, %v4457
        %v4459 = vsel %vm2342, %v4442, 0.0
        %v4460 = vadd.f32 %v4458, %v4459
        %v4461 = vsel %vm2342, %v4443, 0.0
        %v4462 = vadd.f32 %v4460, %v4461
        %v4463 = vsel %vm2342, %v4444, 0.0
        %v4464 = vadd.f32 %v4462, %v4463
        %v4465 = vsel %vm2342, %v4445, 0.0
        %v4466 = vadd.f32 %v4464, %v4465
        %v4467 = vsel %vm2342, %v4446, 0.0
        %v4468 = vadd.f32 %v4466, %v4467
        %v4469 = vsel %vm2342, %v4447, 0.0
        %v4470 = vadd.f32 %v4468, %v4469
        %v4471 = vsel %vm2342, %v4448, 0.0
        %v4472 = vadd.f32 %v4470, %v4471
        %v4473 = vsel %vm2342, %v4449, 0.0
        %v4474 = vadd.f32 %v4472, %v4473
        %v4475 = vsel %vm2342, %v4450, 0.0
        %v4476 = vadd.f32 %v4474, %v4475
        %v4477 = vsel %vm2342, %v4451, 0.0
        %v4478 = vadd.f32 %v4476, %v4477
        %v4479 = vsel %vm2342, %v4452, 0.0
        %v4480 = vadd.f32 %v4478, %v4479
        %v4481 = vsel %vm2342, %v4453, 0.0
        %v4482 = vadd.f32 %v4480, %v4481
        %v4483 = vsel %vm2342, %v4454, 0.0
        %v4484 = vadd.f32 %v4482, %v4483
        %v4485 = vsel %vm2342, %v4455, 0.0
        %v4486 = vadd.f32 %v4484, %v4485
        %v4487 = vrot.slane %v4486, 4
        %v4488 = vadd.f32 %v4486, %v4487
        %v4489 = vrot.slane %v4488, 2
        %v4490 = vadd.f32 %v4488, %v4489
        %v4491 = vrot.slane %v4490, 1
        %v4492 = vadd.f32 %v4490, %v4491
        %v4493 = vmax.f32 %v4492, 1.0
        %v4494 = vmul.f32 %v2312, %v4440
        %v4495 = vmul.f32 %v2313, %v4441
        %v4496 = vmul.f32 %v2314, %v4442
        %v4497 = vmul.f32 %v2315, %v4443
        %v4498 = vmul.f32 %v2316, %v4444
        %v4499 = vmul.f32 %v2317, %v4445
        %v4500 = vmul.f32 %v2318, %v4446
        %v4501 = vmul.f32 %v2319, %v4447
        %v4502 = vmul.f32 %v2320, %v4448
        %v4503 = vmul.f32 %v2321, %v4449
        %v4504 = vmul.f32 %v2322, %v4450
        %v4505 = vmul.f32 %v2323, %v4451
        %v4506 = vmul.f32 %v2324, %v4452
        %v4507 = vmul.f32 %v2325, %v4453
        %v4508 = vmul.f32 %v2326, %v4454
        %v4509 = vmul.f32 %v2327, %v4455
        %v4510 = vsel %vm2342, %v4494, 0.0
        %v4511 = vsel %vm2342, %v4495, 0.0
        %v4512 = vadd.f32 %v4510, %v4511
        %v4513 = vsel %vm2342, %v4496, 0.0
        %v4514 = vadd.f32 %v4512, %v4513
        %v4515 = vsel %vm2342, %v4497, 0.0
        %v4516 = vadd.f32 %v4514, %v4515
        %v4517 = vsel %vm2342, %v4498, 0.0
        %v4518 = vadd.f32 %v4516, %v4517
        %v4519 = vsel %vm2342, %v4499, 0.0
        %v4520 = vadd.f32 %v4518, %v4519
        %v4521 = vsel %vm2342, %v4500, 0.0
        %v4522 = vadd.f32 %v4520, %v4521
        %v4523 = vsel %vm2342, %v4501, 0.0
        %v4524 = vadd.f32 %v4522, %v4523
        %v4525 = vsel %vm2342, %v4502, 0.0
        %v4526 = vadd.f32 %v4524, %v4525
        %v4527 = vsel %vm2342, %v4503, 0.0
        %v4528 = vadd.f32 %v4526, %v4527
        %v4529 = vsel %vm2342, %v4504, 0.0
        %v4530 = vadd.f32 %v4528, %v4529
        %v4531 = vsel %vm2342, %v4505, 0.0
        %v4532 = vadd.f32 %v4530, %v4531
        %v4533 = vsel %vm2342, %v4506, 0.0
        %v4534 = vadd.f32 %v4532, %v4533
        %v4535 = vsel %vm2342, %v4507, 0.0
        %v4536 = vadd.f32 %v4534, %v4535
        %v4537 = vsel %vm2342, %v4508, 0.0
        %v4538 = vadd.f32 %v4536, %v4537
        %v4539 = vsel %vm2342, %v4509, 0.0
        %v4540 = vadd.f32 %v4538, %v4539
        %v4541 = vrot.slane %v4540, 4
        %v4542 = vadd.f32 %v4540, %v4541
        %v4543 = vrot.slane %v4542, 2
        %v4544 = vadd.f32 %v4542, %v4543
        %v4545 = vrot.slane %v4544, 1
        %v4546 = vadd.f32 %v4544, %v4545
        %v4547 = vrcp.pop %v4493
        %v4548 = vmul.f32 %v4493, %v4547
        %v4549 = vsub.f32 1.0, %v4548
        %v4550 = vmul.f32 %v4547, %v4549
        %v4551 = vadd.f32 %v4547, %v4550
        %vm4552 = vweird.f32 %v4493
        %vm4553 = vweird.f32 %v4547
        %vm4554 = vmor %vm4552, %vm4553
        %v4555 = vsel %vm4554, %v4547, %v4551
        %v4556 = vand.u32 2147483647, %v4493
        %vm4557 = vcmp.eq.f32.partialorder %v4556, 8.507059e+37
        %v4558 = vand.u32 %v4493, 2147483648
        %v4559 = vor.u32 1.1754944e-38, %v4558
        %v4560 = vsel %vm4557, %v4559, %v4555
        %v4561 = vmul.f32 %v4546, %v4560
        %v4562 = vsub.f32 %v2312, %v4561
        %v4563 = vsub.f32 %v2313, %v4561
        %v4564 = vsub.f32 %v2314, %v4561
        %v4565 = vsub.f32 %v2315, %v4561
        %v4566 = vsub.f32 %v2316, %v4561
        %v4567 = vsub.f32 %v2317, %v4561
        %v4568 = vsub.f32 %v2318, %v4561
        %v4569 = vsub.f32 %v2319, %v4561
        %v4570 = vsub.f32 %v2320, %v4561
        %v4571 = vsub.f32 %v2321, %v4561
        %v4572 = vsub.f32 %v2322, %v4561
        %v4573 = vsub.f32 %v2323, %v4561
        %v4574 = vsub.f32 %v2324, %v4561
        %v4575 = vsub.f32 %v2325, %v4561
        %v4576 = vsub.f32 %v2326, %v4561
        %v4577 = vsub.f32 %v2327, %v4561
        %v4578 = vmul.f32 %v4562, %v4440
        %v4579 = vmul.f32 %v4563, %v4441
        %v4580 = vmul.f32 %v4564, %v4442
        %v4581 = vmul.f32 %v4565, %v4443
        %v4582 = vmul.f32 %v4566, %v4444
        %v4583 = vmul.f32 %v4567, %v4445
        %v4584 = vmul.f32 %v4568, %v4446
        %v4585 = vmul.f32 %v4569, %v4447
        %v4586 = vmul.f32 %v4570, %v4448
        %v4587 = vmul.f32 %v4571, %v4449
        %v4588 = vmul.f32 %v4572, %v4450
        %v4589 = vmul.f32 %v4573, %v4451
        %v4590 = vmul.f32 %v4574, %v4452
        %v4591 = vmul.f32 %v4575, %v4453
        %v4592 = vmul.f32 %v4576, %v4454
        %v4593 = vmul.f32 %v4577, %v4455
        %v4594 = vpack.c.bf16 %v4579, %v4578
        %v4595 = vpack.c.bf16 %v4581, %v4580
        %v4596 = vpack.c.bf16 %v4583, %v4582
        %v4597 = vpack.c.bf16 %v4585, %v4584
        %v4598 = vpack.c.bf16 %v4587, %v4586
        %v4599 = vpack.c.bf16 %v4589, %v4588
        %v4600 = vpack.c.bf16 %v4591, %v4590
        %v4601 = vpack.c.bf16 %v4593, %v4592
        %v4602 = vld [vmem:[#allocation33] sm:$0x3]
        %v4603 = vld [vmem:[#allocation34] sm:$0x1]
        %v4605 = vperm.slane %v4603, 0
        %v4608 = vsel %vm2342, %v4594, 0
        %v4611 = vsel %vm2342, %v4595, 0
        %v4614 = vsel %vm2342, %v4596, 0
        %v4617 = vsel %vm2342, %v4597, 0
        %v4620 = vsel %vm2342, %v4598, 0
        %v4623 = vsel %vm2342, %v4599, 0
        %v4626 = vsel %vm2342, %v4600, 0
        %v4629 = vsel %vm2342, %v4601, 0
        %v4632 = vsel %vm2367, %v4602, 0
        %4634 = vmatpush.bf16.msra.mxu0 0
        %4635 = vmatpush.bf16.msra.mxu0 0
        %4636 = vmatpush.bf16.msra.mxu0 0
        %4637 = vmatpush.bf16.msra.mxu0 0
        %4638 = vmatpush.bf16.msra.mxu0 0
        %4639 = vmatpush.bf16.msra.mxu0 0
        %4640 = vmatpush.bf16.msra.mxu0 0
        %4641 = vmatpush.bf16.msra.mxu0 %v4632
        %4642 = vmatmul.bf16.gmra.mxu0 %v4608
        %v4643 = vpop.f32.mrf.mxu0
        %v4644 = vadd.f32 %v4605, %v4643
        %v4645 = vpop.f32.mrf.mxu0
        %v4646 = vadd.f32 %v4605, %v4645
        %4647 = vmatmul.bf16.gmra.mxu0 %v4611
        %v4648 = vpop.f32.mrf.mxu0
        %v4649 = vadd.f32 %v4605, %v4648
        %v4650 = vpop.f32.mrf.mxu0
        %v4651 = vadd.f32 %v4605, %v4650
        %4652 = vmatmul.bf16.gmra.mxu0 %v4614
        %v4653 = vpop.f32.mrf.mxu0
        %v4654 = vadd.f32 %v4605, %v4653
        %v4655 = vpop.f32.mrf.mxu0
        %v4656 = vadd.f32 %v4605, %v4655
        %4657 = vmatmul.bf16.gmra.mxu0 %v4617
        %v4658 = vpop.f32.mrf.mxu0
        %v4659 = vadd.f32 %v4605, %v4658
        %v4660 = vpop.f32.mrf.mxu0
        %v4661 = vadd.f32 %v4605, %v4660
        %4662 = vmatmul.bf16.gmra.mxu0 %v4620
        %v4663 = vpop.f32.mrf.mxu0
        %v4664 = vadd.f32 %v4605, %v4663
        %v4665 = vpop.f32.mrf.mxu0
        %v4666 = vadd.f32 %v4605, %v4665
        %4667 = vmatmul.bf16.gmra.mxu0 %v4623
        %v4668 = vpop.f32.mrf.mxu0
        %v4669 = vadd.f32 %v4605, %v4668
        %v4670 = vpop.f32.mrf.mxu0
        %v4671 = vadd.f32 %v4605, %v4670
        %4672 = vmatmul.bf16.gmra.mxu0 %v4626
        %v4673 = vpop.f32.mrf.mxu0
        %v4674 = vadd.f32 %v4605, %v4673
        %v4675 = vpop.f32.mrf.mxu0
        %v4676 = vadd.f32 %v4605, %v4675
        %4677 = vmatmul.bf16.gmra.mxu0 %v4629
        %v4678 = vpop.f32.mrf.mxu0
        %v4679 = vadd.f32 %v4605, %v4678
        %v4680 = vpop.f32.mrf.mxu0
        %v4681 = vadd.f32 %v4605, %v4680
        %4682 = vdwg.mxu0
        %v4683 = vmax.f32 %v4644, 0.0
        %v4684 = vmax.f32 %v4646, 0.0
        %v4685 = vmax.f32 %v4649, 0.0
        %v4686 = vmax.f32 %v4651, 0.0
        %v4687 = vmax.f32 %v4654, 0.0
        %v4688 = vmax.f32 %v4656, 0.0
        %v4689 = vmax.f32 %v4659, 0.0
        %v4690 = vmax.f32 %v4661, 0.0
        %v4691 = vmax.f32 %v4664, 0.0
        %v4692 = vmax.f32 %v4666, 0.0
        %v4693 = vmax.f32 %v4669, 0.0
        %v4694 = vmax.f32 %v4671, 0.0
        %v4695 = vmax.f32 %v4674, 0.0
        %v4696 = vmax.f32 %v4676, 0.0
        %v4697 = vmax.f32 %v4679, 0.0
        %v4698 = vmax.f32 %v4681, 0.0
        %v4699 = vpack.c.bf16 %v4684, %v4683
        %v4700 = vpack.c.bf16 %v4686, %v4685
        %v4701 = vpack.c.bf16 %v4688, %v4687
        %v4702 = vpack.c.bf16 %v4690, %v4689
        %v4703 = vpack.c.bf16 %v4692, %v4691
        %v4704 = vpack.c.bf16 %v4694, %v4693
        %v4705 = vpack.c.bf16 %v4696, %v4695
        %v4706 = vpack.c.bf16 %v4698, %v4697
        %v4707 = vld [vmem:[#allocation36] sm:$0xf]
        %v4708 = vld [vmem:[#allocation36 + $0x4] sm:$0xf]
        %v4709 = vld [vmem:[#allocation36 + $0x8] sm:$0xf]
        %v4710 = vld [vmem:[#allocation36 + $0xc] sm:$0xf]
        %v4711 = vld [vmem:[#allocation36 + $0x10] sm:$0xf]
        %v4712 = vld [vmem:[#allocation36 + $0x14] sm:$0xf]
        %v4713 = vld [vmem:[#allocation36 + $0x18] sm:$0xf]
        %v4714 = vld [vmem:[#allocation36 + $0x1c] sm:$0xf]
        %v4715 = vld [vmem:[#allocation36 + $0x20] sm:$0xf]
        %v4716 = vld [vmem:[#allocation36 + $0x24] sm:$0xf]
        %v4717 = vld [vmem:[#allocation36 + $0x28] sm:$0xf]
        %v4718 = vld [vmem:[#allocation36 + $0x2c] sm:$0xf]
        %v4719 = vld [vmem:[#allocation36 + $0x30] sm:$0xf]
        %v4720 = vld [vmem:[#allocation36 + $0x34] sm:$0xf]
        %v4721 = vld [vmem:[#allocation36 + $0x38] sm:$0xf]
        %v4722 = vld [vmem:[#allocation36 + $0x3c] sm:$0xf]
        %v4723 = vld [vmem:[#allocation37] sm:$0x1]
        %v4725 = vperm.slane %v4723, 0
        %v4743 = vunpack.c.l.b16 %v4707
        %v4744 = vunpack.c.l.b16 %v4708
        %v4745 = vunpack.c.l.b16 %v4709
        %v4746 = vunpack.c.l.b16 %v4710
        %v4747 = vunpack.c.l.b16 %v4711
        %v4748 = vunpack.c.l.b16 %v4712
        %v4749 = vunpack.c.l.b16 %v4713
        %v4750 = vunpack.c.l.b16 %v4714
        %v4751 = vunpack.c.l.b16 %v4715
        %v4752 = vunpack.c.l.b16 %v4716
        %v4753 = vunpack.c.l.b16 %v4717
        %v4754 = vunpack.c.l.b16 %v4718
        %v4755 = vunpack.c.l.b16 %v4719
        %v4756 = vunpack.c.l.b16 %v4720
        %v4757 = vunpack.c.l.b16 %v4721
        %v4758 = vunpack.c.l.b16 %v4722
        %v4759 = vpack.c.b16 %v4744, %v4743
        %v4760 = vpack.c.b16 %v4746, %v4745
        %v4761 = vpack.c.b16 %v4748, %v4747
        %v4762 = vpack.c.b16 %v4750, %v4749
        %v4763 = vpack.c.b16 %v4752, %v4751
        %v4764 = vpack.c.b16 %v4754, %v4753
        %v4765 = vpack.c.b16 %v4756, %v4755
        %v4766 = vpack.c.b16 %v4758, %v4757
        %4775 = vmatpush.bf16.msra.mxu0 %v4766
        %4776 = vmatpush.bf16.msra.mxu0 %v4765
        %4777 = vmatpush.bf16.msra.mxu0 %v4764
        %4778 = vmatpush.bf16.msra.mxu0 %v4763
        %4779 = vmatpush.bf16.msra.mxu0 %v4762
        %4780 = vmatpush.bf16.msra.mxu0 %v4761
        %4781 = vmatpush.bf16.msra.mxu0 %v4760
        %4782 = vmatpush.bf16.msra.mxu0 %v4759
        %4783 = vmatmul.bf16.gmra.mxu0 %v4699
        %v4784 = vpop.f32.mrf.mxu0
        %v4785 = vadd.f32 %v4725, %v4784
        %v4786 = vpop.f32.mrf.mxu0
        %v4787 = vadd.f32 %v4725, %v4786
        %4788 = vmatmul.bf16.gmra.mxu0 %v4700
        %v4789 = vpop.f32.mrf.mxu0
        %v4790 = vadd.f32 %v4725, %v4789
        %v4791 = vpop.f32.mrf.mxu0
        %v4792 = vadd.f32 %v4725, %v4791
        %4793 = vmatmul.bf16.gmra.mxu0 %v4701
        %v4794 = vpop.f32.mrf.mxu0
        %v4795 = vadd.f32 %v4725, %v4794
        %v4796 = vpop.f32.mrf.mxu0
        %v4797 = vadd.f32 %v4725, %v4796
        %4798 = vmatmul.bf16.gmra.mxu0 %v4702
        %v4799 = vpop.f32.mrf.mxu0
        %v4800 = vadd.f32 %v4725, %v4799
        %v4801 = vpop.f32.mrf.mxu0
        %v4802 = vadd.f32 %v4725, %v4801
        %4803 = vmatmul.bf16.gmra.mxu0 %v4703
        %v4804 = vpop.f32.mrf.mxu0
        %v4805 = vadd.f32 %v4725, %v4804
        %v4806 = vpop.f32.mrf.mxu0
        %v4807 = vadd.f32 %v4725, %v4806
        %4808 = vmatmul.bf16.gmra.mxu0 %v4704
        %v4809 = vpop.f32.mrf.mxu0
        %v4810 = vadd.f32 %v4725, %v4809
        %v4811 = vpop.f32.mrf.mxu0
        %v4812 = vadd.f32 %v4725, %v4811
        %4813 = vmatmul.bf16.gmra.mxu0 %v4705
        %v4814 = vpop.f32.mrf.mxu0
        %v4815 = vadd.f32 %v4725, %v4814
        %v4816 = vpop.f32.mrf.mxu0
        %v4817 = vadd.f32 %v4725, %v4816
        %4818 = vmatmul.bf16.gmra.mxu0 %v4706
        %v4819 = vpop.f32.mrf.mxu0
        %v4820 = vadd.f32 %v4725, %v4819
        %v4821 = vpop.f32.mrf.mxu0
        %v4822 = vadd.f32 %v4725, %v4821
        %4823 = vdwg.mxu0
        %v4824 = vmax.f32 %v4785, 0.0
        %v4825 = vmax.f32 %v4787, 0.0
        %v4826 = vmax.f32 %v4790, 0.0
        %v4827 = vmax.f32 %v4792, 0.0
        %v4828 = vmax.f32 %v4795, 0.0
        %v4829 = vmax.f32 %v4797, 0.0
        %v4830 = vmax.f32 %v4800, 0.0
        %v4831 = vmax.f32 %v4802, 0.0
        %v4832 = vmax.f32 %v4805, 0.0
        %v4833 = vmax.f32 %v4807, 0.0
        %v4834 = vmax.f32 %v4810, 0.0
        %v4835 = vmax.f32 %v4812, 0.0
        %v4836 = vmax.f32 %v4815, 0.0
        %v4837 = vmax.f32 %v4817, 0.0
        %v4838 = vmax.f32 %v4820, 0.0
        %v4839 = vmax.f32 %v4822, 0.0
        %v4840 = vpack.c.bf16 %v4825, %v4824
        %v4841 = vpack.c.bf16 %v4827, %v4826
        %v4842 = vpack.c.bf16 %v4829, %v4828
        %v4843 = vpack.c.bf16 %v4831, %v4830
        %v4844 = vpack.c.bf16 %v4833, %v4832
        %v4845 = vpack.c.bf16 %v4835, %v4834
        %v4846 = vpack.c.bf16 %v4837, %v4836
        %v4847 = vpack.c.bf16 %v4839, %v4838
        %v4848 = vld [vmem:[#allocation39] sm:$0xff]
        %v4849 = vld [vmem:[#allocation39 + $0x8] sm:$0xff]
        %v4850 = vld [vmem:[#allocation39 + $0x10] sm:$0xff]
        %v4851 = vld [vmem:[#allocation39 + $0x18] sm:$0xff]
        %v4852 = vld [vmem:[#allocation39 + $0x20] sm:$0xff]
        %v4853 = vld [vmem:[#allocation39 + $0x28] sm:$0xff]
        %v4854 = vld [vmem:[#allocation39 + $0x30] sm:$0xff]
        %v4855 = vld [vmem:[#allocation39 + $0x38] sm:$0xff]
        %v4856 = vld [vmem:[#allocation39 + $0x40] sm:$0xff]
        %v4857 = vld [vmem:[#allocation39 + $0x48] sm:$0xff]
        %v4858 = vld [vmem:[#allocation39 + $0x50] sm:$0xff]
        %v4859 = vld [vmem:[#allocation39 + $0x58] sm:$0xff]
        %v4860 = vld [vmem:[#allocation39 + $0x60] sm:$0xff]
        %v4861 = vld [vmem:[#allocation39 + $0x68] sm:$0xff]
        %v4862 = vld [vmem:[#allocation39 + $0x70] sm:$0xff]
        %v4863 = vld [vmem:[#allocation39 + $0x78] sm:$0xff]
        %v4864 = vld [vmem:[#allocation40] sm:$0x3]
        %v4866 = vperm.slane %v4864, 0
        %v4867 = vperm.slane %v4864, 1
        %v4886 = vunpack.c.l.b16 %v4848
        %v4887 = vunpack.c.h.b16 %v4848
        %v4888 = vunpack.c.l.b16 %v4849
        %v4889 = vunpack.c.h.b16 %v4849
        %v4890 = vunpack.c.l.b16 %v4850
        %v4891 = vunpack.c.h.b16 %v4850
        %v4892 = vunpack.c.l.b16 %v4851
        %v4893 = vunpack.c.h.b16 %v4851
        %v4894 = vunpack.c.l.b16 %v4852
        %v4895 = vunpack.c.h.b16 %v4852
        %v4896 = vunpack.c.l.b16 %v4853
        %v4897 = vunpack.c.h.b16 %v4853
        %v4898 = vunpack.c.l.b16 %v4854
        %v4899 = vunpack.c.h.b16 %v4854
        %v4900 = vunpack.c.l.b16 %v4855
        %v4901 = vunpack.c.h.b16 %v4855
        %v4902 = vunpack.c.l.b16 %v4856
        %v4903 = vunpack.c.h.b16 %v4856
        %v4904 = vunpack.c.l.b16 %v4857
        %v4905 = vunpack.c.h.b16 %v4857
        %v4906 = vunpack.c.l.b16 %v4858
        %v4907 = vunpack.c.h.b16 %v4858
        %v4908 = vunpack.c.l.b16 %v4859
        %v4909 = vunpack.c.h.b16 %v4859
        %v4910 = vunpack.c.l.b16 %v4860
        %v4911 = vunpack.c.h.b16 %v4860
        %v4912 = vunpack.c.l.b16 %v4861
        %v4913 = vunpack.c.h.b16 %v4861
        %v4914 = vunpack.c.l.b16 %v4862
        %v4915 = vunpack.c.h.b16 %v4862
        %v4916 = vunpack.c.l.b16 %v4863
        %v4917 = vunpack.c.h.b16 %v4863
        %v4918 = vpack.c.b16 %v4888, %v4886
        %v4919 = vpack.c.b16 %v4889, %v4887
        %v4920 = vpack.c.b16 %v4892, %v4890
        %v4921 = vpack.c.b16 %v4893, %v4891
        %v4922 = vpack.c.b16 %v4896, %v4894
        %v4923 = vpack.c.b16 %v4897, %v4895
        %v4924 = vpack.c.b16 %v4900, %v4898
        %v4925 = vpack.c.b16 %v4901, %v4899
        %v4926 = vpack.c.b16 %v4904, %v4902
        %v4927 = vpack.c.b16 %v4905, %v4903
        %v4928 = vpack.c.b16 %v4908, %v4906
        %v4929 = vpack.c.b16 %v4909, %v4907
        %v4930 = vpack.c.b16 %v4912, %v4910
        %v4931 = vpack.c.b16 %v4913, %v4911
        %v4932 = vpack.c.b16 %v4916, %v4914
        %v4933 = vpack.c.b16 %v4917, %v4915
        %4950 = vmatpush.bf16.msra.mxu0 %v4932
        %4951 = vmatpush.bf16.msra.mxu0 %v4930
        %4952 = vmatpush.bf16.msra.mxu0 %v4928
        %4953 = vmatpush.bf16.msra.mxu0 %v4926
        %4954 = vmatpush.bf16.msra.mxu0 %v4924
        %4955 = vmatpush.bf16.msra.mxu0 %v4922
        %4956 = vmatpush.bf16.msra.mxu0 %v4920
        %4957 = vmatpush.bf16.msra.mxu0 %v4918
        %4958 = vmatmul.bf16.gmra.mxu0 %v4840
        %v4959 = vpop.f32.mrf.mxu0
        %v4960 = vadd.f32 %v4866, %v4959
        %v4961 = vpop.f32.mrf.mxu0
        %v4962 = vadd.f32 %v4866, %v4961
        %4963 = vmatmul.bf16.gmra.mxu0 %v4841
        %v4964 = vpop.f32.mrf.mxu0
        %v4965 = vadd.f32 %v4866, %v4964
        %v4966 = vpop.f32.mrf.mxu0
        %v4967 = vadd.f32 %v4866, %v4966
        %4968 = vmatmul.bf16.gmra.mxu0 %v4842
        %v4969 = vpop.f32.mrf.mxu0
        %v4970 = vadd.f32 %v4866, %v4969
        %v4971 = vpop.f32.mrf.mxu0
        %v4972 = vadd.f32 %v4866, %v4971
        %4973 = vmatmul.bf16.gmra.mxu0 %v4843
        %v4974 = vpop.f32.mrf.mxu0
        %v4975 = vadd.f32 %v4866, %v4974
        %v4976 = vpop.f32.mrf.mxu0
        %v4977 = vadd.f32 %v4866, %v4976
        %4978 = vmatmul.bf16.gmra.mxu0 %v4844
        %v4979 = vpop.f32.mrf.mxu0
        %v4980 = vadd.f32 %v4866, %v4979
        %v4981 = vpop.f32.mrf.mxu0
        %v4982 = vadd.f32 %v4866, %v4981
        %4983 = vmatmul.bf16.gmra.mxu0 %v4845
        %v4984 = vpop.f32.mrf.mxu0
        %v4985 = vadd.f32 %v4866, %v4984
        %v4986 = vpop.f32.mrf.mxu0
        %v4987 = vadd.f32 %v4866, %v4986
        %4988 = vmatmul.bf16.gmra.mxu0 %v4846
        %v4989 = vpop.f32.mrf.mxu0
        %v4990 = vadd.f32 %v4866, %v4989
        %v4991 = vpop.f32.mrf.mxu0
        %v4992 = vadd.f32 %v4866, %v4991
        %4993 = vmatmul.bf16.gmra.mxu0 %v4847
        %v4994 = vpop.f32.mrf.mxu0
        %v4995 = vadd.f32 %v4866, %v4994
        %v4996 = vpop.f32.mrf.mxu0
        %v4997 = vadd.f32 %v4866, %v4996
        %4998 = vdwg.mxu0
        %4999 = vmatpush.bf16.msra.mxu0 %v4933
        %5000 = vmatpush.bf16.msra.mxu0 %v4931
        %5001 = vmatpush.bf16.msra.mxu0 %v4929
        %5002 = vmatpush.bf16.msra.mxu0 %v4927
        %5003 = vmatpush.bf16.msra.mxu0 %v4925
        %5004 = vmatpush.bf16.msra.mxu0 %v4923
        %5005 = vmatpush.bf16.msra.mxu0 %v4921
        %5006 = vmatpush.bf16.msra.mxu0 %v4919
        %5007 = vmatmul.bf16.gmra.mxu0 %v4840
        %v5008 = vpop.f32.mrf.mxu0
        %v5009 = vadd.f32 %v4867, %v5008
        %v5010 = vpop.f32.mrf.mxu0
        %v5011 = vadd.f32 %v4867, %v5010
        %5012 = vmatmul.bf16.gmra.mxu0 %v4841
        %v5013 = vpop.f32.mrf.mxu0
        %v5014 = vadd.f32 %v4867, %v5013
        %v5015 = vpop.f32.mrf.mxu0
        %v5016 = vadd.f32 %v4867, %v5015
        %5017 = vmatmul.bf16.gmra.mxu0 %v4842
        %v5018 = vpop.f32.mrf.mxu0
        %v5019 = vadd.f32 %v4867, %v5018
        %v5020 = vpop.f32.mrf.mxu0
        %v5021 = vadd.f32 %v4867, %v5020
        %5022 = vmatmul.bf16.gmra.mxu0 %v4843
        %v5023 = vpop.f32.mrf.mxu0
        %v5024 = vadd.f32 %v4867, %v5023
        %v5025 = vpop.f32.mrf.mxu0
        %v5026 = vadd.f32 %v4867, %v5025
        %5027 = vmatmul.bf16.gmra.mxu0 %v4844
        %v5028 = vpop.f32.mrf.mxu0
        %v5029 = vadd.f32 %v4867, %v5028
        %v5030 = vpop.f32.mrf.mxu0
        %v5031 = vadd.f32 %v4867, %v5030
        %5032 = vmatmul.bf16.gmra.mxu0 %v4845
        %v5033 = vpop.f32.mrf.mxu0
        %v5034 = vadd.f32 %v4867, %v5033
        %v5035 = vpop.f32.mrf.mxu0
        %v5036 = vadd.f32 %v4867, %v5035
        %5037 = vmatmul.bf16.gmra.mxu0 %v4846
        %v5038 = vpop.f32.mrf.mxu0
        %v5039 = vadd.f32 %v4867, %v5038
        %v5040 = vpop.f32.mrf.mxu0
        %v5041 = vadd.f32 %v4867, %v5040
        %5042 = vmatmul.bf16.gmra.mxu0 %v4847
        %v5043 = vpop.f32.mrf.mxu0
        %v5044 = vadd.f32 %v4867, %v5043
        %v5045 = vpop.f32.mrf.mxu0
        %v5046 = vadd.f32 %v4867, %v5045
        %5047 = vdwg.mxu0
        %v5048 = vmax.f32 %v4960, 0.0
        %v5049 = vmax.f32 %v5009, 0.0
        %v5050 = vmax.f32 %v4962, 0.0
        %v5051 = vmax.f32 %v5011, 0.0
        %v5052 = vmax.f32 %v4965, 0.0
        %v5053 = vmax.f32 %v5014, 0.0
        %v5054 = vmax.f32 %v4967, 0.0
        %v5055 = vmax.f32 %v5016, 0.0
        %v5056 = vmax.f32 %v4970, 0.0
        %v5057 = vmax.f32 %v5019, 0.0
        %v5058 = vmax.f32 %v4972, 0.0
        %v5059 = vmax.f32 %v5021, 0.0
        %v5060 = vmax.f32 %v4975, 0.0
        %v5061 = vmax.f32 %v5024, 0.0
        %v5062 = vmax.f32 %v4977, 0.0
        %v5063 = vmax.f32 %v5026, 0.0
        %v5064 = vmax.f32 %v4980, 0.0
        %v5065 = vmax.f32 %v5029, 0.0
        %v5066 = vmax.f32 %v4982, 0.0
        %v5067 = vmax.f32 %v5031, 0.0
        %v5068 = vmax.f32 %v4985, 0.0
        %v5069 = vmax.f32 %v5034, 0.0
        %v5070 = vmax.f32 %v4987, 0.0
        %v5071 = vmax.f32 %v5036, 0.0
        %v5072 = vmax.f32 %v4990, 0.0
        %v5073 = vmax.f32 %v5039, 0.0
        %v5074 = vmax.f32 %v4992, 0.0
        %v5075 = vmax.f32 %v5041, 0.0
        %v5076 = vmax.f32 %v4995, 0.0
        %v5077 = vmax.f32 %v5044, 0.0
        %v5078 = vmax.f32 %v4997, 0.0
        %v5079 = vmax.f32 %v5046, 0.0
        %v5080 = vmax.f32 %v5048, %v5052
        %v5081 = vmax.f32 %v5050, %v5054
        %v5082 = vmax.f32 %v5080, %v5056
        %v5083 = vmax.f32 %v5081, %v5058
        %v5084 = vmax.f32 %v5082, %v5060
        %v5085 = vmax.f32 %v5083, %v5062
        %v5086 = vmax.f32 %v5084, %v5064
        %v5087 = vmax.f32 %v5085, %v5066
        %v5088 = vmax.f32 %v5086, %v5068
        %v5089 = vmax.f32 %v5087, %v5070
        %v5090 = vmax.f32 %v5088, %v5072
        %v5091 = vmax.f32 %v5089, %v5074
        %v5092 = vmax.f32 %v5090, %v5076
        %v5093 = vmax.f32 %v5091, %v5078
        %v5094 = vmax.f32 %v5092, %v5093
        %v5095 = vrot.slane %v5094, 4
        %v5096 = vmax.f32 %v5094, %v5095
        %v5097 = vrot.slane %v5096, 2
        %v5098 = vmax.f32 %v5096, %v5097
        %v5099 = vrot.slane %v5098, 1
        %v5100 = vmax.f32 %v5098, %v5099
        %v5101 = vmax.f32 %v5049, %v5053
        %v5102 = vmax.f32 %v5051, %v5055
        %v5103 = vmax.f32 %v5101, %v5057
        %v5104 = vmax.f32 %v5102, %v5059
        %v5105 = vmax.f32 %v5103, %v5061
        %v5106 = vmax.f32 %v5104, %v5063
        %v5107 = vmax.f32 %v5105, %v5065
        %v5108 = vmax.f32 %v5106, %v5067
        %v5109 = vmax.f32 %v5107, %v5069
        %v5110 = vmax.f32 %v5108, %v5071
        %v5111 = vmax.f32 %v5109, %v5073
        %v5112 = vmax.f32 %v5110, %v5075
        %v5113 = vmax.f32 %v5111, %v5077
        %v5114 = vmax.f32 %v5112, %v5079
        %v5115 = vmax.f32 %v5113, %v5114
        %v5116 = vrot.slane %v5115, 4
        %v5117 = vmax.f32 %v5115, %v5116
        %v5118 = vrot.slane %v5117, 2
        %v5119 = vmax.f32 %v5117, %v5118
        %v5120 = vrot.slane %v5119, 1
        %v5121 = vmax.f32 %v5119, %v5120
        %v5122 = vpack.c.bf16 %v5100, %v5100
        %v5123 = vpack.c.bf16 %v5121, %v5121
        %v5124 = vld [vmem:[#allocation42] sm:$0xff]
        %v5125 = vld [vmem:[#allocation42 + $0x8] sm:$0xff]
        %v5126 = vld [vmem:[#allocation42 + $0x10] sm:$0xff]
        %v5127 = vld [vmem:[#allocation42 + $0x18] sm:$0xff]
        %v5128 = vld [vmem:[#allocation42 + $0x20] sm:$0xff]
        %v5129 = vld [vmem:[#allocation42 + $0x28] sm:$0xff]
        %v5130 = vld [vmem:[#allocation42 + $0x30] sm:$0xff]
        %v5131 = vld [vmem:[#allocation42 + $0x38] sm:$0xff]
        %v5132 = vld [vmem:[#allocation42 + $0x40] sm:$0xff]
        %v5133 = vld [vmem:[#allocation42 + $0x48] sm:$0xff]
        %v5134 = vld [vmem:[#allocation42 + $0x50] sm:$0xff]
        %v5135 = vld [vmem:[#allocation42 + $0x58] sm:$0xff]
        %v5136 = vld [vmem:[#allocation42 + $0x60] sm:$0xff]
        %v5137 = vld [vmem:[#allocation42 + $0x68] sm:$0xff]
        %v5138 = vld [vmem:[#allocation42 + $0x70] sm:$0xff]
        %v5139 = vld [vmem:[#allocation42 + $0x78] sm:$0xff]
        %v5140 = vld [vmem:[#allocation42 + $0x80] sm:$0xff]
        %v5141 = vld [vmem:[#allocation42 + $0x88] sm:$0xff]
        %v5142 = vld [vmem:[#allocation42 + $0x90] sm:$0xff]
        %v5143 = vld [vmem:[#allocation42 + $0x98] sm:$0xff]
        %v5144 = vld [vmem:[#allocation42 + $0xa0] sm:$0xff]
        %v5145 = vld [vmem:[#allocation42 + $0xa8] sm:$0xff]
        %v5146 = vld [vmem:[#allocation42 + $0xb0] sm:$0xff]
        %v5147 = vld [vmem:[#allocation42 + $0xb8] sm:$0xff]
        %v5148 = vld [vmem:[#allocation42 + $0xc0] sm:$0xff]
        %v5149 = vld [vmem:[#allocation42 + $0xc8] sm:$0xff]
        %v5150 = vld [vmem:[#allocation42 + $0xd0] sm:$0xff]
        %v5151 = vld [vmem:[#allocation42 + $0xd8] sm:$0xff]
        %v5152 = vld [vmem:[#allocation42 + $0xe0] sm:$0xff]
        %v5153 = vld [vmem:[#allocation42 + $0xe8] sm:$0xff]
        %v5154 = vld [vmem:[#allocation42 + $0xf0] sm:$0xff]
        %v5155 = vld [vmem:[#allocation42 + $0xf8] sm:$0xff]
        %v5156 = vld [vmem:[%s67] sm:$0x77]
        %5158 = vst [vmem:[#allocation1] ss:$2 sm:$0xff] %v5156
        %v5159 = vld.sshfl [vmem:[#allocation1] sm:$0xff pattern:$0x75316420]
        %v5160 = vld.sshfl [vmem:[#allocation1 + $0x8] sm:$0xff pattern:$0x75316420]
        %v5161 = vsel %vm3161, %v5159, 0
        %v5163 = vsel %vm3161, %v5160, 0
        %5165 = vmatpush.msra.mxu0 0.0
        %5166 = vmatpush.msra.mxu0 0.0
        %5167 = vmatpush.msra.mxu0 0.0
        %5168 = vmatpush.msra.mxu0 0.0
        %5169 = vmatpush.msra.mxu0 0.0
        %5170 = vmatpush.msra.mxu0 0.0
        %5171 = vmatpush.msra.mxu0 0.0
        %5172 = vmatpush.msra.mxu0 0.0
        %5173 = vmatpush.msra.mxu0 0.0
        %5174 = vmatpush.msra.mxu0 0.0
        %5175 = vmatpush.msra.mxu0 0.0
        %5176 = vmatpush.msra.mxu0 0.0
        %5177 = vmatpush.msra.mxu0 0.0
        %5178 = vmatpush.msra.mxu0 0.0
        %5179 = vmatpush.msra.mxu0 0.0
        %5180 = vmatpush.msra.mxu0 %v5161
        %5181 = vmatmul.f32.gmra.mxu0 %v3159
        %v5182 = vpop.f32.mrf.mxu0
        %v5183 = vadd.f32 0.0, %v5182
        %5184 = vdwg.mxu0
        %5185 = vmatpush.msra.mxu0 0.0
        %5186 = vmatpush.msra.mxu0 0.0
        %5187 = vmatpush.msra.mxu0 0.0
        %5188 = vmatpush.msra.mxu0 0.0
        %5189 = vmatpush.msra.mxu0 0.0
        %5190 = vmatpush.msra.mxu0 0.0
        %5191 = vmatpush.msra.mxu0 0.0
        %5192 = vmatpush.msra.mxu0 0.0
        %5193 = vmatpush.msra.mxu0 0.0
        %5194 = vmatpush.msra.mxu0 0.0
        %5195 = vmatpush.msra.mxu0 0.0
        %5196 = vmatpush.msra.mxu0 0.0
        %5197 = vmatpush.msra.mxu0 0.0
        %5198 = vmatpush.msra.mxu0 0.0
        %5199 = vmatpush.msra.mxu0 0.0
        %5200 = vmatpush.msra.mxu0 %v5163
        %5201 = vmatmul.f32.gmra.mxu0 %v3159
        %v5202 = vpop.f32.mrf.mxu0
        %v5203 = vadd.f32 0.0, %v5202
        %5204 = vdwg.mxu0
        %v5237 = vunpack.c.l.b16 %v5124
        %v5238 = vunpack.c.h.b16 %v5124
        %v5239 = vunpack.c.l.b16 %v5125
        %v5240 = vunpack.c.h.b16 %v5125
        %v5241 = vunpack.c.l.b16 %v5126
        %v5242 = vunpack.c.h.b16 %v5126
        %v5243 = vunpack.c.l.b16 %v5127
        %v5244 = vunpack.c.h.b16 %v5127
        %v5245 = vunpack.c.l.b16 %v5128
        %v5246 = vunpack.c.h.b16 %v5128
        %v5247 = vunpack.c.l.b16 %v5129
        %v5248 = vunpack.c.h.b16 %v5129
        %v5249 = vunpack.c.l.b16 %v5130
        %v5250 = vunpack.c.h.b16 %v5130
        %v5251 = vunpack.c.l.b16 %v5131
        %v5252 = vunpack.c.h.b16 %v5131
        %v5253 = vunpack.c.l.b16 %v5132
        %v5254 = vunpack.c.h.b16 %v5132
        %v5255 = vunpack.c.l.b16 %v5133
        %v5256 = vunpack.c.h.b16 %v5133
        %v5257 = vunpack.c.l.b16 %v5134
        %v5258 = vunpack.c.h.b16 %v5134
        %v5259 = vunpack.c.l.b16 %v5135
        %v5260 = vunpack.c.h.b16 %v5135
        %v5261 = vunpack.c.l.b16 %v5136
        %v5262 = vunpack.c.h.b16 %v5136
        %v5263 = vunpack.c.l.b16 %v5137
        %v5264 = vunpack.c.h.b16 %v5137
        %v5265 = vunpack.c.l.b16 %v5138
        %v5266 = vunpack.c.h.b16 %v5138
        %v5267 = vunpack.c.l.b16 %v5139
        %v5268 = vunpack.c.h.b16 %v5139
        %v5269 = vunpack.c.l.b16 %v5140
        %v5270 = vunpack.c.h.b16 %v5140
        %v5271 = vunpack.c.l.b16 %v5141
        %v5272 = vunpack.c.h.b16 %v5141
        %v5273 = vunpack.c.l.b16 %v5142
        %v5274 = vunpack.c.h.b16 %v5142
        %v5275 = vunpack.c.l.b16 %v5143
        %v5276 = vunpack.c.h.b16 %v5143
        %v5277 = vunpack.c.l.b16 %v5144
        %v5278 = vunpack.c.h.b16 %v5144
        %v5279 = vunpack.c.l.b16 %v5145
        %v5280 = vunpack.c.h.b16 %v5145
        %v5281 = vunpack.c.l.b16 %v5146
        %v5282 = vunpack.c.h.b16 %v5146
        %v5283 = vunpack.c.l.b16 %v5147
        %v5284 = vunpack.c.h.b16 %v5147
        %v5285 = vunpack.c.l.b16 %v5148
        %v5286 = vunpack.c.h.b16 %v5148
        %v5287 = vunpack.c.l.b16 %v5149
        %v5288 = vunpack.c.h.b16 %v5149
        %v5289 = vunpack.c.l.b16 %v5150
        %v5290 = vunpack.c.h.b16 %v5150
        %v5291 = vunpack.c.l.b16 %v5151
        %v5292 = vunpack.c.h.b16 %v5151
        %v5293 = vunpack.c.l.b16 %v5152
        %v5294 = vunpack.c.h.b16 %v5152
        %v5295 = vunpack.c.l.b16 %v5153
        %v5296 = vunpack.c.h.b16 %v5153
        %v5297 = vunpack.c.l.b16 %v5154
        %v5298 = vunpack.c.h.b16 %v5154
        %v5299 = vunpack.c.l.b16 %v5155
        %v5300 = vunpack.c.h.b16 %v5155
        %v5301 = vpack.c.b16 %v5239, %v5237
        %v5302 = vpack.c.b16 %v5240, %v5238
        %v5303 = vpack.c.b16 %v5243, %v5241
        %v5304 = vpack.c.b16 %v5244, %v5242
        %v5305 = vpack.c.b16 %v5247, %v5245
        %v5306 = vpack.c.b16 %v5248, %v5246
        %v5307 = vpack.c.b16 %v5251, %v5249
        %v5308 = vpack.c.b16 %v5252, %v5250
        %v5309 = vpack.c.b16 %v5255, %v5253
        %v5310 = vpack.c.b16 %v5256, %v5254
        %v5311 = vpack.c.b16 %v5259, %v5257
        %v5312 = vpack.c.b16 %v5260, %v5258
        %v5313 = vpack.c.b16 %v5263, %v5261
        %v5314 = vpack.c.b16 %v5264, %v5262
        %v5315 = vpack.c.b16 %v5267, %v5265
        %v5316 = vpack.c.b16 %v5268, %v5266
        %v5317 = vpack.c.b16 %v5271, %v5269
        %v5318 = vpack.c.b16 %v5272, %v5270
        %v5319 = vpack.c.b16 %v5275, %v5273
        %v5320 = vpack.c.b16 %v5276, %v5274
        %v5321 = vpack.c.b16 %v5279, %v5277
        %v5322 = vpack.c.b16 %v5280, %v5278
        %v5323 = vpack.c.b16 %v5283, %v5281
        %v5324 = vpack.c.b16 %v5284, %v5282
        %v5325 = vpack.c.b16 %v5287, %v5285
        %v5326 = vpack.c.b16 %v5288, %v5286
        %v5327 = vpack.c.b16 %v5291, %v5289
        %v5328 = vpack.c.b16 %v5292, %v5290
        %v5329 = vpack.c.b16 %v5295, %v5293
        %v5330 = vpack.c.b16 %v5296, %v5294
        %v5331 = vpack.c.b16 %v5299, %v5297
        %v5332 = vpack.c.b16 %v5300, %v5298
        %5365 = vmatpush.bf16.msra.mxu0 %v5315
        %5366 = vmatpush.bf16.msra.mxu0 %v5313
        %5367 = vmatpush.bf16.msra.mxu0 %v5311
        %5368 = vmatpush.bf16.msra.mxu0 %v5309
        %5369 = vmatpush.bf16.msra.mxu0 %v5307
        %5370 = vmatpush.bf16.msra.mxu0 %v5305
        %5371 = vmatpush.bf16.msra.mxu0 %v5303
        %5372 = vmatpush.bf16.msra.mxu0 %v5301
        %5373 = vmatmul.bf16.gmra.mxu0 %v5122
        %v5374 = vpop.f32.mrf.mxu0
        %v5375 = vadd.f32 %v5183, %v5374
        %v5376 = vpop.f32.mrf.mxu0
        %5377 = vdwg.mxu0
        %5378 = vmatpush.bf16.msra.mxu0 %v5331
        %5379 = vmatpush.bf16.msra.mxu0 %v5329
        %5380 = vmatpush.bf16.msra.mxu0 %v5327
        %5381 = vmatpush.bf16.msra.mxu0 %v5325
        %5382 = vmatpush.bf16.msra.mxu0 %v5323
        %5383 = vmatpush.bf16.msra.mxu0 %v5321
        %5384 = vmatpush.bf16.msra.mxu0 %v5319
        %5385 = vmatpush.bf16.msra.mxu0 %v5317
        %5386 = vmatmul.bf16.gmra.mxu0 %v5123
        %v5387 = vpop.f32.mrf.mxu0
        %v5388 = vadd.f32 %v5375, %v5387
        %v5389 = vpop.f32.mrf.mxu0
        %5390 = vdwg.mxu0
        %5391 = vmatpush.bf16.msra.mxu0 %v5316
        %5392 = vmatpush.bf16.msra.mxu0 %v5314
        %5393 = vmatpush.bf16.msra.mxu0 %v5312
        %5394 = vmatpush.bf16.msra.mxu0 %v5310
        %5395 = vmatpush.bf16.msra.mxu0 %v5308
        %5396 = vmatpush.bf16.msra.mxu0 %v5306
        %5397 = vmatpush.bf16.msra.mxu0 %v5304
        %5398 = vmatpush.bf16.msra.mxu0 %v5302
        %5399 = vmatmul.bf16.gmra.mxu0 %v5122
        %v5400 = vpop.f32.mrf.mxu0
        %v5401 = vadd.f32 %v5203, %v5400
        %v5402 = vpop.f32.mrf.mxu0
        %5403 = vdwg.mxu0
        %5404 = vmatpush.bf16.msra.mxu0 %v5332
        %5405 = vmatpush.bf16.msra.mxu0 %v5330
        %5406 = vmatpush.bf16.msra.mxu0 %v5328
        %5407 = vmatpush.bf16.msra.mxu0 %v5326
        %5408 = vmatpush.bf16.msra.mxu0 %v5324
        %5409 = vmatpush.bf16.msra.mxu0 %v5322
        %5410 = vmatpush.bf16.msra.mxu0 %v5320
        %5411 = vmatpush.bf16.msra.mxu0 %v5318
        %5412 = vmatmul.bf16.gmra.mxu0 %v5123
        %v5413 = vpop.f32.mrf.mxu0
        %v5414 = vadd.f32 %v5401, %v5413
        %v5415 = vpop.f32.mrf.mxu0
        %5416 = vdwg.mxu0
        %v5417 = vld [vmem:[#allocation43] sm:$0x3]
        %v5419 = vperm.slane %v5417, 0
        %v5420 = vperm.slane %v5417, 1
        %v5423 = vadd.f32 %v5388, %v5419
        %v5424 = vadd.f32 %v5414, %v5420
        %v5425 = vmax.f32 %v5423, 0.0
        %v5426 = vmax.f32 %v5424, 0.0
        %v5427 = vpack.c.bf16 %v5425, %v5425
        %v5428 = vpack.c.bf16 %v5426, %v5426
        %v5429 = vld [vmem:[#allocation45] sm:$0xf]
        %v5430 = vld [vmem:[#allocation45 + $0x4] sm:$0xf]
        %v5431 = vld [vmem:[#allocation45 + $0x8] sm:$0xf]
        %v5432 = vld [vmem:[#allocation45 + $0xc] sm:$0xf]
        %v5433 = vld [vmem:[#allocation45 + $0x10] sm:$0xf]
        %v5434 = vld [vmem:[#allocation45 + $0x14] sm:$0xf]
        %v5435 = vld [vmem:[#allocation45 + $0x18] sm:$0xf]
        %v5436 = vld [vmem:[#allocation45 + $0x1c] sm:$0xf]
        %v5437 = vld [vmem:[#allocation45 + $0x20] sm:$0xf]
        %v5438 = vld [vmem:[#allocation45 + $0x24] sm:$0xf]
        %v5439 = vld [vmem:[#allocation45 + $0x28] sm:$0xf]
        %v5440 = vld [vmem:[#allocation45 + $0x2c] sm:$0xf]
        %v5441 = vld [vmem:[#allocation45 + $0x30] sm:$0xf]
        %v5442 = vld [vmem:[#allocation45 + $0x34] sm:$0xf]
        %v5443 = vld [vmem:[#allocation45 + $0x38] sm:$0xf]
        %v5444 = vld [vmem:[#allocation45 + $0x3c] sm:$0xf]
        %v5445 = vld [vmem:[#allocation45 + $0x40] sm:$0xf]
        %v5446 = vld [vmem:[#allocation45 + $0x44] sm:$0xf]
        %v5447 = vld [vmem:[#allocation45 + $0x48] sm:$0xf]
        %v5448 = vld [vmem:[#allocation45 + $0x4c] sm:$0xf]
        %v5449 = vld [vmem:[#allocation45 + $0x50] sm:$0xf]
        %v5450 = vld [vmem:[#allocation45 + $0x54] sm:$0xf]
        %v5451 = vld [vmem:[#allocation45 + $0x58] sm:$0xf]
        %v5452 = vld [vmem:[#allocation45 + $0x5c] sm:$0xf]
        %v5453 = vld [vmem:[#allocation45 + $0x60] sm:$0xf]
        %v5454 = vld [vmem:[#allocation45 + $0x64] sm:$0xf]
        %v5455 = vld [vmem:[#allocation45 + $0x68] sm:$0xf]
        %v5456 = vld [vmem:[#allocation45 + $0x6c] sm:$0xf]
        %v5457 = vld [vmem:[#allocation45 + $0x70] sm:$0xf]
        %v5458 = vld [vmem:[#allocation45 + $0x74] sm:$0xf]
        %v5459 = vld [vmem:[#allocation45 + $0x78] sm:$0xf]
        %v5460 = vld [vmem:[#allocation45 + $0x7c] sm:$0xf]
        %v5461 = vld [vmem:[#allocation46] sm:$0x1]
        %v5494 = vunpack.c.l.b16 %v5429
        %v5495 = vunpack.c.l.b16 %v5430
        %v5496 = vunpack.c.l.b16 %v5431
        %v5497 = vunpack.c.l.b16 %v5432
        %v5498 = vunpack.c.l.b16 %v5433
        %v5499 = vunpack.c.l.b16 %v5434
        %v5500 = vunpack.c.l.b16 %v5435
        %v5501 = vunpack.c.l.b16 %v5436
        %v5502 = vunpack.c.l.b16 %v5437
        %v5503 = vunpack.c.l.b16 %v5438
        %v5504 = vunpack.c.l.b16 %v5439
        %v5505 = vunpack.c.l.b16 %v5440
        %v5506 = vunpack.c.l.b16 %v5441
        %v5507 = vunpack.c.l.b16 %v5442
        %v5508 = vunpack.c.l.b16 %v5443
        %v5509 = vunpack.c.l.b16 %v5444
        %v5510 = vunpack.c.l.b16 %v5445
        %v5511 = vunpack.c.l.b16 %v5446
        %v5512 = vunpack.c.l.b16 %v5447
        %v5513 = vunpack.c.l.b16 %v5448
        %v5514 = vunpack.c.l.b16 %v5449
        %v5515 = vunpack.c.l.b16 %v5450
        %v5516 = vunpack.c.l.b16 %v5451
        %v5517 = vunpack.c.l.b16 %v5452
        %v5518 = vunpack.c.l.b16 %v5453
        %v5519 = vunpack.c.l.b16 %v5454
        %v5520 = vunpack.c.l.b16 %v5455
        %v5521 = vunpack.c.l.b16 %v5456
        %v5522 = vunpack.c.l.b16 %v5457
        %v5523 = vunpack.c.l.b16 %v5458
        %v5524 = vunpack.c.l.b16 %v5459
        %v5525 = vunpack.c.l.b16 %v5460
        %v5526 = vpack.c.b16 %v5495, %v5494
        %v5527 = vpack.c.b16 %v5497, %v5496
        %v5528 = vpack.c.b16 %v5499, %v5498
        %v5529 = vpack.c.b16 %v5501, %v5500
        %v5530 = vpack.c.b16 %v5503, %v5502
        %v5531 = vpack.c.b16 %v5505, %v5504
        %v5532 = vpack.c.b16 %v5507, %v5506
        %v5533 = vpack.c.b16 %v5509, %v5508
        %v5534 = vpack.c.b16 %v5511, %v5510
        %v5535 = vpack.c.b16 %v5513, %v5512
        %v5536 = vpack.c.b16 %v5515, %v5514
        %v5537 = vpack.c.b16 %v5517, %v5516
        %v5538 = vpack.c.b16 %v5519, %v5518
        %v5539 = vpack.c.b16 %v5521, %v5520
        %v5540 = vpack.c.b16 %v5523, %v5522
        %v5541 = vpack.c.b16 %v5525, %v5524
        %5558 = vmatpush.bf16.msra.mxu0 %v5533
        %5559 = vmatpush.bf16.msra.mxu0 %v5532
        %5560 = vmatpush.bf16.msra.mxu0 %v5531
        %5561 = vmatpush.bf16.msra.mxu0 %v5530
        %5562 = vmatpush.bf16.msra.mxu0 %v5529
        %5563 = vmatpush.bf16.msra.mxu0 %v5528
        %5564 = vmatpush.bf16.msra.mxu0 %v5527
        %5565 = vmatpush.bf16.msra.mxu0 %v5526
        %5566 = vmatmul.bf16.gmra.mxu0 %v5427
        %v5567 = vpop.f32.mrf.mxu0
        %v5568 = vadd.f32 %v5461, %v5567
        %v5569 = vpop.f32.mrf.mxu0
        %5570 = vdwg.mxu0
        %5571 = vmatpush.bf16.msra.mxu0 %v5541
        %5572 = vmatpush.bf16.msra.mxu0 %v5540
        %5573 = vmatpush.bf16.msra.mxu0 %v5539
        %5574 = vmatpush.bf16.msra.mxu0 %v5538
        %5575 = vmatpush.bf16.msra.mxu0 %v5537
        %5576 = vmatpush.bf16.msra.mxu0 %v5536
        %5577 = vmatpush.bf16.msra.mxu0 %v5535
        %5578 = vmatpush.bf16.msra.mxu0 %v5534
        %5579 = vmatmul.bf16.gmra.mxu0 %v5428
        %v5580 = vpop.f32.mrf.mxu0
        %v5581 = vadd.f32 %v5568, %v5580
        %v5582 = vpop.f32.mrf.mxu0
        %5583 = vdwg.mxu0
        %v5584 = vmax.f32 %v5581, 0.0
        %v5585 = vpack.c.bf16 %v5584, %v5584
        %v5586 = vld [vmem:[%s75] sm:$0xf]
        %v5587 = vld [vmem:[%s75 + $0x4] sm:$0xf]
        %v5588 = vld [vmem:[%s75 + $0x8] sm:$0xf]
        %v5589 = vld [vmem:[%s75 + $0xc] sm:$0xf]
        %v5590 = vld [vmem:[%s75 + $0x10] sm:$0xf]
        %v5591 = vld [vmem:[%s75 + $0x14] sm:$0xf]
        %v5592 = vld [vmem:[%s75 + $0x18] sm:$0xf]
        %v5593 = vld [vmem:[%s75 + $0x1c] sm:$0xf]
        %v5594 = vld [vmem:[%s75 + $0x20] sm:$0xf]
        %v5595 = vld [vmem:[%s75 + $0x24] sm:$0xf]
        %v5596 = vld [vmem:[%s75 + $0x28] sm:$0xf]
        %v5597 = vld [vmem:[%s75 + $0x2c] sm:$0xf]
        %v5598 = vld [vmem:[%s75 + $0x30] sm:$0xf]
        %v5599 = vld [vmem:[%s75 + $0x34] sm:$0xf]
        %v5600 = vld [vmem:[%s75 + $0x38] sm:$0xf]
        %v5601 = vld [vmem:[%s75 + $0x3c] sm:$0xf]
        %v5602 = vld [vmem:[#allocation48] sm:$0x1]
        %v5619 = vunpack.c.l.b16 %v5586
        %v5620 = vunpack.c.l.b16 %v5587
        %v5621 = vunpack.c.l.b16 %v5588
        %v5622 = vunpack.c.l.b16 %v5589
        %v5623 = vunpack.c.l.b16 %v5590
        %v5624 = vunpack.c.l.b16 %v5591
        %v5625 = vunpack.c.l.b16 %v5592
        %v5626 = vunpack.c.l.b16 %v5593
        %v5627 = vunpack.c.l.b16 %v5594
        %v5628 = vunpack.c.l.b16 %v5595
        %v5629 = vunpack.c.l.b16 %v5596
        %v5630 = vunpack.c.l.b16 %v5597
        %v5631 = vunpack.c.l.b16 %v5598
        %v5632 = vunpack.c.l.b16 %v5599
        %v5633 = vunpack.c.l.b16 %v5600
        %v5634 = vunpack.c.l.b16 %v5601
        %v5635 = vpack.c.b16 %v5620, %v5619
        %v5636 = vpack.c.b16 %v5622, %v5621
        %v5637 = vpack.c.b16 %v5624, %v5623
        %v5638 = vpack.c.b16 %v5626, %v5625
        %v5639 = vpack.c.b16 %v5628, %v5627
        %v5640 = vpack.c.b16 %v5630, %v5629
        %v5641 = vpack.c.b16 %v5632, %v5631
        %v5642 = vpack.c.b16 %v5634, %v5633
        %5651 = vmatpush.bf16.msra.mxu0 %v5642
        %5652 = vmatpush.bf16.msra.mxu0 %v5641
        %5653 = vmatpush.bf16.msra.mxu0 %v5640
        %5654 = vmatpush.bf16.msra.mxu0 %v5639
        %5655 = vmatpush.bf16.msra.mxu0 %v5638
        %5656 = vmatpush.bf16.msra.mxu0 %v5637
        %5657 = vmatpush.bf16.msra.mxu0 %v5636
        %5658 = vmatpush.bf16.msra.mxu0 %v5635
        %5659 = vmatmul.bf16.gmra.mxu0 %v5585
        %v5660 = vpop.f32.mrf.mxu0
        %v5661 = vadd.f32 %v5602, %v5660
        %v5662 = vpop.f32.mrf.mxu0
        %5663 = vdwg.mxu0
        %v5664 = vadd.f32 %v5661, %v4561
        %v5665 = vperm.slane %v5661, 0
        %v5666 = vsub.f32 %v4578, %v5665
        %v5667 = vsub.f32 %v4579, %v5665
        %v5668 = vsub.f32 %v4580, %v5665
        %v5669 = vsub.f32 %v4581, %v5665
        %v5670 = vsub.f32 %v4582, %v5665
        %v5671 = vsub.f32 %v4583, %v5665
        %v5672 = vsub.f32 %v4584, %v5665
        %v5673 = vsub.f32 %v4585, %v5665
        %v5674 = vsub.f32 %v4586, %v5665
        %v5675 = vsub.f32 %v4587, %v5665
        %v5676 = vsub.f32 %v4588, %v5665
        %v5677 = vsub.f32 %v4589, %v5665
        %v5678 = vsub.f32 %v4590, %v5665
        %v5679 = vsub.f32 %v4591, %v5665
        %v5680 = vsub.f32 %v4592, %v5665
        %v5681 = vsub.f32 %v4593, %v5665
        %v5682 = vpack.c.bf16 %v5667, %v5666
        %v5683 = vpack.c.bf16 %v5669, %v5668
        %v5684 = vpack.c.bf16 %v5671, %v5670
        %v5685 = vpack.c.bf16 %v5673, %v5672
        %v5686 = vpack.c.bf16 %v5675, %v5674
        %v5687 = vpack.c.bf16 %v5677, %v5676
        %v5688 = vpack.c.bf16 %v5679, %v5678
        %v5689 = vpack.c.bf16 %v5681, %v5680
        %v5690 = vld [vmem:[#allocation49] sm:$0x3]
        %v5691 = vld [vmem:[#allocation51] sm:$0x1]
        %v5693 = vperm.slane %v5691, 0
        %v5696 = vsel %vm2342, %v5682, 0
        %v5699 = vsel %vm2342, %v5683, 0
        %v5702 = vsel %vm2342, %v5684, 0
        %v5705 = vsel %vm2342, %v5685, 0
        %v5708 = vsel %vm2342, %v5686, 0
        %v5711 = vsel %vm2342, %v5687, 0
        %v5714 = vsel %vm2342, %v5688, 0
        %v5717 = vsel %vm2342, %v5689, 0
        %v5720 = vsel %vm2367, %v5690, 0
        %5722 = vmatpush.bf16.msra.mxu0 0
        %5723 = vmatpush.bf16.msra.mxu0 0
        %5724 = vmatpush.bf16.msra.mxu0 0
        %5725 = vmatpush.bf16.msra.mxu0 0
        %5726 = vmatpush.bf16.msra.mxu0 0
        %5727 = vmatpush.bf16.msra.mxu0 0
        %5728 = vmatpush.bf16.msra.mxu0 0
        %5729 = vmatpush.bf16.msra.mxu0 %v5720
        %5730 = vmatmul.bf16.gmra.mxu0 %v5696
        %v5731 = vpop.f32.mrf.mxu0
        %v5732 = vadd.f32 %v5693, %v5731
        %v5733 = vpop.f32.mrf.mxu0
        %v5734 = vadd.f32 %v5693, %v5733
        %5735 = vmatmul.bf16.gmra.mxu0 %v5699
        %v5736 = vpop.f32.mrf.mxu0
        %v5737 = vadd.f32 %v5693, %v5736
        %v5738 = vpop.f32.mrf.mxu0
        %v5739 = vadd.f32 %v5693, %v5738
        %5740 = vmatmul.bf16.gmra.mxu0 %v5702
        %v5741 = vpop.f32.mrf.mxu0
        %v5742 = vadd.f32 %v5693, %v5741
        %v5743 = vpop.f32.mrf.mxu0
        %v5744 = vadd.f32 %v5693, %v5743
        %5745 = vmatmul.bf16.gmra.mxu0 %v5705
        %v5746 = vpop.f32.mrf.mxu0
        %v5747 = vadd.f32 %v5693, %v5746
        %v5748 = vpop.f32.mrf.mxu0
        %v5749 = vadd.f32 %v5693, %v5748
        %5750 = vmatmul.bf16.gmra.mxu0 %v5708
        %v5751 = vpop.f32.mrf.mxu0
        %v5752 = vadd.f32 %v5693, %v5751
        %v5753 = vpop.f32.mrf.mxu0
        %v5754 = vadd.f32 %v5693, %v5753
        %5755 = vmatmul.bf16.gmra.mxu0 %v5711
        %v5756 = vpop.f32.mrf.mxu0
        %v5757 = vadd.f32 %v5693, %v5756
        %v5758 = vpop.f32.mrf.mxu0
        %v5759 = vadd.f32 %v5693, %v5758
        %5760 = vmatmul.bf16.gmra.mxu0 %v5714
        %v5761 = vpop.f32.mrf.mxu0
        %v5762 = vadd.f32 %v5693, %v5761
        %v5763 = vpop.f32.mrf.mxu0
        %v5764 = vadd.f32 %v5693, %v5763
        %5765 = vmatmul.bf16.gmra.mxu0 %v5717
        %v5766 = vpop.f32.mrf.mxu0
        %v5767 = vadd.f32 %v5693, %v5766
        %v5768 = vpop.f32.mrf.mxu0
        %v5769 = vadd.f32 %v5693, %v5768
        %5770 = vdwg.mxu0
        %v5771 = vmax.f32 %v5732, 0.0
        %v5772 = vmax.f32 %v5734, 0.0
        %v5773 = vmax.f32 %v5737, 0.0
        %v5774 = vmax.f32 %v5739, 0.0
        %v5775 = vmax.f32 %v5742, 0.0
        %v5776 = vmax.f32 %v5744, 0.0
        %v5777 = vmax.f32 %v5747, 0.0
        %v5778 = vmax.f32 %v5749, 0.0
        %v5779 = vmax.f32 %v5752, 0.0
        %v5780 = vmax.f32 %v5754, 0.0
        %v5781 = vmax.f32 %v5757, 0.0
        %v5782 = vmax.f32 %v5759, 0.0
        %v5783 = vmax.f32 %v5762, 0.0
        %v5784 = vmax.f32 %v5764, 0.0
        %v5785 = vmax.f32 %v5767, 0.0
        %v5786 = vmax.f32 %v5769, 0.0
        %v5787 = vpack.c.bf16 %v5772, %v5771
        %v5788 = vpack.c.bf16 %v5774, %v5773
        %v5789 = vpack.c.bf16 %v5776, %v5775
        %v5790 = vpack.c.bf16 %v5778, %v5777
        %v5791 = vpack.c.bf16 %v5780, %v5779
        %v5792 = vpack.c.bf16 %v5782, %v5781
        %v5793 = vpack.c.bf16 %v5784, %v5783
        %v5794 = vpack.c.bf16 %v5786, %v5785
        %v5795 = vld [vmem:[#allocation52] sm:$0xf]
        %v5796 = vld [vmem:[#allocation52 + $0x4] sm:$0xf]
        %v5797 = vld [vmem:[#allocation52 + $0x8] sm:$0xf]
        %v5798 = vld [vmem:[#allocation52 + $0xc] sm:$0xf]
        %v5799 = vld [vmem:[#allocation52 + $0x10] sm:$0xf]
        %v5800 = vld [vmem:[#allocation52 + $0x14] sm:$0xf]
        %v5801 = vld [vmem:[#allocation52 + $0x18] sm:$0xf]
        %v5802 = vld [vmem:[#allocation52 + $0x1c] sm:$0xf]
        %v5803 = vld [vmem:[#allocation52 + $0x20] sm:$0xf]
        %v5804 = vld [vmem:[#allocation52 + $0x24] sm:$0xf]
        %v5805 = vld [vmem:[#allocation52 + $0x28] sm:$0xf]
        %v5806 = vld [vmem:[#allocation52 + $0x2c] sm:$0xf]
        %v5807 = vld [vmem:[#allocation52 + $0x30] sm:$0xf]
        %v5808 = vld [vmem:[#allocation52 + $0x34] sm:$0xf]
        %v5809 = vld [vmem:[#allocation52 + $0x38] sm:$0xf]
        %v5810 = vld [vmem:[#allocation52 + $0x3c] sm:$0xf]
        %v5811 = vld [vmem:[#allocation54] sm:$0x1]
        %v5813 = vperm.slane %v5811, 0
        %v5831 = vunpack.c.l.b16 %v5795
        %v5832 = vunpack.c.l.b16 %v5796
        %v5833 = vunpack.c.l.b16 %v5797
        %v5834 = vunpack.c.l.b16 %v5798
        %v5835 = vunpack.c.l.b16 %v5799
        %v5836 = vunpack.c.l.b16 %v5800
        %v5837 = vunpack.c.l.b16 %v5801
        %v5838 = vunpack.c.l.b16 %v5802
        %v5839 = vunpack.c.l.b16 %v5803
        %v5840 = vunpack.c.l.b16 %v5804
        %v5841 = vunpack.c.l.b16 %v5805
        %v5842 = vunpack.c.l.b16 %v5806
        %v5843 = vunpack.c.l.b16 %v5807
        %v5844 = vunpack.c.l.b16 %v5808
        %v5845 = vunpack.c.l.b16 %v5809
        %v5846 = vunpack.c.l.b16 %v5810
        %v5847 = vpack.c.b16 %v5832, %v5831
        %v5848 = vpack.c.b16 %v5834, %v5833
        %v5849 = vpack.c.b16 %v5836, %v5835
        %v5850 = vpack.c.b16 %v5838, %v5837
        %v5851 = vpack.c.b16 %v5840, %v5839
        %v5852 = vpack.c.b16 %v5842, %v5841
        %v5853 = vpack.c.b16 %v5844, %v5843
        %v5854 = vpack.c.b16 %v5846, %v5845
        %5863 = vmatpush.bf16.msra.mxu0 %v5854
        %5864 = vmatpush.bf16.msra.mxu0 %v5853
        %5865 = vmatpush.bf16.msra.mxu0 %v5852
        %5866 = vmatpush.bf16.msra.mxu0 %v5851
        %5867 = vmatpush.bf16.msra.mxu0 %v5850
        %5868 = vmatpush.bf16.msra.mxu0 %v5849
        %5869 = vmatpush.bf16.msra.mxu0 %v5848
        %5870 = vmatpush.bf16.msra.mxu0 %v5847
        %5871 = vmatmul.bf16.gmra.mxu0 %v5787
        %v5872 = vpop.f32.mrf.mxu0
        %v5873 = vadd.f32 %v5813, %v5872
        %v5874 = vpop.f32.mrf.mxu0
        %v5875 = vadd.f32 %v5813, %v5874
        %5876 = vmatmul.bf16.gmra.mxu0 %v5788
        %v5877 = vpop.f32.mrf.mxu0
        %v5878 = vadd.f32 %v5813, %v5877
        %v5879 = vpop.f32.mrf.mxu0
        %v5880 = vadd.f32 %v5813, %v5879
        %5881 = vmatmul.bf16.gmra.mxu0 %v5789
        %v5882 = vpop.f32.mrf.mxu0
        %v5883 = vadd.f32 %v5813, %v5882
        %v5884 = vpop.f32.mrf.mxu0
        %v5885 = vadd.f32 %v5813, %v5884
        %5886 = vmatmul.bf16.gmra.mxu0 %v5790
        %v5887 = vpop.f32.mrf.mxu0
        %v5888 = vadd.f32 %v5813, %v5887
        %v5889 = vpop.f32.mrf.mxu0
        %v5890 = vadd.f32 %v5813, %v5889
        %5891 = vmatmul.bf16.gmra.mxu0 %v5791
        %v5892 = vpop.f32.mrf.mxu0
        %v5893 = vadd.f32 %v5813, %v5892
        %v5894 = vpop.f32.mrf.mxu0
        %v5895 = vadd.f32 %v5813, %v5894
        %5896 = vmatmul.bf16.gmra.mxu0 %v5792
        %v5897 = vpop.f32.mrf.mxu0
        %v5898 = vadd.f32 %v5813, %v5897
        %v5899 = vpop.f32.mrf.mxu0
        %v5900 = vadd.f32 %v5813, %v5899
        %5901 = vmatmul.bf16.gmra.mxu0 %v5793
        %v5902 = vpop.f32.mrf.mxu0
        %v5903 = vadd.f32 %v5813, %v5902
        %v5904 = vpop.f32.mrf.mxu0
        %v5905 = vadd.f32 %v5813, %v5904
        %5906 = vmatmul.bf16.gmra.mxu0 %v5794
        %v5907 = vpop.f32.mrf.mxu0
        %v5908 = vadd.f32 %v5813, %v5907
        %v5909 = vpop.f32.mrf.mxu0
        %v5910 = vadd.f32 %v5813, %v5909
        %5911 = vdwg.mxu0
        %v5912 = vmax.f32 %v5873, 0.0
        %v5913 = vmax.f32 %v5875, 0.0
        %v5914 = vmax.f32 %v5878, 0.0
        %v5915 = vmax.f32 %v5880, 0.0
        %v5916 = vmax.f32 %v5883, 0.0
        %v5917 = vmax.f32 %v5885, 0.0
        %v5918 = vmax.f32 %v5888, 0.0
        %v5919 = vmax.f32 %v5890, 0.0
        %v5920 = vmax.f32 %v5893, 0.0
        %v5921 = vmax.f32 %v5895, 0.0
        %v5922 = vmax.f32 %v5898, 0.0
        %v5923 = vmax.f32 %v5900, 0.0
        %v5924 = vmax.f32 %v5903, 0.0
        %v5925 = vmax.f32 %v5905, 0.0
        %v5926 = vmax.f32 %v5908, 0.0
        %v5927 = vmax.f32 %v5910, 0.0
        %v5928 = vpack.c.bf16 %v5913, %v5912
        %v5929 = vpack.c.bf16 %v5915, %v5914
        %v5930 = vpack.c.bf16 %v5917, %v5916
        %v5931 = vpack.c.bf16 %v5919, %v5918
        %v5932 = vpack.c.bf16 %v5921, %v5920
        %v5933 = vpack.c.bf16 %v5923, %v5922
        %v5934 = vpack.c.bf16 %v5925, %v5924
        %v5935 = vpack.c.bf16 %v5927, %v5926
        %v5936 = vld [vmem:[#allocation55] sm:$0xff]
        %v5937 = vld [vmem:[#allocation55 + $0x8] sm:$0xff]
        %v5938 = vld [vmem:[#allocation55 + $0x10] sm:$0xff]
        %v5939 = vld [vmem:[#allocation55 + $0x18] sm:$0xff]
        %v5940 = vld [vmem:[#allocation55 + $0x20] sm:$0xff]
        %v5941 = vld [vmem:[#allocation55 + $0x28] sm:$0xff]
        %v5942 = vld [vmem:[#allocation55 + $0x30] sm:$0xff]
        %v5943 = vld [vmem:[#allocation55 + $0x38] sm:$0xff]
        %v5944 = vld [vmem:[#allocation55 + $0x40] sm:$0xff]
        %v5945 = vld [vmem:[#allocation55 + $0x48] sm:$0xff]
        %v5946 = vld [vmem:[#allocation55 + $0x50] sm:$0xff]
        %v5947 = vld [vmem:[#allocation55 + $0x58] sm:$0xff]
        %v5948 = vld [vmem:[#allocation55 + $0x60] sm:$0xff]
        %v5949 = vld [vmem:[#allocation55 + $0x68] sm:$0xff]
        %v5950 = vld [vmem:[#allocation55 + $0x70] sm:$0xff]
        %v5951 = vld [vmem:[#allocation55 + $0x78] sm:$0xff]
        %v5952 = vld [vmem:[#allocation57] sm:$0x3]
        %v5954 = vperm.slane %v5952, 0
        %v5955 = vperm.slane %v5952, 1
        %v5974 = vunpack.c.l.b16 %v5936
        %v5975 = vunpack.c.h.b16 %v5936
        %v5976 = vunpack.c.l.b16 %v5937
        %v5977 = vunpack.c.h.b16 %v5937
        %v5978 = vunpack.c.l.b16 %v5938
        %v5979 = vunpack.c.h.b16 %v5938
        %v5980 = vunpack.c.l.b16 %v5939
        %v5981 = vunpack.c.h.b16 %v5939
        %v5982 = vunpack.c.l.b16 %v5940
        %v5983 = vunpack.c.h.b16 %v5940
        %v5984 = vunpack.c.l.b16 %v5941
        %v5985 = vunpack.c.h.b16 %v5941
        %v5986 = vunpack.c.l.b16 %v5942
        %v5987 = vunpack.c.h.b16 %v5942
        %v5988 = vunpack.c.l.b16 %v5943
        %v5989 = vunpack.c.h.b16 %v5943
        %v5990 = vunpack.c.l.b16 %v5944
        %v5991 = vunpack.c.h.b16 %v5944
        %v5992 = vunpack.c.l.b16 %v5945
        %v5993 = vunpack.c.h.b16 %v5945
        %v5994 = vunpack.c.l.b16 %v5946
        %v5995 = vunpack.c.h.b16 %v5946
        %v5996 = vunpack.c.l.b16 %v5947
        %v5997 = vunpack.c.h.b16 %v5947
        %v5998 = vunpack.c.l.b16 %v5948
        %v5999 = vunpack.c.h.b16 %v5948
        %v6000 = vunpack.c.l.b16 %v5949
        %v6001 = vunpack.c.h.b16 %v5949
        %v6002 = vunpack.c.l.b16 %v5950
        %v6003 = vunpack.c.h.b16 %v5950
        %v6004 = vunpack.c.l.b16 %v5951
        %v6005 = vunpack.c.h.b16 %v5951
        %v6006 = vpack.c.b16 %v5976, %v5974
        %v6007 = vpack.c.b16 %v5977, %v5975
        %v6008 = vpack.c.b16 %v5980, %v5978
        %v6009 = vpack.c.b16 %v5981, %v5979
        %v6010 = vpack.c.b16 %v5984, %v5982
        %v6011 = vpack.c.b16 %v5985, %v5983
        %v6012 = vpack.c.b16 %v5988, %v5986
        %v6013 = vpack.c.b16 %v5989, %v5987
        %v6014 = vpack.c.b16 %v5992, %v5990
        %v6015 = vpack.c.b16 %v5993, %v5991
        %v6016 = vpack.c.b16 %v5996, %v5994
        %v6017 = vpack.c.b16 %v5997, %v5995
        %v6018 = vpack.c.b16 %v6000, %v5998
        %v6019 = vpack.c.b16 %v6001, %v5999
        %v6020 = vpack.c.b16 %v6004, %v6002
        %v6021 = vpack.c.b16 %v6005, %v6003
        %6038 = vmatpush.bf16.msra.mxu0 %v6020
        %6039 = vmatpush.bf16.msra.mxu0 %v6018
        %6040 = vmatpush.bf16.msra.mxu0 %v6016
        %6041 = vmatpush.bf16.msra.mxu0 %v6014
        %6042 = vmatpush.bf16.msra.mxu0 %v6012
        %6043 = vmatpush.bf16.msra.mxu0 %v6010
        %6044 = vmatpush.bf16.msra.mxu0 %v6008
        %6045 = vmatpush.bf16.msra.mxu0 %v6006
        %6046 = vmatmul.bf16.gmra.mxu0 %v5928
        %v6047 = vpop.f32.mrf.mxu0
        %v6048 = vadd.f32 %v5954, %v6047
        %v6049 = vpop.f32.mrf.mxu0
        %v6050 = vadd.f32 %v5954, %v6049
        %6051 = vmatmul.bf16.gmra.mxu0 %v5929
        %v6052 = vpop.f32.mrf.mxu0
        %v6053 = vadd.f32 %v5954, %v6052
        %v6054 = vpop.f32.mrf.mxu0
        %v6055 = vadd.f32 %v5954, %v6054
        %6056 = vmatmul.bf16.gmra.mxu0 %v5930
        %v6057 = vpop.f32.mrf.mxu0
        %v6058 = vadd.f32 %v5954, %v6057
        %v6059 = vpop.f32.mrf.mxu0
        %v6060 = vadd.f32 %v5954, %v6059
        %6061 = vmatmul.bf16.gmra.mxu0 %v5931
        %v6062 = vpop.f32.mrf.mxu0
        %v6063 = vadd.f32 %v5954, %v6062
        %v6064 = vpop.f32.mrf.mxu0
        %v6065 = vadd.f32 %v5954, %v6064
        %6066 = vmatmul.bf16.gmra.mxu0 %v5932
        %v6067 = vpop.f32.mrf.mxu0
        %v6068 = vadd.f32 %v5954, %v6067
        %v6069 = vpop.f32.mrf.mxu0
        %v6070 = vadd.f32 %v5954, %v6069
        %6071 = vmatmul.bf16.gmra.mxu0 %v5933
        %v6072 = vpop.f32.mrf.mxu0
        %v6073 = vadd.f32 %v5954, %v6072
        %v6074 = vpop.f32.mrf.mxu0
        %v6075 = vadd.f32 %v5954, %v6074
        %6076 = vmatmul.bf16.gmra.mxu0 %v5934
        %v6077 = vpop.f32.mrf.mxu0
        %v6078 = vadd.f32 %v5954, %v6077
        %v6079 = vpop.f32.mrf.mxu0
        %v6080 = vadd.f32 %v5954, %v6079
        %6081 = vmatmul.bf16.gmra.mxu0 %v5935
        %v6082 = vpop.f32.mrf.mxu0
        %v6083 = vadd.f32 %v5954, %v6082
        %v6084 = vpop.f32.mrf.mxu0
        %v6085 = vadd.f32 %v5954, %v6084
        %6086 = vdwg.mxu0
        %6087 = vmatpush.bf16.msra.mxu0 %v6021
        %6088 = vmatpush.bf16.msra.mxu0 %v6019
        %6089 = vmatpush.bf16.msra.mxu0 %v6017
        %6090 = vmatpush.bf16.msra.mxu0 %v6015
        %6091 = vmatpush.bf16.msra.mxu0 %v6013
        %6092 = vmatpush.bf16.msra.mxu0 %v6011
        %6093 = vmatpush.bf16.msra.mxu0 %v6009
        %6094 = vmatpush.bf16.msra.mxu0 %v6007
        %6095 = vmatmul.bf16.gmra.mxu0 %v5928
        %v6096 = vpop.f32.mrf.mxu0
        %v6097 = vadd.f32 %v5955, %v6096
        %v6098 = vpop.f32.mrf.mxu0
        %v6099 = vadd.f32 %v5955, %v6098
        %6100 = vmatmul.bf16.gmra.mxu0 %v5929
        %v6101 = vpop.f32.mrf.mxu0
        %v6102 = vadd.f32 %v5955, %v6101
        %v6103 = vpop.f32.mrf.mxu0
        %v6104 = vadd.f32 %v5955, %v6103
        %6105 = vmatmul.bf16.gmra.mxu0 %v5930
        %v6106 = vpop.f32.mrf.mxu0
        %v6107 = vadd.f32 %v5955, %v6106
        %v6108 = vpop.f32.mrf.mxu0
        %v6109 = vadd.f32 %v5955, %v6108
        %6110 = vmatmul.bf16.gmra.mxu0 %v5931
        %v6111 = vpop.f32.mrf.mxu0
        %v6112 = vadd.f32 %v5955, %v6111
        %v6113 = vpop.f32.mrf.mxu0
        %v6114 = vadd.f32 %v5955, %v6113
        %6115 = vmatmul.bf16.gmra.mxu0 %v5932
        %v6116 = vpop.f32.mrf.mxu0
        %v6117 = vadd.f32 %v5955, %v6116
        %v6118 = vpop.f32.mrf.mxu0
        %v6119 = vadd.f32 %v5955, %v6118
        %6120 = vmatmul.bf16.gmra.mxu0 %v5933
        %v6121 = vpop.f32.mrf.mxu0
        %v6122 = vadd.f32 %v5955, %v6121
        %v6123 = vpop.f32.mrf.mxu0
        %v6124 = vadd.f32 %v5955, %v6123
        %6125 = vmatmul.bf16.gmra.mxu0 %v5934
        %v6126 = vpop.f32.mrf.mxu0
        %v6127 = vadd.f32 %v5955, %v6126
        %v6128 = vpop.f32.mrf.mxu0
        %v6129 = vadd.f32 %v5955, %v6128
        %6130 = vmatmul.bf16.gmra.mxu0 %v5935
        %v6131 = vpop.f32.mrf.mxu0
        %v6132 = vadd.f32 %v5955, %v6131
        %v6133 = vpop.f32.mrf.mxu0
        %v6134 = vadd.f32 %v5955, %v6133
        %6135 = vdwg.mxu0
        %v6136 = vmax.f32 %v6048, 0.0
        %v6137 = vmax.f32 %v6097, 0.0
        %v6138 = vmax.f32 %v6050, 0.0
        %v6139 = vmax.f32 %v6099, 0.0
        %v6140 = vmax.f32 %v6053, 0.0
        %v6141 = vmax.f32 %v6102, 0.0
        %v6142 = vmax.f32 %v6055, 0.0
        %v6143 = vmax.f32 %v6104, 0.0
        %v6144 = vmax.f32 %v6058, 0.0
        %v6145 = vmax.f32 %v6107, 0.0
        %v6146 = vmax.f32 %v6060, 0.0
        %v6147 = vmax.f32 %v6109, 0.0
        %v6148 = vmax.f32 %v6063, 0.0
        %v6149 = vmax.f32 %v6112, 0.0
        %v6150 = vmax.f32 %v6065, 0.0
        %v6151 = vmax.f32 %v6114, 0.0
        %v6152 = vmax.f32 %v6068, 0.0
        %v6153 = vmax.f32 %v6117, 0.0
        %v6154 = vmax.f32 %v6070, 0.0
        %v6155 = vmax.f32 %v6119, 0.0
        %v6156 = vmax.f32 %v6073, 0.0
        %v6157 = vmax.f32 %v6122, 0.0
        %v6158 = vmax.f32 %v6075, 0.0
        %v6159 = vmax.f32 %v6124, 0.0
        %v6160 = vmax.f32 %v6078, 0.0
        %v6161 = vmax.f32 %v6127, 0.0
        %v6162 = vmax.f32 %v6080, 0.0
        %v6163 = vmax.f32 %v6129, 0.0
        %v6164 = vmax.f32 %v6083, 0.0
        %v6165 = vmax.f32 %v6132, 0.0
        %v6166 = vmax.f32 %v6085, 0.0
        %v6167 = vmax.f32 %v6134, 0.0
        %v6168 = vpack.c.bf16 %v6138, %v6136
        %v6169 = vpack.c.bf16 %v6139, %v6137
        %v6170 = vpack.c.bf16 %v6142, %v6140
        %v6171 = vpack.c.bf16 %v6143, %v6141
        %v6172 = vpack.c.bf16 %v6146, %v6144
        %v6173 = vpack.c.bf16 %v6147, %v6145
        %v6174 = vpack.c.bf16 %v6150, %v6148
        %v6175 = vpack.c.bf16 %v6151, %v6149
        %v6176 = vpack.c.bf16 %v6154, %v6152
        %v6177 = vpack.c.bf16 %v6155, %v6153
        %v6178 = vpack.c.bf16 %v6158, %v6156
        %v6179 = vpack.c.bf16 %v6159, %v6157
        %v6180 = vpack.c.bf16 %v6162, %v6160
        %v6181 = vpack.c.bf16 %v6163, %v6161
        %v6182 = vpack.c.bf16 %v6166, %v6164
        %v6183 = vpack.c.bf16 %v6167, %v6165
        %v6184 = vld [vmem:[#allocation58] sm:$0xff]
        %v6185 = vld [vmem:[#allocation58 + $0x8] sm:$0xff]
        %v6186 = vld [vmem:[#allocation58 + $0x10] sm:$0xff]
        %v6187 = vld [vmem:[#allocation58 + $0x18] sm:$0xff]
        %v6188 = vld [vmem:[#allocation58 + $0x20] sm:$0xff]
        %v6189 = vld [vmem:[#allocation58 + $0x28] sm:$0xff]
        %v6190 = vld [vmem:[#allocation58 + $0x30] sm:$0xff]
        %v6191 = vld [vmem:[#allocation58 + $0x38] sm:$0xff]
        %v6192 = vld [vmem:[#allocation58 + $0x40] sm:$0xff]
        %v6193 = vld [vmem:[#allocation58 + $0x48] sm:$0xff]
        %v6194 = vld [vmem:[#allocation58 + $0x50] sm:$0xff]
        %v6195 = vld [vmem:[#allocation58 + $0x58] sm:$0xff]
        %v6196 = vld [vmem:[#allocation58 + $0x60] sm:$0xff]
        %v6197 = vld [vmem:[#allocation58 + $0x68] sm:$0xff]
        %v6198 = vld [vmem:[#allocation58 + $0x70] sm:$0xff]
        %v6199 = vld [vmem:[#allocation58 + $0x78] sm:$0xff]
        %v6200 = vld [vmem:[#allocation58 + $0x80] sm:$0xff]
        %v6201 = vld [vmem:[#allocation58 + $0x88] sm:$0xff]
        %v6202 = vld [vmem:[#allocation58 + $0x90] sm:$0xff]
        %v6203 = vld [vmem:[#allocation58 + $0x98] sm:$0xff]
        %v6204 = vld [vmem:[#allocation58 + $0xa0] sm:$0xff]
        %v6205 = vld [vmem:[#allocation58 + $0xa8] sm:$0xff]
        %v6206 = vld [vmem:[#allocation58 + $0xb0] sm:$0xff]
        %v6207 = vld [vmem:[#allocation58 + $0xb8] sm:$0xff]
        %v6208 = vld [vmem:[#allocation58 + $0xc0] sm:$0xff]
        %v6209 = vld [vmem:[#allocation58 + $0xc8] sm:$0xff]
        %v6210 = vld [vmem:[#allocation58 + $0xd0] sm:$0xff]
        %v6211 = vld [vmem:[#allocation58 + $0xd8] sm:$0xff]
        %v6212 = vld [vmem:[#allocation58 + $0xe0] sm:$0xff]
        %v6213 = vld [vmem:[#allocation58 + $0xe8] sm:$0xff]
        %v6214 = vld [vmem:[#allocation58 + $0xf0] sm:$0xff]
        %v6215 = vld [vmem:[#allocation58 + $0xf8] sm:$0xff]
        %v6216 = vld [vmem:[#allocation58 + $0x100] sm:$0xff]
        %v6217 = vld [vmem:[#allocation58 + $0x108] sm:$0xff]
        %v6218 = vld [vmem:[#allocation58 + $0x110] sm:$0xff]
        %v6219 = vld [vmem:[#allocation58 + $0x118] sm:$0xff]
        %v6220 = vld [vmem:[#allocation58 + $0x120] sm:$0xff]
        %v6221 = vld [vmem:[#allocation58 + $0x128] sm:$0xff]
        %v6222 = vld [vmem:[#allocation58 + $0x130] sm:$0xff]
        %v6223 = vld [vmem:[#allocation58 + $0x138] sm:$0xff]
        %v6224 = vld [vmem:[#allocation58 + $0x140] sm:$0xff]
        %v6225 = vld [vmem:[#allocation58 + $0x148] sm:$0xff]
        %v6226 = vld [vmem:[#allocation58 + $0x150] sm:$0xff]
        %v6227 = vld [vmem:[#allocation58 + $0x158] sm:$0xff]
        %v6228 = vld [vmem:[#allocation58 + $0x160] sm:$0xff]
        %v6229 = vld [vmem:[#allocation58 + $0x168] sm:$0xff]
        %v6230 = vld [vmem:[#allocation58 + $0x170] sm:$0xff]
        %v6231 = vld [vmem:[#allocation58 + $0x178] sm:$0xff]
        %v6232 = vld [vmem:[#allocation58 + $0x180] sm:$0xff]
        %v6233 = vld [vmem:[#allocation58 + $0x188] sm:$0xff]
        %v6234 = vld [vmem:[#allocation58 + $0x190] sm:$0xff]
        %v6235 = vld [vmem:[#allocation58 + $0x198] sm:$0xff]
        %v6236 = vld [vmem:[#allocation58 + $0x1a0] sm:$0xff]
        %v6237 = vld [vmem:[#allocation58 + $0x1a8] sm:$0xff]
        %v6238 = vld [vmem:[#allocation58 + $0x1b0] sm:$0xff]
        %v6239 = vld [vmem:[#allocation58 + $0x1b8] sm:$0xff]
        %v6240 = vld [vmem:[#allocation58 + $0x1c0] sm:$0xff]
        %v6241 = vld [vmem:[#allocation58 + $0x1c8] sm:$0xff]
        %v6242 = vld [vmem:[#allocation58 + $0x1d0] sm:$0xff]
        %v6243 = vld [vmem:[#allocation58 + $0x1d8] sm:$0xff]
        %v6244 = vld [vmem:[#allocation58 + $0x1e0] sm:$0xff]
        %v6245 = vld [vmem:[#allocation58 + $0x1e8] sm:$0xff]
        %v6246 = vld [vmem:[#allocation58 + $0x1f0] sm:$0xff]
        %v6247 = vld [vmem:[#allocation58 + $0x1f8] sm:$0xff]
        %v6248 = vld [vmem:[%s93] sm:$0xf]
        %v6250 = vperm.slane %v6248, 0
        %v6251 = vperm.slane %v6248, 1
        %v6252 = vperm.slane %v6248, 2
        %v6253 = vperm.slane %v6248, 3
        %v6322 = vunpack.c.l.b16 %v6184
        %v6323 = vunpack.c.h.b16 %v6184
        %v6324 = vunpack.c.l.b16 %v6185
        %v6325 = vunpack.c.h.b16 %v6185
        %v6326 = vunpack.c.l.b16 %v6186
        %v6327 = vunpack.c.h.b16 %v6186
        %v6328 = vunpack.c.l.b16 %v6187
        %v6329 = vunpack.c.h.b16 %v6187
        %v6330 = vunpack.c.l.b16 %v6188
        %v6331 = vunpack.c.h.b16 %v6188
        %v6332 = vunpack.c.l.b16 %v6189
        %v6333 = vunpack.c.h.b16 %v6189
        %v6334 = vunpack.c.l.b16 %v6190
        %v6335 = vunpack.c.h.b16 %v6190
        %v6336 = vunpack.c.l.b16 %v6191
        %v6337 = vunpack.c.h.b16 %v6191
        %v6338 = vunpack.c.l.b16 %v6192
        %v6339 = vunpack.c.h.b16 %v6192
        %v6340 = vunpack.c.l.b16 %v6193
        %v6341 = vunpack.c.h.b16 %v6193
        %v6342 = vunpack.c.l.b16 %v6194
        %v6343 = vunpack.c.h.b16 %v6194
        %v6344 = vunpack.c.l.b16 %v6195
        %v6345 = vunpack.c.h.b16 %v6195
        %v6346 = vunpack.c.l.b16 %v6196
        %v6347 = vunpack.c.h.b16 %v6196
        %v6348 = vunpack.c.l.b16 %v6197
        %v6349 = vunpack.c.h.b16 %v6197
        %v6350 = vunpack.c.l.b16 %v6198
        %v6351 = vunpack.c.h.b16 %v6198
        %v6352 = vunpack.c.l.b16 %v6199
        %v6353 = vunpack.c.h.b16 %v6199
        %v6354 = vunpack.c.l.b16 %v6200
        %v6355 = vunpack.c.h.b16 %v6200
        %v6356 = vunpack.c.l.b16 %v6201
        %v6357 = vunpack.c.h.b16 %v6201
        %v6358 = vunpack.c.l.b16 %v6202
        %v6359 = vunpack.c.h.b16 %v6202
        %v6360 = vunpack.c.l.b16 %v6203
        %v6361 = vunpack.c.h.b16 %v6203
        %v6362 = vunpack.c.l.b16 %v6204
        %v6363 = vunpack.c.h.b16 %v6204
        %v6364 = vunpack.c.l.b16 %v6205
        %v6365 = vunpack.c.h.b16 %v6205
        %v6366 = vunpack.c.l.b16 %v6206
        %v6367 = vunpack.c.h.b16 %v6206
        %v6368 = vunpack.c.l.b16 %v6207
        %v6369 = vunpack.c.h.b16 %v6207
        %v6370 = vunpack.c.l.b16 %v6208
        %v6371 = vunpack.c.h.b16 %v6208
        %v6372 = vunpack.c.l.b16 %v6209
        %v6373 = vunpack.c.h.b16 %v6209
        %v6374 = vunpack.c.l.b16 %v6210
        %v6375 = vunpack.c.h.b16 %v6210
        %v6376 = vunpack.c.l.b16 %v6211
        %v6377 = vunpack.c.h.b16 %v6211
        %v6378 = vunpack.c.l.b16 %v6212
        %v6379 = vunpack.c.h.b16 %v6212
        %v6380 = vunpack.c.l.b16 %v6213
        %v6381 = vunpack.c.h.b16 %v6213
        %v6382 = vunpack.c.l.b16 %v6214
        %v6383 = vunpack.c.h.b16 %v6214
        %v6384 = vunpack.c.l.b16 %v6215
        %v6385 = vunpack.c.h.b16 %v6215
        %v6386 = vunpack.c.l.b16 %v6216
        %v6387 = vunpack.c.h.b16 %v6216
        %v6388 = vunpack.c.l.b16 %v6217
        %v6389 = vunpack.c.h.b16 %v6217
        %v6390 = vunpack.c.l.b16 %v6218
        %v6391 = vunpack.c.h.b16 %v6218
        %v6392 = vunpack.c.l.b16 %v6219
        %v6393 = vunpack.c.h.b16 %v6219
        %v6394 = vunpack.c.l.b16 %v6220
        %v6395 = vunpack.c.h.b16 %v6220
        %v6396 = vunpack.c.l.b16 %v6221
        %v6397 = vunpack.c.h.b16 %v6221
        %v6398 = vunpack.c.l.b16 %v6222
        %v6399 = vunpack.c.h.b16 %v6222
        %v6400 = vunpack.c.l.b16 %v6223
        %v6401 = vunpack.c.h.b16 %v6223
        %v6402 = vunpack.c.l.b16 %v6224
        %v6403 = vunpack.c.h.b16 %v6224
        %v6404 = vunpack.c.l.b16 %v6225
        %v6405 = vunpack.c.h.b16 %v6225
        %v6406 = vunpack.c.l.b16 %v6226
        %v6407 = vunpack.c.h.b16 %v6226
        %v6408 = vunpack.c.l.b16 %v6227
        %v6409 = vunpack.c.h.b16 %v6227
        %v6410 = vunpack.c.l.b16 %v6228
        %v6411 = vunpack.c.h.b16 %v6228
        %v6412 = vunpack.c.l.b16 %v6229
        %v6413 = vunpack.c.h.b16 %v6229
        %v6414 = vunpack.c.l.b16 %v6230
        %v6415 = vunpack.c.h.b16 %v6230
        %v6416 = vunpack.c.l.b16 %v6231
        %v6417 = vunpack.c.h.b16 %v6231
        %v6418 = vunpack.c.l.b16 %v6232
        %v6419 = vunpack.c.h.b16 %v6232
        %v6420 = vunpack.c.l.b16 %v6233
        %v6421 = vunpack.c.h.b16 %v6233
        %v6422 = vunpack.c.l.b16 %v6234
        %v6423 = vunpack.c.h.b16 %v6234
        %v6424 = vunpack.c.l.b16 %v6235
        %v6425 = vunpack.c.h.b16 %v6235
        %v6426 = vunpack.c.l.b16 %v6236
        %v6427 = vunpack.c.h.b16 %v6236
        %v6428 = vunpack.c.l.b16 %v6237
        %v6429 = vunpack.c.h.b16 %v6237
        %v6430 = vunpack.c.l.b16 %v6238
        %v6431 = vunpack.c.h.b16 %v6238
        %v6432 = vunpack.c.l.b16 %v6239
        %v6433 = vunpack.c.h.b16 %v6239
        %v6434 = vunpack.c.l.b16 %v6240
        %v6435 = vunpack.c.h.b16 %v6240
        %v6436 = vunpack.c.l.b16 %v6241
        %v6437 = vunpack.c.h.b16 %v6241
        %v6438 = vunpack.c.l.b16 %v6242
        %v6439 = vunpack.c.h.b16 %v6242
        %v6440 = vunpack.c.l.b16 %v6243
        %v6441 = vunpack.c.h.b16 %v6243
        %v6442 = vunpack.c.l.b16 %v6244
        %v6443 = vunpack.c.h.b16 %v6244
        %v6444 = vunpack.c.l.b16 %v6245
        %v6445 = vunpack.c.h.b16 %v6245
        %v6446 = vunpack.c.l.b16 %v6246
        %v6447 = vunpack.c.h.b16 %v6246
        %v6448 = vunpack.c.l.b16 %v6247
        %v6449 = vunpack.c.h.b16 %v6247
        %v6450 = vpack.c.b16 %v6326, %v6322
        %v6451 = vpack.c.b16 %v6327, %v6323
        %v6452 = vpack.c.b16 %v6328, %v6324
        %v6453 = vpack.c.b16 %v6329, %v6325
        %v6454 = vpack.c.b16 %v6334, %v6330
        %v6455 = vpack.c.b16 %v6335, %v6331
        %v6456 = vpack.c.b16 %v6336, %v6332
        %v6457 = vpack.c.b16 %v6337, %v6333
        %v6458 = vpack.c.b16 %v6342, %v6338
        %v6459 = vpack.c.b16 %v6343, %v6339
        %v6460 = vpack.c.b16 %v6344, %v6340
        %v6461 = vpack.c.b16 %v6345, %v6341
        %v6462 = vpack.c.b16 %v6350, %v6346
        %v6463 = vpack.c.b16 %v6351, %v6347
        %v6464 = vpack.c.b16 %v6352, %v6348
        %v6465 = vpack.c.b16 %v6353, %v6349
        %v6466 = vpack.c.b16 %v6358, %v6354
        %v6467 = vpack.c.b16 %v6359, %v6355
        %v6468 = vpack.c.b16 %v6360, %v6356
        %v6469 = vpack.c.b16 %v6361, %v6357
        %v6470 = vpack.c.b16 %v6366, %v6362
        %v6471 = vpack.c.b16 %v6367, %v6363
        %v6472 = vpack.c.b16 %v6368, %v6364
        %v6473 = vpack.c.b16 %v6369, %v6365
        %v6474 = vpack.c.b16 %v6374, %v6370
        %v6475 = vpack.c.b16 %v6375, %v6371
        %v6476 = vpack.c.b16 %v6376, %v6372
        %v6477 = vpack.c.b16 %v6377, %v6373
        %v6478 = vpack.c.b16 %v6382, %v6378
        %v6479 = vpack.c.b16 %v6383, %v6379
        %v6480 = vpack.c.b16 %v6384, %v6380
        %v6481 = vpack.c.b16 %v6385, %v6381
        %v6482 = vpack.c.b16 %v6390, %v6386
        %v6483 = vpack.c.b16 %v6391, %v6387
        %v6484 = vpack.c.b16 %v6392, %v6388
        %v6485 = vpack.c.b16 %v6393, %v6389
        %v6486 = vpack.c.b16 %v6398, %v6394
        %v6487 = vpack.c.b16 %v6399, %v6395
        %v6488 = vpack.c.b16 %v6400, %v6396
        %v6489 = vpack.c.b16 %v6401, %v6397
        %v6490 = vpack.c.b16 %v6406, %v6402
        %v6491 = vpack.c.b16 %v6407, %v6403
        %v6492 = vpack.c.b16 %v6408, %v6404
        %v6493 = vpack.c.b16 %v6409, %v6405
        %v6494 = vpack.c.b16 %v6414, %v6410
        %v6495 = vpack.c.b16 %v6415, %v6411
        %v6496 = vpack.c.b16 %v6416, %v6412
        %v6497 = vpack.c.b16 %v6417, %v6413
        %v6498 = vpack.c.b16 %v6422, %v6418
        %v6499 = vpack.c.b16 %v6423, %v6419
        %v6500 = vpack.c.b16 %v6424, %v6420
        %v6501 = vpack.c.b16 %v6425, %v6421
        %v6502 = vpack.c.b16 %v6430, %v6426
        %v6503 = vpack.c.b16 %v6431, %v6427
        %v6504 = vpack.c.b16 %v6432, %v6428
        %v6505 = vpack.c.b16 %v6433, %v6429
        %v6506 = vpack.c.b16 %v6438, %v6434
        %v6507 = vpack.c.b16 %v6439, %v6435
        %v6508 = vpack.c.b16 %v6440, %v6436
        %v6509 = vpack.c.b16 %v6441, %v6437
        %v6510 = vpack.c.b16 %v6446, %v6442
        %v6511 = vpack.c.b16 %v6447, %v6443
        %v6512 = vpack.c.b16 %v6448, %v6444
        %v6513 = vpack.c.b16 %v6449, %v6445
        %6578 = vmatpush.bf16.msra.mxu0 %v6478
        %6579 = vmatpush.bf16.msra.mxu0 %v6474
        %6580 = vmatpush.bf16.msra.mxu0 %v6470
        %6581 = vmatpush.bf16.msra.mxu0 %v6466
        %6582 = vmatpush.bf16.msra.mxu0 %v6462
        %6583 = vmatpush.bf16.msra.mxu0 %v6458
        %6584 = vmatpush.bf16.msra.mxu0 %v6454
        %6585 = vmatpush.bf16.msra.mxu0 %v6450
        %6586 = vmatmul.bf16.gmra.mxu0 %v6168
        %v6587 = vpop.f32.mrf.mxu0
        %v6588 = vadd.f32 %v6250, %v6587
        %v6589 = vpop.f32.mrf.mxu0
        %v6590 = vadd.f32 %v6250, %v6589
        %6591 = vmatmul.bf16.gmra.mxu0 %v6170
        %v6592 = vpop.f32.mrf.mxu0
        %v6593 = vadd.f32 %v6250, %v6592
        %v6594 = vpop.f32.mrf.mxu0
        %v6595 = vadd.f32 %v6250, %v6594
        %6596 = vmatmul.bf16.gmra.mxu0 %v6172
        %v6597 = vpop.f32.mrf.mxu0
        %v6598 = vadd.f32 %v6250, %v6597
        %v6599 = vpop.f32.mrf.mxu0
        %v6600 = vadd.f32 %v6250, %v6599
        %6601 = vmatmul.bf16.gmra.mxu0 %v6174
        %v6602 = vpop.f32.mrf.mxu0
        %v6603 = vadd.f32 %v6250, %v6602
        %v6604 = vpop.f32.mrf.mxu0
        %v6605 = vadd.f32 %v6250, %v6604
        %6606 = vmatmul.bf16.gmra.mxu0 %v6176
        %v6607 = vpop.f32.mrf.mxu0
        %v6608 = vadd.f32 %v6250, %v6607
        %v6609 = vpop.f32.mrf.mxu0
        %v6610 = vadd.f32 %v6250, %v6609
        %6611 = vmatmul.bf16.gmra.mxu0 %v6178
        %v6612 = vpop.f32.mrf.mxu0
        %v6613 = vadd.f32 %v6250, %v6612
        %v6614 = vpop.f32.mrf.mxu0
        %v6615 = vadd.f32 %v6250, %v6614
        %6616 = vmatmul.bf16.gmra.mxu0 %v6180
        %v6617 = vpop.f32.mrf.mxu0
        %v6618 = vadd.f32 %v6250, %v6617
        %v6619 = vpop.f32.mrf.mxu0
        %v6620 = vadd.f32 %v6250, %v6619
        %6621 = vmatmul.bf16.gmra.mxu0 %v6182
        %v6622 = vpop.f32.mrf.mxu0
        %v6623 = vadd.f32 %v6250, %v6622
        %v6624 = vpop.f32.mrf.mxu0
        %v6625 = vadd.f32 %v6250, %v6624
        %6626 = vdwg.mxu0
        %6627 = vmatpush.bf16.msra.mxu0 %v6510
        %6628 = vmatpush.bf16.msra.mxu0 %v6506
        %6629 = vmatpush.bf16.msra.mxu0 %v6502
        %6630 = vmatpush.bf16.msra.mxu0 %v6498
        %6631 = vmatpush.bf16.msra.mxu0 %v6494
        %6632 = vmatpush.bf16.msra.mxu0 %v6490
        %6633 = vmatpush.bf16.msra.mxu0 %v6486
        %6634 = vmatpush.bf16.msra.mxu0 %v6482
        %6635 = vmatmul.bf16.gmra.mxu0 %v6169
        %v6636 = vpop.f32.mrf.mxu0
        %v6637 = vadd.f32 %v6588, %v6636
        %v6638 = vpop.f32.mrf.mxu0
        %v6639 = vadd.f32 %v6590, %v6638
        %6640 = vmatmul.bf16.gmra.mxu0 %v6171
        %v6641 = vpop.f32.mrf.mxu0
        %v6642 = vadd.f32 %v6593, %v6641
        %v6643 = vpop.f32.mrf.mxu0
        %v6644 = vadd.f32 %v6595, %v6643
        %6645 = vmatmul.bf16.gmra.mxu0 %v6173
        %v6646 = vpop.f32.mrf.mxu0
        %v6647 = vadd.f32 %v6598, %v6646
        %v6648 = vpop.f32.mrf.mxu0
        %v6649 = vadd.f32 %v6600, %v6648
        %6650 = vmatmul.bf16.gmra.mxu0 %v6175
        %v6651 = vpop.f32.mrf.mxu0
        %v6652 = vadd.f32 %v6603, %v6651
        %v6653 = vpop.f32.mrf.mxu0
        %v6654 = vadd.f32 %v6605, %v6653
        %6655 = vmatmul.bf16.gmra.mxu0 %v6177
        %v6656 = vpop.f32.mrf.mxu0
        %v6657 = vadd.f32 %v6608, %v6656
        %v6658 = vpop.f32.mrf.mxu0
        %v6659 = vadd.f32 %v6610, %v6658
        %6660 = vmatmul.bf16.gmra.mxu0 %v6179
        %v6661 = vpop.f32.mrf.mxu0
        %v6662 = vadd.f32 %v6613, %v6661
        %v6663 = vpop.f32.mrf.mxu0
        %v6664 = vadd.f32 %v6615, %v6663
        %6665 = vmatmul.bf16.gmra.mxu0 %v6181
        %v6666 = vpop.f32.mrf.mxu0
        %v6667 = vadd.f32 %v6618, %v6666
        %v6668 = vpop.f32.mrf.mxu0
        %v6669 = vadd.f32 %v6620, %v6668
        %6670 = vmatmul.bf16.gmra.mxu0 %v6183
        %v6671 = vpop.f32.mrf.mxu0
        %v6672 = vadd.f32 %v6623, %v6671
        %v6673 = vpop.f32.mrf.mxu0
        %v6674 = vadd.f32 %v6625, %v6673
        %6675 = vdwg.mxu0
        %6676 = vmatpush.bf16.msra.mxu0 %v6479
        %6677 = vmatpush.bf16.msra.mxu0 %v6475
        %6678 = vmatpush.bf16.msra.mxu0 %v6471
        %6679 = vmatpush.bf16.msra.mxu0 %v6467
        %6680 = vmatpush.bf16.msra.mxu0 %v6463
        %6681 = vmatpush.bf16.msra.mxu0 %v6459
        %6682 = vmatpush.bf16.msra.mxu0 %v6455
        %6683 = vmatpush.bf16.msra.mxu0 %v6451
        %6684 = vmatmul.bf16.gmra.mxu0 %v6168
        %v6685 = vpop.f32.mrf.mxu0
        %v6686 = vadd.f32 %v6251, %v6685
        %v6687 = vpop.f32.mrf.mxu0
        %v6688 = vadd.f32 %v6251, %v6687
        %6689 = vmatmul.bf16.gmra.mxu0 %v6170
        %v6690 = vpop.f32.mrf.mxu0
        %v6691 = vadd.f32 %v6251, %v6690
        %v6692 = vpop.f32.mrf.mxu0
        %v6693 = vadd.f32 %v6251, %v6692
        %6694 = vmatmul.bf16.gmra.mxu0 %v6172
        %v6695 = vpop.f32.mrf.mxu0
        %v6696 = vadd.f32 %v6251, %v6695
        %v6697 = vpop.f32.mrf.mxu0
        %v6698 = vadd.f32 %v6251, %v6697
        %6699 = vmatmul.bf16.gmra.mxu0 %v6174
        %v6700 = vpop.f32.mrf.mxu0
        %v6701 = vadd.f32 %v6251, %v6700
        %v6702 = vpop.f32.mrf.mxu0
        %v6703 = vadd.f32 %v6251, %v6702
        %6704 = vmatmul.bf16.gmra.mxu0 %v6176
        %v6705 = vpop.f32.mrf.mxu0
        %v6706 = vadd.f32 %v6251, %v6705
        %v6707 = vpop.f32.mrf.mxu0
        %v6708 = vadd.f32 %v6251, %v6707
        %6709 = vmatmul.bf16.gmra.mxu0 %v6178
        %v6710 = vpop.f32.mrf.mxu0
        %v6711 = vadd.f32 %v6251, %v6710
        %v6712 = vpop.f32.mrf.mxu0
        %v6713 = vadd.f32 %v6251, %v6712
        %6714 = vmatmul.bf16.gmra.mxu0 %v6180
        %v6715 = vpop.f32.mrf.mxu0
        %v6716 = vadd.f32 %v6251, %v6715
        %v6717 = vpop.f32.mrf.mxu0
        %v6718 = vadd.f32 %v6251, %v6717
        %6719 = vmatmul.bf16.gmra.mxu0 %v6182
        %v6720 = vpop.f32.mrf.mxu0
        %v6721 = vadd.f32 %v6251, %v6720
        %v6722 = vpop.f32.mrf.mxu0
        %v6723 = vadd.f32 %v6251, %v6722
        %6724 = vdwg.mxu0
        %6725 = vmatpush.bf16.msra.mxu0 %v6511
        %6726 = vmatpush.bf16.msra.mxu0 %v6507
        %6727 = vmatpush.bf16.msra.mxu0 %v6503
        %6728 = vmatpush.bf16.msra.mxu0 %v6499
        %6729 = vmatpush.bf16.msra.mxu0 %v6495
        %6730 = vmatpush.bf16.msra.mxu0 %v6491
        %6731 = vmatpush.bf16.msra.mxu0 %v6487
        %6732 = vmatpush.bf16.msra.mxu0 %v6483
        %6733 = vmatmul.bf16.gmra.mxu0 %v6169
        %v6734 = vpop.f32.mrf.mxu0
        %v6735 = vadd.f32 %v6686, %v6734
        %v6736 = vpop.f32.mrf.mxu0
        %v6737 = vadd.f32 %v6688, %v6736
        %6738 = vmatmul.bf16.gmra.mxu0 %v6171
        %v6739 = vpop.f32.mrf.mxu0
        %v6740 = vadd.f32 %v6691, %v6739
        %v6741 = vpop.f32.mrf.mxu0
        %v6742 = vadd.f32 %v6693, %v6741
        %6743 = vmatmul.bf16.gmra.mxu0 %v6173
        %v6744 = vpop.f32.mrf.mxu0
        %v6745 = vadd.f32 %v6696, %v6744
        %v6746 = vpop.f32.mrf.mxu0
        %v6747 = vadd.f32 %v6698, %v6746
        %6748 = vmatmul.bf16.gmra.mxu0 %v6175
        %v6749 = vpop.f32.mrf.mxu0
        %v6750 = vadd.f32 %v6701, %v6749
        %v6751 = vpop.f32.mrf.mxu0
        %v6752 = vadd.f32 %v6703, %v6751
        %6753 = vmatmul.bf16.gmra.mxu0 %v6177
        %v6754 = vpop.f32.mrf.mxu0
        %v6755 = vadd.f32 %v6706, %v6754
        %v6756 = vpop.f32.mrf.mxu0
        %v6757 = vadd.f32 %v6708, %v6756
        %6758 = vmatmul.bf16.gmra.mxu0 %v6179
        %v6759 = vpop.f32.mrf.mxu0
        %v6760 = vadd.f32 %v6711, %v6759
        %v6761 = vpop.f32.mrf.mxu0
        %v6762 = vadd.f32 %v6713, %v6761
        %6763 = vmatmul.bf16.gmra.mxu0 %v6181
        %v6764 = vpop.f32.mrf.mxu0
        %v6765 = vadd.f32 %v6716, %v6764
        %v6766 = vpop.f32.mrf.mxu0
        %v6767 = vadd.f32 %v6718, %v6766
        %6768 = vmatmul.bf16.gmra.mxu0 %v6183
        %v6769 = vpop.f32.mrf.mxu0
        %v6770 = vadd.f32 %v6721, %v6769
        %v6771 = vpop.f32.mrf.mxu0
        %v6772 = vadd.f32 %v6723, %v6771
        %6773 = vdwg.mxu0
        %6774 = vmatpush.bf16.msra.mxu0 %v6480
        %6775 = vmatpush.bf16.msra.mxu0 %v6476
        %6776 = vmatpush.bf16.msra.mxu0 %v6472
        %6777 = vmatpush.bf16.msra.mxu0 %v6468
        %6778 = vmatpush.bf16.msra.mxu0 %v6464
        %6779 = vmatpush.bf16.msra.mxu0 %v6460
        %6780 = vmatpush.bf16.msra.mxu0 %v6456
        %6781 = vmatpush.bf16.msra.mxu0 %v6452
        %6782 = vmatmul.bf16.gmra.mxu0 %v6168
        %v6783 = vpop.f32.mrf.mxu0
        %v6784 = vadd.f32 %v6252, %v6783
        %v6785 = vpop.f32.mrf.mxu0
        %v6786 = vadd.f32 %v6252, %v6785
        %6787 = vmatmul.bf16.gmra.mxu0 %v6170
        %v6788 = vpop.f32.mrf.mxu0
        %v6789 = vadd.f32 %v6252, %v6788
        %v6790 = vpop.f32.mrf.mxu0
        %v6791 = vadd.f32 %v6252, %v6790
        %6792 = vmatmul.bf16.gmra.mxu0 %v6172
        %v6793 = vpop.f32.mrf.mxu0
        %v6794 = vadd.f32 %v6252, %v6793
        %v6795 = vpop.f32.mrf.mxu0
        %v6796 = vadd.f32 %v6252, %v6795
        %6797 = vmatmul.bf16.gmra.mxu0 %v6174
        %v6798 = vpop.f32.mrf.mxu0
        %v6799 = vadd.f32 %v6252, %v6798
        %v6800 = vpop.f32.mrf.mxu0
        %v6801 = vadd.f32 %v6252, %v6800
        %6802 = vmatmul.bf16.gmra.mxu0 %v6176
        %v6803 = vpop.f32.mrf.mxu0
        %v6804 = vadd.f32 %v6252, %v6803
        %v6805 = vpop.f32.mrf.mxu0
        %v6806 = vadd.f32 %v6252, %v6805
        %6807 = vmatmul.bf16.gmra.mxu0 %v6178
        %v6808 = vpop.f32.mrf.mxu0
        %v6809 = vadd.f32 %v6252, %v6808
        %v6810 = vpop.f32.mrf.mxu0
        %v6811 = vadd.f32 %v6252, %v6810
        %6812 = vmatmul.bf16.gmra.mxu0 %v6180
        %v6813 = vpop.f32.mrf.mxu0
        %v6814 = vadd.f32 %v6252, %v6813
        %v6815 = vpop.f32.mrf.mxu0
        %v6816 = vadd.f32 %v6252, %v6815
        %6817 = vmatmul.bf16.gmra.mxu0 %v6182
        %v6818 = vpop.f32.mrf.mxu0
        %v6819 = vadd.f32 %v6252, %v6818
        %v6820 = vpop.f32.mrf.mxu0
        %v6821 = vadd.f32 %v6252, %v6820
        %6822 = vdwg.mxu0
        %6823 = vmatpush.bf16.msra.mxu0 %v6512
        %6824 = vmatpush.bf16.msra.mxu0 %v6508
        %6825 = vmatpush.bf16.msra.mxu0 %v6504
        %6826 = vmatpush.bf16.msra.mxu0 %v6500
        %6827 = vmatpush.bf16.msra.mxu0 %v6496
        %6828 = vmatpush.bf16.msra.mxu0 %v6492
        %6829 = vmatpush.bf16.msra.mxu0 %v6488
        %6830 = vmatpush.bf16.msra.mxu0 %v6484
        %6831 = vmatmul.bf16.gmra.mxu0 %v6169
        %v6832 = vpop.f32.mrf.mxu0
        %v6833 = vadd.f32 %v6784, %v6832
        %v6834 = vpop.f32.mrf.mxu0
        %v6835 = vadd.f32 %v6786, %v6834
        %6836 = vmatmul.bf16.gmra.mxu0 %v6171
        %v6837 = vpop.f32.mrf.mxu0
        %v6838 = vadd.f32 %v6789, %v6837
        %v6839 = vpop.f32.mrf.mxu0
        %v6840 = vadd.f32 %v6791, %v6839
        %6841 = vmatmul.bf16.gmra.mxu0 %v6173
        %v6842 = vpop.f32.mrf.mxu0
        %v6843 = vadd.f32 %v6794, %v6842
        %v6844 = vpop.f32.mrf.mxu0
        %v6845 = vadd.f32 %v6796, %v6844
        %6846 = vmatmul.bf16.gmra.mxu0 %v6175
        %v6847 = vpop.f32.mrf.mxu0
        %v6848 = vadd.f32 %v6799, %v6847
        %v6849 = vpop.f32.mrf.mxu0
        %v6850 = vadd.f32 %v6801, %v6849
        %6851 = vmatmul.bf16.gmra.mxu0 %v6177
        %v6852 = vpop.f32.mrf.mxu0
        %v6853 = vadd.f32 %v6804, %v6852
        %v6854 = vpop.f32.mrf.mxu0
        %v6855 = vadd.f32 %v6806, %v6854
        %6856 = vmatmul.bf16.gmra.mxu0 %v6179
        %v6857 = vpop.f32.mrf.mxu0
        %v6858 = vadd.f32 %v6809, %v6857
        %v6859 = vpop.f32.mrf.mxu0
        %v6860 = vadd.f32 %v6811, %v6859
        %6861 = vmatmul.bf16.gmra.mxu0 %v6181
        %v6862 = vpop.f32.mrf.mxu0
        %v6863 = vadd.f32 %v6814, %v6862
        %v6864 = vpop.f32.mrf.mxu0
        %v6865 = vadd.f32 %v6816, %v6864
        %6866 = vmatmul.bf16.gmra.mxu0 %v6183
        %v6867 = vpop.f32.mrf.mxu0
        %v6868 = vadd.f32 %v6819, %v6867
        %v6869 = vpop.f32.mrf.mxu0
        %v6870 = vadd.f32 %v6821, %v6869
        %6871 = vdwg.mxu0
        %6872 = vmatpush.bf16.msra.mxu0 %v6481
        %6873 = vmatpush.bf16.msra.mxu0 %v6477
        %6874 = vmatpush.bf16.msra.mxu0 %v6473
        %6875 = vmatpush.bf16.msra.mxu0 %v6469
        %6876 = vmatpush.bf16.msra.mxu0 %v6465
        %6877 = vmatpush.bf16.msra.mxu0 %v6461
        %6878 = vmatpush.bf16.msra.mxu0 %v6457
        %6879 = vmatpush.bf16.msra.mxu0 %v6453
        %6880 = vmatmul.bf16.gmra.mxu0 %v6168
        %v6881 = vpop.f32.mrf.mxu0
        %v6882 = vadd.f32 %v6253, %v6881
        %v6883 = vpop.f32.mrf.mxu0
        %v6884 = vadd.f32 %v6253, %v6883
        %6885 = vmatmul.bf16.gmra.mxu0 %v6170
        %v6886 = vpop.f32.mrf.mxu0
        %v6887 = vadd.f32 %v6253, %v6886
        %v6888 = vpop.f32.mrf.mxu0
        %v6889 = vadd.f32 %v6253, %v6888
        %6890 = vmatmul.bf16.gmra.mxu0 %v6172
        %v6891 = vpop.f32.mrf.mxu0
        %v6892 = vadd.f32 %v6253, %v6891
        %v6893 = vpop.f32.mrf.mxu0
        %v6894 = vadd.f32 %v6253, %v6893
        %6895 = vmatmul.bf16.gmra.mxu0 %v6174
        %v6896 = vpop.f32.mrf.mxu0
        %v6897 = vadd.f32 %v6253, %v6896
        %v6898 = vpop.f32.mrf.mxu0
        %v6899 = vadd.f32 %v6253, %v6898
        %6900 = vmatmul.bf16.gmra.mxu0 %v6176
        %v6901 = vpop.f32.mrf.mxu0
        %v6902 = vadd.f32 %v6253, %v6901
        %v6903 = vpop.f32.mrf.mxu0
        %v6904 = vadd.f32 %v6253, %v6903
        %6905 = vmatmul.bf16.gmra.mxu0 %v6178
        %v6906 = vpop.f32.mrf.mxu0
        %v6907 = vadd.f32 %v6253, %v6906
        %v6908 = vpop.f32.mrf.mxu0
        %v6909 = vadd.f32 %v6253, %v6908
        %6910 = vmatmul.bf16.gmra.mxu0 %v6180
        %v6911 = vpop.f32.mrf.mxu0
        %v6912 = vadd.f32 %v6253, %v6911
        %v6913 = vpop.f32.mrf.mxu0
        %v6914 = vadd.f32 %v6253, %v6913
        %6915 = vmatmul.bf16.gmra.mxu0 %v6182
        %v6916 = vpop.f32.mrf.mxu0
        %v6917 = vadd.f32 %v6253, %v6916
        %v6918 = vpop.f32.mrf.mxu0
        %v6919 = vadd.f32 %v6253, %v6918
        %6920 = vdwg.mxu0
        %6921 = vmatpush.bf16.msra.mxu0 %v6513
        %6922 = vmatpush.bf16.msra.mxu0 %v6509
        %6923 = vmatpush.bf16.msra.mxu0 %v6505
        %6924 = vmatpush.bf16.msra.mxu0 %v6501
        %6925 = vmatpush.bf16.msra.mxu0 %v6497
        %6926 = vmatpush.bf16.msra.mxu0 %v6493
        %6927 = vmatpush.bf16.msra.mxu0 %v6489
        %6928 = vmatpush.bf16.msra.mxu0 %v6485
        %6929 = vmatmul.bf16.gmra.mxu0 %v6169
        %v6930 = vpop.f32.mrf.mxu0
        %v6931 = vadd.f32 %v6882, %v6930
        %v6932 = vpop.f32.mrf.mxu0
        %v6933 = vadd.f32 %v6884, %v6932
        %6934 = vmatmul.bf16.gmra.mxu0 %v6171
        %v6935 = vpop.f32.mrf.mxu0
        %v6936 = vadd.f32 %v6887, %v6935
        %v6937 = vpop.f32.mrf.mxu0
        %v6938 = vadd.f32 %v6889, %v6937
        %6939 = vmatmul.bf16.gmra.mxu0 %v6173
        %v6940 = vpop.f32.mrf.mxu0
        %v6941 = vadd.f32 %v6892, %v6940
        %v6942 = vpop.f32.mrf.mxu0
        %v6943 = vadd.f32 %v6894, %v6942
        %6944 = vmatmul.bf16.gmra.mxu0 %v6175
        %v6945 = vpop.f32.mrf.mxu0
        %v6946 = vadd.f32 %v6897, %v6945
        %v6947 = vpop.f32.mrf.mxu0
        %v6948 = vadd.f32 %v6899, %v6947
        %6949 = vmatmul.bf16.gmra.mxu0 %v6177
        %v6950 = vpop.f32.mrf.mxu0
        %v6951 = vadd.f32 %v6902, %v6950
        %v6952 = vpop.f32.mrf.mxu0
        %v6953 = vadd.f32 %v6904, %v6952
        %6954 = vmatmul.bf16.gmra.mxu0 %v6179
        %v6955 = vpop.f32.mrf.mxu0
        %v6956 = vadd.f32 %v6907, %v6955
        %v6957 = vpop.f32.mrf.mxu0
        %v6958 = vadd.f32 %v6909, %v6957
        %6959 = vmatmul.bf16.gmra.mxu0 %v6181
        %v6960 = vpop.f32.mrf.mxu0
        %v6961 = vadd.f32 %v6912, %v6960
        %v6962 = vpop.f32.mrf.mxu0
        %v6963 = vadd.f32 %v6914, %v6962
        %6964 = vmatmul.bf16.gmra.mxu0 %v6183
        %v6965 = vpop.f32.mrf.mxu0
        %v6966 = vadd.f32 %v6917, %v6965
        %v6967 = vpop.f32.mrf.mxu0
        %v6968 = vadd.f32 %v6919, %v6967
        %6969 = vdwg.mxu0
        %v6970 = vmax.f32 %v6637, 0.0
        %v6971 = vmax.f32 %v6735, 0.0
        %v6972 = vmax.f32 %v6833, 0.0
        %v6973 = vmax.f32 %v6931, 0.0
        %v6974 = vmax.f32 %v6639, 0.0
        %v6975 = vmax.f32 %v6737, 0.0
        %v6976 = vmax.f32 %v6835, 0.0
        %v6977 = vmax.f32 %v6933, 0.0
        %v6978 = vmax.f32 %v6642, 0.0
        %v6979 = vmax.f32 %v6740, 0.0
        %v6980 = vmax.f32 %v6838, 0.0
        %v6981 = vmax.f32 %v6936, 0.0
        %v6982 = vmax.f32 %v6644, 0.0
        %v6983 = vmax.f32 %v6742, 0.0
        %v6984 = vmax.f32 %v6840, 0.0
        %v6985 = vmax.f32 %v6938, 0.0
        %v6986 = vmax.f32 %v6647, 0.0
        %v6987 = vmax.f32 %v6745, 0.0
        %v6988 = vmax.f32 %v6843, 0.0
        %v6989 = vmax.f32 %v6941, 0.0
        %v6990 = vmax.f32 %v6649, 0.0
        %v6991 = vmax.f32 %v6747, 0.0
        %v6992 = vmax.f32 %v6845, 0.0
        %v6993 = vmax.f32 %v6943, 0.0
        %v6994 = vmax.f32 %v6652, 0.0
        %v6995 = vmax.f32 %v6750, 0.0
        %v6996 = vmax.f32 %v6848, 0.0
        %v6997 = vmax.f32 %v6946, 0.0
        %v6998 = vmax.f32 %v6654, 0.0
        %v6999 = vmax.f32 %v6752, 0.0
        %v7000 = vmax.f32 %v6850, 0.0
        %v7001 = vmax.f32 %v6948, 0.0
        %v7002 = vmax.f32 %v6657, 0.0
        %v7003 = vmax.f32 %v6755, 0.0
        %v7004 = vmax.f32 %v6853, 0.0
        %v7005 = vmax.f32 %v6951, 0.0
        %v7006 = vmax.f32 %v6659, 0.0
        %v7007 = vmax.f32 %v6757, 0.0
        %v7008 = vmax.f32 %v6855, 0.0
        %v7009 = vmax.f32 %v6953, 0.0
        %v7010 = vmax.f32 %v6662, 0.0
        %v7011 = vmax.f32 %v6760, 0.0
        %v7012 = vmax.f32 %v6858, 0.0
        %v7013 = vmax.f32 %v6956, 0.0
        %v7014 = vmax.f32 %v6664, 0.0
        %v7015 = vmax.f32 %v6762, 0.0
        %v7016 = vmax.f32 %v6860, 0.0
        %v7017 = vmax.f32 %v6958, 0.0
        %v7018 = vmax.f32 %v6667, 0.0
        %v7019 = vmax.f32 %v6765, 0.0
        %v7020 = vmax.f32 %v6863, 0.0
        %v7021 = vmax.f32 %v6961, 0.0
        %v7022 = vmax.f32 %v6669, 0.0
        %v7023 = vmax.f32 %v6767, 0.0
        %v7024 = vmax.f32 %v6865, 0.0
        %v7025 = vmax.f32 %v6963, 0.0
        %v7026 = vmax.f32 %v6672, 0.0
        %v7027 = vmax.f32 %v6770, 0.0
        %v7028 = vmax.f32 %v6868, 0.0
        %v7029 = vmax.f32 %v6966, 0.0
        %v7030 = vmax.f32 %v6674, 0.0
        %v7031 = vmax.f32 %v6772, 0.0
        %v7032 = vmax.f32 %v6870, 0.0
        %v7033 = vmax.f32 %v6968, 0.0
        %v7034 = vmax.f32 %v6970, %v6974
        %v7035 = vmax.f32 %v7034, %v6978
        %v7036 = vmax.f32 %v7035, %v6982
        %v7037 = vmax.f32 %v7036, %v6986
        %v7038 = vmax.f32 %v7037, %v6990
        %v7039 = vmax.f32 %v7038, %v6994
        %v7040 = vmax.f32 %v7039, %v6998
        %v7041 = vmax.f32 %v7040, %v7002
        %v7042 = vmax.f32 %v7041, %v7006
        %v7043 = vmax.f32 %v7042, %v7010
        %v7044 = vmax.f32 %v7043, %v7014
        %v7045 = vmax.f32 %v7044, %v7018
        %v7046 = vmax.f32 %v7045, %v7022
        %v7047 = vmax.f32 %v7046, %v7026
        %v7048 = vmax.f32 %v7047, %v7030
        %v7049 = vrot.slane %v7048, 4
        %v7050 = vmax.f32 %v7048, %v7049
        %v7051 = vrot.slane %v7050, 2
        %v7052 = vmax.f32 %v7050, %v7051
        %v7053 = vrot.slane %v7052, 1
        %v7054 = vmax.f32 %v7052, %v7053
        %v7055 = vmax.f32 %v6971, %v6975
        %v7056 = vmax.f32 %v7055, %v6979
        %v7057 = vmax.f32 %v7056, %v6983
        %v7058 = vmax.f32 %v7057, %v6987
        %v7059 = vmax.f32 %v7058, %v6991
        %v7060 = vmax.f32 %v7059, %v6995
        %v7061 = vmax.f32 %v7060, %v6999
        %v7062 = vmax.f32 %v7061, %v7003
        %v7063 = vmax.f32 %v7062, %v7007
        %v7064 = vmax.f32 %v7063, %v7011
        %v7065 = vmax.f32 %v7064, %v7015
        %v7066 = vmax.f32 %v7065, %v7019
        %v7067 = vmax.f32 %v7066, %v7023
        %v7068 = vmax.f32 %v7067, %v7027
        %v7069 = vmax.f32 %v7068, %v7031
        %v7070 = vrot.slane %v7069, 4
        %v7071 = vmax.f32 %v7069, %v7070
        %v7072 = vrot.slane %v7071, 2
        %v7073 = vmax.f32 %v7071, %v7072
        %v7074 = vrot.slane %v7073, 1
        %v7075 = vmax.f32 %v7073, %v7074
        %v7076 = vmax.f32 %v6972, %v6976
        %v7077 = vmax.f32 %v7076, %v6980
        %v7078 = vmax.f32 %v7077, %v6984
        %v7079 = vmax.f32 %v7078, %v6988
        %v7080 = vmax.f32 %v7079, %v6992
        %v7081 = vmax.f32 %v7080, %v6996
        %v7082 = vmax.f32 %v7081, %v7000
        %v7083 = vmax.f32 %v7082, %v7004
        %v7084 = vmax.f32 %v7083, %v7008
        %v7085 = vmax.f32 %v7084, %v7012
        %v7086 = vmax.f32 %v7085, %v7016
        %v7087 = vmax.f32 %v7086, %v7020
        %v7088 = vmax.f32 %v7087, %v7024
        %v7089 = vmax.f32 %v7088, %v7028
        %v7090 = vmax.f32 %v7089, %v7032
        %v7091 = vrot.slane %v7090, 4
        %v7092 = vmax.f32 %v7090, %v7091
        %v7093 = vrot.slane %v7092, 2
        %v7094 = vmax.f32 %v7092, %v7093
        %v7095 = vrot.slane %v7094, 1
        %v7096 = vmax.f32 %v7094, %v7095
        %v7097 = vmax.f32 %v6973, %v6977
        %v7098 = vmax.f32 %v7097, %v6981
        %v7099 = vmax.f32 %v7098, %v6985
        %v7100 = vmax.f32 %v7099, %v6989
        %v7101 = vmax.f32 %v7100, %v6993
        %v7102 = vmax.f32 %v7101, %v6997
        %v7103 = vmax.f32 %v7102, %v7001
        %v7104 = vmax.f32 %v7103, %v7005
        %v7105 = vmax.f32 %v7104, %v7009
        %v7106 = vmax.f32 %v7105, %v7013
        %v7107 = vmax.f32 %v7106, %v7017
        %v7108 = vmax.f32 %v7107, %v7021
        %v7109 = vmax.f32 %v7108, %v7025
        %v7110 = vmax.f32 %v7109, %v7029
        %v7111 = vmax.f32 %v7110, %v7033
        %v7112 = vrot.slane %v7111, 4
        %v7113 = vmax.f32 %v7111, %v7112
        %v7114 = vrot.slane %v7113, 2
        %v7115 = vmax.f32 %v7113, %v7114
        %v7116 = vrot.slane %v7115, 1
        %v7117 = vmax.f32 %v7115, %v7116
        %v7118 = vpack.c.bf16 %v7054, %v7054
        %v7119 = vpack.c.bf16 %v7075, %v7075
        %v7120 = vpack.c.bf16 %v7096, %v7096
        %v7121 = vpack.c.bf16 %v7117, %v7117
        %v7122 = vld [vmem:[#allocation60] sm:$0xff]
        %v7123 = vld [vmem:[#allocation60 + $0x8] sm:$0xff]
        %v7124 = vld [vmem:[#allocation60 + $0x10] sm:$0xff]
        %v7125 = vld [vmem:[#allocation60 + $0x18] sm:$0xff]
        %v7126 = vld [vmem:[#allocation60 + $0x20] sm:$0xff]
        %v7127 = vld [vmem:[#allocation60 + $0x28] sm:$0xff]
        %v7128 = vld [vmem:[#allocation60 + $0x30] sm:$0xff]
        %v7129 = vld [vmem:[#allocation60 + $0x38] sm:$0xff]
        %v7130 = vld [vmem:[#allocation60 + $0x40] sm:$0xff]
        %v7131 = vld [vmem:[#allocation60 + $0x48] sm:$0xff]
        %v7132 = vld [vmem:[#allocation60 + $0x50] sm:$0xff]
        %v7133 = vld [vmem:[#allocation60 + $0x58] sm:$0xff]
        %v7134 = vld [vmem:[#allocation60 + $0x60] sm:$0xff]
        %v7135 = vld [vmem:[#allocation60 + $0x68] sm:$0xff]
        %v7136 = vld [vmem:[#allocation60 + $0x70] sm:$0xff]
        %v7137 = vld [vmem:[#allocation60 + $0x78] sm:$0xff]
        %v7138 = vld [vmem:[#allocation60 + $0x80] sm:$0xff]
        %v7139 = vld [vmem:[#allocation60 + $0x88] sm:$0xff]
        %v7140 = vld [vmem:[#allocation60 + $0x90] sm:$0xff]
        %v7141 = vld [vmem:[#allocation60 + $0x98] sm:$0xff]
        %v7142 = vld [vmem:[#allocation60 + $0xa0] sm:$0xff]
        %v7143 = vld [vmem:[#allocation60 + $0xa8] sm:$0xff]
        %v7144 = vld [vmem:[#allocation60 + $0xb0] sm:$0xff]
        %v7145 = vld [vmem:[#allocation60 + $0xb8] sm:$0xff]
        %v7146 = vld [vmem:[#allocation60 + $0xc0] sm:$0xff]
        %v7147 = vld [vmem:[#allocation60 + $0xc8] sm:$0xff]
        %v7148 = vld [vmem:[#allocation60 + $0xd0] sm:$0xff]
        %v7149 = vld [vmem:[#allocation60 + $0xd8] sm:$0xff]
        %v7150 = vld [vmem:[#allocation60 + $0xe0] sm:$0xff]
        %v7151 = vld [vmem:[#allocation60 + $0xe8] sm:$0xff]
        %v7152 = vld [vmem:[#allocation60 + $0xf0] sm:$0xff]
        %v7153 = vld [vmem:[#allocation60 + $0xf8] sm:$0xff]
        %v7154 = vld [vmem:[#allocation60 + $0x100] sm:$0xff]
        %v7155 = vld [vmem:[#allocation60 + $0x108] sm:$0xff]
        %v7156 = vld [vmem:[#allocation60 + $0x110] sm:$0xff]
        %v7157 = vld [vmem:[#allocation60 + $0x118] sm:$0xff]
        %v7158 = vld [vmem:[#allocation60 + $0x120] sm:$0xff]
        %v7159 = vld [vmem:[#allocation60 + $0x128] sm:$0xff]
        %v7160 = vld [vmem:[#allocation60 + $0x130] sm:$0xff]
        %v7161 = vld [vmem:[#allocation60 + $0x138] sm:$0xff]
        %v7162 = vld [vmem:[#allocation60 + $0x140] sm:$0xff]
        %v7163 = vld [vmem:[#allocation60 + $0x148] sm:$0xff]
        %v7164 = vld [vmem:[#allocation60 + $0x150] sm:$0xff]
        %v7165 = vld [vmem:[#allocation60 + $0x158] sm:$0xff]
        %v7166 = vld [vmem:[#allocation60 + $0x160] sm:$0xff]
        %v7167 = vld [vmem:[#allocation60 + $0x168] sm:$0xff]
        %v7168 = vld [vmem:[#allocation60 + $0x170] sm:$0xff]
        %v7169 = vld [vmem:[#allocation60 + $0x178] sm:$0xff]
        %v7170 = vld [vmem:[#allocation60 + $0x180] sm:$0xff]
        %v7171 = vld [vmem:[#allocation60 + $0x188] sm:$0xff]
        %v7172 = vld [vmem:[#allocation60 + $0x190] sm:$0xff]
        %v7173 = vld [vmem:[#allocation60 + $0x198] sm:$0xff]
        %v7174 = vld [vmem:[#allocation60 + $0x1a0] sm:$0xff]
        %v7175 = vld [vmem:[#allocation60 + $0x1a8] sm:$0xff]
        %v7176 = vld [vmem:[#allocation60 + $0x1b0] sm:$0xff]
        %v7177 = vld [vmem:[#allocation60 + $0x1b8] sm:$0xff]
        %v7178 = vld [vmem:[#allocation60 + $0x1c0] sm:$0xff]
        %v7179 = vld [vmem:[#allocation60 + $0x1c8] sm:$0xff]
        %v7180 = vld [vmem:[#allocation60 + $0x1d0] sm:$0xff]
        %v7181 = vld [vmem:[#allocation60 + $0x1d8] sm:$0xff]
        %v7182 = vld [vmem:[#allocation60 + $0x1e0] sm:$0xff]
        %v7183 = vld [vmem:[#allocation60 + $0x1e8] sm:$0xff]
        %v7184 = vld [vmem:[#allocation60 + $0x1f0] sm:$0xff]
        %v7185 = vld [vmem:[#allocation60 + $0x1f8] sm:$0xff]
        %v7186 = vld [vmem:[#allocation60 + $0x200] sm:$0xff]
        %v7187 = vld [vmem:[#allocation60 + $0x208] sm:$0xff]
        %v7188 = vld [vmem:[#allocation60 + $0x210] sm:$0xff]
        %v7189 = vld [vmem:[#allocation60 + $0x218] sm:$0xff]
        %v7190 = vld [vmem:[#allocation60 + $0x220] sm:$0xff]
        %v7191 = vld [vmem:[#allocation60 + $0x228] sm:$0xff]
        %v7192 = vld [vmem:[#allocation60 + $0x230] sm:$0xff]
        %v7193 = vld [vmem:[#allocation60 + $0x238] sm:$0xff]
        %v7194 = vld [vmem:[#allocation60 + $0x240] sm:$0xff]
        %v7195 = vld [vmem:[#allocation60 + $0x248] sm:$0xff]
        %v7196 = vld [vmem:[#allocation60 + $0x250] sm:$0xff]
        %v7197 = vld [vmem:[#allocation60 + $0x258] sm:$0xff]
        %v7198 = vld [vmem:[#allocation60 + $0x260] sm:$0xff]
        %v7199 = vld [vmem:[#allocation60 + $0x268] sm:$0xff]
        %v7200 = vld [vmem:[#allocation60 + $0x270] sm:$0xff]
        %v7201 = vld [vmem:[#allocation60 + $0x278] sm:$0xff]
        %v7202 = vld [vmem:[#allocation60 + $0x280] sm:$0xff]
        %v7203 = vld [vmem:[#allocation60 + $0x288] sm:$0xff]
        %v7204 = vld [vmem:[#allocation60 + $0x290] sm:$0xff]
        %v7205 = vld [vmem:[#allocation60 + $0x298] sm:$0xff]
        %v7206 = vld [vmem:[#allocation60 + $0x2a0] sm:$0xff]
        %v7207 = vld [vmem:[#allocation60 + $0x2a8] sm:$0xff]
        %v7208 = vld [vmem:[#allocation60 + $0x2b0] sm:$0xff]
        %v7209 = vld [vmem:[#allocation60 + $0x2b8] sm:$0xff]
        %v7210 = vld [vmem:[#allocation60 + $0x2c0] sm:$0xff]
        %v7211 = vld [vmem:[#allocation60 + $0x2c8] sm:$0xff]
        %v7212 = vld [vmem:[#allocation60 + $0x2d0] sm:$0xff]
        %v7213 = vld [vmem:[#allocation60 + $0x2d8] sm:$0xff]
        %v7214 = vld [vmem:[#allocation60 + $0x2e0] sm:$0xff]
        %v7215 = vld [vmem:[#allocation60 + $0x2e8] sm:$0xff]
        %v7216 = vld [vmem:[#allocation60 + $0x2f0] sm:$0xff]
        %v7217 = vld [vmem:[#allocation60 + $0x2f8] sm:$0xff]
        %v7218 = vld [vmem:[#allocation60 + $0x300] sm:$0xff]
        %v7219 = vld [vmem:[#allocation60 + $0x308] sm:$0xff]
        %v7220 = vld [vmem:[#allocation60 + $0x310] sm:$0xff]
        %v7221 = vld [vmem:[#allocation60 + $0x318] sm:$0xff]
        %v7222 = vld [vmem:[#allocation60 + $0x320] sm:$0xff]
        %v7223 = vld [vmem:[#allocation60 + $0x328] sm:$0xff]
        %v7224 = vld [vmem:[#allocation60 + $0x330] sm:$0xff]
        %v7225 = vld [vmem:[#allocation60 + $0x338] sm:$0xff]
        %v7226 = vld [vmem:[#allocation60 + $0x340] sm:$0xff]
        %v7227 = vld [vmem:[#allocation60 + $0x348] sm:$0xff]
        %v7228 = vld [vmem:[#allocation60 + $0x350] sm:$0xff]
        %v7229 = vld [vmem:[#allocation60 + $0x358] sm:$0xff]
        %v7230 = vld [vmem:[#allocation60 + $0x360] sm:$0xff]
        %v7231 = vld [vmem:[#allocation60 + $0x368] sm:$0xff]
        %v7232 = vld [vmem:[#allocation60 + $0x370] sm:$0xff]
        %v7233 = vld [vmem:[#allocation60 + $0x378] sm:$0xff]
        %v7234 = vld [vmem:[#allocation60 + $0x380] sm:$0xff]
        %v7235 = vld [vmem:[#allocation60 + $0x388] sm:$0xff]
        %v7236 = vld [vmem:[#allocation60 + $0x390] sm:$0xff]
        %v7237 = vld [vmem:[#allocation60 + $0x398] sm:$0xff]
        %v7238 = vld [vmem:[#allocation60 + $0x3a0] sm:$0xff]
        %v7239 = vld [vmem:[#allocation60 + $0x3a8] sm:$0xff]
        %v7240 = vld [vmem:[#allocation60 + $0x3b0] sm:$0xff]
        %v7241 = vld [vmem:[#allocation60 + $0x3b8] sm:$0xff]
        %v7242 = vld [vmem:[#allocation60 + $0x3c0] sm:$0xff]
        %v7243 = vld [vmem:[#allocation60 + $0x3c8] sm:$0xff]
        %v7244 = vld [vmem:[#allocation60 + $0x3d0] sm:$0xff]
        %v7245 = vld [vmem:[#allocation60 + $0x3d8] sm:$0xff]
        %v7246 = vld [vmem:[#allocation60 + $0x3e0] sm:$0xff]
        %v7247 = vld [vmem:[#allocation60 + $0x3e8] sm:$0xff]
        %v7248 = vld [vmem:[#allocation60 + $0x3f0] sm:$0xff]
        %v7249 = vld [vmem:[#allocation60 + $0x3f8] sm:$0xff]
        %v7250 = vld [vmem:[%s97] sm:$0x77]
        %v7251 = vld [vmem:[%s97 + $0x8] sm:$0x77]
        %7254 = vst [vmem:[#allocation1] ss:$2 sm:$0xff] %v7250
        %s7255 = scalar_lea.vmem [#allocation1], 16
        %7256 = vst [vmem:[%s7255] ss:$2 sm:$0xff] %v7251
        %v7257 = vld.sshfl [vmem:[#allocation1] sm:$0xff pattern:$0x75316420]
        %v7258 = vld.sshfl [vmem:[#allocation1 + $0x8] sm:$0xff pattern:$0x75316420]
        %v7259 = vld.sshfl [vmem:[#allocation1 + $0x10] sm:$0xff pattern:$0x75316420]
        %v7260 = vld.sshfl [vmem:[#allocation1 + $0x18] sm:$0xff pattern:$0x75316420]
        %v7261 = vsel %vm3161, %v7257, 0
        %v7263 = vsel %vm3161, %v7258, 0
        %v7265 = vsel %vm3161, %v7259, 0
        %v7267 = vsel %vm3161, %v7260, 0
        %7269 = vmatpush.msra.mxu0 0.0
        %7270 = vmatpush.msra.mxu0 0.0
        %7271 = vmatpush.msra.mxu0 0.0
        %7272 = vmatpush.msra.mxu0 0.0
        %7273 = vmatpush.msra.mxu0 0.0
        %7274 = vmatpush.msra.mxu0 0.0
        %7275 = vmatpush.msra.mxu0 0.0
        %7276 = vmatpush.msra.mxu0 0.0
        %7277 = vmatpush.msra.mxu0 0.0
        %7278 = vmatpush.msra.mxu0 0.0
        %7279 = vmatpush.msra.mxu0 0.0
        %7280 = vmatpush.msra.mxu0 0.0
        %7281 = vmatpush.msra.mxu0 0.0
        %7282 = vmatpush.msra.mxu0 0.0
        %7283 = vmatpush.msra.mxu0 0.0
        %7284 = vmatpush.msra.mxu0 %v7261
        %7285 = vmatmul.f32.gmra.mxu0 %v3159
        %v7286 = vpop.f32.mrf.mxu0
        %v7287 = vadd.f32 0.0, %v7286
        %7288 = vdwg.mxu0
        %7289 = vmatpush.msra.mxu0 0.0
        %7290 = vmatpush.msra.mxu0 0.0
        %7291 = vmatpush.msra.mxu0 0.0
        %7292 = vmatpush.msra.mxu0 0.0
        %7293 = vmatpush.msra.mxu0 0.0
        %7294 = vmatpush.msra.mxu0 0.0
        %7295 = vmatpush.msra.mxu0 0.0
        %7296 = vmatpush.msra.mxu0 0.0
        %7297 = vmatpush.msra.mxu0 0.0
        %7298 = vmatpush.msra.mxu0 0.0
        %7299 = vmatpush.msra.mxu0 0.0
        %7300 = vmatpush.msra.mxu0 0.0
        %7301 = vmatpush.msra.mxu0 0.0
        %7302 = vmatpush.msra.mxu0 0.0
        %7303 = vmatpush.msra.mxu0 0.0
        %7304 = vmatpush.msra.mxu0 %v7263
        %7305 = vmatmul.f32.gmra.mxu0 %v3159
        %v7306 = vpop.f32.mrf.mxu0
        %v7307 = vadd.f32 0.0, %v7306
        %7308 = vdwg.mxu0
        %7309 = vmatpush.msra.mxu0 0.0
        %7310 = vmatpush.msra.mxu0 0.0
        %7311 = vmatpush.msra.mxu0 0.0
        %7312 = vmatpush.msra.mxu0 0.0
        %7313 = vmatpush.msra.mxu0 0.0
        %7314 = vmatpush.msra.mxu0 0.0
        %7315 = vmatpush.msra.mxu0 0.0
        %7316 = vmatpush.msra.mxu0 0.0
        %7317 = vmatpush.msra.mxu0 0.0
        %7318 = vmatpush.msra.mxu0 0.0
        %7319 = vmatpush.msra.mxu0 0.0
        %7320 = vmatpush.msra.mxu0 0.0
        %7321 = vmatpush.msra.mxu0 0.0
        %7322 = vmatpush.msra.mxu0 0.0
        %7323 = vmatpush.msra.mxu0 0.0
        %7324 = vmatpush.msra.mxu0 %v7265
        %7325 = vmatmul.f32.gmra.mxu0 %v3159
        %v7326 = vpop.f32.mrf.mxu0
        %v7327 = vadd.f32 0.0, %v7326
        %7328 = vdwg.mxu0
        %7329 = vmatpush.msra.mxu0 0.0
        %7330 = vmatpush.msra.mxu0 0.0
        %7331 = vmatpush.msra.mxu0 0.0
        %7332 = vmatpush.msra.mxu0 0.0
        %7333 = vmatpush.msra.mxu0 0.0
        %7334 = vmatpush.msra.mxu0 0.0
        %7335 = vmatpush.msra.mxu0 0.0
        %7336 = vmatpush.msra.mxu0 0.0
        %7337 = vmatpush.msra.mxu0 0.0
        %7338 = vmatpush.msra.mxu0 0.0
        %7339 = vmatpush.msra.mxu0 0.0
        %7340 = vmatpush.msra.mxu0 0.0
        %7341 = vmatpush.msra.mxu0 0.0
        %7342 = vmatpush.msra.mxu0 0.0
        %7343 = vmatpush.msra.mxu0 0.0
        %7344 = vmatpush.msra.mxu0 %v7267
        %7345 = vmatmul.f32.gmra.mxu0 %v3159
        %v7346 = vpop.f32.mrf.mxu0
        %v7347 = vadd.f32 0.0, %v7346
        %7348 = vdwg.mxu0
        %v7477 = vunpack.c.l.b16 %v7122
        %v7478 = vunpack.c.h.b16 %v7122
        %v7479 = vunpack.c.l.b16 %v7123
        %v7480 = vunpack.c.h.b16 %v7123
        %v7481 = vunpack.c.l.b16 %v7124
        %v7482 = vunpack.c.h.b16 %v7124
        %v7483 = vunpack.c.l.b16 %v7125
        %v7484 = vunpack.c.h.b16 %v7125
        %v7485 = vunpack.c.l.b16 %v7126
        %v7486 = vunpack.c.h.b16 %v7126
        %v7487 = vunpack.c.l.b16 %v7127
        %v7488 = vunpack.c.h.b16 %v7127
        %v7489 = vunpack.c.l.b16 %v7128
        %v7490 = vunpack.c.h.b16 %v7128
        %v7491 = vunpack.c.l.b16 %v7129
        %v7492 = vunpack.c.h.b16 %v7129
        %v7493 = vunpack.c.l.b16 %v7130
        %v7494 = vunpack.c.h.b16 %v7130
        %v7495 = vunpack.c.l.b16 %v7131
        %v7496 = vunpack.c.h.b16 %v7131
        %v7497 = vunpack.c.l.b16 %v7132
        %v7498 = vunpack.c.h.b16 %v7132
        %v7499 = vunpack.c.l.b16 %v7133
        %v7500 = vunpack.c.h.b16 %v7133
        %v7501 = vunpack.c.l.b16 %v7134
        %v7502 = vunpack.c.h.b16 %v7134
        %v7503 = vunpack.c.l.b16 %v7135
        %v7504 = vunpack.c.h.b16 %v7135
        %v7505 = vunpack.c.l.b16 %v7136
        %v7506 = vunpack.c.h.b16 %v7136
        %v7507 = vunpack.c.l.b16 %v7137
        %v7508 = vunpack.c.h.b16 %v7137
        %v7509 = vunpack.c.l.b16 %v7138
        %v7510 = vunpack.c.h.b16 %v7138
        %v7511 = vunpack.c.l.b16 %v7139
        %v7512 = vunpack.c.h.b16 %v7139
        %v7513 = vunpack.c.l.b16 %v7140
        %v7514 = vunpack.c.h.b16 %v7140
        %v7515 = vunpack.c.l.b16 %v7141
        %v7516 = vunpack.c.h.b16 %v7141
        %v7517 = vunpack.c.l.b16 %v7142
        %v7518 = vunpack.c.h.b16 %v7142
        %v7519 = vunpack.c.l.b16 %v7143
        %v7520 = vunpack.c.h.b16 %v7143
        %v7521 = vunpack.c.l.b16 %v7144
        %v7522 = vunpack.c.h.b16 %v7144
        %v7523 = vunpack.c.l.b16 %v7145
        %v7524 = vunpack.c.h.b16 %v7145
        %v7525 = vunpack.c.l.b16 %v7146
        %v7526 = vunpack.c.h.b16 %v7146
        %v7527 = vunpack.c.l.b16 %v7147
        %v7528 = vunpack.c.h.b16 %v7147
        %v7529 = vunpack.c.l.b16 %v7148
        %v7530 = vunpack.c.h.b16 %v7148
        %v7531 = vunpack.c.l.b16 %v7149
        %v7532 = vunpack.c.h.b16 %v7149
        %v7533 = vunpack.c.l.b16 %v7150
        %v7534 = vunpack.c.h.b16 %v7150
        %v7535 = vunpack.c.l.b16 %v7151
        %v7536 = vunpack.c.h.b16 %v7151
        %v7537 = vunpack.c.l.b16 %v7152
        %v7538 = vunpack.c.h.b16 %v7152
        %v7539 = vunpack.c.l.b16 %v7153
        %v7540 = vunpack.c.h.b16 %v7153
        %v7541 = vunpack.c.l.b16 %v7154
        %v7542 = vunpack.c.h.b16 %v7154
        %v7543 = vunpack.c.l.b16 %v7155
        %v7544 = vunpack.c.h.b16 %v7155
        %v7545 = vunpack.c.l.b16 %v7156
        %v7546 = vunpack.c.h.b16 %v7156
        %v7547 = vunpack.c.l.b16 %v7157
        %v7548 = vunpack.c.h.b16 %v7157
        %v7549 = vunpack.c.l.b16 %v7158
        %v7550 = vunpack.c.h.b16 %v7158
        %v7551 = vunpack.c.l.b16 %v7159
        %v7552 = vunpack.c.h.b16 %v7159
        %v7553 = vunpack.c.l.b16 %v7160
        %v7554 = vunpack.c.h.b16 %v7160
        %v7555 = vunpack.c.l.b16 %v7161
        %v7556 = vunpack.c.h.b16 %v7161
        %v7557 = vunpack.c.l.b16 %v7162
        %v7558 = vunpack.c.h.b16 %v7162
        %v7559 = vunpack.c.l.b16 %v7163
        %v7560 = vunpack.c.h.b16 %v7163
        %v7561 = vunpack.c.l.b16 %v7164
        %v7562 = vunpack.c.h.b16 %v7164
        %v7563 = vunpack.c.l.b16 %v7165
        %v7564 = vunpack.c.h.b16 %v7165
        %v7565 = vunpack.c.l.b16 %v7166
        %v7566 = vunpack.c.h.b16 %v7166
        %v7567 = vunpack.c.l.b16 %v7167
        %v7568 = vunpack.c.h.b16 %v7167
        %v7569 = vunpack.c.l.b16 %v7168
        %v7570 = vunpack.c.h.b16 %v7168
        %v7571 = vunpack.c.l.b16 %v7169
        %v7572 = vunpack.c.h.b16 %v7169
        %v7573 = vunpack.c.l.b16 %v7170
        %v7574 = vunpack.c.h.b16 %v7170
        %v7575 = vunpack.c.l.b16 %v7171
        %v7576 = vunpack.c.h.b16 %v7171
        %v7577 = vunpack.c.l.b16 %v7172
        %v7578 = vunpack.c.h.b16 %v7172
        %v7579 = vunpack.c.l.b16 %v7173
        %v7580 = vunpack.c.h.b16 %v7173
        %v7581 = vunpack.c.l.b16 %v7174
        %v7582 = vunpack.c.h.b16 %v7174
        %v7583 = vunpack.c.l.b16 %v7175
        %v7584 = vunpack.c.h.b16 %v7175
        %v7585 = vunpack.c.l.b16 %v7176
        %v7586 = vunpack.c.h.b16 %v7176
        %v7587 = vunpack.c.l.b16 %v7177
        %v7588 = vunpack.c.h.b16 %v7177
        %v7589 = vunpack.c.l.b16 %v7178
        %v7590 = vunpack.c.h.b16 %v7178
        %v7591 = vunpack.c.l.b16 %v7179
        %v7592 = vunpack.c.h.b16 %v7179
        %v7593 = vunpack.c.l.b16 %v7180
        %v7594 = vunpack.c.h.b16 %v7180
        %v7595 = vunpack.c.l.b16 %v7181
        %v7596 = vunpack.c.h.b16 %v7181
        %v7597 = vunpack.c.l.b16 %v7182
        %v7598 = vunpack.c.h.b16 %v7182
        %v7599 = vunpack.c.l.b16 %v7183
        %v7600 = vunpack.c.h.b16 %v7183
        %v7601 = vunpack.c.l.b16 %v7184
        %v7602 = vunpack.c.h.b16 %v7184
        %v7603 = vunpack.c.l.b16 %v7185
        %v7604 = vunpack.c.h.b16 %v7185
        %v7605 = vunpack.c.l.b16 %v7186
        %v7606 = vunpack.c.h.b16 %v7186
        %v7607 = vunpack.c.l.b16 %v7187
        %v7608 = vunpack.c.h.b16 %v7187
        %v7609 = vunpack.c.l.b16 %v7188
        %v7610 = vunpack.c.h.b16 %v7188
        %v7611 = vunpack.c.l.b16 %v7189
        %v7612 = vunpack.c.h.b16 %v7189
        %v7613 = vunpack.c.l.b16 %v7190
        %v7614 = vunpack.c.h.b16 %v7190
        %v7615 = vunpack.c.l.b16 %v7191
        %v7616 = vunpack.c.h.b16 %v7191
        %v7617 = vunpack.c.l.b16 %v7192
        %v7618 = vunpack.c.h.b16 %v7192
        %v7619 = vunpack.c.l.b16 %v7193
        %v7620 = vunpack.c.h.b16 %v7193
        %v7621 = vunpack.c.l.b16 %v7194
        %v7622 = vunpack.c.h.b16 %v7194
        %v7623 = vunpack.c.l.b16 %v7195
        %v7624 = vunpack.c.h.b16 %v7195
        %v7625 = vunpack.c.l.b16 %v7196
        %v7626 = vunpack.c.h.b16 %v7196
        %v7627 = vunpack.c.l.b16 %v7197
        %v7628 = vunpack.c.h.b16 %v7197
        %v7629 = vunpack.c.l.b16 %v7198
        %v7630 = vunpack.c.h.b16 %v7198
        %v7631 = vunpack.c.l.b16 %v7199
        %v7632 = vunpack.c.h.b16 %v7199
        %v7633 = vunpack.c.l.b16 %v7200
        %v7634 = vunpack.c.h.b16 %v7200
        %v7635 = vunpack.c.l.b16 %v7201
        %v7636 = vunpack.c.h.b16 %v7201
        %v7637 = vunpack.c.l.b16 %v7202
        %v7638 = vunpack.c.h.b16 %v7202
        %v7639 = vunpack.c.l.b16 %v7203
        %v7640 = vunpack.c.h.b16 %v7203
        %v7641 = vunpack.c.l.b16 %v7204
        %v7642 = vunpack.c.h.b16 %v7204
        %v7643 = vunpack.c.l.b16 %v7205
        %v7644 = vunpack.c.h.b16 %v7205
        %v7645 = vunpack.c.l.b16 %v7206
        %v7646 = vunpack.c.h.b16 %v7206
        %v7647 = vunpack.c.l.b16 %v7207
        %v7648 = vunpack.c.h.b16 %v7207
        %v7649 = vunpack.c.l.b16 %v7208
        %v7650 = vunpack.c.h.b16 %v7208
        %v7651 = vunpack.c.l.b16 %v7209
        %v7652 = vunpack.c.h.b16 %v7209
        %v7653 = vunpack.c.l.b16 %v7210
        %v7654 = vunpack.c.h.b16 %v7210
        %v7655 = vunpack.c.l.b16 %v7211
        %v7656 = vunpack.c.h.b16 %v7211
        %v7657 = vunpack.c.l.b16 %v7212
        %v7658 = vunpack.c.h.b16 %v7212
        %v7659 = vunpack.c.l.b16 %v7213
        %v7660 = vunpack.c.h.b16 %v7213
        %v7661 = vunpack.c.l.b16 %v7214
        %v7662 = vunpack.c.h.b16 %v7214
        %v7663 = vunpack.c.l.b16 %v7215
        %v7664 = vunpack.c.h.b16 %v7215
        %v7665 = vunpack.c.l.b16 %v7216
        %v7666 = vunpack.c.h.b16 %v7216
        %v7667 = vunpack.c.l.b16 %v7217
        %v7668 = vunpack.c.h.b16 %v7217
        %v7669 = vunpack.c.l.b16 %v7218
        %v7670 = vunpack.c.h.b16 %v7218
        %v7671 = vunpack.c.l.b16 %v7219
        %v7672 = vunpack.c.h.b16 %v7219
        %v7673 = vunpack.c.l.b16 %v7220
        %v7674 = vunpack.c.h.b16 %v7220
        %v7675 = vunpack.c.l.b16 %v7221
        %v7676 = vunpack.c.h.b16 %v7221
        %v7677 = vunpack.c.l.b16 %v7222
        %v7678 = vunpack.c.h.b16 %v7222
        %v7679 = vunpack.c.l.b16 %v7223
        %v7680 = vunpack.c.h.b16 %v7223
        %v7681 = vunpack.c.l.b16 %v7224
        %v7682 = vunpack.c.h.b16 %v7224
        %v7683 = vunpack.c.l.b16 %v7225
        %v7684 = vunpack.c.h.b16 %v7225
        %v7685 = vunpack.c.l.b16 %v7226
        %v7686 = vunpack.c.h.b16 %v7226
        %v7687 = vunpack.c.l.b16 %v7227
        %v7688 = vunpack.c.h.b16 %v7227
        %v7689 = vunpack.c.l.b16 %v7228
        %v7690 = vunpack.c.h.b16 %v7228
        %v7691 = vunpack.c.l.b16 %v7229
        %v7692 = vunpack.c.h.b16 %v7229
        %v7693 = vunpack.c.l.b16 %v7230
        %v7694 = vunpack.c.h.b16 %v7230
        %v7695 = vunpack.c.l.b16 %v7231
        %v7696 = vunpack.c.h.b16 %v7231
        %v7697 = vunpack.c.l.b16 %v7232
        %v7698 = vunpack.c.h.b16 %v7232
        %v7699 = vunpack.c.l.b16 %v7233
        %v7700 = vunpack.c.h.b16 %v7233
        %v7701 = vunpack.c.l.b16 %v7234
        %v7702 = vunpack.c.h.b16 %v7234
        %v7703 = vunpack.c.l.b16 %v7235
        %v7704 = vunpack.c.h.b16 %v7235
        %v7705 = vunpack.c.l.b16 %v7236
        %v7706 = vunpack.c.h.b16 %v7236
        %v7707 = vunpack.c.l.b16 %v7237
        %v7708 = vunpack.c.h.b16 %v7237
        %v7709 = vunpack.c.l.b16 %v7238
        %v7710 = vunpack.c.h.b16 %v7238
        %v7711 = vunpack.c.l.b16 %v7239
        %v7712 = vunpack.c.h.b16 %v7239
        %v7713 = vunpack.c.l.b16 %v7240
        %v7714 = vunpack.c.h.b16 %v7240
        %v7715 = vunpack.c.l.b16 %v7241
        %v7716 = vunpack.c.h.b16 %v7241
        %v7717 = vunpack.c.l.b16 %v7242
        %v7718 = vunpack.c.h.b16 %v7242
        %v7719 = vunpack.c.l.b16 %v7243
        %v7720 = vunpack.c.h.b16 %v7243
        %v7721 = vunpack.c.l.b16 %v7244
        %v7722 = vunpack.c.h.b16 %v7244
        %v7723 = vunpack.c.l.b16 %v7245
        %v7724 = vunpack.c.h.b16 %v7245
        %v7725 = vunpack.c.l.b16 %v7246
        %v7726 = vunpack.c.h.b16 %v7246
        %v7727 = vunpack.c.l.b16 %v7247
        %v7728 = vunpack.c.h.b16 %v7247
        %v7729 = vunpack.c.l.b16 %v7248
        %v7730 = vunpack.c.h.b16 %v7248
        %v7731 = vunpack.c.l.b16 %v7249
        %v7732 = vunpack.c.h.b16 %v7249
        %v7733 = vpack.c.b16 %v7481, %v7477
        %v7734 = vpack.c.b16 %v7482, %v7478
        %v7735 = vpack.c.b16 %v7483, %v7479
        %v7736 = vpack.c.b16 %v7484, %v7480
        %v7737 = vpack.c.b16 %v7489, %v7485
        %v7738 = vpack.c.b16 %v7490, %v7486
        %v7739 = vpack.c.b16 %v7491, %v7487
        %v7740 = vpack.c.b16 %v7492, %v7488
        %v7741 = vpack.c.b16 %v7497, %v7493
        %v7742 = vpack.c.b16 %v7498, %v7494
        %v7743 = vpack.c.b16 %v7499, %v7495
        %v7744 = vpack.c.b16 %v7500, %v7496
        %v7745 = vpack.c.b16 %v7505, %v7501
        %v7746 = vpack.c.b16 %v7506, %v7502
        %v7747 = vpack.c.b16 %v7507, %v7503
        %v7748 = vpack.c.b16 %v7508, %v7504
        %v7749 = vpack.c.b16 %v7513, %v7509
        %v7750 = vpack.c.b16 %v7514, %v7510
        %v7751 = vpack.c.b16 %v7515, %v7511
        %v7752 = vpack.c.b16 %v7516, %v7512
        %v7753 = vpack.c.b16 %v7521, %v7517
        %v7754 = vpack.c.b16 %v7522, %v7518
        %v7755 = vpack.c.b16 %v7523, %v7519
        %v7756 = vpack.c.b16 %v7524, %v7520
        %v7757 = vpack.c.b16 %v7529, %v7525
        %v7758 = vpack.c.b16 %v7530, %v7526
        %v7759 = vpack.c.b16 %v7531, %v7527
        %v7760 = vpack.c.b16 %v7532, %v7528
        %v7761 = vpack.c.b16 %v7537, %v7533
        %v7762 = vpack.c.b16 %v7538, %v7534
        %v7763 = vpack.c.b16 %v7539, %v7535
        %v7764 = vpack.c.b16 %v7540, %v7536
        %v7765 = vpack.c.b16 %v7545, %v7541
        %v7766 = vpack.c.b16 %v7546, %v7542
        %v7767 = vpack.c.b16 %v7547, %v7543
        %v7768 = vpack.c.b16 %v7548, %v7544
        %v7769 = vpack.c.b16 %v7553, %v7549
        %v7770 = vpack.c.b16 %v7554, %v7550
        %v7771 = vpack.c.b16 %v7555, %v7551
        %v7772 = vpack.c.b16 %v7556, %v7552
        %v7773 = vpack.c.b16 %v7561, %v7557
        %v7774 = vpack.c.b16 %v7562, %v7558
        %v7775 = vpack.c.b16 %v7563, %v7559
        %v7776 = vpack.c.b16 %v7564, %v7560
        %v7777 = vpack.c.b16 %v7569, %v7565
        %v7778 = vpack.c.b16 %v7570, %v7566
        %v7779 = vpack.c.b16 %v7571, %v7567
        %v7780 = vpack.c.b16 %v7572, %v7568
        %v7781 = vpack.c.b16 %v7577, %v7573
        %v7782 = vpack.c.b16 %v7578, %v7574
        %v7783 = vpack.c.b16 %v7579, %v7575
        %v7784 = vpack.c.b16 %v7580, %v7576
        %v7785 = vpack.c.b16 %v7585, %v7581
        %v7786 = vpack.c.b16 %v7586, %v7582
        %v7787 = vpack.c.b16 %v7587, %v7583
        %v7788 = vpack.c.b16 %v7588, %v7584
        %v7789 = vpack.c.b16 %v7593, %v7589
        %v7790 = vpack.c.b16 %v7594, %v7590
        %v7791 = vpack.c.b16 %v7595, %v7591
        %v7792 = vpack.c.b16 %v7596, %v7592
        %v7793 = vpack.c.b16 %v7601, %v7597
        %v7794 = vpack.c.b16 %v7602, %v7598
        %v7795 = vpack.c.b16 %v7603, %v7599
        %v7796 = vpack.c.b16 %v7604, %v7600
        %v7797 = vpack.c.b16 %v7609, %v7605
        %v7798 = vpack.c.b16 %v7610, %v7606
        %v7799 = vpack.c.b16 %v7611, %v7607
        %v7800 = vpack.c.b16 %v7612, %v7608
        %v7801 = vpack.c.b16 %v7617, %v7613
        %v7802 = vpack.c.b16 %v7618, %v7614
        %v7803 = vpack.c.b16 %v7619, %v7615
        %v7804 = vpack.c.b16 %v7620, %v7616
        %v7805 = vpack.c.b16 %v7625, %v7621
        %v7806 = vpack.c.b16 %v7626, %v7622
        %v7807 = vpack.c.b16 %v7627, %v7623
        %v7808 = vpack.c.b16 %v7628, %v7624
        %v7809 = vpack.c.b16 %v7633, %v7629
        %v7810 = vpack.c.b16 %v7634, %v7630
        %v7811 = vpack.c.b16 %v7635, %v7631
        %v7812 = vpack.c.b16 %v7636, %v7632
        %v7813 = vpack.c.b16 %v7641, %v7637
        %v7814 = vpack.c.b16 %v7642, %v7638
        %v7815 = vpack.c.b16 %v7643, %v7639
        %v7816 = vpack.c.b16 %v7644, %v7640
        %v7817 = vpack.c.b16 %v7649, %v7645
        %v7818 = vpack.c.b16 %v7650, %v7646
        %v7819 = vpack.c.b16 %v7651, %v7647
        %v7820 = vpack.c.b16 %v7652, %v7648
        %v7821 = vpack.c.b16 %v7657, %v7653
        %v7822 = vpack.c.b16 %v7658, %v7654
        %v7823 = vpack.c.b16 %v7659, %v7655
        %v7824 = vpack.c.b16 %v7660, %v7656
        %v7825 = vpack.c.b16 %v7665, %v7661
        %v7826 = vpack.c.b16 %v7666, %v7662
        %v7827 = vpack.c.b16 %v7667, %v7663
        %v7828 = vpack.c.b16 %v7668, %v7664
        %v7829 = vpack.c.b16 %v7673, %v7669
        %v7830 = vpack.c.b16 %v7674, %v7670
        %v7831 = vpack.c.b16 %v7675, %v7671
        %v7832 = vpack.c.b16 %v7676, %v7672
        %v7833 = vpack.c.b16 %v7681, %v7677
        %v7834 = vpack.c.b16 %v7682, %v7678
        %v7835 = vpack.c.b16 %v7683, %v7679
        %v7836 = vpack.c.b16 %v7684, %v7680
        %v7837 = vpack.c.b16 %v7689, %v7685
        %v7838 = vpack.c.b16 %v7690, %v7686
        %v7839 = vpack.c.b16 %v7691, %v7687
        %v7840 = vpack.c.b16 %v7692, %v7688
        %v7841 = vpack.c.b16 %v7697, %v7693
        %v7842 = vpack.c.b16 %v7698, %v7694
        %v7843 = vpack.c.b16 %v7699, %v7695
        %v7844 = vpack.c.b16 %v7700, %v7696
        %v7845 = vpack.c.b16 %v7705, %v7701
        %v7846 = vpack.c.b16 %v7706, %v7702
        %v7847 = vpack.c.b16 %v7707, %v7703
        %v7848 = vpack.c.b16 %v7708, %v7704
        %v7849 = vpack.c.b16 %v7713, %v7709
        %v7850 = vpack.c.b16 %v7714, %v7710
        %v7851 = vpack.c.b16 %v7715, %v7711
        %v7852 = vpack.c.b16 %v7716, %v7712
        %v7853 = vpack.c.b16 %v7721, %v7717
        %v7854 = vpack.c.b16 %v7722, %v7718
        %v7855 = vpack.c.b16 %v7723, %v7719
        %v7856 = vpack.c.b16 %v7724, %v7720
        %v7857 = vpack.c.b16 %v7729, %v7725
        %v7858 = vpack.c.b16 %v7730, %v7726
        %v7859 = vpack.c.b16 %v7731, %v7727
        %v7860 = vpack.c.b16 %v7732, %v7728
        %7989 = vmatpush.bf16.msra.mxu0 %v7761
        %7990 = vmatpush.bf16.msra.mxu0 %v7757
        %7991 = vmatpush.bf16.msra.mxu0 %v7753
        %7992 = vmatpush.bf16.msra.mxu0 %v7749
        %7993 = vmatpush.bf16.msra.mxu0 %v7745
        %7994 = vmatpush.bf16.msra.mxu0 %v7741
        %7995 = vmatpush.bf16.msra.mxu0 %v7737
        %7996 = vmatpush.bf16.msra.mxu0 %v7733
        %7997 = vmatmul.bf16.gmra.mxu0 %v7118
        %v7998 = vpop.f32.mrf.mxu0
        %v7999 = vadd.f32 %v7287, %v7998
        %v8000 = vpop.f32.mrf.mxu0
        %8001 = vdwg.mxu0
        %8002 = vmatpush.bf16.msra.mxu0 %v7793
        %8003 = vmatpush.bf16.msra.mxu0 %v7789
        %8004 = vmatpush.bf16.msra.mxu0 %v7785
        %8005 = vmatpush.bf16.msra.mxu0 %v7781
        %8006 = vmatpush.bf16.msra.mxu0 %v7777
        %8007 = vmatpush.bf16.msra.mxu0 %v7773
        %8008 = vmatpush.bf16.msra.mxu0 %v7769
        %8009 = vmatpush.bf16.msra.mxu0 %v7765
        %8010 = vmatmul.bf16.gmra.mxu0 %v7119
        %v8011 = vpop.f32.mrf.mxu0
        %v8012 = vadd.f32 %v7999, %v8011
        %v8013 = vpop.f32.mrf.mxu0
        %8014 = vdwg.mxu0
        %8015 = vmatpush.bf16.msra.mxu0 %v7825
        %8016 = vmatpush.bf16.msra.mxu0 %v7821
        %8017 = vmatpush.bf16.msra.mxu0 %v7817
        %8018 = vmatpush.bf16.msra.mxu0 %v7813
        %8019 = vmatpush.bf16.msra.mxu0 %v7809
        %8020 = vmatpush.bf16.msra.mxu0 %v7805
        %8021 = vmatpush.bf16.msra.mxu0 %v7801
        %8022 = vmatpush.bf16.msra.mxu0 %v7797
        %8023 = vmatmul.bf16.gmra.mxu0 %v7120
        %v8024 = vpop.f32.mrf.mxu0
        %v8025 = vadd.f32 %v8012, %v8024
        %v8026 = vpop.f32.mrf.mxu0
        %8027 = vdwg.mxu0
        %8028 = vmatpush.bf16.msra.mxu0 %v7857
        %8029 = vmatpush.bf16.msra.mxu0 %v7853
        %8030 = vmatpush.bf16.msra.mxu0 %v7849
        %8031 = vmatpush.bf16.msra.mxu0 %v7845
        %8032 = vmatpush.bf16.msra.mxu0 %v7841
        %8033 = vmatpush.bf16.msra.mxu0 %v7837
        %8034 = vmatpush.bf16.msra.mxu0 %v7833
        %8035 = vmatpush.bf16.msra.mxu0 %v7829
        %8036 = vmatmul.bf16.gmra.mxu0 %v7121
        %v8037 = vpop.f32.mrf.mxu0
        %v8038 = vadd.f32 %v8025, %v8037
        %v8039 = vpop.f32.mrf.mxu0
        %8040 = vdwg.mxu0
        %8041 = vmatpush.bf16.msra.mxu0 %v7762
        %8042 = vmatpush.bf16.msra.mxu0 %v7758
        %8043 = vmatpush.bf16.msra.mxu0 %v7754
        %8044 = vmatpush.bf16.msra.mxu0 %v7750
        %8045 = vmatpush.bf16.msra.mxu0 %v7746
        %8046 = vmatpush.bf16.msra.mxu0 %v7742
        %8047 = vmatpush.bf16.msra.mxu0 %v7738
        %8048 = vmatpush.bf16.msra.mxu0 %v7734
        %8049 = vmatmul.bf16.gmra.mxu0 %v7118
        %v8050 = vpop.f32.mrf.mxu0
        %v8051 = vadd.f32 %v7307, %v8050
        %v8052 = vpop.f32.mrf.mxu0
        %8053 = vdwg.mxu0
        %8054 = vmatpush.bf16.msra.mxu0 %v7794
        %8055 = vmatpush.bf16.msra.mxu0 %v7790
        %8056 = vmatpush.bf16.msra.mxu0 %v7786
        %8057 = vmatpush.bf16.msra.mxu0 %v7782
        %8058 = vmatpush.bf16.msra.mxu0 %v7778
        %8059 = vmatpush.bf16.msra.mxu0 %v7774
        %8060 = vmatpush.bf16.msra.mxu0 %v7770
        %8061 = vmatpush.bf16.msra.mxu0 %v7766
        %8062 = vmatmul.bf16.gmra.mxu0 %v7119
        %v8063 = vpop.f32.mrf.mxu0
        %v8064 = vadd.f32 %v8051, %v8063
        %v8065 = vpop.f32.mrf.mxu0
        %8066 = vdwg.mxu0
        %8067 = vmatpush.bf16.msra.mxu0 %v7826
        %8068 = vmatpush.bf16.msra.mxu0 %v7822
        %8069 = vmatpush.bf16.msra.mxu0 %v7818
        %8070 = vmatpush.bf16.msra.mxu0 %v7814
        %8071 = vmatpush.bf16.msra.mxu0 %v7810
        %8072 = vmatpush.bf16.msra.mxu0 %v7806
        %8073 = vmatpush.bf16.msra.mxu0 %v7802
        %8074 = vmatpush.bf16.msra.mxu0 %v7798
        %8075 = vmatmul.bf16.gmra.mxu0 %v7120
        %v8076 = vpop.f32.mrf.mxu0
        %v8077 = vadd.f32 %v8064, %v8076
        %v8078 = vpop.f32.mrf.mxu0
        %8079 = vdwg.mxu0
        %8080 = vmatpush.bf16.msra.mxu0 %v7858
        %8081 = vmatpush.bf16.msra.mxu0 %v7854
        %8082 = vmatpush.bf16.msra.mxu0 %v7850
        %8083 = vmatpush.bf16.msra.mxu0 %v7846
        %8084 = vmatpush.bf16.msra.mxu0 %v7842
        %8085 = vmatpush.bf16.msra.mxu0 %v7838
        %8086 = vmatpush.bf16.msra.mxu0 %v7834
        %8087 = vmatpush.bf16.msra.mxu0 %v7830
        %8088 = vmatmul.bf16.gmra.mxu0 %v7121
        %v8089 = vpop.f32.mrf.mxu0
        %v8090 = vadd.f32 %v8077, %v8089
        %v8091 = vpop.f32.mrf.mxu0
        %8092 = vdwg.mxu0
        %8093 = vmatpush.bf16.msra.mxu0 %v7763
        %8094 = vmatpush.bf16.msra.mxu0 %v7759
        %8095 = vmatpush.bf16.msra.mxu0 %v7755
        %8096 = vmatpush.bf16.msra.mxu0 %v7751
        %8097 = vmatpush.bf16.msra.mxu0 %v7747
        %8098 = vmatpush.bf16.msra.mxu0 %v7743
        %8099 = vmatpush.bf16.msra.mxu0 %v7739
        %8100 = vmatpush.bf16.msra.mxu0 %v7735
        %8101 = vmatmul.bf16.gmra.mxu0 %v7118
        %v8102 = vpop.f32.mrf.mxu0
        %v8103 = vadd.f32 %v7327, %v8102
        %v8104 = vpop.f32.mrf.mxu0
        %8105 = vdwg.mxu0
        %8106 = vmatpush.bf16.msra.mxu0 %v7795
        %8107 = vmatpush.bf16.msra.mxu0 %v7791
        %8108 = vmatpush.bf16.msra.mxu0 %v7787
        %8109 = vmatpush.bf16.msra.mxu0 %v7783
        %8110 = vmatpush.bf16.msra.mxu0 %v7779
        %8111 = vmatpush.bf16.msra.mxu0 %v7775
        %8112 = vmatpush.bf16.msra.mxu0 %v7771
        %8113 = vmatpush.bf16.msra.mxu0 %v7767
        %8114 = vmatmul.bf16.gmra.mxu0 %v7119
        %v8115 = vpop.f32.mrf.mxu0
        %v8116 = vadd.f32 %v8103, %v8115
        %v8117 = vpop.f32.mrf.mxu0
        %8118 = vdwg.mxu0
        %8119 = vmatpush.bf16.msra.mxu0 %v7827
        %8120 = vmatpush.bf16.msra.mxu0 %v7823
        %8121 = vmatpush.bf16.msra.mxu0 %v7819
        %8122 = vmatpush.bf16.msra.mxu0 %v7815
        %8123 = vmatpush.bf16.msra.mxu0 %v7811
        %8124 = vmatpush.bf16.msra.mxu0 %v7807
        %8125 = vmatpush.bf16.msra.mxu0 %v7803
        %8126 = vmatpush.bf16.msra.mxu0 %v7799
        %8127 = vmatmul.bf16.gmra.mxu0 %v7120
        %v8128 = vpop.f32.mrf.mxu0
        %v8129 = vadd.f32 %v8116, %v8128
        %v8130 = vpop.f32.mrf.mxu0
        %8131 = vdwg.mxu0
        %8132 = vmatpush.bf16.msra.mxu0 %v7859
        %8133 = vmatpush.bf16.msra.mxu0 %v7855
        %8134 = vmatpush.bf16.msra.mxu0 %v7851
        %8135 = vmatpush.bf16.msra.mxu0 %v7847
        %8136 = vmatpush.bf16.msra.mxu0 %v7843
        %8137 = vmatpush.bf16.msra.mxu0 %v7839
        %8138 = vmatpush.bf16.msra.mxu0 %v7835
        %8139 = vmatpush.bf16.msra.mxu0 %v7831
        %8140 = vmatmul.bf16.gmra.mxu0 %v7121
        %v8141 = vpop.f32.mrf.mxu0
        %v8142 = vadd.f32 %v8129, %v8141
        %v8143 = vpop.f32.mrf.mxu0
        %8144 = vdwg.mxu0
        %8145 = vmatpush.bf16.msra.mxu0 %v7764
        %8146 = vmatpush.bf16.msra.mxu0 %v7760
        %8147 = vmatpush.bf16.msra.mxu0 %v7756
        %8148 = vmatpush.bf16.msra.mxu0 %v7752
        %8149 = vmatpush.bf16.msra.mxu0 %v7748
        %8150 = vmatpush.bf16.msra.mxu0 %v7744
        %8151 = vmatpush.bf16.msra.mxu0 %v7740
        %8152 = vmatpush.bf16.msra.mxu0 %v7736
        %8153 = vmatmul.bf16.gmra.mxu0 %v7118
        %v8154 = vpop.f32.mrf.mxu0
        %v8155 = vadd.f32 %v7347, %v8154
        %v8156 = vpop.f32.mrf.mxu0
        %8157 = vdwg.mxu0
        %8158 = vmatpush.bf16.msra.mxu0 %v7796
        %8159 = vmatpush.bf16.msra.mxu0 %v7792
        %8160 = vmatpush.bf16.msra.mxu0 %v7788
        %8161 = vmatpush.bf16.msra.mxu0 %v7784
        %8162 = vmatpush.bf16.msra.mxu0 %v7780
        %8163 = vmatpush.bf16.msra.mxu0 %v7776
        %8164 = vmatpush.bf16.msra.mxu0 %v7772
        %8165 = vmatpush.bf16.msra.mxu0 %v7768
        %8166 = vmatmul.bf16.gmra.mxu0 %v7119
        %v8167 = vpop.f32.mrf.mxu0
        %v8168 = vadd.f32 %v8155, %v8167
        %v8169 = vpop.f32.mrf.mxu0
        %8170 = vdwg.mxu0
        %8171 = vmatpush.bf16.msra.mxu0 %v7828
        %8172 = vmatpush.bf16.msra.mxu0 %v7824
        %8173 = vmatpush.bf16.msra.mxu0 %v7820
        %8174 = vmatpush.bf16.msra.mxu0 %v7816
        %8175 = vmatpush.bf16.msra.mxu0 %v7812
        %8176 = vmatpush.bf16.msra.mxu0 %v7808
        %8177 = vmatpush.bf16.msra.mxu0 %v7804
        %8178 = vmatpush.bf16.msra.mxu0 %v7800
        %8179 = vmatmul.bf16.gmra.mxu0 %v7120
        %v8180 = vpop.f32.mrf.mxu0
        %v8181 = vadd.f32 %v8168, %v8180
        %v8182 = vpop.f32.mrf.mxu0
        %8183 = vdwg.mxu0
        %8184 = vmatpush.bf16.msra.mxu0 %v7860
        %8185 = vmatpush.bf16.msra.mxu0 %v7856
        %8186 = vmatpush.bf16.msra.mxu0 %v7852
        %8187 = vmatpush.bf16.msra.mxu0 %v7848
        %8188 = vmatpush.bf16.msra.mxu0 %v7844
        %8189 = vmatpush.bf16.msra.mxu0 %v7840
        %8190 = vmatpush.bf16.msra.mxu0 %v7836
        %8191 = vmatpush.bf16.msra.mxu0 %v7832
        %8192 = vmatmul.bf16.gmra.mxu0 %v7121
        %v8193 = vpop.f32.mrf.mxu0
        %v8194 = vadd.f32 %v8181, %v8193
        %v8195 = vpop.f32.mrf.mxu0
        %8196 = vdwg.mxu0
        %v8197 = vld [vmem:[%s99] sm:$0xf]
        %v8199 = vperm.slane %v8197, 0
        %v8200 = vperm.slane %v8197, 1
        %v8201 = vperm.slane %v8197, 2
        %v8202 = vperm.slane %v8197, 3
        %v8207 = vadd.f32 %v8038, %v8199
        %v8208 = vadd.f32 %v8090, %v8200
        %v8209 = vadd.f32 %v8142, %v8201
        %v8210 = vadd.f32 %v8194, %v8202
        %v8211 = vmax.f32 %v8207, 0.0
        %v8212 = vmax.f32 %v8208, 0.0
        %v8213 = vmax.f32 %v8209, 0.0
        %v8214 = vmax.f32 %v8210, 0.0
        %v8215 = vpack.c.bf16 %v8211, %v8211
        %v8216 = vpack.c.bf16 %v8212, %v8212
        %v8217 = vpack.c.bf16 %v8213, %v8213
        %v8218 = vpack.c.bf16 %v8214, %v8214
        %v8219 = vld [vmem:[#allocation61] sm:$0xff]
        %v8220 = vld [vmem:[#allocation61 + $0x8] sm:$0xff]
        %v8221 = vld [vmem:[#allocation61 + $0x10] sm:$0xff]
        %v8222 = vld [vmem:[#allocation61 + $0x18] sm:$0xff]
        %v8223 = vld [vmem:[#allocation61 + $0x20] sm:$0xff]
        %v8224 = vld [vmem:[#allocation61 + $0x28] sm:$0xff]
        %v8225 = vld [vmem:[#allocation61 + $0x30] sm:$0xff]
        %v8226 = vld [vmem:[#allocation61 + $0x38] sm:$0xff]
        %v8227 = vld [vmem:[#allocation61 + $0x40] sm:$0xff]
        %v8228 = vld [vmem:[#allocation61 + $0x48] sm:$0xff]
        %v8229 = vld [vmem:[#allocation61 + $0x50] sm:$0xff]
        %v8230 = vld [vmem:[#allocation61 + $0x58] sm:$0xff]
        %v8231 = vld [vmem:[#allocation61 + $0x60] sm:$0xff]
        %v8232 = vld [vmem:[#allocation61 + $0x68] sm:$0xff]
        %v8233 = vld [vmem:[#allocation61 + $0x70] sm:$0xff]
        %v8234 = vld [vmem:[#allocation61 + $0x78] sm:$0xff]
        %v8235 = vld [vmem:[#allocation61 + $0x80] sm:$0xff]
        %v8236 = vld [vmem:[#allocation61 + $0x88] sm:$0xff]
        %v8237 = vld [vmem:[#allocation61 + $0x90] sm:$0xff]
        %v8238 = vld [vmem:[#allocation61 + $0x98] sm:$0xff]
        %v8239 = vld [vmem:[#allocation61 + $0xa0] sm:$0xff]
        %v8240 = vld [vmem:[#allocation61 + $0xa8] sm:$0xff]
        %v8241 = vld [vmem:[#allocation61 + $0xb0] sm:$0xff]
        %v8242 = vld [vmem:[#allocation61 + $0xb8] sm:$0xff]
        %v8243 = vld [vmem:[#allocation61 + $0xc0] sm:$0xff]
        %v8244 = vld [vmem:[#allocation61 + $0xc8] sm:$0xff]
        %v8245 = vld [vmem:[#allocation61 + $0xd0] sm:$0xff]
        %v8246 = vld [vmem:[#allocation61 + $0xd8] sm:$0xff]
        %v8247 = vld [vmem:[#allocation61 + $0xe0] sm:$0xff]
        %v8248 = vld [vmem:[#allocation61 + $0xe8] sm:$0xff]
        %v8249 = vld [vmem:[#allocation61 + $0xf0] sm:$0xff]
        %v8250 = vld [vmem:[#allocation61 + $0xf8] sm:$0xff]
        %v8251 = vld [vmem:[#allocation61 + $0x100] sm:$0xff]
        %v8252 = vld [vmem:[#allocation61 + $0x108] sm:$0xff]
        %v8253 = vld [vmem:[#allocation61 + $0x110] sm:$0xff]
        %v8254 = vld [vmem:[#allocation61 + $0x118] sm:$0xff]
        %v8255 = vld [vmem:[#allocation61 + $0x120] sm:$0xff]
        %v8256 = vld [vmem:[#allocation61 + $0x128] sm:$0xff]
        %v8257 = vld [vmem:[#allocation61 + $0x130] sm:$0xff]
        %v8258 = vld [vmem:[#allocation61 + $0x138] sm:$0xff]
        %v8259 = vld [vmem:[#allocation61 + $0x140] sm:$0xff]
        %v8260 = vld [vmem:[#allocation61 + $0x148] sm:$0xff]
        %v8261 = vld [vmem:[#allocation61 + $0x150] sm:$0xff]
        %v8262 = vld [vmem:[#allocation61 + $0x158] sm:$0xff]
        %v8263 = vld [vmem:[#allocation61 + $0x160] sm:$0xff]
        %v8264 = vld [vmem:[#allocation61 + $0x168] sm:$0xff]
        %v8265 = vld [vmem:[#allocation61 + $0x170] sm:$0xff]
        %v8266 = vld [vmem:[#allocation61 + $0x178] sm:$0xff]
        %v8267 = vld [vmem:[#allocation61 + $0x180] sm:$0xff]
        %v8268 = vld [vmem:[#allocation61 + $0x188] sm:$0xff]
        %v8269 = vld [vmem:[#allocation61 + $0x190] sm:$0xff]
        %v8270 = vld [vmem:[#allocation61 + $0x198] sm:$0xff]
        %v8271 = vld [vmem:[#allocation61 + $0x1a0] sm:$0xff]
        %v8272 = vld [vmem:[#allocation61 + $0x1a8] sm:$0xff]
        %v8273 = vld [vmem:[#allocation61 + $0x1b0] sm:$0xff]
        %v8274 = vld [vmem:[#allocation61 + $0x1b8] sm:$0xff]
        %v8275 = vld [vmem:[#allocation61 + $0x1c0] sm:$0xff]
        %v8276 = vld [vmem:[#allocation61 + $0x1c8] sm:$0xff]
        %v8277 = vld [vmem:[#allocation61 + $0x1d0] sm:$0xff]
        %v8278 = vld [vmem:[#allocation61 + $0x1d8] sm:$0xff]
        %v8279 = vld [vmem:[#allocation61 + $0x1e0] sm:$0xff]
        %v8280 = vld [vmem:[#allocation61 + $0x1e8] sm:$0xff]
        %v8281 = vld [vmem:[#allocation61 + $0x1f0] sm:$0xff]
        %v8282 = vld [vmem:[#allocation61 + $0x1f8] sm:$0xff]
        %v8283 = vld [vmem:[%s103] sm:$0x3]
        %v8348 = vunpack.c.l.b16 %v8219
        %v8349 = vunpack.c.h.b16 %v8219
        %v8350 = vunpack.c.l.b16 %v8220
        %v8351 = vunpack.c.h.b16 %v8220
        %v8352 = vunpack.c.l.b16 %v8221
        %v8353 = vunpack.c.h.b16 %v8221
        %v8354 = vunpack.c.l.b16 %v8222
        %v8355 = vunpack.c.h.b16 %v8222
        %v8356 = vunpack.c.l.b16 %v8223
        %v8357 = vunpack.c.h.b16 %v8223
        %v8358 = vunpack.c.l.b16 %v8224
        %v8359 = vunpack.c.h.b16 %v8224
        %v8360 = vunpack.c.l.b16 %v8225
        %v8361 = vunpack.c.h.b16 %v8225
        %v8362 = vunpack.c.l.b16 %v8226
        %v8363 = vunpack.c.h.b16 %v8226
        %v8364 = vunpack.c.l.b16 %v8227
        %v8365 = vunpack.c.h.b16 %v8227
        %v8366 = vunpack.c.l.b16 %v8228
        %v8367 = vunpack.c.h.b16 %v8228
        %v8368 = vunpack.c.l.b16 %v8229
        %v8369 = vunpack.c.h.b16 %v8229
        %v8370 = vunpack.c.l.b16 %v8230
        %v8371 = vunpack.c.h.b16 %v8230
        %v8372 = vunpack.c.l.b16 %v8231
        %v8373 = vunpack.c.h.b16 %v8231
        %v8374 = vunpack.c.l.b16 %v8232
        %v8375 = vunpack.c.h.b16 %v8232
        %v8376 = vunpack.c.l.b16 %v8233
        %v8377 = vunpack.c.h.b16 %v8233
        %v8378 = vunpack.c.l.b16 %v8234
        %v8379 = vunpack.c.h.b16 %v8234
        %v8380 = vunpack.c.l.b16 %v8235
        %v8381 = vunpack.c.h.b16 %v8235
        %v8382 = vunpack.c.l.b16 %v8236
        %v8383 = vunpack.c.h.b16 %v8236
        %v8384 = vunpack.c.l.b16 %v8237
        %v8385 = vunpack.c.h.b16 %v8237
        %v8386 = vunpack.c.l.b16 %v8238
        %v8387 = vunpack.c.h.b16 %v8238
        %v8388 = vunpack.c.l.b16 %v8239
        %v8389 = vunpack.c.h.b16 %v8239
        %v8390 = vunpack.c.l.b16 %v8240
        %v8391 = vunpack.c.h.b16 %v8240
        %v8392 = vunpack.c.l.b16 %v8241
        %v8393 = vunpack.c.h.b16 %v8241
        %v8394 = vunpack.c.l.b16 %v8242
        %v8395 = vunpack.c.h.b16 %v8242
        %v8396 = vunpack.c.l.b16 %v8243
        %v8397 = vunpack.c.h.b16 %v8243
        %v8398 = vunpack.c.l.b16 %v8244
        %v8399 = vunpack.c.h.b16 %v8244
        %v8400 = vunpack.c.l.b16 %v8245
        %v8401 = vunpack.c.h.b16 %v8245
        %v8402 = vunpack.c.l.b16 %v8246
        %v8403 = vunpack.c.h.b16 %v8246
        %v8404 = vunpack.c.l.b16 %v8247
        %v8405 = vunpack.c.h.b16 %v8247
        %v8406 = vunpack.c.l.b16 %v8248
        %v8407 = vunpack.c.h.b16 %v8248
        %v8408 = vunpack.c.l.b16 %v8249
        %v8409 = vunpack.c.h.b16 %v8249
        %v8410 = vunpack.c.l.b16 %v8250
        %v8411 = vunpack.c.h.b16 %v8250
        %v8412 = vunpack.c.l.b16 %v8251
        %v8413 = vunpack.c.h.b16 %v8251
        %v8414 = vunpack.c.l.b16 %v8252
        %v8415 = vunpack.c.h.b16 %v8252
        %v8416 = vunpack.c.l.b16 %v8253
        %v8417 = vunpack.c.h.b16 %v8253
        %v8418 = vunpack.c.l.b16 %v8254
        %v8419 = vunpack.c.h.b16 %v8254
        %v8420 = vunpack.c.l.b16 %v8255
        %v8421 = vunpack.c.h.b16 %v8255
        %v8422 = vunpack.c.l.b16 %v8256
        %v8423 = vunpack.c.h.b16 %v8256
        %v8424 = vunpack.c.l.b16 %v8257
        %v8425 = vunpack.c.h.b16 %v8257
        %v8426 = vunpack.c.l.b16 %v8258
        %v8427 = vunpack.c.h.b16 %v8258
        %v8428 = vunpack.c.l.b16 %v8259
        %v8429 = vunpack.c.h.b16 %v8259
        %v8430 = vunpack.c.l.b16 %v8260
        %v8431 = vunpack.c.h.b16 %v8260
        %v8432 = vunpack.c.l.b16 %v8261
        %v8433 = vunpack.c.h.b16 %v8261
        %v8434 = vunpack.c.l.b16 %v8262
        %v8435 = vunpack.c.h.b16 %v8262
        %v8436 = vunpack.c.l.b16 %v8263
        %v8437 = vunpack.c.h.b16 %v8263
        %v8438 = vunpack.c.l.b16 %v8264
        %v8439 = vunpack.c.h.b16 %v8264
        %v8440 = vunpack.c.l.b16 %v8265
        %v8441 = vunpack.c.h.b16 %v8265
        %v8442 = vunpack.c.l.b16 %v8266
        %v8443 = vunpack.c.h.b16 %v8266
        %v8444 = vunpack.c.l.b16 %v8267
        %v8445 = vunpack.c.h.b16 %v8267
        %v8446 = vunpack.c.l.b16 %v8268
        %v8447 = vunpack.c.h.b16 %v8268
        %v8448 = vunpack.c.l.b16 %v8269
        %v8449 = vunpack.c.h.b16 %v8269
        %v8450 = vunpack.c.l.b16 %v8270
        %v8451 = vunpack.c.h.b16 %v8270
        %v8452 = vunpack.c.l.b16 %v8271
        %v8453 = vunpack.c.h.b16 %v8271
        %v8454 = vunpack.c.l.b16 %v8272
        %v8455 = vunpack.c.h.b16 %v8272
        %v8456 = vunpack.c.l.b16 %v8273
        %v8457 = vunpack.c.h.b16 %v8273
        %v8458 = vunpack.c.l.b16 %v8274
        %v8459 = vunpack.c.h.b16 %v8274
        %v8460 = vunpack.c.l.b16 %v8275
        %v8461 = vunpack.c.h.b16 %v8275
        %v8462 = vunpack.c.l.b16 %v8276
        %v8463 = vunpack.c.h.b16 %v8276
        %v8464 = vunpack.c.l.b16 %v8277
        %v8465 = vunpack.c.h.b16 %v8277
        %v8466 = vunpack.c.l.b16 %v8278
        %v8467 = vunpack.c.h.b16 %v8278
        %v8468 = vunpack.c.l.b16 %v8279
        %v8469 = vunpack.c.h.b16 %v8279
        %v8470 = vunpack.c.l.b16 %v8280
        %v8471 = vunpack.c.h.b16 %v8280
        %v8472 = vunpack.c.l.b16 %v8281
        %v8473 = vunpack.c.h.b16 %v8281
        %v8474 = vunpack.c.l.b16 %v8282
        %v8475 = vunpack.c.h.b16 %v8282
        %v8476 = vpack.c.b16 %v8350, %v8348
        %v8477 = vpack.c.b16 %v8351, %v8349
        %v8478 = vpack.c.b16 %v8354, %v8352
        %v8479 = vpack.c.b16 %v8355, %v8353
        %v8480 = vpack.c.b16 %v8358, %v8356
        %v8481 = vpack.c.b16 %v8359, %v8357
        %v8482 = vpack.c.b16 %v8362, %v8360
        %v8483 = vpack.c.b16 %v8363, %v8361
        %v8484 = vpack.c.b16 %v8366, %v8364
        %v8485 = vpack.c.b16 %v8367, %v8365
        %v8486 = vpack.c.b16 %v8370, %v8368
        %v8487 = vpack.c.b16 %v8371, %v8369
        %v8488 = vpack.c.b16 %v8374, %v8372
        %v8489 = vpack.c.b16 %v8375, %v8373
        %v8490 = vpack.c.b16 %v8378, %v8376
        %v8491 = vpack.c.b16 %v8379, %v8377
        %v8492 = vpack.c.b16 %v8382, %v8380
        %v8493 = vpack.c.b16 %v8383, %v8381
        %v8494 = vpack.c.b16 %v8386, %v8384
        %v8495 = vpack.c.b16 %v8387, %v8385
        %v8496 = vpack.c.b16 %v8390, %v8388
        %v8497 = vpack.c.b16 %v8391, %v8389
        %v8498 = vpack.c.b16 %v8394, %v8392
        %v8499 = vpack.c.b16 %v8395, %v8393
        %v8500 = vpack.c.b16 %v8398, %v8396
        %v8501 = vpack.c.b16 %v8399, %v8397
        %v8502 = vpack.c.b16 %v8402, %v8400
        %v8503 = vpack.c.b16 %v8403, %v8401
        %v8504 = vpack.c.b16 %v8406, %v8404
        %v8505 = vpack.c.b16 %v8407, %v8405
        %v8506 = vpack.c.b16 %v8410, %v8408
        %v8507 = vpack.c.b16 %v8411, %v8409
        %v8508 = vpack.c.b16 %v8414, %v8412
        %v8509 = vpack.c.b16 %v8415, %v8413
        %v8510 = vpack.c.b16 %v8418, %v8416
        %v8511 = vpack.c.b16 %v8419, %v8417
        %v8512 = vpack.c.b16 %v8422, %v8420
        %v8513 = vpack.c.b16 %v8423, %v8421
        %v8514 = vpack.c.b16 %v8426, %v8424
        %v8515 = vpack.c.b16 %v8427, %v8425
        %v8516 = vpack.c.b16 %v8430, %v8428
        %v8517 = vpack.c.b16 %v8431, %v8429
        %v8518 = vpack.c.b16 %v8434, %v8432
        %v8519 = vpack.c.b16 %v8435, %v8433
        %v8520 = vpack.c.b16 %v8438, %v8436
        %v8521 = vpack.c.b16 %v8439, %v8437
        %v8522 = vpack.c.b16 %v8442, %v8440
        %v8523 = vpack.c.b16 %v8443, %v8441
        %v8524 = vpack.c.b16 %v8446, %v8444
        %v8525 = vpack.c.b16 %v8447, %v8445
        %v8526 = vpack.c.b16 %v8450, %v8448
        %v8527 = vpack.c.b16 %v8451, %v8449
        %v8528 = vpack.c.b16 %v8454, %v8452
        %v8529 = vpack.c.b16 %v8455, %v8453
        %v8530 = vpack.c.b16 %v8458, %v8456
        %v8531 = vpack.c.b16 %v8459, %v8457
        %v8532 = vpack.c.b16 %v8462, %v8460
        %v8533 = vpack.c.b16 %v8463, %v8461
        %v8534 = vpack.c.b16 %v8466, %v8464
        %v8535 = vpack.c.b16 %v8467, %v8465
        %v8536 = vpack.c.b16 %v8470, %v8468
        %v8537 = vpack.c.b16 %v8471, %v8469
        %v8538 = vpack.c.b16 %v8474, %v8472
        %v8539 = vpack.c.b16 %v8475, %v8473
        %v8605 = vperm.slane %v8283, 0
        %v8606 = vperm.slane %v8283, 1
        %8609 = vmatpush.bf16.msra.mxu0 %v8490
        %8610 = vmatpush.bf16.msra.mxu0 %v8488
        %8611 = vmatpush.bf16.msra.mxu0 %v8486
        %8612 = vmatpush.bf16.msra.mxu0 %v8484
        %8613 = vmatpush.bf16.msra.mxu0 %v8482
        %8614 = vmatpush.bf16.msra.mxu0 %v8480
        %8615 = vmatpush.bf16.msra.mxu0 %v8478
        %8616 = vmatpush.bf16.msra.mxu0 %v8476
        %8617 = vmatmul.bf16.gmra.mxu0 %v8215
        %v8618 = vpop.f32.mrf.mxu0
        %v8619 = vadd.f32 %v8605, %v8618
        %v8620 = vpop.f32.mrf.mxu0
        %8621 = vdwg.mxu0
        %8622 = vmatpush.bf16.msra.mxu0 %v8506
        %8623 = vmatpush.bf16.msra.mxu0 %v8504
        %8624 = vmatpush.bf16.msra.mxu0 %v8502
        %8625 = vmatpush.bf16.msra.mxu0 %v8500
        %8626 = vmatpush.bf16.msra.mxu0 %v8498
        %8627 = vmatpush.bf16.msra.mxu0 %v8496
        %8628 = vmatpush.bf16.msra.mxu0 %v8494
        %8629 = vmatpush.bf16.msra.mxu0 %v8492
        %8630 = vmatmul.bf16.gmra.mxu0 %v8216
        %v8631 = vpop.f32.mrf.mxu0
        %v8632 = vadd.f32 %v8619, %v8631
        %v8633 = vpop.f32.mrf.mxu0
        %8634 = vdwg.mxu0
        %8635 = vmatpush.bf16.msra.mxu0 %v8522
        %8636 = vmatpush.bf16.msra.mxu0 %v8520
        %8637 = vmatpush.bf16.msra.mxu0 %v8518
        %8638 = vmatpush.bf16.msra.mxu0 %v8516
        %8639 = vmatpush.bf16.msra.mxu0 %v8514
        %8640 = vmatpush.bf16.msra.mxu0 %v8512
        %8641 = vmatpush.bf16.msra.mxu0 %v8510
        %8642 = vmatpush.bf16.msra.mxu0 %v8508
        %8643 = vmatmul.bf16.gmra.mxu0 %v8217
        %v8644 = vpop.f32.mrf.mxu0
        %v8645 = vadd.f32 %v8632, %v8644
        %v8646 = vpop.f32.mrf.mxu0
        %8647 = vdwg.mxu0
        %8648 = vmatpush.bf16.msra.mxu0 %v8538
        %8649 = vmatpush.bf16.msra.mxu0 %v8536
        %8650 = vmatpush.bf16.msra.mxu0 %v8534
        %8651 = vmatpush.bf16.msra.mxu0 %v8532
        %8652 = vmatpush.bf16.msra.mxu0 %v8530
        %8653 = vmatpush.bf16.msra.mxu0 %v8528
        %8654 = vmatpush.bf16.msra.mxu0 %v8526
        %8655 = vmatpush.bf16.msra.mxu0 %v8524
        %8656 = vmatmul.bf16.gmra.mxu0 %v8218
        %v8657 = vpop.f32.mrf.mxu0
        %v8658 = vadd.f32 %v8645, %v8657
        %v8659 = vpop.f32.mrf.mxu0
        %8660 = vdwg.mxu0
        %8661 = vmatpush.bf16.msra.mxu0 %v8491
        %8662 = vmatpush.bf16.msra.mxu0 %v8489
        %8663 = vmatpush.bf16.msra.mxu0 %v8487
        %8664 = vmatpush.bf16.msra.mxu0 %v8485
        %8665 = vmatpush.bf16.msra.mxu0 %v8483
        %8666 = vmatpush.bf16.msra.mxu0 %v8481
        %8667 = vmatpush.bf16.msra.mxu0 %v8479
        %8668 = vmatpush.bf16.msra.mxu0 %v8477
        %8669 = vmatmul.bf16.gmra.mxu0 %v8215
        %v8670 = vpop.f32.mrf.mxu0
        %v8671 = vadd.f32 %v8606, %v8670
        %v8672 = vpop.f32.mrf.mxu0
        %8673 = vdwg.mxu0
        %8674 = vmatpush.bf16.msra.mxu0 %v8507
        %8675 = vmatpush.bf16.msra.mxu0 %v8505
        %8676 = vmatpush.bf16.msra.mxu0 %v8503
        %8677 = vmatpush.bf16.msra.mxu0 %v8501
        %8678 = vmatpush.bf16.msra.mxu0 %v8499
        %8679 = vmatpush.bf16.msra.mxu0 %v8497
        %8680 = vmatpush.bf16.msra.mxu0 %v8495
        %8681 = vmatpush.bf16.msra.mxu0 %v8493
        %8682 = vmatmul.bf16.gmra.mxu0 %v8216
        %v8683 = vpop.f32.mrf.mxu0
        %v8684 = vadd.f32 %v8671, %v8683
        %v8685 = vpop.f32.mrf.mxu0
        %8686 = vdwg.mxu0
        %8687 = vmatpush.bf16.msra.mxu0 %v8523
        %8688 = vmatpush.bf16.msra.mxu0 %v8521
        %8689 = vmatpush.bf16.msra.mxu0 %v8519
        %8690 = vmatpush.bf16.msra.mxu0 %v8517
        %8691 = vmatpush.bf16.msra.mxu0 %v8515
        %8692 = vmatpush.bf16.msra.mxu0 %v8513
        %8693 = vmatpush.bf16.msra.mxu0 %v8511
        %8694 = vmatpush.bf16.msra.mxu0 %v8509
        %8695 = vmatmul.bf16.gmra.mxu0 %v8217
        %v8696 = vpop.f32.mrf.mxu0
        %v8697 = vadd.f32 %v8684, %v8696
        %v8698 = vpop.f32.mrf.mxu0
        %8699 = vdwg.mxu0
        %8700 = vmatpush.bf16.msra.mxu0 %v8539
        %8701 = vmatpush.bf16.msra.mxu0 %v8537
        %8702 = vmatpush.bf16.msra.mxu0 %v8535
        %8703 = vmatpush.bf16.msra.mxu0 %v8533
        %8704 = vmatpush.bf16.msra.mxu0 %v8531
        %8705 = vmatpush.bf16.msra.mxu0 %v8529
        %8706 = vmatpush.bf16.msra.mxu0 %v8527
        %8707 = vmatpush.bf16.msra.mxu0 %v8525
        %8708 = vmatmul.bf16.gmra.mxu0 %v8218
        %v8709 = vpop.f32.mrf.mxu0
        %v8710 = vadd.f32 %v8697, %v8709
        %v8711 = vpop.f32.mrf.mxu0
        %8712 = vdwg.mxu0
        %v8713 = vmax.f32 %v8658, 0.0
        %v8714 = vmax.f32 %v8710, 0.0
        %v8715 = vpack.c.bf16 %v8713, %v8713
        %v8716 = vpack.c.bf16 %v8714, %v8714
        %v8717 = vld [vmem:[#allocation63] sm:$0xf]
        %v8718 = vld [vmem:[#allocation63 + $0x4] sm:$0xf]
        %v8719 = vld [vmem:[#allocation63 + $0x8] sm:$0xf]
        %v8720 = vld [vmem:[#allocation63 + $0xc] sm:$0xf]
        %v8721 = vld [vmem:[#allocation63 + $0x10] sm:$0xf]
        %v8722 = vld [vmem:[#allocation63 + $0x14] sm:$0xf]
        %v8723 = vld [vmem:[#allocation63 + $0x18] sm:$0xf]
        %v8724 = vld [vmem:[#allocation63 + $0x1c] sm:$0xf]
        %v8725 = vld [vmem:[#allocation63 + $0x20] sm:$0xf]
        %v8726 = vld [vmem:[#allocation63 + $0x24] sm:$0xf]
        %v8727 = vld [vmem:[#allocation63 + $0x28] sm:$0xf]
        %v8728 = vld [vmem:[#allocation63 + $0x2c] sm:$0xf]
        %v8729 = vld [vmem:[#allocation63 + $0x30] sm:$0xf]
        %v8730 = vld [vmem:[#allocation63 + $0x34] sm:$0xf]
        %v8731 = vld [vmem:[#allocation63 + $0x38] sm:$0xf]
        %v8732 = vld [vmem:[#allocation63 + $0x3c] sm:$0xf]
        %v8733 = vld [vmem:[#allocation63 + $0x40] sm:$0xf]
        %v8734 = vld [vmem:[#allocation63 + $0x44] sm:$0xf]
        %v8735 = vld [vmem:[#allocation63 + $0x48] sm:$0xf]
        %v8736 = vld [vmem:[#allocation63 + $0x4c] sm:$0xf]
        %v8737 = vld [vmem:[#allocation63 + $0x50] sm:$0xf]
        %v8738 = vld [vmem:[#allocation63 + $0x54] sm:$0xf]
        %v8739 = vld [vmem:[#allocation63 + $0x58] sm:$0xf]
        %v8740 = vld [vmem:[#allocation63 + $0x5c] sm:$0xf]
        %v8741 = vld [vmem:[#allocation63 + $0x60] sm:$0xf]
        %v8742 = vld [vmem:[#allocation63 + $0x64] sm:$0xf]
        %v8743 = vld [vmem:[#allocation63 + $0x68] sm:$0xf]
        %v8744 = vld [vmem:[#allocation63 + $0x6c] sm:$0xf]
        %v8745 = vld [vmem:[#allocation63 + $0x70] sm:$0xf]
        %v8746 = vld [vmem:[#allocation63 + $0x74] sm:$0xf]
        %v8747 = vld [vmem:[#allocation63 + $0x78] sm:$0xf]
        %v8748 = vld [vmem:[#allocation63 + $0x7c] sm:$0xf]
        %v8749 = vld [vmem:[%s107] sm:$0x1]
        %v8782 = vunpack.c.l.b16 %v8717
        %v8783 = vunpack.c.l.b16 %v8718
        %v8784 = vunpack.c.l.b16 %v8719
        %v8785 = vunpack.c.l.b16 %v8720
        %v8786 = vunpack.c.l.b16 %v8721
        %v8787 = vunpack.c.l.b16 %v8722
        %v8788 = vunpack.c.l.b16 %v8723
        %v8789 = vunpack.c.l.b16 %v8724
        %v8790 = vunpack.c.l.b16 %v8725
        %v8791 = vunpack.c.l.b16 %v8726
        %v8792 = vunpack.c.l.b16 %v8727
        %v8793 = vunpack.c.l.b16 %v8728
        %v8794 = vunpack.c.l.b16 %v8729
        %v8795 = vunpack.c.l.b16 %v8730
        %v8796 = vunpack.c.l.b16 %v8731
        %v8797 = vunpack.c.l.b16 %v8732
        %v8798 = vunpack.c.l.b16 %v8733
        %v8799 = vunpack.c.l.b16 %v8734
        %v8800 = vunpack.c.l.b16 %v8735
        %v8801 = vunpack.c.l.b16 %v8736
        %v8802 = vunpack.c.l.b16 %v8737
        %v8803 = vunpack.c.l.b16 %v8738
        %v8804 = vunpack.c.l.b16 %v8739
        %v8805 = vunpack.c.l.b16 %v8740
        %v8806 = vunpack.c.l.b16 %v8741
        %v8807 = vunpack.c.l.b16 %v8742
        %v8808 = vunpack.c.l.b16 %v8743
        %v8809 = vunpack.c.l.b16 %v8744
        %v8810 = vunpack.c.l.b16 %v8745
        %v8811 = vunpack.c.l.b16 %v8746
        %v8812 = vunpack.c.l.b16 %v8747
        %v8813 = vunpack.c.l.b16 %v8748
        %v8814 = vpack.c.b16 %v8783, %v8782
        %v8815 = vpack.c.b16 %v8785, %v8784
        %v8816 = vpack.c.b16 %v8787, %v8786
        %v8817 = vpack.c.b16 %v8789, %v8788
        %v8818 = vpack.c.b16 %v8791, %v8790
        %v8819 = vpack.c.b16 %v8793, %v8792
        %v8820 = vpack.c.b16 %v8795, %v8794
        %v8821 = vpack.c.b16 %v8797, %v8796
        %v8822 = vpack.c.b16 %v8799, %v8798
        %v8823 = vpack.c.b16 %v8801, %v8800
        %v8824 = vpack.c.b16 %v8803, %v8802
        %v8825 = vpack.c.b16 %v8805, %v8804
        %v8826 = vpack.c.b16 %v8807, %v8806
        %v8827 = vpack.c.b16 %v8809, %v8808
        %v8828 = vpack.c.b16 %v8811, %v8810
        %v8829 = vpack.c.b16 %v8813, %v8812
        %8846 = vmatpush.bf16.msra.mxu0 %v8821
        %8847 = vmatpush.bf16.msra.mxu0 %v8820
        %8848 = vmatpush.bf16.msra.mxu0 %v8819
        %8849 = vmatpush.bf16.msra.mxu0 %v8818
        %8850 = vmatpush.bf16.msra.mxu0 %v8817
        %8851 = vmatpush.bf16.msra.mxu0 %v8816
        %8852 = vmatpush.bf16.msra.mxu0 %v8815
        %8853 = vmatpush.bf16.msra.mxu0 %v8814
        %8854 = vmatmul.bf16.gmra.mxu0 %v8715
        %v8855 = vpop.f32.mrf.mxu0
        %v8856 = vadd.f32 %v8749, %v8855
        %v8857 = vpop.f32.mrf.mxu0
        %8858 = vdwg.mxu0
        %8859 = vmatpush.bf16.msra.mxu0 %v8829
        %8860 = vmatpush.bf16.msra.mxu0 %v8828
        %8861 = vmatpush.bf16.msra.mxu0 %v8827
        %8862 = vmatpush.bf16.msra.mxu0 %v8826
        %8863 = vmatpush.bf16.msra.mxu0 %v8825
        %8864 = vmatpush.bf16.msra.mxu0 %v8824
        %8865 = vmatpush.bf16.msra.mxu0 %v8823
        %8866 = vmatpush.bf16.msra.mxu0 %v8822
        %8867 = vmatmul.bf16.gmra.mxu0 %v8716
        %v8868 = vpop.f32.mrf.mxu0
        %v8869 = vadd.f32 %v8856, %v8868
        %v8870 = vpop.f32.mrf.mxu0
        %8871 = vdwg.mxu0
        %v8872 = vld [vmem:[%s109] sm:$0xf]
        %v8874 = vsel %vm2342, %v5664, 0
        %vm8876 = vcmask 1043456
        %v8878 = vsel %vm8876, %v8872, 0
        %8880 = vmatpush.msra.mxu0 0.0
        %8881 = vmatpush.msra.mxu0 0.0
        %8882 = vmatpush.msra.mxu0 0.0
        %8883 = vmatpush.msra.mxu0 0.0
        %8884 = vmatpush.msra.mxu0 0.0
        %8885 = vmatpush.msra.mxu0 0.0
        %8886 = vmatpush.msra.mxu0 0.0
        %8887 = vmatpush.msra.mxu0 0.0
        %8888 = vmatpush.msra.mxu0 0.0
        %8889 = vmatpush.msra.mxu0 0.0
        %8890 = vmatpush.msra.mxu0 0.0
        %8891 = vmatpush.msra.mxu0 0.0
        %8892 = vmatpush.msra.mxu0 0.0
        %8893 = vmatpush.msra.mxu0 0.0
        %8894 = vmatpush.msra.mxu0 0.0
        %8895 = vmatpush.msra.mxu0 %v8878
        %8896 = vmatmul.f32.gmra.mxu0 %v8874
        %v8897 = vpop.f32.mrf.mxu0
        %v8898 = vadd.f32 0.0, %v8897
        %8899 = vdwg.mxu0
        %v8900 = vadd.f32 %v8869, %v8898
        %8901 = vst [vmem:[%s2310] sm:$0x1] %v8900
        %p8902 = scmp.lt.s32.totalorder %s146, 1
        %s8903 = scalar_select %p8902, %s146, 1
        %s8904 = smul.addr %s8903, 16
        %s8905 = smul.addr %s8904, 8
        %s8906 = scalar_lea.vmem %s111, %s8905
        %p8907 = scmp.lt.s32.totalorder %s146, 1
        %s8908 = scalar_select %p8907, %s146, 1
        %s8909 = scalar_lea.vmem %s113, %s8908
        // Predicated region
        $region405: #{fpointnet_forward.1} parent=239 // pred_check
          %p8910 = pneg %p1329
        $region406: #{fpointnet_forward.1} parent=239 // pred_check_branch
          %8912 = sbr.rel (%p8910) target = $region408
        $region407: #{fpointnet_forward.1} parent=239 // pred_region
          _
        $region408: #{fpointnet_forward.1} parent=239 // pred_fallthru
          _
        // Predicated region
        $region409: #{fpointnet_forward.1} parent=239 // pred_check
          %p8913 = pneg %p1355
        $region410: #{fpointnet_forward.1} parent=239 // pred_check_branch
          %8915 = sbr.rel (%p8913) target = $region412
        $region411: #{fpointnet_forward.1} parent=239 // pred_region
          _
        $region412: #{fpointnet_forward.1} parent=239 // pred_fallthru
          _
      $region240: #{fpointnet_forward.1} parent=5 // pred_fallthru
        _
      %p8916 = scmp.le.s32.totalorder 2, %s141
      // Predicated region
      $region413: #{fpointnet_forward.1} parent=5 // pred_check
        %p8917 = pneg %p8916
      $region414: #{fpointnet_forward.1} parent=5 // pred_check_branch
        %8919 = sbr.rel (%p8917) target = $region416
      $region415: #{fpointnet_forward.1} parent=5 // pred_region
        %s8920 = ssub.s32 %s141, 2
        // Predicated region
        $region417: #{fpointnet_forward.1} parent=415 // pred_check
          %p8921 = pneg %p1335
        $region418: #{fpointnet_forward.1} parent=415 // pred_check_branch
          %8923 = sbr.rel (%p8921) target = $region420
        $region419: #{fpointnet_forward.1} parent=415 // pred_region
          %p8924 = scmp.lt.s32.totalorder %s147, 1
          %s8925 = scalar_select %p8924, %s147, 1
          %s8926 = smul.addr %s8925, 16
          %s8927 = smul.addr %s8926, 8
          %s8928 = scalar_lea.vmem %s111, %s8927
        $region420: #{fpointnet_forward.1} parent=415 // pred_fallthru
          _
        // Predicated region
        $region421: #{fpointnet_forward.1} parent=415 // pred_check
          %p8929 = pneg %p1361
        $region422: #{fpointnet_forward.1} parent=415 // pred_check_branch
          %8931 = sbr.rel (%p8929) target = $region424
        $region423: #{fpointnet_forward.1} parent=415 // pred_region
          %p8932 = scmp.lt.s32.totalorder %s147, 1
          %s8933 = scalar_select %p8932, %s147, 1
          %s8934 = scalar_lea.vmem %s113, %s8933
        $region424: #{fpointnet_forward.1} parent=415 // pred_fallthru
          _
      $region416: #{fpointnet_forward.1} parent=5 // pred_fallthru
        _
    $region6: #{fpointnet_forward.1} parent=1 // loop_footer
      %s145 = sadd.s32 1, %s141
    $region7: #{fpointnet_forward.1} parent=1 // loop_footer_branch
      %140 = sbr.rel target = $region3
    $region8: #{fpointnet_forward.1} parent=1 // loop_exit
      _
    %8935 = vsyncpa [#allocation3], 1
    %s8936 = scalar_lea.sflag [#allocation3], 1
    %8937 = vsyncpa %s8936, 1
    %8938 = vsyncpa [#allocation5], 1
    %8939 = vsyncpa [#allocation8], 1
    %8940 = vsyncpa [#allocation11], 1
    %8941 = vsyncpa [#allocation14], 1
    %8942 = vsyncpa [#allocation17], 1
    %8943 = vsyncpa [#allocation20], 1
    %8944 = vsyncpa [#allocation23], 1
    %8945 = vsyncpa [#allocation26], 1
    %8946 = vsyncpa [#allocation29], 1
    %8947 = vsyncpa [#allocation32], 1
    %8948 = vsyncpa [#allocation35], 1
    %8949 = vsyncpa [#allocation38], 1
    %8950 = vsyncpa [#allocation41], 1
    %8951 = vsyncpa [#allocation44], 1
    %8952 = vsyncpa [#allocation47], 1
    %8953 = vsyncpa [#allocation50], 1
    %8954 = vsyncpa [#allocation53], 1
    %8955 = vsyncpa [#allocation56], 1
    %8956 = vsyncpa [#allocation59], 1
    %8957 = vsyncpa [#allocation62], 1

</llo_original>
